<compile_context>
chip_gen: v6e
topology: v6e:2x2x1
jax: 0.10.0
libtpu: 0.0.40
codegen_flags: <defaults>
</compile_context>

<pallas_src>
import jax
import jax.numpy as jnp
from jax.experimental import pallas as pl
from jax.experimental.pallas import tpu as pltpu

# Layer sizes of the autoencoder MLP.
DIMS = [28 ** 2, 512, 256, 128, 256, 512, 28 ** 2]
LANE = 128
D_PAD = ((DIMS[0] + LANE - 1) // LANE) * LANE  # 896 = 7 * 128
_SUB = 16  # batch-tile granularity: bf16 sublane packing (16 rows / vreg), also /8 safe


def _round_up(n, m):
    return ((n + m - 1) // m) * m


def _num_tensorcores():
    """Best-effort TensorCore-per-device count (v4 / v5p / v7x expose 2 TCs per device)."""
    try:
        kind = jax.devices()[0].device_kind.lower()
    except Exception:
        return 1
    for tag in ("v7", "v5p", "v4"):
        if tag in kind:
            return 2
    return 1


def _choose_tiling(batch, requested_tb, num_cores):
    """Pick (batch_tile, padded_batch) so that:
       - the tile is at most `requested_tb` rows,
       - padding never exceeds ~one tile of zero rows (no 2x over-padding),
       - the grid length is a multiple of the TensorCore count (when batch allows),
         so dimension_semantics=("parallel",) can shard across all cores."""
    b = _round_up(batch, _SUB)
    tb = max(_SUB, min(requested_tb, b))
    steps = (b + tb - 1) // tb
    if num_cores > 1 and b >= num_cores * _SUB:
        steps = _round_up(steps, num_cores)
    tb = _round_up((b + steps - 1) // steps, _SUB)
    return tb, steps * tb


def mlp_autoencoder_kernel(x_ref,
                           w1_ref, b1_ref,
                           w2_ref, b2_ref,
                           w3_ref, b3_ref,
                           w4_ref, b4_ref,
                           w5_ref, b5_ref,
                           w6_ref, b6_ref,
                           o_ref):
    """Fused 6-layer Linear+ReLU MLP on one bf16 batch tile.

    Weights are bf16 (in_features, out_features); biases are f32 (1, out_features).
    Matmuls run on the MXU at bf16 rate with f32 accumulation; bias+ReLU in f32 on the
    VPU (portable to v5e), then a single cast to bf16 feeds the next layer / the output.
    """

    def linear_relu(h_bf16, w_ref, b_ref):
        acc = jnp.dot(h_bf16, w_ref[...], preferred_element_type=jnp.float32)
        y = jnp.maximum(acc + b_ref[...], 0.0)   # (1, out) bias broadcasts over batch tile
        return y.astype(jnp.bfloat16)

    h = x_ref[...]                               # bf16, lane-dense (tb, 896)
    h = linear_relu(h, w1_ref, b1_ref)
    h = linear_relu(h, w2_ref, b2_ref)
    h = linear_relu(h, w3_ref, b3_ref)
    h = linear_relu(h, w4_ref, b4_ref)
    h = linear_relu(h, w5_ref, b5_ref)
    h = linear_relu(h, w6_ref, b6_ref)
    o_ref[...] = h                               # bf16 output tile


def init_params(key):
    """PyTorch nn.Linear default init (U(-1/sqrt(in), 1/sqrt(in))), f32, unpadded.

    Weights are stored already transposed to (in_features, out_features)."""
    params = []
    for i in range(len(DIMS) - 1):
        fan_in, fan_out = DIMS[i], DIMS[i + 1]
        key, kw, kb = jax.random.split(key, 3)
        bound = 1.0 / (fan_in ** 0.5)
        w = jax.random.uniform(kw, (fan_in, fan_out), jnp.float32, -bound, bound)
        b = jax.random.uniform(kb, (1, fan_out), jnp.float32, -bound, bound)
        params.append((w, b))
    return params


def prepare_kernel_params(params):
    """Zero-pad layer-1 rows and layer-6 cols/bias from 784 -> 896, cast weights to bf16."""
    prepped = []
    n = len(params)
    for i, (w, b) in enumerate(params):
        if i == 0:
            w = jnp.pad(w, ((0, D_PAD - w.shape[0]), (0, 0)))
        if i == n - 1:
            w = jnp.pad(w, ((0, 0), (0, D_PAD - w.shape[1])))
            b = jnp.pad(b, ((0, 0), (0, D_PAD - b.shape[1])))
        prepped.append((w.astype(jnp.bfloat16), b.astype(jnp.float32)))
    return prepped


def mlp_autoencoder(x, kernel_params, tb=512, num_cores=None):
    """x: (batch, 784) f32. kernel_params: output of prepare_kernel_params.

    Returns (batch, 784) in x.dtype. The kernel itself runs bf16-in / bf16-out."""
    if num_cores is None:
        num_cores = _num_tensorcores()
    batch = x.shape[0]
    tb_eff, padded_batch = _choose_tiling(batch, tb, num_cores)

    # Zero-pad input to (padded_batch, 896) in bf16: exact vs. the padded zero weight
    # rows of W1, and the padded batch rows are sliced away below.
    x_p = jnp.zeros((padded_batch, D_PAD), jnp.bfloat16)
    x_p = x_p.at[:batch, :DIMS[0]].set(x.astype(jnp.bfloat16))

    flat_params = [p for wb in kernel_params for p in wb]

    grid = (padded_batch // tb_eff,)
    # Activation tile moves with the grid; weights/biases use a constant index_map so
    # they are loaded once and stay resident in VMEM across all batch tiles.
    in_specs = [pl.BlockSpec((tb_eff, D_PAD), lambda b: (b, 0))]
    for p in flat_params:
        in_specs.append(pl.BlockSpec(p.shape, lambda b: (0, 0)))

    out_shape = jax.ShapeDtypeStruct((padded_batch, D_PAD), jnp.bfloat16)
    out_spec = pl.BlockSpec((tb_eff, D_PAD), lambda b: (b, 0))

    out = pl.pallas_call(
        mlp_autoencoder_kernel,
        out_shape=out_shape,
        grid=grid,
        in_specs=in_specs,
        out_specs=out_spec,
        compiler_params=pltpu.CompilerParams(
            dimension_semantics=("parallel",)),
    )(x_p, *flat_params)

    return out[:batch, :DIMS[-1]].astype(x.dtype)


def reference_forward(x, params):
    """Plain-JAX reference mirroring the kernel numerics: bf16 activations, bf16 weights,
    f32 MXU accumulation, f32 bias+ReLU, cast back to bf16 between layers."""
    h = x.astype(jnp.bfloat16)
    for w, b in params:
        acc = jnp.dot(h, w.astype(jnp.bfloat16), preferred_element_type=jnp.float32)
        h = jnp.maximum(acc + b.astype(jnp.float32), 0.0).astype(jnp.bfloat16)
    return h.astype(jnp.float32)


if __name__ == "__main__":
    key = jax.random.PRNGKey(0)
    key, kx = jax.random.split(key)

    batch = 256
    x = jax.random.normal(kx, (batch, DIMS[0]), jnp.float32)

    params = init_params(key)                      # f32, unpadded (PyTorch-equivalent)
    kernel_params = prepare_kernel_params(params)  # bf16 weights, padded 784 -> 896

    out = mlp_autoencoder(x, kernel_params, tb=512)
    out = jax.block_until_ready(out)

    # Sanity check against a plain-JAX reference using the same bf16/f32 numerics.
    ref = reference_forward(x, params)
    assert out.shape == (batch, DIMS[-1])
    assert jnp.allclose(out, ref, atol=2e-2, rtol=2e-2), "mismatch vs reference"

    print("KERNEL_OK")
</pallas_src>

<mosaic_0001>
module attributes {stable_mosaic.version = 11 : i64} {
  func.func @mlp_autoencoder_kernel(%arg0: i32, %arg1: memref<256x896xbf16, #tpu.memory_space<vmem>>, %arg2: memref<896x512xbf16, #tpu.memory_space<vmem>>, %arg3: memref<1x512xf32, #tpu.memory_space<vmem>>, %arg4: memref<512x256xbf16, #tpu.memory_space<vmem>>, %arg5: memref<1x256xf32, #tpu.memory_space<vmem>>, %arg6: memref<256x128xbf16, #tpu.memory_space<vmem>>, %arg7: memref<1x128xf32, #tpu.memory_space<vmem>>, %arg8: memref<128x256xbf16, #tpu.memory_space<vmem>>, %arg9: memref<1x256xf32, #tpu.memory_space<vmem>>, %arg10: memref<256x512xbf16, #tpu.memory_space<vmem>>, %arg11: memref<1x512xf32, #tpu.memory_space<vmem>>, %arg12: memref<512x896xbf16, #tpu.memory_space<vmem>>, %arg13: memref<1x896xf32, #tpu.memory_space<vmem>>, %arg14: memref<256x896xbf16, #tpu.memory_space<vmem>>) attributes {dimension_semantics = [#tpu.dimension_semantics<parallel>], iteration_bounds = array<i64: 1>, scalar_prefetch = 0 : i64, scratch_operands = 0 : i64, tpu.core_type = #tpu.core_type<tc>, window_params = [{transform_indices = @transform_0, window_bounds = array<i64: 256, 896>}, {pipeline_mode = #tpu.pipeline_mode<synchronous>, transform_indices = @transform_1, window_bounds = array<i64: 896, 512>}, {pipeline_mode = #tpu.pipeline_mode<synchronous>, transform_indices = @transform_2, window_bounds = array<i64: 1, 512>}, {pipeline_mode = #tpu.pipeline_mode<synchronous>, transform_indices = @transform_3, window_bounds = array<i64: 512, 256>}, {pipeline_mode = #tpu.pipeline_mode<synchronous>, transform_indices = @transform_4, window_bounds = array<i64: 1, 256>}, {pipeline_mode = #tpu.pipeline_mode<synchronous>, transform_indices = @transform_5, window_bounds = array<i64: 256, 128>}, {pipeline_mode = #tpu.pipeline_mode<synchronous>, transform_indices = @transform_6, window_bounds = array<i64: 1, 128>}, {pipeline_mode = #tpu.pipeline_mode<synchronous>, transform_indices = @transform_7, window_bounds = array<i64: 128, 256>}, {pipeline_mode = #tpu.pipeline_mode<synchronous>, transform_indices = @transform_8, window_bounds = array<i64: 1, 256>}, {pipeline_mode = #tpu.pipeline_mode<synchronous>, transform_indices = @transform_9, window_bounds = array<i64: 256, 512>}, {pipeline_mode = #tpu.pipeline_mode<synchronous>, transform_indices = @transform_10, window_bounds = array<i64: 1, 512>}, {pipeline_mode = #tpu.pipeline_mode<synchronous>, transform_indices = @transform_11, window_bounds = array<i64: 512, 896>}, {pipeline_mode = #tpu.pipeline_mode<synchronous>, transform_indices = @transform_12, window_bounds = array<i64: 1, 896>}, {transform_indices = @transform_13, window_bounds = array<i64: 256, 896>}]} {
    %c0 = arith.constant 0 : index
    %c0_0 = arith.constant 0 : index
    %0 = vector.load %arg1[%c0, %c0_0] : memref<256x896xbf16, #tpu.memory_space<vmem>>, vector<256x896xbf16>
    %c0_1 = arith.constant 0 : index
    %c0_2 = arith.constant 0 : index
    %1 = vector.load %arg2[%c0_1, %c0_2] : memref<896x512xbf16, #tpu.memory_space<vmem>>, vector<896x512xbf16>
    %cst = arith.constant dense<0.000000e+00> : vector<256x512xf32>
    %2 = tpu.matmul %0, %1, %cst {dimension_numbers = #tpu.dot_dimension_numbers<[1], [0], [0], [1], [0, 0, 1, 1], [], []>} : vector<256x896xbf16>, vector<896x512xbf16>, vector<256x512xf32> -> vector<256x512xf32>
    %c0_3 = arith.constant 0 : index
    %c0_4 = arith.constant 0 : index
    %3 = vector.load %arg3[%c0_3, %c0_4] : memref<1x512xf32, #tpu.memory_space<vmem>>, vector<1x512xf32>
    %4 = vector.broadcast %3 : vector<1x512xf32> to vector<256x512xf32>
    %5 = arith.addf %2, %4 : vector<256x512xf32>
    %cst_5 = arith.constant 0.000000e+00 : f32
    %6 = vector.broadcast %cst_5 : f32 to vector<256x512xf32>
    %7 = arith.maximumf %5, %6 : vector<256x512xf32>
    %8 = arith.truncf %7 : vector<256x512xf32> to vector<256x512xbf16>
    %c0_6 = arith.constant 0 : index
    %c0_7 = arith.constant 0 : index
    %9 = vector.load %arg4[%c0_6, %c0_7] : memref<512x256xbf16, #tpu.memory_space<vmem>>, vector<512x256xbf16>
    %cst_8 = arith.constant dense<0.000000e+00> : vector<256x256xf32>
    %10 = tpu.matmul %8, %9, %cst_8 {dimension_numbers = #tpu.dot_dimension_numbers<[1], [0], [0], [1], [0, 0, 1, 1], [], []>} : vector<256x512xbf16>, vector<512x256xbf16>, vector<256x256xf32> -> vector<256x256xf32>
    %c0_9 = arith.constant 0 : index
    %c0_10 = arith.constant 0 : index
    %11 = vector.load %arg5[%c0_9, %c0_10] : memref<1x256xf32, #tpu.memory_space<vmem>>, vector<1x256xf32>
    %12 = vector.broadcast %11 : vector<1x256xf32> to vector<256x256xf32>
    %13 = arith.addf %10, %12 : vector<256x256xf32>
    %cst_11 = arith.constant 0.000000e+00 : f32
    %14 = vector.broadcast %cst_11 : f32 to vector<256x256xf32>
    %15 = arith.maximumf %13, %14 : vector<256x256xf32>
    %16 = arith.truncf %15 : vector<256x256xf32> to vector<256x256xbf16>
    %c0_12 = arith.constant 0 : index
    %c0_13 = arith.constant 0 : index
    %17 = vector.load %arg6[%c0_12, %c0_13] : memref<256x128xbf16, #tpu.memory_space<vmem>>, vector<256x128xbf16>
    %cst_14 = arith.constant dense<0.000000e+00> : vector<256x128xf32>
    %18 = tpu.matmul %16, %17, %cst_14 {dimension_numbers = #tpu.dot_dimension_numbers<[1], [0], [0], [1], [0, 0, 1, 1], [], []>} : vector<256x256xbf16>, vector<256x128xbf16>, vector<256x128xf32> -> vector<256x128xf32>
    %c0_15 = arith.constant 0 : index
    %c0_16 = arith.constant 0 : index
    %19 = vector.load %arg7[%c0_15, %c0_16] : memref<1x128xf32, #tpu.memory_space<vmem>>, vector<1x128xf32>
    %20 = vector.broadcast %19 : vector<1x128xf32> to vector<256x128xf32>
    %21 = arith.addf %18, %20 : vector<256x128xf32>
    %cst_17 = arith.constant 0.000000e+00 : f32
    %22 = vector.broadcast %cst_17 : f32 to vector<256x128xf32>
    %23 = arith.maximumf %21, %22 : vector<256x128xf32>
    %24 = arith.truncf %23 : vector<256x128xf32> to vector<256x128xbf16>
    %c0_18 = arith.constant 0 : index
    %c0_19 = arith.constant 0 : index
    %25 = vector.load %arg8[%c0_18, %c0_19] : memref<128x256xbf16, #tpu.memory_space<vmem>>, vector<128x256xbf16>
    %cst_20 = arith.constant dense<0.000000e+00> : vector<256x256xf32>
    %26 = tpu.matmul %24, %25, %cst_20 {dimension_numbers = #tpu.dot_dimension_numbers<[1], [0], [0], [1], [0, 0, 1, 1], [], []>} : vector<256x128xbf16>, vector<128x256xbf16>, vector<256x256xf32> -> vector<256x256xf32>
    %c0_21 = arith.constant 0 : index
    %c0_22 = arith.constant 0 : index
    %27 = vector.load %arg9[%c0_21, %c0_22] : memref<1x256xf32, #tpu.memory_space<vmem>>, vector<1x256xf32>
    %28 = vector.broadcast %27 : vector<1x256xf32> to vector<256x256xf32>
    %29 = arith.addf %26, %28 : vector<256x256xf32>
    %cst_23 = arith.constant 0.000000e+00 : f32
    %30 = vector.broadcast %cst_23 : f32 to vector<256x256xf32>
    %31 = arith.maximumf %29, %30 : vector<256x256xf32>
    %32 = arith.truncf %31 : vector<256x256xf32> to vector<256x256xbf16>
    %c0_24 = arith.constant 0 : index
    %c0_25 = arith.constant 0 : index
    %33 = vector.load %arg10[%c0_24, %c0_25] : memref<256x512xbf16, #tpu.memory_space<vmem>>, vector<256x512xbf16>
    %cst_26 = arith.constant dense<0.000000e+00> : vector<256x512xf32>
    %34 = tpu.matmul %32, %33, %cst_26 {dimension_numbers = #tpu.dot_dimension_numbers<[1], [0], [0], [1], [0, 0, 1, 1], [], []>} : vector<256x256xbf16>, vector<256x512xbf16>, vector<256x512xf32> -> vector<256x512xf32>
    %c0_27 = arith.constant 0 : index
    %c0_28 = arith.constant 0 : index
    %35 = vector.load %arg11[%c0_27, %c0_28] : memref<1x512xf32, #tpu.memory_space<vmem>>, vector<1x512xf32>
    %36 = vector.broadcast %35 : vector<1x512xf32> to vector<256x512xf32>
    %37 = arith.addf %34, %36 : vector<256x512xf32>
    %cst_29 = arith.constant 0.000000e+00 : f32
    %38 = vector.broadcast %cst_29 : f32 to vector<256x512xf32>
    %39 = arith.maximumf %37, %38 : vector<256x512xf32>
    %40 = arith.truncf %39 : vector<256x512xf32> to vector<256x512xbf16>
    %c0_30 = arith.constant 0 : index
    %c0_31 = arith.constant 0 : index
    %41 = vector.load %arg12[%c0_30, %c0_31] : memref<512x896xbf16, #tpu.memory_space<vmem>>, vector<512x896xbf16>
    %cst_32 = arith.constant dense<0.000000e+00> : vector<256x896xf32>
    %42 = tpu.matmul %40, %41, %cst_32 {dimension_numbers = #tpu.dot_dimension_numbers<[1], [0], [0], [1], [0, 0, 1, 1], [], []>} : vector<256x512xbf16>, vector<512x896xbf16>, vector<256x896xf32> -> vector<256x896xf32>
    %c0_33 = arith.constant 0 : index
    %c0_34 = arith.constant 0 : index
    %43 = vector.load %arg13[%c0_33, %c0_34] : memref<1x896xf32, #tpu.memory_space<vmem>>, vector<1x896xf32>
    %44 = vector.broadcast %43 : vector<1x896xf32> to vector<256x896xf32>
    %45 = arith.addf %42, %44 : vector<256x896xf32>
    %cst_35 = arith.constant 0.000000e+00 : f32
    %46 = vector.broadcast %cst_35 : f32 to vector<256x896xf32>
    %47 = arith.maximumf %45, %46 : vector<256x896xf32>
    %48 = arith.truncf %47 : vector<256x896xf32> to vector<256x896xbf16>
    %c0_36 = arith.constant 0 : index
    %c0_37 = arith.constant 0 : index
    %49 = vector.load %arg14[%c0_36, %c0_37] : memref<256x896xbf16, #tpu.memory_space<vmem>>, vector<256x896xbf16>
    tpu.vector_store %arg14[%c0_36, %c0_37], %48 {strides = array<i32>} : memref<256x896xbf16, #tpu.memory_space<vmem>>, vector<256x896xbf16>,
    return
  }
  func.func @transform_0(%arg0: i32) -> (i32, i32) {
    %c0_i32 = arith.constant 0 : i32
    %c0_i32_0 = arith.constant 0 : i32
    return %arg0, %c0_i32 : i32, i32
  }
  func.func @transform_1(%arg0: i32) -> (i32, i32) {
    %c0_i32 = arith.constant 0 : i32
    %c0_i32_0 = arith.constant 0 : i32
    %c0_i32_1 = arith.constant 0 : i32
    return %c0_i32, %c0_i32_0 : i32, i32
  }
  func.func @transform_2(%arg0: i32) -> (i32, i32) {
    %c0_i32 = arith.constant 0 : i32
    %c0_i32_0 = arith.constant 0 : i32
    %c0_i32_1 = arith.constant 0 : i32
    return %c0_i32, %c0_i32_0 : i32, i32
  }
  func.func @transform_3(%arg0: i32) -> (i32, i32) {
    %c0_i32 = arith.constant 0 : i32
    %c0_i32_0 = arith.constant 0 : i32
    %c0_i32_1 = arith.constant 0 : i32
    return %c0_i32, %c0_i32_0 : i32, i32
  }
  func.func @transform_4(%arg0: i32) -> (i32, i32) {
    %c0_i32 = arith.constant 0 : i32
    %c0_i32_0 = arith.constant 0 : i32
    %c0_i32_1 = arith.constant 0 : i32
    return %c0_i32, %c0_i32_0 : i32, i32
  }
  func.func @transform_5(%arg0: i32) -> (i32, i32) {
    %c0_i32 = arith.constant 0 : i32
    %c0_i32_0 = arith.constant 0 : i32
    %c0_i32_1 = arith.constant 0 : i32
    return %c0_i32, %c0_i32_0 : i32, i32
  }
  func.func @transform_6(%arg0: i32) -> (i32, i32) {
    %c0_i32 = arith.constant 0 : i32
    %c0_i32_0 = arith.constant 0 : i32
    %c0_i32_1 = arith.constant 0 : i32
    return %c0_i32, %c0_i32_0 : i32, i32
  }
  func.func @transform_7(%arg0: i32) -> (i32, i32) {
    %c0_i32 = arith.constant 0 : i32
    %c0_i32_0 = arith.constant 0 : i32
    %c0_i32_1 = arith.constant 0 : i32
    return %c0_i32, %c0_i32_0 : i32, i32
  }
  func.func @transform_8(%arg0: i32) -> (i32, i32) {
    %c0_i32 = arith.constant 0 : i32
    %c0_i32_0 = arith.constant 0 : i32
    %c0_i32_1 = arith.constant 0 : i32
    return %c0_i32, %c0_i32_0 : i32, i32
  }
  func.func @transform_9(%arg0: i32) -> (i32, i32) {
    %c0_i32 = arith.constant 0 : i32
    %c0_i32_0 = arith.constant 0 : i32
    %c0_i32_1 = arith.constant 0 : i32
    return %c0_i32, %c0_i32_0 : i32, i32
  }
  func.func @transform_10(%arg0: i32) -> (i32, i32) {
    %c0_i32 = arith.constant 0 : i32
    %c0_i32_0 = arith.constant 0 : i32
    %c0_i32_1 = arith.constant 0 : i32
    return %c0_i32, %c0_i32_0 : i32, i32
  }
  func.func @transform_11(%arg0: i32) -> (i32, i32) {
    %c0_i32 = arith.constant 0 : i32
    %c0_i32_0 = arith.constant 0 : i32
    %c0_i32_1 = arith.constant 0 : i32
    return %c0_i32, %c0_i32_0 : i32, i32
  }
  func.func @transform_12(%arg0: i32) -> (i32, i32) {
    %c0_i32 = arith.constant 0 : i32
    %c0_i32_0 = arith.constant 0 : i32
    %c0_i32_1 = arith.constant 0 : i32
    return %c0_i32, %c0_i32_0 : i32, i32
  }
  func.func @transform_13(%arg0: i32) -> (i32, i32) {
    %c0_i32 = arith.constant 0 : i32
    %c0_i32_0 = arith.constant 0 : i32
    return %arg0, %c0_i32 : i32, i32
  }
}

</mosaic_0001>

<llo_original>
// kernel: tpu_custom_call.1
$region0: #{tpu_custom_call.1}
  #allocation0 [shape = 'u32[]', space=smem, size = 0x4, offset = 0x4, fixed_abs, tag = 'smem constant byte address 0x4 - core index']
  #allocation1 [shape = 'u32[144,128]{1,0:T(1,128)}', space=vmem, size = 0x12000, scoped, tag = 'internal scratch']
  %s0 = inlined_call_operand.hbm [shape: bf16[256,896], index: 0, kind: input, shape index: {}]
  %s1 = inlined_call_operand.hbm [shape: bf16[896,512], index: 1, kind: input, shape index: {}]
  %s2 = inlined_call_operand.hbm [shape: f32[1,512], index: 2, kind: input, shape index: {}]
  %s3 = inlined_call_operand.hbm [shape: bf16[512,256], index: 3, kind: input, shape index: {}]
  %s4 = inlined_call_operand.vmem [shape: f32[1,256], index: 4, kind: input, shape index: {}]
  %s5 = inlined_call_operand.hbm [shape: bf16[256,128], index: 5, kind: input, shape index: {}]
  %s6 = inlined_call_operand.vmem [shape: f32[1,128], index: 6, kind: input, shape index: {}]
  %s7 = inlined_call_operand.hbm [shape: bf16[128,256], index: 7, kind: input, shape index: {}]
  %s8 = inlined_call_operand.hbm [shape: f32[1,256], index: 8, kind: input, shape index: {}]
  %s9 = inlined_call_operand.hbm [shape: bf16[256,512], index: 9, kind: input, shape index: {}]
  %s10 = inlined_call_operand.vmem [shape: f32[1,512], index: 10, kind: input, shape index: {}]
  %s11 = inlined_call_operand.hbm [shape: bf16[512,896], index: 11, kind: input, shape index: {}]
  %s12 = inlined_call_operand.vmem [shape: f32[1,896], index: 12, kind: input, shape index: {}]
  %s13 = inlined_call_operand.hbm [shape: bf16[256,896], index: 13, kind: output, shape index: {}]
  %s14 = sld [smem:[#allocation0]]
  $region98: #{tpu_custom_call.1} parent=0
    _
  %s16 = ssub.s32 1, %s14
  %s17 = scalar_select 0, %s16, %s14
  $region1: #{tpu_custom_call.1} parent=0
    #allocation2 [shape = 'u8[458752]{0}', space=vmem, size = 0x70000, scoped, tag = 'input window, operand 0, single buffered']
    #allocation3 [shape = 's32[1]{0}', space=sflag, size = 0x4, scoped, tag = 'scoped memory for tpu_custom_call.1']
    #allocation4 [shape = 's32[1]{0}', space=sflag, size = 0x4, scoped, tag = 'scoped memory for tpu_custom_call.1']
    #allocation5 [shape = 'u8[917504]{0}', space=vmem, size = 0xe0000, scoped, tag = 'input window, operand 1, single buffered']
    #allocation6 [shape = 's32[1]{0}', space=sflag, size = 0x4, scoped, tag = 'scoped memory for tpu_custom_call.1']
    #allocation7 [shape = 'u8[2048]{0}', space=vmem, size = 0x800, scoped, tag = 'input window, operand 2, single buffered']
    #allocation8 [shape = 'u8[262144]{0}', space=vmem, size = 0x40000, scoped, tag = 'input window, operand 3, single buffered']
    #allocation9 [shape = 's32[1]{0}', space=sflag, size = 0x4, scoped, tag = 'scoped memory for tpu_custom_call.1']
    #allocation10 [shape = 'u8[65536]{0}', space=vmem, size = 0x10000, scoped, tag = 'input window, operand 5, single buffered']
    #allocation11 [shape = 'u8[65536]{0}', space=vmem, size = 0x10000, scoped, tag = 'input window, operand 7, single buffered']
    #allocation12 [shape = 's32[1]{0}', space=sflag, size = 0x4, scoped, tag = 'scoped memory for tpu_custom_call.1']
    #allocation13 [shape = 'u8[1024]{0}', space=vmem, size = 0x400, scoped, tag = 'input window, operand 8, single buffered']
    #allocation14 [shape = 'u8[262144]{0}', space=vmem, size = 0x40000, scoped, tag = 'input window, operand 9, single buffered']
    #allocation15 [shape = 's32[1]{0}', space=sflag, size = 0x4, scoped, tag = 'scoped memory for tpu_custom_call.1']
    #allocation16 [shape = 'u8[917504]{0}', space=vmem, size = 0xe0000, scoped, tag = 'input window, operand 11, single buffered']
    #allocation17 [shape = 'u8[458752]{0}', space=vmem, size = 0x70000, scoped, tag = 'output window, operand 0, single buffered']
    %18 = vsyncpa [#allocation3], 0
    %19 = vsyncpa [#allocation6], 0
    %20 = vsyncpa [#allocation9], 0
    %21 = vsyncpa [#allocation12], 0
    %22 = vsyncpa [#allocation15], 0
    %23 = vsyncpa [#allocation4], 0
    // Predicated region
    $region2: #{tpu_custom_call.1} parent=1 // pred_check
      _
    $region3: #{tpu_custom_call.1} parent=1 // pred_check_branch
      %25 = sbr.rel (0) target = $region5
    $region4: #{tpu_custom_call.1} parent=1 // pred_region
      %s27 = ssub.s32 14336, 14336
      %28 = vsyncadd [#allocation3], %s27
      %s29 = sshll.u32 [#allocation2], 4
      %s30 = int_to_ptr.vmem [resolvable:$true] %s29
      %35 = dma.hbm_to_vmem [thread:$0]  %s0, 14336, %s30, [#allocation3], 448, 448, 28
    $region5: #{tpu_custom_call.1} parent=1 // pred_fallthru
      _
    // Predicated region
    $region6: #{tpu_custom_call.1} parent=1 // pred_check
      _
    $region7: #{tpu_custom_call.1} parent=1 // pred_check_branch
      %37 = sbr.rel (0) target = $region9
    $region8: #{tpu_custom_call.1} parent=1 // pred_region
      %s39 = ssub.s32 28672, 28672
      %40 = vsyncadd [#allocation6], %s39
      %s41 = sshll.u32 [#allocation5], 4
      %s42 = int_to_ptr.vmem [resolvable:$true] %s41
      %47 = dma.hbm_to_vmem [thread:$0]  %s1, 28672, %s42, [#allocation6], 256, 256, 16
    $region9: #{tpu_custom_call.1} parent=1 // pred_fallthru
      _
    // Predicated region
    $region10: #{tpu_custom_call.1} parent=1 // pred_check
      _
    $region11: #{tpu_custom_call.1} parent=1 // pred_check_branch
      %49 = sbr.rel (0) target = $region13
    $region12: #{tpu_custom_call.1} parent=1 // pred_region
      %s51 = ssub.s32 64, 64
      %52 = vsyncadd [#allocation6], %s51
      %s54 = sshll.u32 [#allocation7], 4
      %s55 = int_to_ptr.vmem [resolvable:$true] %s54
      %57 = dma.hbm_to_vmem [thread:$0]  %s2, 64, %s55, [#allocation6]
    $region13: #{tpu_custom_call.1} parent=1 // pred_fallthru
      _
    // Predicated region
    $region14: #{tpu_custom_call.1} parent=1 // pred_check
      _
    $region15: #{tpu_custom_call.1} parent=1 // pred_check_branch
      %59 = sbr.rel (0) target = $region17
    $region16: #{tpu_custom_call.1} parent=1 // pred_region
      %s61 = ssub.s32 8192, 8192
      %62 = vsyncadd [#allocation9], %s61
      %s63 = sshll.u32 [#allocation8], 4
      %s64 = int_to_ptr.vmem [resolvable:$true] %s63
      %69 = dma.hbm_to_vmem [thread:$0]  %s3, 8192, %s64, [#allocation9], 128, 128, 8
    $region17: #{tpu_custom_call.1} parent=1 // pred_fallthru
      _
    // Predicated region
    $region18: #{tpu_custom_call.1} parent=1 // pred_check
      _
    $region19: #{tpu_custom_call.1} parent=1 // pred_check_branch
      %71 = sbr.rel (0) target = $region21
    $region20: #{tpu_custom_call.1} parent=1 // pred_region
      _
    $region21: #{tpu_custom_call.1} parent=1 // pred_fallthru
      _
    // Predicated region
    $region22: #{tpu_custom_call.1} parent=1 // pred_check
      _
    $region23: #{tpu_custom_call.1} parent=1 // pred_check_branch
      %73 = sbr.rel (0) target = $region25
    $region24: #{tpu_custom_call.1} parent=1 // pred_region
      %s75 = ssub.s32 2048, 2048
      %76 = vsyncadd [#allocation9], %s75
      %s77 = sshll.u32 [#allocation10], 4
      %s78 = int_to_ptr.vmem [resolvable:$true] %s77
      %83 = dma.hbm_to_vmem [thread:$0]  %s5, 2048, %s78, [#allocation9], 64, 64, 4
    $region25: #{tpu_custom_call.1} parent=1 // pred_fallthru
      _
    // Predicated region
    $region26: #{tpu_custom_call.1} parent=1 // pred_check
      _
    $region27: #{tpu_custom_call.1} parent=1 // pred_check_branch
      %85 = sbr.rel (0) target = $region29
    $region28: #{tpu_custom_call.1} parent=1 // pred_region
      _
    $region29: #{tpu_custom_call.1} parent=1 // pred_fallthru
      _
    // Predicated region
    $region30: #{tpu_custom_call.1} parent=1 // pred_check
      _
    $region31: #{tpu_custom_call.1} parent=1 // pred_check_branch
      %87 = sbr.rel (0) target = $region33
    $region32: #{tpu_custom_call.1} parent=1 // pred_region
      %s89 = ssub.s32 2048, 2048
      %90 = vsyncadd [#allocation12], %s89
      %s91 = sshll.u32 [#allocation11], 4
      %s92 = int_to_ptr.vmem [resolvable:$true] %s91
      %97 = dma.hbm_to_vmem [thread:$0]  %s7, 2048, %s92, [#allocation12], 128, 128, 8
    $region33: #{tpu_custom_call.1} parent=1 // pred_fallthru
      _
    // Predicated region
    $region34: #{tpu_custom_call.1} parent=1 // pred_check
      _
    $region35: #{tpu_custom_call.1} parent=1 // pred_check_branch
      %99 = sbr.rel (0) target = $region37
    $region36: #{tpu_custom_call.1} parent=1 // pred_region
      %s101 = ssub.s32 32, 32
      %102 = vsyncadd [#allocation12], %s101
      %s104 = sshll.u32 [#allocation13], 4
      %s105 = int_to_ptr.vmem [resolvable:$true] %s104
      %107 = dma.hbm_to_vmem [thread:$0]  %s8, 32, %s105, [#allocation12]
    $region37: #{tpu_custom_call.1} parent=1 // pred_fallthru
      _
    // Predicated region
    $region38: #{tpu_custom_call.1} parent=1 // pred_check
      _
    $region39: #{tpu_custom_call.1} parent=1 // pred_check_branch
      %109 = sbr.rel (0) target = $region41
    $region40: #{tpu_custom_call.1} parent=1 // pred_region
      %s111 = ssub.s32 8192, 8192
      %112 = vsyncadd [#allocation15], %s111
      %s113 = sshll.u32 [#allocation14], 4
      %s114 = int_to_ptr.vmem [resolvable:$true] %s113
      %119 = dma.hbm_to_vmem [thread:$0]  %s9, 8192, %s114, [#allocation15], 256, 256, 16
    $region41: #{tpu_custom_call.1} parent=1 // pred_fallthru
      _
    // Predicated region
    $region42: #{tpu_custom_call.1} parent=1 // pred_check
      _
    $region43: #{tpu_custom_call.1} parent=1 // pred_check_branch
      %121 = sbr.rel (0) target = $region45
    $region44: #{tpu_custom_call.1} parent=1 // pred_region
      _
    $region45: #{tpu_custom_call.1} parent=1 // pred_fallthru
      _
    // Predicated region
    $region46: #{tpu_custom_call.1} parent=1 // pred_check
      _
    $region47: #{tpu_custom_call.1} parent=1 // pred_check_branch
      %123 = sbr.rel (0) target = $region49
    $region48: #{tpu_custom_call.1} parent=1 // pred_region
      %s125 = ssub.s32 28672, 28672
      %126 = vsyncadd [#allocation15], %s125
      %s127 = sshll.u32 [#allocation16], 4
      %s128 = int_to_ptr.vmem [resolvable:$true] %s127
      %133 = dma.hbm_to_vmem [thread:$0]  %s11, 28672, %s128, [#allocation15], 448, 448, 28
    $region49: #{tpu_custom_call.1} parent=1 // pred_fallthru
      _
    // Predicated region
    $region50: #{tpu_custom_call.1} parent=1 // pred_check
      _
    $region51: #{tpu_custom_call.1} parent=1 // pred_check_branch
      %135 = sbr.rel (0) target = $region53
    $region52: #{tpu_custom_call.1} parent=1 // pred_region
      _
    $region53: #{tpu_custom_call.1} parent=1 // pred_fallthru
      _
    // Predicated region
    $region54: #{tpu_custom_call.1} parent=1 // pred_check
      _
    $region55: #{tpu_custom_call.1} parent=1 // pred_check_branch
      %137 = sbr.rel (0) target = $region57
    $region56: #{tpu_custom_call.1} parent=1 // pred_region
      %138 = dma.done [#allocation3], 14336
    $region57: #{tpu_custom_call.1} parent=1 // pred_fallthru
      _
    // Predicated region
    $region58: #{tpu_custom_call.1} parent=1 // pred_check
      _
    $region59: #{tpu_custom_call.1} parent=1 // pred_check_branch
      %140 = sbr.rel (0) target = $region61
    $region60: #{tpu_custom_call.1} parent=1 // pred_region
      %141 = dma.done [#allocation6], 28672
    $region61: #{tpu_custom_call.1} parent=1 // pred_fallthru
      _
    // Predicated region
    $region62: #{tpu_custom_call.1} parent=1 // pred_check
      _
    $region63: #{tpu_custom_call.1} parent=1 // pred_check_branch
      %143 = sbr.rel (0) target = $region65
    $region64: #{tpu_custom_call.1} parent=1 // pred_region
      %144 = dma.done [#allocation6], 64
    $region65: #{tpu_custom_call.1} parent=1 // pred_fallthru
      _
    // Predicated region
    $region66: #{tpu_custom_call.1} parent=1 // pred_check
      _
    $region67: #{tpu_custom_call.1} parent=1 // pred_check_branch
      %146 = sbr.rel (0) target = $region69
    $region68: #{tpu_custom_call.1} parent=1 // pred_region
      %147 = dma.done [#allocation9], 8192
    $region69: #{tpu_custom_call.1} parent=1 // pred_fallthru
      _
    // Predicated region
    $region70: #{tpu_custom_call.1} parent=1 // pred_check
      _
    $region71: #{tpu_custom_call.1} parent=1 // pred_check_branch
      %149 = sbr.rel (0) target = $region73
    $region72: #{tpu_custom_call.1} parent=1 // pred_region
      %150 = dma.done [#allocation9], 2048
    $region73: #{tpu_custom_call.1} parent=1 // pred_fallthru
      _
    // Predicated region
    $region74: #{tpu_custom_call.1} parent=1 // pred_check
      _
    $region75: #{tpu_custom_call.1} parent=1 // pred_check_branch
      %152 = sbr.rel (0) target = $region77
    $region76: #{tpu_custom_call.1} parent=1 // pred_region
      %153 = dma.done [#allocation12], 2048
    $region77: #{tpu_custom_call.1} parent=1 // pred_fallthru
      _
    // Predicated region
    $region78: #{tpu_custom_call.1} parent=1 // pred_check
      _
    $region79: #{tpu_custom_call.1} parent=1 // pred_check_branch
      %155 = sbr.rel (0) target = $region81
    $region80: #{tpu_custom_call.1} parent=1 // pred_region
      %156 = dma.done [#allocation12], 32
    $region81: #{tpu_custom_call.1} parent=1 // pred_fallthru
      _
    // Predicated region
    $region82: #{tpu_custom_call.1} parent=1 // pred_check
      _
    $region83: #{tpu_custom_call.1} parent=1 // pred_check_branch
      %158 = sbr.rel (0) target = $region85
    $region84: #{tpu_custom_call.1} parent=1 // pred_region
      %159 = dma.done [#allocation15], 8192
    $region85: #{tpu_custom_call.1} parent=1 // pred_fallthru
      _
    // Predicated region
    $region86: #{tpu_custom_call.1} parent=1 // pred_check
      _
    $region87: #{tpu_custom_call.1} parent=1 // pred_check_branch
      %161 = sbr.rel (0) target = $region89
    $region88: #{tpu_custom_call.1} parent=1 // pred_region
      %162 = dma.done [#allocation15], 28672
    $region89: #{tpu_custom_call.1} parent=1 // pred_fallthru
      _
    %v164 = vld [vmem:[#allocation2] sm:$0xff]
    %v165 = vld [vmem:[#allocation2 + $0x8] sm:$0xff]
    %v166 = vld [vmem:[#allocation2 + $0x10] sm:$0xff]
    %v167 = vld [vmem:[#allocation2 + $0x18] sm:$0xf]
    %v168 = vld [vmem:[#allocation2 + $0x1c] sm:$0xff]
    %v169 = vld [vmem:[#allocation2 + $0x24] sm:$0xff]
    %v170 = vld [vmem:[#allocation2 + $0x2c] sm:$0xff]
    %v171 = vld [vmem:[#allocation2 + $0x34] sm:$0xf]
    %v172 = vld [vmem:[#allocation2 + $0x38] sm:$0xff]
    %v173 = vld [vmem:[#allocation2 + $0x40] sm:$0xff]
    %v174 = vld [vmem:[#allocation2 + $0x48] sm:$0xff]
    %v175 = vld [vmem:[#allocation2 + $0x50] sm:$0xf]
    %v176 = vld [vmem:[#allocation2 + $0x54] sm:$0xff]
    %v177 = vld [vmem:[#allocation2 + $0x5c] sm:$0xff]
    %v178 = vld [vmem:[#allocation2 + $0x64] sm:$0xff]
    %v179 = vld [vmem:[#allocation2 + $0x6c] sm:$0xf]
    %v180 = vld [vmem:[#allocation2 + $0x70] sm:$0xff]
    %v181 = vld [vmem:[#allocation2 + $0x78] sm:$0xff]
    %v182 = vld [vmem:[#allocation2 + $0x80] sm:$0xff]
    %v183 = vld [vmem:[#allocation2 + $0x88] sm:$0xf]
    %v184 = vld [vmem:[#allocation2 + $0x8c] sm:$0xff]
    %v185 = vld [vmem:[#allocation2 + $0x94] sm:$0xff]
    %v186 = vld [vmem:[#allocation2 + $0x9c] sm:$0xff]
    %v187 = vld [vmem:[#allocation2 + $0xa4] sm:$0xf]
    %v188 = vld [vmem:[#allocation2 + $0xa8] sm:$0xff]
    %v189 = vld [vmem:[#allocation2 + $0xb0] sm:$0xff]
    %v190 = vld [vmem:[#allocation2 + $0xb8] sm:$0xff]
    %v191 = vld [vmem:[#allocation2 + $0xc0] sm:$0xf]
    %v192 = vld [vmem:[#allocation2 + $0xc4] sm:$0xff]
    %v193 = vld [vmem:[#allocation2 + $0xcc] sm:$0xff]
    %v194 = vld [vmem:[#allocation2 + $0xd4] sm:$0xff]
    %v195 = vld [vmem:[#allocation2 + $0xdc] sm:$0xf]
    %v196 = vld [vmem:[#allocation2 + $0xe0] sm:$0xff]
    %v197 = vld [vmem:[#allocation2 + $0xe8] sm:$0xff]
    %v198 = vld [vmem:[#allocation2 + $0xf0] sm:$0xff]
    %v199 = vld [vmem:[#allocation2 + $0xf8] sm:$0xf]
    %v200 = vld [vmem:[#allocation2 + $0xfc] sm:$0xff]
    %v201 = vld [vmem:[#allocation2 + $0x104] sm:$0xff]
    %v202 = vld [vmem:[#allocation2 + $0x10c] sm:$0xff]
    %v203 = vld [vmem:[#allocation2 + $0x114] sm:$0xf]
    %v204 = vld [vmem:[#allocation2 + $0x118] sm:$0xff]
    %v205 = vld [vmem:[#allocation2 + $0x120] sm:$0xff]
    %v206 = vld [vmem:[#allocation2 + $0x128] sm:$0xff]
    %v207 = vld [vmem:[#allocation2 + $0x130] sm:$0xf]
    %v208 = vld [vmem:[#allocation2 + $0x134] sm:$0xff]
    %v209 = vld [vmem:[#allocation2 + $0x13c] sm:$0xff]
    %v210 = vld [vmem:[#allocation2 + $0x144] sm:$0xff]
    %v211 = vld [vmem:[#allocation2 + $0x14c] sm:$0xf]
    %v212 = vld [vmem:[#allocation2 + $0x150] sm:$0xff]
    %v213 = vld [vmem:[#allocation2 + $0x158] sm:$0xff]
    %v214 = vld [vmem:[#allocation2 + $0x160] sm:$0xff]
    %v215 = vld [vmem:[#allocation2 + $0x168] sm:$0xf]
    %v216 = vld [vmem:[#allocation2 + $0x16c] sm:$0xff]
    %v217 = vld [vmem:[#allocation2 + $0x174] sm:$0xff]
    %v218 = vld [vmem:[#allocation2 + $0x17c] sm:$0xff]
    %v219 = vld [vmem:[#allocation2 + $0x184] sm:$0xf]
    %v220 = vld [vmem:[#allocation2 + $0x188] sm:$0xff]
    %v221 = vld [vmem:[#allocation2 + $0x190] sm:$0xff]
    %v222 = vld [vmem:[#allocation2 + $0x198] sm:$0xff]
    %v223 = vld [vmem:[#allocation2 + $0x1a0] sm:$0xf]
    %v224 = vld [vmem:[#allocation2 + $0x1a4] sm:$0xff]
    %v225 = vld [vmem:[#allocation2 + $0x1ac] sm:$0xff]
    %v226 = vld [vmem:[#allocation2 + $0x1b4] sm:$0xff]
    %v227 = vld [vmem:[#allocation2 + $0x1bc] sm:$0xf]
    %v228 = vld [vmem:[#allocation2 + $0x1c0] sm:$0xff]
    %v229 = vld [vmem:[#allocation2 + $0x1c8] sm:$0xff]
    %v230 = vld [vmem:[#allocation2 + $0x1d0] sm:$0xff]
    %v231 = vld [vmem:[#allocation2 + $0x1d8] sm:$0xf]
    %v232 = vld [vmem:[#allocation2 + $0x1dc] sm:$0xff]
    %v233 = vld [vmem:[#allocation2 + $0x1e4] sm:$0xff]
    %v234 = vld [vmem:[#allocation2 + $0x1ec] sm:$0xff]
    %v235 = vld [vmem:[#allocation2 + $0x1f4] sm:$0xf]
    %v236 = vld [vmem:[#allocation2 + $0x1f8] sm:$0xff]
    %v237 = vld [vmem:[#allocation2 + $0x200] sm:$0xff]
    %v238 = vld [vmem:[#allocation2 + $0x208] sm:$0xff]
    %v239 = vld [vmem:[#allocation2 + $0x210] sm:$0xf]
    %v240 = vld [vmem:[#allocation2 + $0x214] sm:$0xff]
    %v241 = vld [vmem:[#allocation2 + $0x21c] sm:$0xff]
    %v242 = vld [vmem:[#allocation2 + $0x224] sm:$0xff]
    %v243 = vld [vmem:[#allocation2 + $0x22c] sm:$0xf]
    %v244 = vld [vmem:[#allocation2 + $0x230] sm:$0xff]
    %v245 = vld [vmem:[#allocation2 + $0x238] sm:$0xff]
    %v246 = vld [vmem:[#allocation2 + $0x240] sm:$0xff]
    %v247 = vld [vmem:[#allocation2 + $0x248] sm:$0xf]
    %v248 = vld [vmem:[#allocation2 + $0x24c] sm:$0xff]
    %v249 = vld [vmem:[#allocation2 + $0x254] sm:$0xff]
    %v250 = vld [vmem:[#allocation2 + $0x25c] sm:$0xff]
    %v251 = vld [vmem:[#allocation2 + $0x264] sm:$0xf]
    %v252 = vld [vmem:[#allocation2 + $0x268] sm:$0xff]
    %v253 = vld [vmem:[#allocation2 + $0x270] sm:$0xff]
    %v254 = vld [vmem:[#allocation2 + $0x278] sm:$0xff]
    %v255 = vld [vmem:[#allocation2 + $0x280] sm:$0xf]
    %v256 = vld [vmem:[#allocation2 + $0x284] sm:$0xff]
    %v257 = vld [vmem:[#allocation2 + $0x28c] sm:$0xff]
    %v258 = vld [vmem:[#allocation2 + $0x294] sm:$0xff]
    %v259 = vld [vmem:[#allocation2 + $0x29c] sm:$0xf]
    %v260 = vld [vmem:[#allocation2 + $0x2a0] sm:$0xff]
    %v261 = vld [vmem:[#allocation2 + $0x2a8] sm:$0xff]
    %v262 = vld [vmem:[#allocation2 + $0x2b0] sm:$0xff]
    %v263 = vld [vmem:[#allocation2 + $0x2b8] sm:$0xf]
    %v264 = vld [vmem:[#allocation2 + $0x2bc] sm:$0xff]
    %v265 = vld [vmem:[#allocation2 + $0x2c4] sm:$0xff]
    %v266 = vld [vmem:[#allocation2 + $0x2cc] sm:$0xff]
    %v267 = vld [vmem:[#allocation2 + $0x2d4] sm:$0xf]
    %v268 = vld [vmem:[#allocation2 + $0x2d8] sm:$0xff]
    %v269 = vld [vmem:[#allocation2 + $0x2e0] sm:$0xff]
    %v270 = vld [vmem:[#allocation2 + $0x2e8] sm:$0xff]
    %v271 = vld [vmem:[#allocation2 + $0x2f0] sm:$0xf]
    %v272 = vld [vmem:[#allocation2 + $0x2f4] sm:$0xff]
    %v273 = vld [vmem:[#allocation2 + $0x2fc] sm:$0xff]
    %v274 = vld [vmem:[#allocation2 + $0x304] sm:$0xff]
    %v275 = vld [vmem:[#allocation2 + $0x30c] sm:$0xf]
    %v276 = vld [vmem:[#allocation2 + $0x310] sm:$0xff]
    %v277 = vld [vmem:[#allocation2 + $0x318] sm:$0xff]
    %v278 = vld [vmem:[#allocation2 + $0x320] sm:$0xff]
    %v279 = vld [vmem:[#allocation2 + $0x328] sm:$0xf]
    %v280 = vld [vmem:[#allocation2 + $0x32c] sm:$0xff]
    %v281 = vld [vmem:[#allocation2 + $0x334] sm:$0xff]
    %v282 = vld [vmem:[#allocation2 + $0x33c] sm:$0xff]
    %v283 = vld [vmem:[#allocation2 + $0x344] sm:$0xf]
    %v284 = vld [vmem:[#allocation2 + $0x348] sm:$0xff]
    %v285 = vld [vmem:[#allocation2 + $0x350] sm:$0xff]
    %v286 = vld [vmem:[#allocation2 + $0x358] sm:$0xff]
    %v287 = vld [vmem:[#allocation2 + $0x360] sm:$0xf]
    %v288 = vld [vmem:[#allocation2 + $0x364] sm:$0xff]
    %v289 = vld [vmem:[#allocation2 + $0x36c] sm:$0xff]
    %v290 = vld [vmem:[#allocation2 + $0x374] sm:$0xff]
    %v291 = vld [vmem:[#allocation2 + $0x37c] sm:$0xf]
    %v292 = vld [vmem:[#allocation5] sm:$0xff]
    %v293 = vld [vmem:[#allocation5 + $0x8] sm:$0xff]
    %v294 = vld [vmem:[#allocation5 + $0x10] sm:$0xff]
    %v295 = vld [vmem:[#allocation5 + $0x18] sm:$0xff]
    %v296 = vld [vmem:[#allocation5 + $0x20] sm:$0xff]
    %v297 = vld [vmem:[#allocation5 + $0x28] sm:$0xff]
    %v298 = vld [vmem:[#allocation5 + $0x30] sm:$0xff]
    %v299 = vld [vmem:[#allocation5 + $0x38] sm:$0xff]
    %v300 = vld [vmem:[#allocation5 + $0x40] sm:$0xff]
    %v301 = vld [vmem:[#allocation5 + $0x48] sm:$0xff]
    %v302 = vld [vmem:[#allocation5 + $0x50] sm:$0xff]
    %v303 = vld [vmem:[#allocation5 + $0x58] sm:$0xff]
    %v304 = vld [vmem:[#allocation5 + $0x60] sm:$0xff]
    %v305 = vld [vmem:[#allocation5 + $0x68] sm:$0xff]
    %v306 = vld [vmem:[#allocation5 + $0x70] sm:$0xff]
    %v307 = vld [vmem:[#allocation5 + $0x78] sm:$0xff]
    %v308 = vld [vmem:[#allocation5 + $0x80] sm:$0xff]
    %v309 = vld [vmem:[#allocation5 + $0x88] sm:$0xff]
    %v310 = vld [vmem:[#allocation5 + $0x90] sm:$0xff]
    %v311 = vld [vmem:[#allocation5 + $0x98] sm:$0xff]
    %v312 = vld [vmem:[#allocation5 + $0xa0] sm:$0xff]
    %v313 = vld [vmem:[#allocation5 + $0xa8] sm:$0xff]
    %v314 = vld [vmem:[#allocation5 + $0xb0] sm:$0xff]
    %v315 = vld [vmem:[#allocation5 + $0xb8] sm:$0xff]
    %v316 = vld [vmem:[#allocation5 + $0xc0] sm:$0xff]
    %v317 = vld [vmem:[#allocation5 + $0xc8] sm:$0xff]
    %v318 = vld [vmem:[#allocation5 + $0xd0] sm:$0xff]
    %v319 = vld [vmem:[#allocation5 + $0xd8] sm:$0xff]
    %v320 = vld [vmem:[#allocation5 + $0xe0] sm:$0xff]
    %v321 = vld [vmem:[#allocation5 + $0xe8] sm:$0xff]
    %v322 = vld [vmem:[#allocation5 + $0xf0] sm:$0xff]
    %v323 = vld [vmem:[#allocation5 + $0xf8] sm:$0xff]
    %v324 = vld [vmem:[#allocation5 + $0x100] sm:$0xff]
    %v325 = vld [vmem:[#allocation5 + $0x108] sm:$0xff]
    %v326 = vld [vmem:[#allocation5 + $0x110] sm:$0xff]
    %v327 = vld [vmem:[#allocation5 + $0x118] sm:$0xff]
    %v328 = vld [vmem:[#allocation5 + $0x120] sm:$0xff]
    %v329 = vld [vmem:[#allocation5 + $0x128] sm:$0xff]
    %v330 = vld [vmem:[#allocation5 + $0x130] sm:$0xff]
    %v331 = vld [vmem:[#allocation5 + $0x138] sm:$0xff]
    %v332 = vld [vmem:[#allocation5 + $0x140] sm:$0xff]
    %v333 = vld [vmem:[#allocation5 + $0x148] sm:$0xff]
    %v334 = vld [vmem:[#allocation5 + $0x150] sm:$0xff]
    %v335 = vld [vmem:[#allocation5 + $0x158] sm:$0xff]
    %v336 = vld [vmem:[#allocation5 + $0x160] sm:$0xff]
    %v337 = vld [vmem:[#allocation5 + $0x168] sm:$0xff]
    %v338 = vld [vmem:[#allocation5 + $0x170] sm:$0xff]
    %v339 = vld [vmem:[#allocation5 + $0x178] sm:$0xff]
    %v340 = vld [vmem:[#allocation5 + $0x180] sm:$0xff]
    %v341 = vld [vmem:[#allocation5 + $0x188] sm:$0xff]
    %v342 = vld [vmem:[#allocation5 + $0x190] sm:$0xff]
    %v343 = vld [vmem:[#allocation5 + $0x198] sm:$0xff]
    %v344 = vld [vmem:[#allocation5 + $0x1a0] sm:$0xff]
    %v345 = vld [vmem:[#allocation5 + $0x1a8] sm:$0xff]
    %v346 = vld [vmem:[#allocation5 + $0x1b0] sm:$0xff]
    %v347 = vld [vmem:[#allocation5 + $0x1b8] sm:$0xff]
    %v348 = vld [vmem:[#allocation5 + $0x1c0] sm:$0xff]
    %v349 = vld [vmem:[#allocation5 + $0x1c8] sm:$0xff]
    %v350 = vld [vmem:[#allocation5 + $0x1d0] sm:$0xff]
    %v351 = vld [vmem:[#allocation5 + $0x1d8] sm:$0xff]
    %v352 = vld [vmem:[#allocation5 + $0x1e0] sm:$0xff]
    %v353 = vld [vmem:[#allocation5 + $0x1e8] sm:$0xff]
    %v354 = vld [vmem:[#allocation5 + $0x1f0] sm:$0xff]
    %v355 = vld [vmem:[#allocation5 + $0x1f8] sm:$0xff]
    %v356 = vld [vmem:[#allocation5 + $0x200] sm:$0xff]
    %v357 = vld [vmem:[#allocation5 + $0x208] sm:$0xff]
    %v358 = vld [vmem:[#allocation5 + $0x210] sm:$0xff]
    %v359 = vld [vmem:[#allocation5 + $0x218] sm:$0xff]
    %v360 = vld [vmem:[#allocation5 + $0x220] sm:$0xff]
    %v361 = vld [vmem:[#allocation5 + $0x228] sm:$0xff]
    %v362 = vld [vmem:[#allocation5 + $0x230] sm:$0xff]
    %v363 = vld [vmem:[#allocation5 + $0x238] sm:$0xff]
    %v364 = vld [vmem:[#allocation5 + $0x240] sm:$0xff]
    %v365 = vld [vmem:[#allocation5 + $0x248] sm:$0xff]
    %v366 = vld [vmem:[#allocation5 + $0x250] sm:$0xff]
    %v367 = vld [vmem:[#allocation5 + $0x258] sm:$0xff]
    %v368 = vld [vmem:[#allocation5 + $0x260] sm:$0xff]
    %v369 = vld [vmem:[#allocation5 + $0x268] sm:$0xff]
    %v370 = vld [vmem:[#allocation5 + $0x270] sm:$0xff]
    %v371 = vld [vmem:[#allocation5 + $0x278] sm:$0xff]
    %v372 = vld [vmem:[#allocation5 + $0x280] sm:$0xff]
    %v373 = vld [vmem:[#allocation5 + $0x288] sm:$0xff]
    %v374 = vld [vmem:[#allocation5 + $0x290] sm:$0xff]
    %v375 = vld [vmem:[#allocation5 + $0x298] sm:$0xff]
    %v376 = vld [vmem:[#allocation5 + $0x2a0] sm:$0xff]
    %v377 = vld [vmem:[#allocation5 + $0x2a8] sm:$0xff]
    %v378 = vld [vmem:[#allocation5 + $0x2b0] sm:$0xff]
    %v379 = vld [vmem:[#allocation5 + $0x2b8] sm:$0xff]
    %v380 = vld [vmem:[#allocation5 + $0x2c0] sm:$0xff]
    %v381 = vld [vmem:[#allocation5 + $0x2c8] sm:$0xff]
    %v382 = vld [vmem:[#allocation5 + $0x2d0] sm:$0xff]
    %v383 = vld [vmem:[#allocation5 + $0x2d8] sm:$0xff]
    %v384 = vld [vmem:[#allocation5 + $0x2e0] sm:$0xff]
    %v385 = vld [vmem:[#allocation5 + $0x2e8] sm:$0xff]
    %v386 = vld [vmem:[#allocation5 + $0x2f0] sm:$0xff]
    %v387 = vld [vmem:[#allocation5 + $0x2f8] sm:$0xff]
    %v388 = vld [vmem:[#allocation5 + $0x300] sm:$0xff]
    %v389 = vld [vmem:[#allocation5 + $0x308] sm:$0xff]
    %v390 = vld [vmem:[#allocation5 + $0x310] sm:$0xff]
    %v391 = vld [vmem:[#allocation5 + $0x318] sm:$0xff]
    %v392 = vld [vmem:[#allocation5 + $0x320] sm:$0xff]
    %v393 = vld [vmem:[#allocation5 + $0x328] sm:$0xff]
    %v394 = vld [vmem:[#allocation5 + $0x330] sm:$0xff]
    %v395 = vld [vmem:[#allocation5 + $0x338] sm:$0xff]
    %v396 = vld [vmem:[#allocation5 + $0x340] sm:$0xff]
    %v397 = vld [vmem:[#allocation5 + $0x348] sm:$0xff]
    %v398 = vld [vmem:[#allocation5 + $0x350] sm:$0xff]
    %v399 = vld [vmem:[#allocation5 + $0x358] sm:$0xff]
    %v400 = vld [vmem:[#allocation5 + $0x360] sm:$0xff]
    %v401 = vld [vmem:[#allocation5 + $0x368] sm:$0xff]
    %v402 = vld [vmem:[#allocation5 + $0x370] sm:$0xff]
    %v403 = vld [vmem:[#allocation5 + $0x378] sm:$0xff]
    %v404 = vld [vmem:[#allocation5 + $0x380] sm:$0xff]
    %v405 = vld [vmem:[#allocation5 + $0x388] sm:$0xff]
    %v406 = vld [vmem:[#allocation5 + $0x390] sm:$0xff]
    %v407 = vld [vmem:[#allocation5 + $0x398] sm:$0xff]
    %v408 = vld [vmem:[#allocation5 + $0x3a0] sm:$0xff]
    %v409 = vld [vmem:[#allocation5 + $0x3a8] sm:$0xff]
    %v410 = vld [vmem:[#allocation5 + $0x3b0] sm:$0xff]
    %v411 = vld [vmem:[#allocation5 + $0x3b8] sm:$0xff]
    %v412 = vld [vmem:[#allocation5 + $0x3c0] sm:$0xff]
    %v413 = vld [vmem:[#allocation5 + $0x3c8] sm:$0xff]
    %v414 = vld [vmem:[#allocation5 + $0x3d0] sm:$0xff]
    %v415 = vld [vmem:[#allocation5 + $0x3d8] sm:$0xff]
    %v416 = vld [vmem:[#allocation5 + $0x3e0] sm:$0xff]
    %v417 = vld [vmem:[#allocation5 + $0x3e8] sm:$0xff]
    %v418 = vld [vmem:[#allocation5 + $0x3f0] sm:$0xff]
    %v419 = vld [vmem:[#allocation5 + $0x3f8] sm:$0xff]
    %v420 = vld [vmem:[#allocation5 + $0x400] sm:$0xff]
    %v421 = vld [vmem:[#allocation5 + $0x408] sm:$0xff]
    %v422 = vld [vmem:[#allocation5 + $0x410] sm:$0xff]
    %v423 = vld [vmem:[#allocation5 + $0x418] sm:$0xff]
    %v424 = vld [vmem:[#allocation5 + $0x420] sm:$0xff]
    %v425 = vld [vmem:[#allocation5 + $0x428] sm:$0xff]
    %v426 = vld [vmem:[#allocation5 + $0x430] sm:$0xff]
    %v427 = vld [vmem:[#allocation5 + $0x438] sm:$0xff]
    %v428 = vld [vmem:[#allocation5 + $0x440] sm:$0xff]
    %v429 = vld [vmem:[#allocation5 + $0x448] sm:$0xff]
    %v430 = vld [vmem:[#allocation5 + $0x450] sm:$0xff]
    %v431 = vld [vmem:[#allocation5 + $0x458] sm:$0xff]
    %v432 = vld [vmem:[#allocation5 + $0x460] sm:$0xff]
    %v433 = vld [vmem:[#allocation5 + $0x468] sm:$0xff]
    %v434 = vld [vmem:[#allocation5 + $0x470] sm:$0xff]
    %v435 = vld [vmem:[#allocation5 + $0x478] sm:$0xff]
    %v436 = vld [vmem:[#allocation5 + $0x480] sm:$0xff]
    %v437 = vld [vmem:[#allocation5 + $0x488] sm:$0xff]
    %v438 = vld [vmem:[#allocation5 + $0x490] sm:$0xff]
    %v439 = vld [vmem:[#allocation5 + $0x498] sm:$0xff]
    %v440 = vld [vmem:[#allocation5 + $0x4a0] sm:$0xff]
    %v441 = vld [vmem:[#allocation5 + $0x4a8] sm:$0xff]
    %v442 = vld [vmem:[#allocation5 + $0x4b0] sm:$0xff]
    %v443 = vld [vmem:[#allocation5 + $0x4b8] sm:$0xff]
    %v444 = vld [vmem:[#allocation5 + $0x4c0] sm:$0xff]
    %v445 = vld [vmem:[#allocation5 + $0x4c8] sm:$0xff]
    %v446 = vld [vmem:[#allocation5 + $0x4d0] sm:$0xff]
    %v447 = vld [vmem:[#allocation5 + $0x4d8] sm:$0xff]
    %v448 = vld [vmem:[#allocation5 + $0x4e0] sm:$0xff]
    %v449 = vld [vmem:[#allocation5 + $0x4e8] sm:$0xff]
    %v450 = vld [vmem:[#allocation5 + $0x4f0] sm:$0xff]
    %v451 = vld [vmem:[#allocation5 + $0x4f8] sm:$0xff]
    %v452 = vld [vmem:[#allocation5 + $0x500] sm:$0xff]
    %v453 = vld [vmem:[#allocation5 + $0x508] sm:$0xff]
    %v454 = vld [vmem:[#allocation5 + $0x510] sm:$0xff]
    %v455 = vld [vmem:[#allocation5 + $0x518] sm:$0xff]
    %v456 = vld [vmem:[#allocation5 + $0x520] sm:$0xff]
    %v457 = vld [vmem:[#allocation5 + $0x528] sm:$0xff]
    %v458 = vld [vmem:[#allocation5 + $0x530] sm:$0xff]
    %v459 = vld [vmem:[#allocation5 + $0x538] sm:$0xff]
    %v460 = vld [vmem:[#allocation5 + $0x540] sm:$0xff]
    %v461 = vld [vmem:[#allocation5 + $0x548] sm:$0xff]
    %v462 = vld [vmem:[#allocation5 + $0x550] sm:$0xff]
    %v463 = vld [vmem:[#allocation5 + $0x558] sm:$0xff]
    %v464 = vld [vmem:[#allocation5 + $0x560] sm:$0xff]
    %v465 = vld [vmem:[#allocation5 + $0x568] sm:$0xff]
    %v466 = vld [vmem:[#allocation5 + $0x570] sm:$0xff]
    %v467 = vld [vmem:[#allocation5 + $0x578] sm:$0xff]
    %v468 = vld [vmem:[#allocation5 + $0x580] sm:$0xff]
    %v469 = vld [vmem:[#allocation5 + $0x588] sm:$0xff]
    %v470 = vld [vmem:[#allocation5 + $0x590] sm:$0xff]
    %v471 = vld [vmem:[#allocation5 + $0x598] sm:$0xff]
    %v472 = vld [vmem:[#allocation5 + $0x5a0] sm:$0xff]
    %v473 = vld [vmem:[#allocation5 + $0x5a8] sm:$0xff]
    %v474 = vld [vmem:[#allocation5 + $0x5b0] sm:$0xff]
    %v475 = vld [vmem:[#allocation5 + $0x5b8] sm:$0xff]
    %v476 = vld [vmem:[#allocation5 + $0x5c0] sm:$0xff]
    %v477 = vld [vmem:[#allocation5 + $0x5c8] sm:$0xff]
    %v478 = vld [vmem:[#allocation5 + $0x5d0] sm:$0xff]
    %v479 = vld [vmem:[#allocation5 + $0x5d8] sm:$0xff]
    %v480 = vld [vmem:[#allocation5 + $0x5e0] sm:$0xff]
    %v481 = vld [vmem:[#allocation5 + $0x5e8] sm:$0xff]
    %v482 = vld [vmem:[#allocation5 + $0x5f0] sm:$0xff]
    %v483 = vld [vmem:[#allocation5 + $0x5f8] sm:$0xff]
    %v484 = vld [vmem:[#allocation5 + $0x600] sm:$0xff]
    %v485 = vld [vmem:[#allocation5 + $0x608] sm:$0xff]
    %v486 = vld [vmem:[#allocation5 + $0x610] sm:$0xff]
    %v487 = vld [vmem:[#allocation5 + $0x618] sm:$0xff]
    %v488 = vld [vmem:[#allocation5 + $0x620] sm:$0xff]
    %v489 = vld [vmem:[#allocation5 + $0x628] sm:$0xff]
    %v490 = vld [vmem:[#allocation5 + $0x630] sm:$0xff]
    %v491 = vld [vmem:[#allocation5 + $0x638] sm:$0xff]
    %v492 = vld [vmem:[#allocation5 + $0x640] sm:$0xff]
    %v493 = vld [vmem:[#allocation5 + $0x648] sm:$0xff]
    %v494 = vld [vmem:[#allocation5 + $0x650] sm:$0xff]
    %v495 = vld [vmem:[#allocation5 + $0x658] sm:$0xff]
    %v496 = vld [vmem:[#allocation5 + $0x660] sm:$0xff]
    %v497 = vld [vmem:[#allocation5 + $0x668] sm:$0xff]
    %v498 = vld [vmem:[#allocation5 + $0x670] sm:$0xff]
    %v499 = vld [vmem:[#allocation5 + $0x678] sm:$0xff]
    %v500 = vld [vmem:[#allocation5 + $0x680] sm:$0xff]
    %v501 = vld [vmem:[#allocation5 + $0x688] sm:$0xff]
    %v502 = vld [vmem:[#allocation5 + $0x690] sm:$0xff]
    %v503 = vld [vmem:[#allocation5 + $0x698] sm:$0xff]
    %v504 = vld [vmem:[#allocation5 + $0x6a0] sm:$0xff]
    %v505 = vld [vmem:[#allocation5 + $0x6a8] sm:$0xff]
    %v506 = vld [vmem:[#allocation5 + $0x6b0] sm:$0xff]
    %v507 = vld [vmem:[#allocation5 + $0x6b8] sm:$0xff]
    %v508 = vld [vmem:[#allocation5 + $0x6c0] sm:$0xff]
    %v509 = vld [vmem:[#allocation5 + $0x6c8] sm:$0xff]
    %v510 = vld [vmem:[#allocation5 + $0x6d0] sm:$0xff]
    %v511 = vld [vmem:[#allocation5 + $0x6d8] sm:$0xff]
    %v512 = vld [vmem:[#allocation5 + $0x6e0] sm:$0xff]
    %v513 = vld [vmem:[#allocation5 + $0x6e8] sm:$0xff]
    %v514 = vld [vmem:[#allocation5 + $0x6f0] sm:$0xff]
    %v515 = vld [vmem:[#allocation5 + $0x6f8] sm:$0xff]
    %v516 = vld [vmem:[#allocation7] sm:$0xf]
    %v518 = vlaneseq
    %v519 = vshrl.u32 %v518, 7
    %v520 = vsub.s32 0, %v519
    %v521 = vrot.slane %v516, %v520
    %v522 = vlaneseq
    %v523 = vshrl.u32 %v522, 7
    %v524 = vsub.s32 1, %v523
    %v525 = vrot.slane %v516, %v524
    %v526 = vlaneseq
    %v527 = vshrl.u32 %v526, 7
    %v528 = vsub.s32 2, %v527
    %v529 = vrot.slane %v516, %v528
    %v530 = vlaneseq
    %v531 = vshrl.u32 %v530, 7
    %v532 = vsub.s32 3, %v531
    %v533 = vrot.slane %v516, %v532
    %v666 = vunpack.c.l.b16 %v164
    %v667 = vunpack.c.h.b16 %v164
    %v668 = vunpack.c.l.b16 %v165
    %v669 = vunpack.c.h.b16 %v165
    %v670 = vunpack.c.l.b16 %v166
    %v671 = vunpack.c.h.b16 %v166
    %v672 = vunpack.c.l.b16 %v167
    %v673 = vunpack.c.l.b16 %v168
    %v674 = vunpack.c.h.b16 %v168
    %v675 = vunpack.c.l.b16 %v169
    %v676 = vunpack.c.h.b16 %v169
    %v677 = vunpack.c.l.b16 %v170
    %v678 = vunpack.c.h.b16 %v170
    %v679 = vunpack.c.l.b16 %v171
    %v680 = vunpack.c.l.b16 %v172
    %v681 = vunpack.c.h.b16 %v172
    %v682 = vunpack.c.l.b16 %v173
    %v683 = vunpack.c.h.b16 %v173
    %v684 = vunpack.c.l.b16 %v174
    %v685 = vunpack.c.h.b16 %v174
    %v686 = vunpack.c.l.b16 %v175
    %v687 = vunpack.c.l.b16 %v176
    %v688 = vunpack.c.h.b16 %v176
    %v689 = vunpack.c.l.b16 %v177
    %v690 = vunpack.c.h.b16 %v177
    %v691 = vunpack.c.l.b16 %v178
    %v692 = vunpack.c.h.b16 %v178
    %v693 = vunpack.c.l.b16 %v179
    %v694 = vunpack.c.l.b16 %v180
    %v695 = vunpack.c.h.b16 %v180
    %v696 = vunpack.c.l.b16 %v181
    %v697 = vunpack.c.h.b16 %v181
    %v698 = vunpack.c.l.b16 %v182
    %v699 = vunpack.c.h.b16 %v182
    %v700 = vunpack.c.l.b16 %v183
    %v701 = vunpack.c.l.b16 %v184
    %v702 = vunpack.c.h.b16 %v184
    %v703 = vunpack.c.l.b16 %v185
    %v704 = vunpack.c.h.b16 %v185
    %v705 = vunpack.c.l.b16 %v186
    %v706 = vunpack.c.h.b16 %v186
    %v707 = vunpack.c.l.b16 %v187
    %v708 = vunpack.c.l.b16 %v188
    %v709 = vunpack.c.h.b16 %v188
    %v710 = vunpack.c.l.b16 %v189
    %v711 = vunpack.c.h.b16 %v189
    %v712 = vunpack.c.l.b16 %v190
    %v713 = vunpack.c.h.b16 %v190
    %v714 = vunpack.c.l.b16 %v191
    %v715 = vunpack.c.l.b16 %v192
    %v716 = vunpack.c.h.b16 %v192
    %v717 = vunpack.c.l.b16 %v193
    %v718 = vunpack.c.h.b16 %v193
    %v719 = vunpack.c.l.b16 %v194
    %v720 = vunpack.c.h.b16 %v194
    %v721 = vunpack.c.l.b16 %v195
    %v722 = vunpack.c.l.b16 %v196
    %v723 = vunpack.c.h.b16 %v196
    %v724 = vunpack.c.l.b16 %v197
    %v725 = vunpack.c.h.b16 %v197
    %v726 = vunpack.c.l.b16 %v198
    %v727 = vunpack.c.h.b16 %v198
    %v728 = vunpack.c.l.b16 %v199
    %v729 = vunpack.c.l.b16 %v200
    %v730 = vunpack.c.h.b16 %v200
    %v731 = vunpack.c.l.b16 %v201
    %v732 = vunpack.c.h.b16 %v201
    %v733 = vunpack.c.l.b16 %v202
    %v734 = vunpack.c.h.b16 %v202
    %v735 = vunpack.c.l.b16 %v203
    %v736 = vunpack.c.l.b16 %v204
    %v737 = vunpack.c.h.b16 %v204
    %v738 = vunpack.c.l.b16 %v205
    %v739 = vunpack.c.h.b16 %v205
    %v740 = vunpack.c.l.b16 %v206
    %v741 = vunpack.c.h.b16 %v206
    %v742 = vunpack.c.l.b16 %v207
    %v743 = vunpack.c.l.b16 %v208
    %v744 = vunpack.c.h.b16 %v208
    %v745 = vunpack.c.l.b16 %v209
    %v746 = vunpack.c.h.b16 %v209
    %v747 = vunpack.c.l.b16 %v210
    %v748 = vunpack.c.h.b16 %v210
    %v749 = vunpack.c.l.b16 %v211
    %v750 = vunpack.c.l.b16 %v212
    %v751 = vunpack.c.h.b16 %v212
    %v752 = vunpack.c.l.b16 %v213
    %v753 = vunpack.c.h.b16 %v213
    %v754 = vunpack.c.l.b16 %v214
    %v755 = vunpack.c.h.b16 %v214
    %v756 = vunpack.c.l.b16 %v215
    %v757 = vunpack.c.l.b16 %v216
    %v758 = vunpack.c.h.b16 %v216
    %v759 = vunpack.c.l.b16 %v217
    %v760 = vunpack.c.h.b16 %v217
    %v761 = vunpack.c.l.b16 %v218
    %v762 = vunpack.c.h.b16 %v218
    %v763 = vunpack.c.l.b16 %v219
    %v764 = vunpack.c.l.b16 %v220
    %v765 = vunpack.c.h.b16 %v220
    %v766 = vunpack.c.l.b16 %v221
    %v767 = vunpack.c.h.b16 %v221
    %v768 = vunpack.c.l.b16 %v222
    %v769 = vunpack.c.h.b16 %v222
    %v770 = vunpack.c.l.b16 %v223
    %v771 = vunpack.c.l.b16 %v224
    %v772 = vunpack.c.h.b16 %v224
    %v773 = vunpack.c.l.b16 %v225
    %v774 = vunpack.c.h.b16 %v225
    %v775 = vunpack.c.l.b16 %v226
    %v776 = vunpack.c.h.b16 %v226
    %v777 = vunpack.c.l.b16 %v227
    %v778 = vunpack.c.l.b16 %v228
    %v779 = vunpack.c.h.b16 %v228
    %v780 = vunpack.c.l.b16 %v229
    %v781 = vunpack.c.h.b16 %v229
    %v782 = vunpack.c.l.b16 %v230
    %v783 = vunpack.c.h.b16 %v230
    %v784 = vunpack.c.l.b16 %v231
    %v785 = vunpack.c.l.b16 %v232
    %v786 = vunpack.c.h.b16 %v232
    %v787 = vunpack.c.l.b16 %v233
    %v788 = vunpack.c.h.b16 %v233
    %v789 = vunpack.c.l.b16 %v234
    %v790 = vunpack.c.h.b16 %v234
    %v791 = vunpack.c.l.b16 %v235
    %v792 = vunpack.c.l.b16 %v236
    %v793 = vunpack.c.h.b16 %v236
    %v794 = vunpack.c.l.b16 %v237
    %v795 = vunpack.c.h.b16 %v237
    %v796 = vunpack.c.l.b16 %v238
    %v797 = vunpack.c.h.b16 %v238
    %v798 = vunpack.c.l.b16 %v239
    %v799 = vunpack.c.l.b16 %v240
    %v800 = vunpack.c.h.b16 %v240
    %v801 = vunpack.c.l.b16 %v241
    %v802 = vunpack.c.h.b16 %v241
    %v803 = vunpack.c.l.b16 %v242
    %v804 = vunpack.c.h.b16 %v242
    %v805 = vunpack.c.l.b16 %v243
    %v806 = vunpack.c.l.b16 %v244
    %v807 = vunpack.c.h.b16 %v244
    %v808 = vunpack.c.l.b16 %v245
    %v809 = vunpack.c.h.b16 %v245
    %v810 = vunpack.c.l.b16 %v246
    %v811 = vunpack.c.h.b16 %v246
    %v812 = vunpack.c.l.b16 %v247
    %v813 = vunpack.c.l.b16 %v248
    %v814 = vunpack.c.h.b16 %v248
    %v815 = vunpack.c.l.b16 %v249
    %v816 = vunpack.c.h.b16 %v249
    %v817 = vunpack.c.l.b16 %v250
    %v818 = vunpack.c.h.b16 %v250
    %v819 = vunpack.c.l.b16 %v251
    %v820 = vunpack.c.l.b16 %v252
    %v821 = vunpack.c.h.b16 %v252
    %v822 = vunpack.c.l.b16 %v253
    %v823 = vunpack.c.h.b16 %v253
    %v824 = vunpack.c.l.b16 %v254
    %v825 = vunpack.c.h.b16 %v254
    %v826 = vunpack.c.l.b16 %v255
    %v827 = vunpack.c.l.b16 %v256
    %v828 = vunpack.c.h.b16 %v256
    %v829 = vunpack.c.l.b16 %v257
    %v830 = vunpack.c.h.b16 %v257
    %v831 = vunpack.c.l.b16 %v258
    %v832 = vunpack.c.h.b16 %v258
    %v833 = vunpack.c.l.b16 %v259
    %v834 = vunpack.c.l.b16 %v260
    %v835 = vunpack.c.h.b16 %v260
    %v836 = vunpack.c.l.b16 %v261
    %v837 = vunpack.c.h.b16 %v261
    %v838 = vunpack.c.l.b16 %v262
    %v839 = vunpack.c.h.b16 %v262
    %v840 = vunpack.c.l.b16 %v263
    %v841 = vunpack.c.l.b16 %v264
    %v842 = vunpack.c.h.b16 %v264
    %v843 = vunpack.c.l.b16 %v265
    %v844 = vunpack.c.h.b16 %v265
    %v845 = vunpack.c.l.b16 %v266
    %v846 = vunpack.c.h.b16 %v266
    %v847 = vunpack.c.l.b16 %v267
    %v848 = vunpack.c.l.b16 %v268
    %v849 = vunpack.c.h.b16 %v268
    %v850 = vunpack.c.l.b16 %v269
    %v851 = vunpack.c.h.b16 %v269
    %v852 = vunpack.c.l.b16 %v270
    %v853 = vunpack.c.h.b16 %v270
    %v854 = vunpack.c.l.b16 %v271
    %v855 = vunpack.c.l.b16 %v272
    %v856 = vunpack.c.h.b16 %v272
    %v857 = vunpack.c.l.b16 %v273
    %v858 = vunpack.c.h.b16 %v273
    %v859 = vunpack.c.l.b16 %v274
    %v860 = vunpack.c.h.b16 %v274
    %v861 = vunpack.c.l.b16 %v275
    %v862 = vunpack.c.l.b16 %v276
    %v863 = vunpack.c.h.b16 %v276
    %v864 = vunpack.c.l.b16 %v277
    %v865 = vunpack.c.h.b16 %v277
    %v866 = vunpack.c.l.b16 %v278
    %v867 = vunpack.c.h.b16 %v278
    %v868 = vunpack.c.l.b16 %v279
    %v869 = vunpack.c.l.b16 %v280
    %v870 = vunpack.c.h.b16 %v280
    %v871 = vunpack.c.l.b16 %v281
    %v872 = vunpack.c.h.b16 %v281
    %v873 = vunpack.c.l.b16 %v282
    %v874 = vunpack.c.h.b16 %v282
    %v875 = vunpack.c.l.b16 %v283
    %v876 = vunpack.c.l.b16 %v284
    %v877 = vunpack.c.h.b16 %v284
    %v878 = vunpack.c.l.b16 %v285
    %v879 = vunpack.c.h.b16 %v285
    %v880 = vunpack.c.l.b16 %v286
    %v881 = vunpack.c.h.b16 %v286
    %v882 = vunpack.c.l.b16 %v287
    %v883 = vunpack.c.l.b16 %v288
    %v884 = vunpack.c.h.b16 %v288
    %v885 = vunpack.c.l.b16 %v289
    %v886 = vunpack.c.h.b16 %v289
    %v887 = vunpack.c.l.b16 %v290
    %v888 = vunpack.c.h.b16 %v290
    %v889 = vunpack.c.l.b16 %v291
    %v890 = vpack.c.b16 %v673, %v666
    %v891 = vpack.c.b16 %v674, %v667
    %v892 = vpack.c.b16 %v675, %v668
    %v893 = vpack.c.b16 %v676, %v669
    %v894 = vpack.c.b16 %v677, %v670
    %v895 = vpack.c.b16 %v678, %v671
    %v896 = vpack.c.b16 %v679, %v672
    %v897 = vpack.c.b16 %v687, %v680
    %v898 = vpack.c.b16 %v688, %v681
    %v899 = vpack.c.b16 %v689, %v682
    %v900 = vpack.c.b16 %v690, %v683
    %v901 = vpack.c.b16 %v691, %v684
    %v902 = vpack.c.b16 %v692, %v685
    %v903 = vpack.c.b16 %v693, %v686
    %v904 = vpack.c.b16 %v701, %v694
    %v905 = vpack.c.b16 %v702, %v695
    %v906 = vpack.c.b16 %v703, %v696
    %v907 = vpack.c.b16 %v704, %v697
    %v908 = vpack.c.b16 %v705, %v698
    %v909 = vpack.c.b16 %v706, %v699
    %v910 = vpack.c.b16 %v707, %v700
    %v911 = vpack.c.b16 %v715, %v708
    %v912 = vpack.c.b16 %v716, %v709
    %v913 = vpack.c.b16 %v717, %v710
    %v914 = vpack.c.b16 %v718, %v711
    %v915 = vpack.c.b16 %v719, %v712
    %v916 = vpack.c.b16 %v720, %v713
    %v917 = vpack.c.b16 %v721, %v714
    %v918 = vpack.c.b16 %v729, %v722
    %v919 = vpack.c.b16 %v730, %v723
    %v920 = vpack.c.b16 %v731, %v724
    %v921 = vpack.c.b16 %v732, %v725
    %v922 = vpack.c.b16 %v733, %v726
    %v923 = vpack.c.b16 %v734, %v727
    %v924 = vpack.c.b16 %v735, %v728
    %v925 = vpack.c.b16 %v743, %v736
    %v926 = vpack.c.b16 %v744, %v737
    %v927 = vpack.c.b16 %v745, %v738
    %v928 = vpack.c.b16 %v746, %v739
    %v929 = vpack.c.b16 %v747, %v740
    %v930 = vpack.c.b16 %v748, %v741
    %v931 = vpack.c.b16 %v749, %v742
    %v932 = vpack.c.b16 %v757, %v750
    %v933 = vpack.c.b16 %v758, %v751
    %v934 = vpack.c.b16 %v759, %v752
    %v935 = vpack.c.b16 %v760, %v753
    %v936 = vpack.c.b16 %v761, %v754
    %v937 = vpack.c.b16 %v762, %v755
    %v938 = vpack.c.b16 %v763, %v756
    %v939 = vpack.c.b16 %v771, %v764
    %v940 = vpack.c.b16 %v772, %v765
    %v941 = vpack.c.b16 %v773, %v766
    %v942 = vpack.c.b16 %v774, %v767
    %v943 = vpack.c.b16 %v775, %v768
    %v944 = vpack.c.b16 %v776, %v769
    %v945 = vpack.c.b16 %v777, %v770
    %v946 = vpack.c.b16 %v785, %v778
    %v947 = vpack.c.b16 %v786, %v779
    %v948 = vpack.c.b16 %v787, %v780
    %v949 = vpack.c.b16 %v788, %v781
    %v950 = vpack.c.b16 %v789, %v782
    %v951 = vpack.c.b16 %v790, %v783
    %v952 = vpack.c.b16 %v791, %v784
    %v953 = vpack.c.b16 %v799, %v792
    %v954 = vpack.c.b16 %v800, %v793
    %v955 = vpack.c.b16 %v801, %v794
    %v956 = vpack.c.b16 %v802, %v795
    %v957 = vpack.c.b16 %v803, %v796
    %v958 = vpack.c.b16 %v804, %v797
    %v959 = vpack.c.b16 %v805, %v798
    %v960 = vpack.c.b16 %v813, %v806
    %v961 = vpack.c.b16 %v814, %v807
    %v962 = vpack.c.b16 %v815, %v808
    %v963 = vpack.c.b16 %v816, %v809
    %v964 = vpack.c.b16 %v817, %v810
    %v965 = vpack.c.b16 %v818, %v811
    %v966 = vpack.c.b16 %v819, %v812
    %v967 = vpack.c.b16 %v827, %v820
    %v968 = vpack.c.b16 %v828, %v821
    %v969 = vpack.c.b16 %v829, %v822
    %v970 = vpack.c.b16 %v830, %v823
    %v971 = vpack.c.b16 %v831, %v824
    %v972 = vpack.c.b16 %v832, %v825
    %v973 = vpack.c.b16 %v833, %v826
    %v974 = vpack.c.b16 %v841, %v834
    %v975 = vpack.c.b16 %v842, %v835
    %v976 = vpack.c.b16 %v843, %v836
    %v977 = vpack.c.b16 %v844, %v837
    %v978 = vpack.c.b16 %v845, %v838
    %v979 = vpack.c.b16 %v846, %v839
    %v980 = vpack.c.b16 %v847, %v840
    %v981 = vpack.c.b16 %v855, %v848
    %v982 = vpack.c.b16 %v856, %v849
    %v983 = vpack.c.b16 %v857, %v850
    %v984 = vpack.c.b16 %v858, %v851
    %v985 = vpack.c.b16 %v859, %v852
    %v986 = vpack.c.b16 %v860, %v853
    %v987 = vpack.c.b16 %v861, %v854
    %v988 = vpack.c.b16 %v869, %v862
    %v989 = vpack.c.b16 %v870, %v863
    %v990 = vpack.c.b16 %v871, %v864
    %v991 = vpack.c.b16 %v872, %v865
    %v992 = vpack.c.b16 %v873, %v866
    %v993 = vpack.c.b16 %v874, %v867
    %v994 = vpack.c.b16 %v875, %v868
    %v995 = vpack.c.b16 %v883, %v876
    %v996 = vpack.c.b16 %v884, %v877
    %v997 = vpack.c.b16 %v885, %v878
    %v998 = vpack.c.b16 %v886, %v879
    %v999 = vpack.c.b16 %v887, %v880
    %v1000 = vpack.c.b16 %v888, %v881
    %v1001 = vpack.c.b16 %v889, %v882
    %v1338 = vunpack.c.l.b16 %v292
    %v1339 = vunpack.c.h.b16 %v292
    %v1340 = vunpack.c.l.b16 %v293
    %v1341 = vunpack.c.h.b16 %v293
    %v1342 = vunpack.c.l.b16 %v294
    %v1343 = vunpack.c.h.b16 %v294
    %v1344 = vunpack.c.l.b16 %v295
    %v1345 = vunpack.c.h.b16 %v295
    %v1346 = vunpack.c.l.b16 %v296
    %v1347 = vunpack.c.h.b16 %v296
    %v1348 = vunpack.c.l.b16 %v297
    %v1349 = vunpack.c.h.b16 %v297
    %v1350 = vunpack.c.l.b16 %v298
    %v1351 = vunpack.c.h.b16 %v298
    %v1352 = vunpack.c.l.b16 %v299
    %v1353 = vunpack.c.h.b16 %v299
    %v1354 = vunpack.c.l.b16 %v300
    %v1355 = vunpack.c.h.b16 %v300
    %v1356 = vunpack.c.l.b16 %v301
    %v1357 = vunpack.c.h.b16 %v301
    %v1358 = vunpack.c.l.b16 %v302
    %v1359 = vunpack.c.h.b16 %v302
    %v1360 = vunpack.c.l.b16 %v303
    %v1361 = vunpack.c.h.b16 %v303
    %v1362 = vunpack.c.l.b16 %v304
    %v1363 = vunpack.c.h.b16 %v304
    %v1364 = vunpack.c.l.b16 %v305
    %v1365 = vunpack.c.h.b16 %v305
    %v1366 = vunpack.c.l.b16 %v306
    %v1367 = vunpack.c.h.b16 %v306
    %v1368 = vunpack.c.l.b16 %v307
    %v1369 = vunpack.c.h.b16 %v307
    %v1370 = vunpack.c.l.b16 %v308
    %v1371 = vunpack.c.h.b16 %v308
    %v1372 = vunpack.c.l.b16 %v309
    %v1373 = vunpack.c.h.b16 %v309
    %v1374 = vunpack.c.l.b16 %v310
    %v1375 = vunpack.c.h.b16 %v310
    %v1376 = vunpack.c.l.b16 %v311
    %v1377 = vunpack.c.h.b16 %v311
    %v1378 = vunpack.c.l.b16 %v312
    %v1379 = vunpack.c.h.b16 %v312
    %v1380 = vunpack.c.l.b16 %v313
    %v1381 = vunpack.c.h.b16 %v313
    %v1382 = vunpack.c.l.b16 %v314
    %v1383 = vunpack.c.h.b16 %v314
    %v1384 = vunpack.c.l.b16 %v315
    %v1385 = vunpack.c.h.b16 %v315
    %v1386 = vunpack.c.l.b16 %v316
    %v1387 = vunpack.c.h.b16 %v316
    %v1388 = vunpack.c.l.b16 %v317
    %v1389 = vunpack.c.h.b16 %v317
    %v1390 = vunpack.c.l.b16 %v318
    %v1391 = vunpack.c.h.b16 %v318
    %v1392 = vunpack.c.l.b16 %v319
    %v1393 = vunpack.c.h.b16 %v319
    %v1394 = vunpack.c.l.b16 %v320
    %v1395 = vunpack.c.h.b16 %v320
    %v1396 = vunpack.c.l.b16 %v321
    %v1397 = vunpack.c.h.b16 %v321
    %v1398 = vunpack.c.l.b16 %v322
    %v1399 = vunpack.c.h.b16 %v322
    %v1400 = vunpack.c.l.b16 %v323
    %v1401 = vunpack.c.h.b16 %v323
    %v1402 = vunpack.c.l.b16 %v324
    %v1403 = vunpack.c.h.b16 %v324
    %v1404 = vunpack.c.l.b16 %v325
    %v1405 = vunpack.c.h.b16 %v325
    %v1406 = vunpack.c.l.b16 %v326
    %v1407 = vunpack.c.h.b16 %v326
    %v1408 = vunpack.c.l.b16 %v327
    %v1409 = vunpack.c.h.b16 %v327
    %v1410 = vunpack.c.l.b16 %v328
    %v1411 = vunpack.c.h.b16 %v328
    %v1412 = vunpack.c.l.b16 %v329
    %v1413 = vunpack.c.h.b16 %v329
    %v1414 = vunpack.c.l.b16 %v330
    %v1415 = vunpack.c.h.b16 %v330
    %v1416 = vunpack.c.l.b16 %v331
    %v1417 = vunpack.c.h.b16 %v331
    %v1418 = vunpack.c.l.b16 %v332
    %v1419 = vunpack.c.h.b16 %v332
    %v1420 = vunpack.c.l.b16 %v333
    %v1421 = vunpack.c.h.b16 %v333
    %v1422 = vunpack.c.l.b16 %v334
    %v1423 = vunpack.c.h.b16 %v334
    %v1424 = vunpack.c.l.b16 %v335
    %v1425 = vunpack.c.h.b16 %v335
    %v1426 = vunpack.c.l.b16 %v336
    %v1427 = vunpack.c.h.b16 %v336
    %v1428 = vunpack.c.l.b16 %v337
    %v1429 = vunpack.c.h.b16 %v337
    %v1430 = vunpack.c.l.b16 %v338
    %v1431 = vunpack.c.h.b16 %v338
    %v1432 = vunpack.c.l.b16 %v339
    %v1433 = vunpack.c.h.b16 %v339
    %v1434 = vunpack.c.l.b16 %v340
    %v1435 = vunpack.c.h.b16 %v340
    %v1436 = vunpack.c.l.b16 %v341
    %v1437 = vunpack.c.h.b16 %v341
    %v1438 = vunpack.c.l.b16 %v342
    %v1439 = vunpack.c.h.b16 %v342
    %v1440 = vunpack.c.l.b16 %v343
    %v1441 = vunpack.c.h.b16 %v343
    %v1442 = vunpack.c.l.b16 %v344
    %v1443 = vunpack.c.h.b16 %v344
    %v1444 = vunpack.c.l.b16 %v345
    %v1445 = vunpack.c.h.b16 %v345
    %v1446 = vunpack.c.l.b16 %v346
    %v1447 = vunpack.c.h.b16 %v346
    %v1448 = vunpack.c.l.b16 %v347
    %v1449 = vunpack.c.h.b16 %v347
    %v1450 = vunpack.c.l.b16 %v348
    %v1451 = vunpack.c.h.b16 %v348
    %v1452 = vunpack.c.l.b16 %v349
    %v1453 = vunpack.c.h.b16 %v349
    %v1454 = vunpack.c.l.b16 %v350
    %v1455 = vunpack.c.h.b16 %v350
    %v1456 = vunpack.c.l.b16 %v351
    %v1457 = vunpack.c.h.b16 %v351
    %v1458 = vunpack.c.l.b16 %v352
    %v1459 = vunpack.c.h.b16 %v352
    %v1460 = vunpack.c.l.b16 %v353
    %v1461 = vunpack.c.h.b16 %v353
    %v1462 = vunpack.c.l.b16 %v354
    %v1463 = vunpack.c.h.b16 %v354
    %v1464 = vunpack.c.l.b16 %v355
    %v1465 = vunpack.c.h.b16 %v355
    %v1466 = vunpack.c.l.b16 %v356
    %v1467 = vunpack.c.h.b16 %v356
    %v1468 = vunpack.c.l.b16 %v357
    %v1469 = vunpack.c.h.b16 %v357
    %v1470 = vunpack.c.l.b16 %v358
    %v1471 = vunpack.c.h.b16 %v358
    %v1472 = vunpack.c.l.b16 %v359
    %v1473 = vunpack.c.h.b16 %v359
    %v1474 = vunpack.c.l.b16 %v360
    %v1475 = vunpack.c.h.b16 %v360
    %v1476 = vunpack.c.l.b16 %v361
    %v1477 = vunpack.c.h.b16 %v361
    %v1478 = vunpack.c.l.b16 %v362
    %v1479 = vunpack.c.h.b16 %v362
    %v1480 = vunpack.c.l.b16 %v363
    %v1481 = vunpack.c.h.b16 %v363
    %v1482 = vunpack.c.l.b16 %v364
    %v1483 = vunpack.c.h.b16 %v364
    %v1484 = vunpack.c.l.b16 %v365
    %v1485 = vunpack.c.h.b16 %v365
    %v1486 = vunpack.c.l.b16 %v366
    %v1487 = vunpack.c.h.b16 %v366
    %v1488 = vunpack.c.l.b16 %v367
    %v1489 = vunpack.c.h.b16 %v367
    %v1490 = vunpack.c.l.b16 %v368
    %v1491 = vunpack.c.h.b16 %v368
    %v1492 = vunpack.c.l.b16 %v369
    %v1493 = vunpack.c.h.b16 %v369
    %v1494 = vunpack.c.l.b16 %v370
    %v1495 = vunpack.c.h.b16 %v370
    %v1496 = vunpack.c.l.b16 %v371
    %v1497 = vunpack.c.h.b16 %v371
    %v1498 = vunpack.c.l.b16 %v372
    %v1499 = vunpack.c.h.b16 %v372
    %v1500 = vunpack.c.l.b16 %v373
    %v1501 = vunpack.c.h.b16 %v373
    %v1502 = vunpack.c.l.b16 %v374
    %v1503 = vunpack.c.h.b16 %v374
    %v1504 = vunpack.c.l.b16 %v375
    %v1505 = vunpack.c.h.b16 %v375
    %v1506 = vunpack.c.l.b16 %v376
    %v1507 = vunpack.c.h.b16 %v376
    %v1508 = vunpack.c.l.b16 %v377
    %v1509 = vunpack.c.h.b16 %v377
    %v1510 = vunpack.c.l.b16 %v378
    %v1511 = vunpack.c.h.b16 %v378
    %v1512 = vunpack.c.l.b16 %v379
    %v1513 = vunpack.c.h.b16 %v379
    %v1514 = vunpack.c.l.b16 %v380
    %v1515 = vunpack.c.h.b16 %v380
    %v1516 = vunpack.c.l.b16 %v381
    %v1517 = vunpack.c.h.b16 %v381
    %v1518 = vunpack.c.l.b16 %v382
    %v1519 = vunpack.c.h.b16 %v382
    %v1520 = vunpack.c.l.b16 %v383
    %v1521 = vunpack.c.h.b16 %v383
    %v1522 = vunpack.c.l.b16 %v384
    %v1523 = vunpack.c.h.b16 %v384
    %v1524 = vunpack.c.l.b16 %v385
    %v1525 = vunpack.c.h.b16 %v385
    %v1526 = vunpack.c.l.b16 %v386
    %v1527 = vunpack.c.h.b16 %v386
    %v1528 = vunpack.c.l.b16 %v387
    %v1529 = vunpack.c.h.b16 %v387
    %v1530 = vunpack.c.l.b16 %v388
    %v1531 = vunpack.c.h.b16 %v388
    %v1532 = vunpack.c.l.b16 %v389
    %v1533 = vunpack.c.h.b16 %v389
    %v1534 = vunpack.c.l.b16 %v390
    %v1535 = vunpack.c.h.b16 %v390
    %v1536 = vunpack.c.l.b16 %v391
    %v1537 = vunpack.c.h.b16 %v391
    %v1538 = vunpack.c.l.b16 %v392
    %v1539 = vunpack.c.h.b16 %v392
    %v1540 = vunpack.c.l.b16 %v393
    %v1541 = vunpack.c.h.b16 %v393
    %v1542 = vunpack.c.l.b16 %v394
    %v1543 = vunpack.c.h.b16 %v394
    %v1544 = vunpack.c.l.b16 %v395
    %v1545 = vunpack.c.h.b16 %v395
    %v1546 = vunpack.c.l.b16 %v396
    %v1547 = vunpack.c.h.b16 %v396
    %v1548 = vunpack.c.l.b16 %v397
    %v1549 = vunpack.c.h.b16 %v397
    %v1550 = vunpack.c.l.b16 %v398
    %v1551 = vunpack.c.h.b16 %v398
    %v1552 = vunpack.c.l.b16 %v399
    %v1553 = vunpack.c.h.b16 %v399
    %v1554 = vunpack.c.l.b16 %v400
    %v1555 = vunpack.c.h.b16 %v400
    %v1556 = vunpack.c.l.b16 %v401
    %v1557 = vunpack.c.h.b16 %v401
    %v1558 = vunpack.c.l.b16 %v402
    %v1559 = vunpack.c.h.b16 %v402
    %v1560 = vunpack.c.l.b16 %v403
    %v1561 = vunpack.c.h.b16 %v403
    %v1562 = vunpack.c.l.b16 %v404
    %v1563 = vunpack.c.h.b16 %v404
    %v1564 = vunpack.c.l.b16 %v405
    %v1565 = vunpack.c.h.b16 %v405
    %v1566 = vunpack.c.l.b16 %v406
    %v1567 = vunpack.c.h.b16 %v406
    %v1568 = vunpack.c.l.b16 %v407
    %v1569 = vunpack.c.h.b16 %v407
    %v1570 = vunpack.c.l.b16 %v408
    %v1571 = vunpack.c.h.b16 %v408
    %v1572 = vunpack.c.l.b16 %v409
    %v1573 = vunpack.c.h.b16 %v409
    %v1574 = vunpack.c.l.b16 %v410
    %v1575 = vunpack.c.h.b16 %v410
    %v1576 = vunpack.c.l.b16 %v411
    %v1577 = vunpack.c.h.b16 %v411
    %v1578 = vunpack.c.l.b16 %v412
    %v1579 = vunpack.c.h.b16 %v412
    %v1580 = vunpack.c.l.b16 %v413
    %v1581 = vunpack.c.h.b16 %v413
    %v1582 = vunpack.c.l.b16 %v414
    %v1583 = vunpack.c.h.b16 %v414
    %v1584 = vunpack.c.l.b16 %v415
    %v1585 = vunpack.c.h.b16 %v415
    %v1586 = vunpack.c.l.b16 %v416
    %v1587 = vunpack.c.h.b16 %v416
    %v1588 = vunpack.c.l.b16 %v417
    %v1589 = vunpack.c.h.b16 %v417
    %v1590 = vunpack.c.l.b16 %v418
    %v1591 = vunpack.c.h.b16 %v418
    %v1592 = vunpack.c.l.b16 %v419
    %v1593 = vunpack.c.h.b16 %v419
    %v1594 = vunpack.c.l.b16 %v420
    %v1595 = vunpack.c.h.b16 %v420
    %v1596 = vunpack.c.l.b16 %v421
    %v1597 = vunpack.c.h.b16 %v421
    %v1598 = vunpack.c.l.b16 %v422
    %v1599 = vunpack.c.h.b16 %v422
    %v1600 = vunpack.c.l.b16 %v423
    %v1601 = vunpack.c.h.b16 %v423
    %v1602 = vunpack.c.l.b16 %v424
    %v1603 = vunpack.c.h.b16 %v424
    %v1604 = vunpack.c.l.b16 %v425
    %v1605 = vunpack.c.h.b16 %v425
    %v1606 = vunpack.c.l.b16 %v426
    %v1607 = vunpack.c.h.b16 %v426
    %v1608 = vunpack.c.l.b16 %v427
    %v1609 = vunpack.c.h.b16 %v427
    %v1610 = vunpack.c.l.b16 %v428
    %v1611 = vunpack.c.h.b16 %v428
    %v1612 = vunpack.c.l.b16 %v429
    %v1613 = vunpack.c.h.b16 %v429
    %v1614 = vunpack.c.l.b16 %v430
    %v1615 = vunpack.c.h.b16 %v430
    %v1616 = vunpack.c.l.b16 %v431
    %v1617 = vunpack.c.h.b16 %v431
    %v1618 = vunpack.c.l.b16 %v432
    %v1619 = vunpack.c.h.b16 %v432
    %v1620 = vunpack.c.l.b16 %v433
    %v1621 = vunpack.c.h.b16 %v433
    %v1622 = vunpack.c.l.b16 %v434
    %v1623 = vunpack.c.h.b16 %v434
    %v1624 = vunpack.c.l.b16 %v435
    %v1625 = vunpack.c.h.b16 %v435
    %v1626 = vunpack.c.l.b16 %v436
    %v1627 = vunpack.c.h.b16 %v436
    %v1628 = vunpack.c.l.b16 %v437
    %v1629 = vunpack.c.h.b16 %v437
    %v1630 = vunpack.c.l.b16 %v438
    %v1631 = vunpack.c.h.b16 %v438
    %v1632 = vunpack.c.l.b16 %v439
    %v1633 = vunpack.c.h.b16 %v439
    %v1634 = vunpack.c.l.b16 %v440
    %v1635 = vunpack.c.h.b16 %v440
    %v1636 = vunpack.c.l.b16 %v441
    %v1637 = vunpack.c.h.b16 %v441
    %v1638 = vunpack.c.l.b16 %v442
    %v1639 = vunpack.c.h.b16 %v442
    %v1640 = vunpack.c.l.b16 %v443
    %v1641 = vunpack.c.h.b16 %v443
    %v1642 = vunpack.c.l.b16 %v444
    %v1643 = vunpack.c.h.b16 %v444
    %v1644 = vunpack.c.l.b16 %v445
    %v1645 = vunpack.c.h.b16 %v445
    %v1646 = vunpack.c.l.b16 %v446
    %v1647 = vunpack.c.h.b16 %v446
    %v1648 = vunpack.c.l.b16 %v447
    %v1649 = vunpack.c.h.b16 %v447
    %v1650 = vunpack.c.l.b16 %v448
    %v1651 = vunpack.c.h.b16 %v448
    %v1652 = vunpack.c.l.b16 %v449
    %v1653 = vunpack.c.h.b16 %v449
    %v1654 = vunpack.c.l.b16 %v450
    %v1655 = vunpack.c.h.b16 %v450
    %v1656 = vunpack.c.l.b16 %v451
    %v1657 = vunpack.c.h.b16 %v451
    %v1658 = vunpack.c.l.b16 %v452
    %v1659 = vunpack.c.h.b16 %v452
    %v1660 = vunpack.c.l.b16 %v453
    %v1661 = vunpack.c.h.b16 %v453
    %v1662 = vunpack.c.l.b16 %v454
    %v1663 = vunpack.c.h.b16 %v454
    %v1664 = vunpack.c.l.b16 %v455
    %v1665 = vunpack.c.h.b16 %v455
    %v1666 = vunpack.c.l.b16 %v456
    %v1667 = vunpack.c.h.b16 %v456
    %v1668 = vunpack.c.l.b16 %v457
    %v1669 = vunpack.c.h.b16 %v457
    %v1670 = vunpack.c.l.b16 %v458
    %v1671 = vunpack.c.h.b16 %v458
    %v1672 = vunpack.c.l.b16 %v459
    %v1673 = vunpack.c.h.b16 %v459
    %v1674 = vunpack.c.l.b16 %v460
    %v1675 = vunpack.c.h.b16 %v460
    %v1676 = vunpack.c.l.b16 %v461
    %v1677 = vunpack.c.h.b16 %v461
    %v1678 = vunpack.c.l.b16 %v462
    %v1679 = vunpack.c.h.b16 %v462
    %v1680 = vunpack.c.l.b16 %v463
    %v1681 = vunpack.c.h.b16 %v463
    %v1682 = vunpack.c.l.b16 %v464
    %v1683 = vunpack.c.h.b16 %v464
    %v1684 = vunpack.c.l.b16 %v465
    %v1685 = vunpack.c.h.b16 %v465
    %v1686 = vunpack.c.l.b16 %v466
    %v1687 = vunpack.c.h.b16 %v466
    %v1688 = vunpack.c.l.b16 %v467
    %v1689 = vunpack.c.h.b16 %v467
    %v1690 = vunpack.c.l.b16 %v468
    %v1691 = vunpack.c.h.b16 %v468
    %v1692 = vunpack.c.l.b16 %v469
    %v1693 = vunpack.c.h.b16 %v469
    %v1694 = vunpack.c.l.b16 %v470
    %v1695 = vunpack.c.h.b16 %v470
    %v1696 = vunpack.c.l.b16 %v471
    %v1697 = vunpack.c.h.b16 %v471
    %v1698 = vunpack.c.l.b16 %v472
    %v1699 = vunpack.c.h.b16 %v472
    %v1700 = vunpack.c.l.b16 %v473
    %v1701 = vunpack.c.h.b16 %v473
    %v1702 = vunpack.c.l.b16 %v474
    %v1703 = vunpack.c.h.b16 %v474
    %v1704 = vunpack.c.l.b16 %v475
    %v1705 = vunpack.c.h.b16 %v475
    %v1706 = vunpack.c.l.b16 %v476
    %v1707 = vunpack.c.h.b16 %v476
    %v1708 = vunpack.c.l.b16 %v477
    %v1709 = vunpack.c.h.b16 %v477
    %v1710 = vunpack.c.l.b16 %v478
    %v1711 = vunpack.c.h.b16 %v478
    %v1712 = vunpack.c.l.b16 %v479
    %v1713 = vunpack.c.h.b16 %v479
    %v1714 = vunpack.c.l.b16 %v480
    %v1715 = vunpack.c.h.b16 %v480
    %v1716 = vunpack.c.l.b16 %v481
    %v1717 = vunpack.c.h.b16 %v481
    %v1718 = vunpack.c.l.b16 %v482
    %v1719 = vunpack.c.h.b16 %v482
    %v1720 = vunpack.c.l.b16 %v483
    %v1721 = vunpack.c.h.b16 %v483
    %v1722 = vunpack.c.l.b16 %v484
    %v1723 = vunpack.c.h.b16 %v484
    %v1724 = vunpack.c.l.b16 %v485
    %v1725 = vunpack.c.h.b16 %v485
    %v1726 = vunpack.c.l.b16 %v486
    %v1727 = vunpack.c.h.b16 %v486
    %v1728 = vunpack.c.l.b16 %v487
    %v1729 = vunpack.c.h.b16 %v487
    %v1730 = vunpack.c.l.b16 %v488
    %v1731 = vunpack.c.h.b16 %v488
    %v1732 = vunpack.c.l.b16 %v489
    %v1733 = vunpack.c.h.b16 %v489
    %v1734 = vunpack.c.l.b16 %v490
    %v1735 = vunpack.c.h.b16 %v490
    %v1736 = vunpack.c.l.b16 %v491
    %v1737 = vunpack.c.h.b16 %v491
    %v1738 = vunpack.c.l.b16 %v492
    %v1739 = vunpack.c.h.b16 %v492
    %v1740 = vunpack.c.l.b16 %v493
    %v1741 = vunpack.c.h.b16 %v493
    %v1742 = vunpack.c.l.b16 %v494
    %v1743 = vunpack.c.h.b16 %v494
    %v1744 = vunpack.c.l.b16 %v495
    %v1745 = vunpack.c.h.b16 %v495
    %v1746 = vunpack.c.l.b16 %v496
    %v1747 = vunpack.c.h.b16 %v496
    %v1748 = vunpack.c.l.b16 %v497
    %v1749 = vunpack.c.h.b16 %v497
    %v1750 = vunpack.c.l.b16 %v498
    %v1751 = vunpack.c.h.b16 %v498
    %v1752 = vunpack.c.l.b16 %v499
    %v1753 = vunpack.c.h.b16 %v499
    %v1754 = vunpack.c.l.b16 %v500
    %v1755 = vunpack.c.h.b16 %v500
    %v1756 = vunpack.c.l.b16 %v501
    %v1757 = vunpack.c.h.b16 %v501
    %v1758 = vunpack.c.l.b16 %v502
    %v1759 = vunpack.c.h.b16 %v502
    %v1760 = vunpack.c.l.b16 %v503
    %v1761 = vunpack.c.h.b16 %v503
    %v1762 = vunpack.c.l.b16 %v504
    %v1763 = vunpack.c.h.b16 %v504
    %v1764 = vunpack.c.l.b16 %v505
    %v1765 = vunpack.c.h.b16 %v505
    %v1766 = vunpack.c.l.b16 %v506
    %v1767 = vunpack.c.h.b16 %v506
    %v1768 = vunpack.c.l.b16 %v507
    %v1769 = vunpack.c.h.b16 %v507
    %v1770 = vunpack.c.l.b16 %v508
    %v1771 = vunpack.c.h.b16 %v508
    %v1772 = vunpack.c.l.b16 %v509
    %v1773 = vunpack.c.h.b16 %v509
    %v1774 = vunpack.c.l.b16 %v510
    %v1775 = vunpack.c.h.b16 %v510
    %v1776 = vunpack.c.l.b16 %v511
    %v1777 = vunpack.c.h.b16 %v511
    %v1778 = vunpack.c.l.b16 %v512
    %v1779 = vunpack.c.h.b16 %v512
    %v1780 = vunpack.c.l.b16 %v513
    %v1781 = vunpack.c.h.b16 %v513
    %v1782 = vunpack.c.l.b16 %v514
    %v1783 = vunpack.c.h.b16 %v514
    %v1784 = vunpack.c.l.b16 %v515
    %v1785 = vunpack.c.h.b16 %v515
    %v1786 = vpack.c.b16 %v1342, %v1338
    %v1787 = vpack.c.b16 %v1343, %v1339
    %v1788 = vpack.c.b16 %v1344, %v1340
    %v1789 = vpack.c.b16 %v1345, %v1341
    %v1790 = vpack.c.b16 %v1350, %v1346
    %v1791 = vpack.c.b16 %v1351, %v1347
    %v1792 = vpack.c.b16 %v1352, %v1348
    %v1793 = vpack.c.b16 %v1353, %v1349
    %v1794 = vpack.c.b16 %v1358, %v1354
    %v1795 = vpack.c.b16 %v1359, %v1355
    %v1796 = vpack.c.b16 %v1360, %v1356
    %v1797 = vpack.c.b16 %v1361, %v1357
    %v1798 = vpack.c.b16 %v1366, %v1362
    %v1799 = vpack.c.b16 %v1367, %v1363
    %v1800 = vpack.c.b16 %v1368, %v1364
    %v1801 = vpack.c.b16 %v1369, %v1365
    %v1802 = vpack.c.b16 %v1374, %v1370
    %v1803 = vpack.c.b16 %v1375, %v1371
    %v1804 = vpack.c.b16 %v1376, %v1372
    %v1805 = vpack.c.b16 %v1377, %v1373
    %v1806 = vpack.c.b16 %v1382, %v1378
    %v1807 = vpack.c.b16 %v1383, %v1379
    %v1808 = vpack.c.b16 %v1384, %v1380
    %v1809 = vpack.c.b16 %v1385, %v1381
    %v1810 = vpack.c.b16 %v1390, %v1386
    %v1811 = vpack.c.b16 %v1391, %v1387
    %v1812 = vpack.c.b16 %v1392, %v1388
    %v1813 = vpack.c.b16 %v1393, %v1389
    %v1814 = vpack.c.b16 %v1398, %v1394
    %v1815 = vpack.c.b16 %v1399, %v1395
    %v1816 = vpack.c.b16 %v1400, %v1396
    %v1817 = vpack.c.b16 %v1401, %v1397
    %v1818 = vpack.c.b16 %v1406, %v1402
    %v1819 = vpack.c.b16 %v1407, %v1403
    %v1820 = vpack.c.b16 %v1408, %v1404
    %v1821 = vpack.c.b16 %v1409, %v1405
    %v1822 = vpack.c.b16 %v1414, %v1410
    %v1823 = vpack.c.b16 %v1415, %v1411
    %v1824 = vpack.c.b16 %v1416, %v1412
    %v1825 = vpack.c.b16 %v1417, %v1413
    %v1826 = vpack.c.b16 %v1422, %v1418
    %v1827 = vpack.c.b16 %v1423, %v1419
    %v1828 = vpack.c.b16 %v1424, %v1420
    %v1829 = vpack.c.b16 %v1425, %v1421
    %v1830 = vpack.c.b16 %v1430, %v1426
    %v1831 = vpack.c.b16 %v1431, %v1427
    %v1832 = vpack.c.b16 %v1432, %v1428
    %v1833 = vpack.c.b16 %v1433, %v1429
    %v1834 = vpack.c.b16 %v1438, %v1434
    %v1835 = vpack.c.b16 %v1439, %v1435
    %v1836 = vpack.c.b16 %v1440, %v1436
    %v1837 = vpack.c.b16 %v1441, %v1437
    %v1838 = vpack.c.b16 %v1446, %v1442
    %v1839 = vpack.c.b16 %v1447, %v1443
    %v1840 = vpack.c.b16 %v1448, %v1444
    %v1841 = vpack.c.b16 %v1449, %v1445
    %v1842 = vpack.c.b16 %v1454, %v1450
    %v1843 = vpack.c.b16 %v1455, %v1451
    %v1844 = vpack.c.b16 %v1456, %v1452
    %v1845 = vpack.c.b16 %v1457, %v1453
    %v1846 = vpack.c.b16 %v1462, %v1458
    %v1847 = vpack.c.b16 %v1463, %v1459
    %v1848 = vpack.c.b16 %v1464, %v1460
    %v1849 = vpack.c.b16 %v1465, %v1461
    %v1850 = vpack.c.b16 %v1470, %v1466
    %v1851 = vpack.c.b16 %v1471, %v1467
    %v1852 = vpack.c.b16 %v1472, %v1468
    %v1853 = vpack.c.b16 %v1473, %v1469
    %v1854 = vpack.c.b16 %v1478, %v1474
    %v1855 = vpack.c.b16 %v1479, %v1475
    %v1856 = vpack.c.b16 %v1480, %v1476
    %v1857 = vpack.c.b16 %v1481, %v1477
    %v1858 = vpack.c.b16 %v1486, %v1482
    %v1859 = vpack.c.b16 %v1487, %v1483
    %v1860 = vpack.c.b16 %v1488, %v1484
    %v1861 = vpack.c.b16 %v1489, %v1485
    %v1862 = vpack.c.b16 %v1494, %v1490
    %v1863 = vpack.c.b16 %v1495, %v1491
    %v1864 = vpack.c.b16 %v1496, %v1492
    %v1865 = vpack.c.b16 %v1497, %v1493
    %v1866 = vpack.c.b16 %v1502, %v1498
    %v1867 = vpack.c.b16 %v1503, %v1499
    %v1868 = vpack.c.b16 %v1504, %v1500
    %v1869 = vpack.c.b16 %v1505, %v1501
    %v1870 = vpack.c.b16 %v1510, %v1506
    %v1871 = vpack.c.b16 %v1511, %v1507
    %v1872 = vpack.c.b16 %v1512, %v1508
    %v1873 = vpack.c.b16 %v1513, %v1509
    %v1874 = vpack.c.b16 %v1518, %v1514
    %v1875 = vpack.c.b16 %v1519, %v1515
    %v1876 = vpack.c.b16 %v1520, %v1516
    %v1877 = vpack.c.b16 %v1521, %v1517
    %v1878 = vpack.c.b16 %v1526, %v1522
    %v1879 = vpack.c.b16 %v1527, %v1523
    %v1880 = vpack.c.b16 %v1528, %v1524
    %v1881 = vpack.c.b16 %v1529, %v1525
    %v1882 = vpack.c.b16 %v1534, %v1530
    %v1883 = vpack.c.b16 %v1535, %v1531
    %v1884 = vpack.c.b16 %v1536, %v1532
    %v1885 = vpack.c.b16 %v1537, %v1533
    %v1886 = vpack.c.b16 %v1542, %v1538
    %v1887 = vpack.c.b16 %v1543, %v1539
    %v1888 = vpack.c.b16 %v1544, %v1540
    %v1889 = vpack.c.b16 %v1545, %v1541
    %v1890 = vpack.c.b16 %v1550, %v1546
    %v1891 = vpack.c.b16 %v1551, %v1547
    %v1892 = vpack.c.b16 %v1552, %v1548
    %v1893 = vpack.c.b16 %v1553, %v1549
    %v1894 = vpack.c.b16 %v1558, %v1554
    %v1895 = vpack.c.b16 %v1559, %v1555
    %v1896 = vpack.c.b16 %v1560, %v1556
    %v1897 = vpack.c.b16 %v1561, %v1557
    %v1898 = vpack.c.b16 %v1566, %v1562
    %v1899 = vpack.c.b16 %v1567, %v1563
    %v1900 = vpack.c.b16 %v1568, %v1564
    %v1901 = vpack.c.b16 %v1569, %v1565
    %v1902 = vpack.c.b16 %v1574, %v1570
    %v1903 = vpack.c.b16 %v1575, %v1571
    %v1904 = vpack.c.b16 %v1576, %v1572
    %v1905 = vpack.c.b16 %v1577, %v1573
    %v1906 = vpack.c.b16 %v1582, %v1578
    %v1907 = vpack.c.b16 %v1583, %v1579
    %v1908 = vpack.c.b16 %v1584, %v1580
    %v1909 = vpack.c.b16 %v1585, %v1581
    %v1910 = vpack.c.b16 %v1590, %v1586
    %v1911 = vpack.c.b16 %v1591, %v1587
    %v1912 = vpack.c.b16 %v1592, %v1588
    %v1913 = vpack.c.b16 %v1593, %v1589
    %v1914 = vpack.c.b16 %v1598, %v1594
    %v1915 = vpack.c.b16 %v1599, %v1595
    %v1916 = vpack.c.b16 %v1600, %v1596
    %v1917 = vpack.c.b16 %v1601, %v1597
    %v1918 = vpack.c.b16 %v1606, %v1602
    %v1919 = vpack.c.b16 %v1607, %v1603
    %v1920 = vpack.c.b16 %v1608, %v1604
    %v1921 = vpack.c.b16 %v1609, %v1605
    %v1922 = vpack.c.b16 %v1614, %v1610
    %v1923 = vpack.c.b16 %v1615, %v1611
    %v1924 = vpack.c.b16 %v1616, %v1612
    %v1925 = vpack.c.b16 %v1617, %v1613
    %v1926 = vpack.c.b16 %v1622, %v1618
    %v1927 = vpack.c.b16 %v1623, %v1619
    %v1928 = vpack.c.b16 %v1624, %v1620
    %v1929 = vpack.c.b16 %v1625, %v1621
    %v1930 = vpack.c.b16 %v1630, %v1626
    %v1931 = vpack.c.b16 %v1631, %v1627
    %v1932 = vpack.c.b16 %v1632, %v1628
    %v1933 = vpack.c.b16 %v1633, %v1629
    %v1934 = vpack.c.b16 %v1638, %v1634
    %v1935 = vpack.c.b16 %v1639, %v1635
    %v1936 = vpack.c.b16 %v1640, %v1636
    %v1937 = vpack.c.b16 %v1641, %v1637
    %v1938 = vpack.c.b16 %v1646, %v1642
    %v1939 = vpack.c.b16 %v1647, %v1643
    %v1940 = vpack.c.b16 %v1648, %v1644
    %v1941 = vpack.c.b16 %v1649, %v1645
    %v1942 = vpack.c.b16 %v1654, %v1650
    %v1943 = vpack.c.b16 %v1655, %v1651
    %v1944 = vpack.c.b16 %v1656, %v1652
    %v1945 = vpack.c.b16 %v1657, %v1653
    %v1946 = vpack.c.b16 %v1662, %v1658
    %v1947 = vpack.c.b16 %v1663, %v1659
    %v1948 = vpack.c.b16 %v1664, %v1660
    %v1949 = vpack.c.b16 %v1665, %v1661
    %v1950 = vpack.c.b16 %v1670, %v1666
    %v1951 = vpack.c.b16 %v1671, %v1667
    %v1952 = vpack.c.b16 %v1672, %v1668
    %v1953 = vpack.c.b16 %v1673, %v1669
    %v1954 = vpack.c.b16 %v1678, %v1674
    %v1955 = vpack.c.b16 %v1679, %v1675
    %v1956 = vpack.c.b16 %v1680, %v1676
    %v1957 = vpack.c.b16 %v1681, %v1677
    %v1958 = vpack.c.b16 %v1686, %v1682
    %v1959 = vpack.c.b16 %v1687, %v1683
    %v1960 = vpack.c.b16 %v1688, %v1684
    %v1961 = vpack.c.b16 %v1689, %v1685
    %v1962 = vpack.c.b16 %v1694, %v1690
    %v1963 = vpack.c.b16 %v1695, %v1691
    %v1964 = vpack.c.b16 %v1696, %v1692
    %v1965 = vpack.c.b16 %v1697, %v1693
    %v1966 = vpack.c.b16 %v1702, %v1698
    %v1967 = vpack.c.b16 %v1703, %v1699
    %v1968 = vpack.c.b16 %v1704, %v1700
    %v1969 = vpack.c.b16 %v1705, %v1701
    %v1970 = vpack.c.b16 %v1710, %v1706
    %v1971 = vpack.c.b16 %v1711, %v1707
    %v1972 = vpack.c.b16 %v1712, %v1708
    %v1973 = vpack.c.b16 %v1713, %v1709
    %v1974 = vpack.c.b16 %v1718, %v1714
    %v1975 = vpack.c.b16 %v1719, %v1715
    %v1976 = vpack.c.b16 %v1720, %v1716
    %v1977 = vpack.c.b16 %v1721, %v1717
    %v1978 = vpack.c.b16 %v1726, %v1722
    %v1979 = vpack.c.b16 %v1727, %v1723
    %v1980 = vpack.c.b16 %v1728, %v1724
    %v1981 = vpack.c.b16 %v1729, %v1725
    %v1982 = vpack.c.b16 %v1734, %v1730
    %v1983 = vpack.c.b16 %v1735, %v1731
    %v1984 = vpack.c.b16 %v1736, %v1732
    %v1985 = vpack.c.b16 %v1737, %v1733
    %v1986 = vpack.c.b16 %v1742, %v1738
    %v1987 = vpack.c.b16 %v1743, %v1739
    %v1988 = vpack.c.b16 %v1744, %v1740
    %v1989 = vpack.c.b16 %v1745, %v1741
    %v1990 = vpack.c.b16 %v1750, %v1746
    %v1991 = vpack.c.b16 %v1751, %v1747
    %v1992 = vpack.c.b16 %v1752, %v1748
    %v1993 = vpack.c.b16 %v1753, %v1749
    %v1994 = vpack.c.b16 %v1758, %v1754
    %v1995 = vpack.c.b16 %v1759, %v1755
    %v1996 = vpack.c.b16 %v1760, %v1756
    %v1997 = vpack.c.b16 %v1761, %v1757
    %v1998 = vpack.c.b16 %v1766, %v1762
    %v1999 = vpack.c.b16 %v1767, %v1763
    %v2000 = vpack.c.b16 %v1768, %v1764
    %v2001 = vpack.c.b16 %v1769, %v1765
    %v2002 = vpack.c.b16 %v1774, %v1770
    %v2003 = vpack.c.b16 %v1775, %v1771
    %v2004 = vpack.c.b16 %v1776, %v1772
    %v2005 = vpack.c.b16 %v1777, %v1773
    %v2006 = vpack.c.b16 %v1782, %v1778
    %v2007 = vpack.c.b16 %v1783, %v1779
    %v2008 = vpack.c.b16 %v1784, %v1780
    %v2009 = vpack.c.b16 %v1785, %v1781
    %2234 = vmatprep.subr.bf16.mxu0 %v1815
    %2235 = vmatpush1.bf16.msra.mxu0 %v1814
    %2236 = vmatprep.subr.bf16.mxu0 %v1811
    %2237 = vmatpush1.bf16.msra.mxu0 %v1810
    %2238 = vmatprep.subr.bf16.mxu0 %v1807
    %2239 = vmatpush1.bf16.msra.mxu0 %v1806
    %2240 = vmatprep.subr.bf16.mxu0 %v1803
    %2241 = vmatpush1.bf16.msra.mxu0 %v1802
    %2242 = vmatprep.subr.bf16.mxu0 %v1799
    %2243 = vmatpush1.bf16.msra.mxu0 %v1798
    %2244 = vmatprep.subr.bf16.mxu0 %v1795
    %2245 = vmatpush1.bf16.msra.mxu0 %v1794
    %2246 = vmatprep.subr.bf16.mxu0 %v1791
    %2247 = vmatpush1.bf16.msra.mxu0 %v1790
    %2248 = vmatprep.subr.bf16.mxu0 %v1787
    %2249 = vmatpush1.bf16.msra.mxu0 %v1786
    %2250 = vmatprep.subr.bf16.mxu0 %v1847
    %2251 = vmatpush2.bf16.msra.mxu0 %v1846
    %2252 = vmatprep.subr.bf16.mxu0 %v1843
    %2253 = vmatpush2.bf16.msra.mxu0 %v1842
    %2254 = vmatprep.subr.bf16.mxu0 %v1839
    %2255 = vmatpush2.bf16.msra.mxu0 %v1838
    %2256 = vmatprep.subr.bf16.mxu0 %v1835
    %2257 = vmatpush2.bf16.msra.mxu0 %v1834
    %2258 = vmatprep.subr.bf16.mxu0 %v1831
    %2259 = vmatpush2.bf16.msra.mxu0 %v1830
    %2260 = vmatprep.subr.bf16.mxu0 %v1827
    %2261 = vmatpush2.bf16.msra.mxu0 %v1826
    %2262 = vmatprep.subr.bf16.mxu0 %v1823
    %2263 = vmatpush2.bf16.msra.mxu0 %v1822
    %2264 = vmatprep.subr.bf16.mxu0 %v1819
    %2265 = vmatpush2.bf16.msra.mxu0 %v1818
    %2266 = vmatprep.mubr.bf16.mxu0 %v891
    %2267 = vmatmul.mubr.bf16.gmra.mxu0 %v890
    %v2268 = vpop.f32.mrf.mxu0
    %v2269 = vadd.f32 %v521, %v2268
    %v2270 = vpop.f32.mrf.mxu0
    %v2271 = vadd.f32 %v525, %v2270
    %v2272 = vpop.f32.mrf.mxu0
    %v2273 = vadd.f32 %v521, %v2272
    %v2274 = vpop.f32.mrf.mxu0
    %v2275 = vadd.f32 %v525, %v2274
    %2276 = vmatprep.mubr.bf16.mxu0 %v898
    %2277 = vmatmul.mubr.bf16.gmra.mxu0 %v897
    %v2278 = vpop.f32.mrf.mxu0
    %v2279 = vadd.f32 %v521, %v2278
    %v2280 = vpop.f32.mrf.mxu0
    %v2281 = vadd.f32 %v525, %v2280
    %v2282 = vpop.f32.mrf.mxu0
    %v2283 = vadd.f32 %v521, %v2282
    %v2284 = vpop.f32.mrf.mxu0
    %v2285 = vadd.f32 %v525, %v2284
    %2286 = vmatprep.mubr.bf16.mxu0 %v905
    %2287 = vmatmul.mubr.bf16.gmra.mxu0 %v904
    %v2288 = vpop.f32.mrf.mxu0
    %v2289 = vadd.f32 %v521, %v2288
    %v2290 = vpop.f32.mrf.mxu0
    %v2291 = vadd.f32 %v525, %v2290
    %v2292 = vpop.f32.mrf.mxu0
    %v2293 = vadd.f32 %v521, %v2292
    %v2294 = vpop.f32.mrf.mxu0
    %v2295 = vadd.f32 %v525, %v2294
    %2296 = vmatprep.mubr.bf16.mxu0 %v912
    %2297 = vmatmul.mubr.bf16.gmra.mxu0 %v911
    %v2298 = vpop.f32.mrf.mxu0
    %v2299 = vadd.f32 %v521, %v2298
    %v2300 = vpop.f32.mrf.mxu0
    %v2301 = vadd.f32 %v525, %v2300
    %v2302 = vpop.f32.mrf.mxu0
    %v2303 = vadd.f32 %v521, %v2302
    %v2304 = vpop.f32.mrf.mxu0
    %v2305 = vadd.f32 %v525, %v2304
    %2306 = vmatprep.mubr.bf16.mxu0 %v919
    %2307 = vmatmul.mubr.bf16.gmra.mxu0 %v918
    %v2308 = vpop.f32.mrf.mxu0
    %v2309 = vadd.f32 %v521, %v2308
    %v2310 = vpop.f32.mrf.mxu0
    %v2311 = vadd.f32 %v525, %v2310
    %v2312 = vpop.f32.mrf.mxu0
    %v2313 = vadd.f32 %v521, %v2312
    %v2314 = vpop.f32.mrf.mxu0
    %v2315 = vadd.f32 %v525, %v2314
    %2316 = vmatprep.mubr.bf16.mxu0 %v926
    %2317 = vmatmul.mubr.bf16.gmra.mxu0 %v925
    %v2318 = vpop.f32.mrf.mxu0
    %v2319 = vadd.f32 %v521, %v2318
    %v2320 = vpop.f32.mrf.mxu0
    %v2321 = vadd.f32 %v525, %v2320
    %v2322 = vpop.f32.mrf.mxu0
    %v2323 = vadd.f32 %v521, %v2322
    %v2324 = vpop.f32.mrf.mxu0
    %v2325 = vadd.f32 %v525, %v2324
    %2326 = vmatprep.mubr.bf16.mxu0 %v933
    %2327 = vmatmul.mubr.bf16.gmra.mxu0 %v932
    %v2328 = vpop.f32.mrf.mxu0
    %v2329 = vadd.f32 %v521, %v2328
    %v2330 = vpop.f32.mrf.mxu0
    %v2331 = vadd.f32 %v525, %v2330
    %v2332 = vpop.f32.mrf.mxu0
    %v2333 = vadd.f32 %v521, %v2332
    %v2334 = vpop.f32.mrf.mxu0
    %v2335 = vadd.f32 %v525, %v2334
    %2336 = vmatprep.mubr.bf16.mxu0 %v940
    %2337 = vmatmul.mubr.bf16.gmra.mxu0 %v939
    %v2338 = vpop.f32.mrf.mxu0
    %v2339 = vadd.f32 %v521, %v2338
    %v2340 = vpop.f32.mrf.mxu0
    %v2341 = vadd.f32 %v525, %v2340
    %v2342 = vpop.f32.mrf.mxu0
    %v2343 = vadd.f32 %v521, %v2342
    %v2344 = vpop.f32.mrf.mxu0
    %v2345 = vadd.f32 %v525, %v2344
    %2346 = vmatprep.mubr.bf16.mxu0 %v947
    %2347 = vmatmul.mubr.bf16.gmra.mxu0 %v946
    %v2348 = vpop.f32.mrf.mxu0
    %v2349 = vadd.f32 %v521, %v2348
    %v2350 = vpop.f32.mrf.mxu0
    %v2351 = vadd.f32 %v525, %v2350
    %v2352 = vpop.f32.mrf.mxu0
    %v2353 = vadd.f32 %v521, %v2352
    %v2354 = vpop.f32.mrf.mxu0
    %v2355 = vadd.f32 %v525, %v2354
    %2356 = vmatprep.mubr.bf16.mxu0 %v954
    %2357 = vmatmul.mubr.bf16.gmra.mxu0 %v953
    %v2358 = vpop.f32.mrf.mxu0
    %v2359 = vadd.f32 %v521, %v2358
    %v2360 = vpop.f32.mrf.mxu0
    %v2361 = vadd.f32 %v525, %v2360
    %v2362 = vpop.f32.mrf.mxu0
    %v2363 = vadd.f32 %v521, %v2362
    %v2364 = vpop.f32.mrf.mxu0
    %v2365 = vadd.f32 %v525, %v2364
    %2366 = vmatprep.mubr.bf16.mxu0 %v961
    %2367 = vmatmul.mubr.bf16.gmra.mxu0 %v960
    %v2368 = vpop.f32.mrf.mxu0
    %v2369 = vadd.f32 %v521, %v2368
    %v2370 = vpop.f32.mrf.mxu0
    %v2371 = vadd.f32 %v525, %v2370
    %v2372 = vpop.f32.mrf.mxu0
    %v2373 = vadd.f32 %v521, %v2372
    %v2374 = vpop.f32.mrf.mxu0
    %v2375 = vadd.f32 %v525, %v2374
    %2376 = vmatprep.mubr.bf16.mxu0 %v968
    %2377 = vmatmul.mubr.bf16.gmra.mxu0 %v967
    %v2378 = vpop.f32.mrf.mxu0
    %v2379 = vadd.f32 %v521, %v2378
    %v2380 = vpop.f32.mrf.mxu0
    %v2381 = vadd.f32 %v525, %v2380
    %v2382 = vpop.f32.mrf.mxu0
    %v2383 = vadd.f32 %v521, %v2382
    %v2384 = vpop.f32.mrf.mxu0
    %v2385 = vadd.f32 %v525, %v2384
    %2386 = vmatprep.mubr.bf16.mxu0 %v975
    %2387 = vmatmul.mubr.bf16.gmra.mxu0 %v974
    %v2388 = vpop.f32.mrf.mxu0
    %v2389 = vadd.f32 %v521, %v2388
    %v2390 = vpop.f32.mrf.mxu0
    %v2391 = vadd.f32 %v525, %v2390
    %v2392 = vpop.f32.mrf.mxu0
    %v2393 = vadd.f32 %v521, %v2392
    %v2394 = vpop.f32.mrf.mxu0
    %v2395 = vadd.f32 %v525, %v2394
    %2396 = vmatprep.mubr.bf16.mxu0 %v982
    %2397 = vmatmul.mubr.bf16.gmra.mxu0 %v981
    %v2398 = vpop.f32.mrf.mxu0
    %v2399 = vadd.f32 %v521, %v2398
    %v2400 = vpop.f32.mrf.mxu0
    %v2401 = vadd.f32 %v525, %v2400
    %v2402 = vpop.f32.mrf.mxu0
    %v2403 = vadd.f32 %v521, %v2402
    %v2404 = vpop.f32.mrf.mxu0
    %v2405 = vadd.f32 %v525, %v2404
    %2406 = vmatprep.mubr.bf16.mxu0 %v989
    %2407 = vmatmul.mubr.bf16.gmra.mxu0 %v988
    %v2408 = vpop.f32.mrf.mxu0
    %v2409 = vadd.f32 %v521, %v2408
    %v2410 = vpop.f32.mrf.mxu0
    %v2411 = vadd.f32 %v525, %v2410
    %v2412 = vpop.f32.mrf.mxu0
    %v2413 = vadd.f32 %v521, %v2412
    %v2414 = vpop.f32.mrf.mxu0
    %v2415 = vadd.f32 %v525, %v2414
    %2416 = vmatprep.mubr.bf16.mxu0 %v996
    %2417 = vmatmul.mubr.bf16.gmra.mxu0 %v995
    %v2418 = vpop.f32.mrf.mxu0
    %v2419 = vadd.f32 %v521, %v2418
    %v2420 = vpop.f32.mrf.mxu0
    %v2421 = vadd.f32 %v525, %v2420
    %v2422 = vpop.f32.mrf.mxu0
    %v2423 = vadd.f32 %v521, %v2422
    %v2424 = vpop.f32.mrf.mxu0
    %v2425 = vadd.f32 %v525, %v2424
    %2426 = vdwg.mxu0
    %2427 = vmatprep.subr.bf16.mxu0 %v1879
    %2428 = vmatpush1.bf16.msra.mxu0 %v1878
    %2429 = vmatprep.subr.bf16.mxu0 %v1875
    %2430 = vmatpush1.bf16.msra.mxu0 %v1874
    %2431 = vmatprep.subr.bf16.mxu0 %v1871
    %2432 = vmatpush1.bf16.msra.mxu0 %v1870
    %2433 = vmatprep.subr.bf16.mxu0 %v1867
    %2434 = vmatpush1.bf16.msra.mxu0 %v1866
    %2435 = vmatprep.subr.bf16.mxu0 %v1863
    %2436 = vmatpush1.bf16.msra.mxu0 %v1862
    %2437 = vmatprep.subr.bf16.mxu0 %v1859
    %2438 = vmatpush1.bf16.msra.mxu0 %v1858
    %2439 = vmatprep.subr.bf16.mxu0 %v1855
    %2440 = vmatpush1.bf16.msra.mxu0 %v1854
    %2441 = vmatprep.subr.bf16.mxu0 %v1851
    %2442 = vmatpush1.bf16.msra.mxu0 %v1850
    %2443 = vmatprep.subr.bf16.mxu0 %v1911
    %2444 = vmatpush2.bf16.msra.mxu0 %v1910
    %2445 = vmatprep.subr.bf16.mxu0 %v1907
    %2446 = vmatpush2.bf16.msra.mxu0 %v1906
    %2447 = vmatprep.subr.bf16.mxu0 %v1903
    %2448 = vmatpush2.bf16.msra.mxu0 %v1902
    %2449 = vmatprep.subr.bf16.mxu0 %v1899
    %2450 = vmatpush2.bf16.msra.mxu0 %v1898
    %2451 = vmatprep.subr.bf16.mxu0 %v1895
    %2452 = vmatpush2.bf16.msra.mxu0 %v1894
    %2453 = vmatprep.subr.bf16.mxu0 %v1891
    %2454 = vmatpush2.bf16.msra.mxu0 %v1890
    %2455 = vmatprep.subr.bf16.mxu0 %v1887
    %2456 = vmatpush2.bf16.msra.mxu0 %v1886
    %2457 = vmatprep.subr.bf16.mxu0 %v1883
    %2458 = vmatpush2.bf16.msra.mxu0 %v1882
    %2459 = vmatprep.mubr.bf16.mxu0 %v893
    %2460 = vmatmul.mubr.bf16.gmra.mxu0 %v892
    %v2461 = vpop.f32.mrf.mxu0
    %v2462 = vadd.f32 %v2269, %v2461
    %v2463 = vpop.f32.mrf.mxu0
    %v2464 = vadd.f32 %v2271, %v2463
    %v2465 = vpop.f32.mrf.mxu0
    %v2466 = vadd.f32 %v2273, %v2465
    %v2467 = vpop.f32.mrf.mxu0
    %v2468 = vadd.f32 %v2275, %v2467
    %2469 = vmatprep.mubr.bf16.mxu0 %v900
    %2470 = vmatmul.mubr.bf16.gmra.mxu0 %v899
    %v2471 = vpop.f32.mrf.mxu0
    %v2472 = vadd.f32 %v2279, %v2471
    %v2473 = vpop.f32.mrf.mxu0
    %v2474 = vadd.f32 %v2281, %v2473
    %v2475 = vpop.f32.mrf.mxu0
    %v2476 = vadd.f32 %v2283, %v2475
    %v2477 = vpop.f32.mrf.mxu0
    %v2478 = vadd.f32 %v2285, %v2477
    %2479 = vmatprep.mubr.bf16.mxu0 %v907
    %2480 = vmatmul.mubr.bf16.gmra.mxu0 %v906
    %v2481 = vpop.f32.mrf.mxu0
    %v2482 = vadd.f32 %v2289, %v2481
    %v2483 = vpop.f32.mrf.mxu0
    %v2484 = vadd.f32 %v2291, %v2483
    %v2485 = vpop.f32.mrf.mxu0
    %v2486 = vadd.f32 %v2293, %v2485
    %v2487 = vpop.f32.mrf.mxu0
    %v2488 = vadd.f32 %v2295, %v2487
    %2489 = vmatprep.mubr.bf16.mxu0 %v914
    %2490 = vmatmul.mubr.bf16.gmra.mxu0 %v913
    %v2491 = vpop.f32.mrf.mxu0
    %v2492 = vadd.f32 %v2299, %v2491
    %v2493 = vpop.f32.mrf.mxu0
    %v2494 = vadd.f32 %v2301, %v2493
    %v2495 = vpop.f32.mrf.mxu0
    %v2496 = vadd.f32 %v2303, %v2495
    %v2497 = vpop.f32.mrf.mxu0
    %v2498 = vadd.f32 %v2305, %v2497
    %2499 = vmatprep.mubr.bf16.mxu0 %v921
    %2500 = vmatmul.mubr.bf16.gmra.mxu0 %v920
    %v2501 = vpop.f32.mrf.mxu0
    %v2502 = vadd.f32 %v2309, %v2501
    %v2503 = vpop.f32.mrf.mxu0
    %v2504 = vadd.f32 %v2311, %v2503
    %v2505 = vpop.f32.mrf.mxu0
    %v2506 = vadd.f32 %v2313, %v2505
    %v2507 = vpop.f32.mrf.mxu0
    %v2508 = vadd.f32 %v2315, %v2507
    %2509 = vmatprep.mubr.bf16.mxu0 %v928
    %2510 = vmatmul.mubr.bf16.gmra.mxu0 %v927
    %v2511 = vpop.f32.mrf.mxu0
    %v2512 = vadd.f32 %v2319, %v2511
    %v2513 = vpop.f32.mrf.mxu0
    %v2514 = vadd.f32 %v2321, %v2513
    %v2515 = vpop.f32.mrf.mxu0
    %v2516 = vadd.f32 %v2323, %v2515
    %v2517 = vpop.f32.mrf.mxu0
    %v2518 = vadd.f32 %v2325, %v2517
    %2519 = vmatprep.mubr.bf16.mxu0 %v935
    %2520 = vmatmul.mubr.bf16.gmra.mxu0 %v934
    %v2521 = vpop.f32.mrf.mxu0
    %v2522 = vadd.f32 %v2329, %v2521
    %v2523 = vpop.f32.mrf.mxu0
    %v2524 = vadd.f32 %v2331, %v2523
    %v2525 = vpop.f32.mrf.mxu0
    %v2526 = vadd.f32 %v2333, %v2525
    %v2527 = vpop.f32.mrf.mxu0
    %v2528 = vadd.f32 %v2335, %v2527
    %2529 = vmatprep.mubr.bf16.mxu0 %v942
    %2530 = vmatmul.mubr.bf16.gmra.mxu0 %v941
    %v2531 = vpop.f32.mrf.mxu0
    %v2532 = vadd.f32 %v2339, %v2531
    %v2533 = vpop.f32.mrf.mxu0
    %v2534 = vadd.f32 %v2341, %v2533
    %v2535 = vpop.f32.mrf.mxu0
    %v2536 = vadd.f32 %v2343, %v2535
    %v2537 = vpop.f32.mrf.mxu0
    %v2538 = vadd.f32 %v2345, %v2537
    %2539 = vmatprep.mubr.bf16.mxu0 %v949
    %2540 = vmatmul.mubr.bf16.gmra.mxu0 %v948
    %v2541 = vpop.f32.mrf.mxu0
    %v2542 = vadd.f32 %v2349, %v2541
    %v2543 = vpop.f32.mrf.mxu0
    %v2544 = vadd.f32 %v2351, %v2543
    %v2545 = vpop.f32.mrf.mxu0
    %v2546 = vadd.f32 %v2353, %v2545
    %v2547 = vpop.f32.mrf.mxu0
    %v2548 = vadd.f32 %v2355, %v2547
    %2549 = vmatprep.mubr.bf16.mxu0 %v956
    %2550 = vmatmul.mubr.bf16.gmra.mxu0 %v955
    %v2551 = vpop.f32.mrf.mxu0
    %v2552 = vadd.f32 %v2359, %v2551
    %v2553 = vpop.f32.mrf.mxu0
    %v2554 = vadd.f32 %v2361, %v2553
    %v2555 = vpop.f32.mrf.mxu0
    %v2556 = vadd.f32 %v2363, %v2555
    %v2557 = vpop.f32.mrf.mxu0
    %v2558 = vadd.f32 %v2365, %v2557
    %2559 = vmatprep.mubr.bf16.mxu0 %v963
    %2560 = vmatmul.mubr.bf16.gmra.mxu0 %v962
    %v2561 = vpop.f32.mrf.mxu0
    %v2562 = vadd.f32 %v2369, %v2561
    %v2563 = vpop.f32.mrf.mxu0
    %v2564 = vadd.f32 %v2371, %v2563
    %v2565 = vpop.f32.mrf.mxu0
    %v2566 = vadd.f32 %v2373, %v2565
    %v2567 = vpop.f32.mrf.mxu0
    %v2568 = vadd.f32 %v2375, %v2567
    %2569 = vmatprep.mubr.bf16.mxu0 %v970
    %2570 = vmatmul.mubr.bf16.gmra.mxu0 %v969
    %v2571 = vpop.f32.mrf.mxu0
    %v2572 = vadd.f32 %v2379, %v2571
    %v2573 = vpop.f32.mrf.mxu0
    %v2574 = vadd.f32 %v2381, %v2573
    %v2575 = vpop.f32.mrf.mxu0
    %v2576 = vadd.f32 %v2383, %v2575
    %v2577 = vpop.f32.mrf.mxu0
    %v2578 = vadd.f32 %v2385, %v2577
    %2579 = vmatprep.mubr.bf16.mxu0 %v977
    %2580 = vmatmul.mubr.bf16.gmra.mxu0 %v976
    %v2581 = vpop.f32.mrf.mxu0
    %v2582 = vadd.f32 %v2389, %v2581
    %v2583 = vpop.f32.mrf.mxu0
    %v2584 = vadd.f32 %v2391, %v2583
    %v2585 = vpop.f32.mrf.mxu0
    %v2586 = vadd.f32 %v2393, %v2585
    %v2587 = vpop.f32.mrf.mxu0
    %v2588 = vadd.f32 %v2395, %v2587
    %2589 = vmatprep.mubr.bf16.mxu0 %v984
    %2590 = vmatmul.mubr.bf16.gmra.mxu0 %v983
    %v2591 = vpop.f32.mrf.mxu0
    %v2592 = vadd.f32 %v2399, %v2591
    %v2593 = vpop.f32.mrf.mxu0
    %v2594 = vadd.f32 %v2401, %v2593
    %v2595 = vpop.f32.mrf.mxu0
    %v2596 = vadd.f32 %v2403, %v2595
    %v2597 = vpop.f32.mrf.mxu0
    %v2598 = vadd.f32 %v2405, %v2597
    %2599 = vmatprep.mubr.bf16.mxu0 %v991
    %2600 = vmatmul.mubr.bf16.gmra.mxu0 %v990
    %v2601 = vpop.f32.mrf.mxu0
    %v2602 = vadd.f32 %v2409, %v2601
    %v2603 = vpop.f32.mrf.mxu0
    %v2604 = vadd.f32 %v2411, %v2603
    %v2605 = vpop.f32.mrf.mxu0
    %v2606 = vadd.f32 %v2413, %v2605
    %v2607 = vpop.f32.mrf.mxu0
    %v2608 = vadd.f32 %v2415, %v2607
    %2609 = vmatprep.mubr.bf16.mxu0 %v998
    %2610 = vmatmul.mubr.bf16.gmra.mxu0 %v997
    %v2611 = vpop.f32.mrf.mxu0
    %v2612 = vadd.f32 %v2419, %v2611
    %v2613 = vpop.f32.mrf.mxu0
    %v2614 = vadd.f32 %v2421, %v2613
    %v2615 = vpop.f32.mrf.mxu0
    %v2616 = vadd.f32 %v2423, %v2615
    %v2617 = vpop.f32.mrf.mxu0
    %v2618 = vadd.f32 %v2425, %v2617
    %2619 = vdwg.mxu0
    %2620 = vmatprep.subr.bf16.mxu0 %v1943
    %2621 = vmatpush1.bf16.msra.mxu0 %v1942
    %2622 = vmatprep.subr.bf16.mxu0 %v1939
    %2623 = vmatpush1.bf16.msra.mxu0 %v1938
    %2624 = vmatprep.subr.bf16.mxu0 %v1935
    %2625 = vmatpush1.bf16.msra.mxu0 %v1934
    %2626 = vmatprep.subr.bf16.mxu0 %v1931
    %2627 = vmatpush1.bf16.msra.mxu0 %v1930
    %2628 = vmatprep.subr.bf16.mxu0 %v1927
    %2629 = vmatpush1.bf16.msra.mxu0 %v1926
    %2630 = vmatprep.subr.bf16.mxu0 %v1923
    %2631 = vmatpush1.bf16.msra.mxu0 %v1922
    %2632 = vmatprep.subr.bf16.mxu0 %v1919
    %2633 = vmatpush1.bf16.msra.mxu0 %v1918
    %2634 = vmatprep.subr.bf16.mxu0 %v1915
    %2635 = vmatpush1.bf16.msra.mxu0 %v1914
    %2636 = vmatprep.subr.bf16.mxu0 %v1975
    %2637 = vmatpush2.bf16.msra.mxu0 %v1974
    %2638 = vmatprep.subr.bf16.mxu0 %v1971
    %2639 = vmatpush2.bf16.msra.mxu0 %v1970
    %2640 = vmatprep.subr.bf16.mxu0 %v1967
    %2641 = vmatpush2.bf16.msra.mxu0 %v1966
    %2642 = vmatprep.subr.bf16.mxu0 %v1963
    %2643 = vmatpush2.bf16.msra.mxu0 %v1962
    %2644 = vmatprep.subr.bf16.mxu0 %v1959
    %2645 = vmatpush2.bf16.msra.mxu0 %v1958
    %2646 = vmatprep.subr.bf16.mxu0 %v1955
    %2647 = vmatpush2.bf16.msra.mxu0 %v1954
    %2648 = vmatprep.subr.bf16.mxu0 %v1951
    %2649 = vmatpush2.bf16.msra.mxu0 %v1950
    %2650 = vmatprep.subr.bf16.mxu0 %v1947
    %2651 = vmatpush2.bf16.msra.mxu0 %v1946
    %2652 = vmatprep.mubr.bf16.mxu0 %v895
    %2653 = vmatmul.mubr.bf16.gmra.mxu0 %v894
    %v2654 = vpop.f32.mrf.mxu0
    %v2655 = vadd.f32 %v2462, %v2654
    %v2656 = vpop.f32.mrf.mxu0
    %v2657 = vadd.f32 %v2464, %v2656
    %v2658 = vpop.f32.mrf.mxu0
    %v2659 = vadd.f32 %v2466, %v2658
    %v2660 = vpop.f32.mrf.mxu0
    %v2661 = vadd.f32 %v2468, %v2660
    %2662 = vmatprep.mubr.bf16.mxu0 %v902
    %2663 = vmatmul.mubr.bf16.gmra.mxu0 %v901
    %v2664 = vpop.f32.mrf.mxu0
    %v2665 = vadd.f32 %v2472, %v2664
    %v2666 = vpop.f32.mrf.mxu0
    %v2667 = vadd.f32 %v2474, %v2666
    %v2668 = vpop.f32.mrf.mxu0
    %v2669 = vadd.f32 %v2476, %v2668
    %v2670 = vpop.f32.mrf.mxu0
    %v2671 = vadd.f32 %v2478, %v2670
    %2672 = vmatprep.mubr.bf16.mxu0 %v909
    %2673 = vmatmul.mubr.bf16.gmra.mxu0 %v908
    %v2674 = vpop.f32.mrf.mxu0
    %v2675 = vadd.f32 %v2482, %v2674
    %v2676 = vpop.f32.mrf.mxu0
    %v2677 = vadd.f32 %v2484, %v2676
    %v2678 = vpop.f32.mrf.mxu0
    %v2679 = vadd.f32 %v2486, %v2678
    %v2680 = vpop.f32.mrf.mxu0
    %v2681 = vadd.f32 %v2488, %v2680
    %2682 = vmatprep.mubr.bf16.mxu0 %v916
    %2683 = vmatmul.mubr.bf16.gmra.mxu0 %v915
    %v2684 = vpop.f32.mrf.mxu0
    %v2685 = vadd.f32 %v2492, %v2684
    %v2686 = vpop.f32.mrf.mxu0
    %v2687 = vadd.f32 %v2494, %v2686
    %v2688 = vpop.f32.mrf.mxu0
    %v2689 = vadd.f32 %v2496, %v2688
    %v2690 = vpop.f32.mrf.mxu0
    %v2691 = vadd.f32 %v2498, %v2690
    %2692 = vmatprep.mubr.bf16.mxu0 %v923
    %2693 = vmatmul.mubr.bf16.gmra.mxu0 %v922
    %v2694 = vpop.f32.mrf.mxu0
    %v2695 = vadd.f32 %v2502, %v2694
    %v2696 = vpop.f32.mrf.mxu0
    %v2697 = vadd.f32 %v2504, %v2696
    %v2698 = vpop.f32.mrf.mxu0
    %v2699 = vadd.f32 %v2506, %v2698
    %v2700 = vpop.f32.mrf.mxu0
    %v2701 = vadd.f32 %v2508, %v2700
    %2702 = vmatprep.mubr.bf16.mxu0 %v930
    %2703 = vmatmul.mubr.bf16.gmra.mxu0 %v929
    %v2704 = vpop.f32.mrf.mxu0
    %v2705 = vadd.f32 %v2512, %v2704
    %v2706 = vpop.f32.mrf.mxu0
    %v2707 = vadd.f32 %v2514, %v2706
    %v2708 = vpop.f32.mrf.mxu0
    %v2709 = vadd.f32 %v2516, %v2708
    %v2710 = vpop.f32.mrf.mxu0
    %v2711 = vadd.f32 %v2518, %v2710
    %2712 = vmatprep.mubr.bf16.mxu0 %v937
    %2713 = vmatmul.mubr.bf16.gmra.mxu0 %v936
    %v2714 = vpop.f32.mrf.mxu0
    %v2715 = vadd.f32 %v2522, %v2714
    %v2716 = vpop.f32.mrf.mxu0
    %v2717 = vadd.f32 %v2524, %v2716
    %v2718 = vpop.f32.mrf.mxu0
    %v2719 = vadd.f32 %v2526, %v2718
    %v2720 = vpop.f32.mrf.mxu0
    %v2721 = vadd.f32 %v2528, %v2720
    %2722 = vmatprep.mubr.bf16.mxu0 %v944
    %2723 = vmatmul.mubr.bf16.gmra.mxu0 %v943
    %v2724 = vpop.f32.mrf.mxu0
    %v2725 = vadd.f32 %v2532, %v2724
    %v2726 = vpop.f32.mrf.mxu0
    %v2727 = vadd.f32 %v2534, %v2726
    %v2728 = vpop.f32.mrf.mxu0
    %v2729 = vadd.f32 %v2536, %v2728
    %v2730 = vpop.f32.mrf.mxu0
    %v2731 = vadd.f32 %v2538, %v2730
    %2732 = vmatprep.mubr.bf16.mxu0 %v951
    %2733 = vmatmul.mubr.bf16.gmra.mxu0 %v950
    %v2734 = vpop.f32.mrf.mxu0
    %v2735 = vadd.f32 %v2542, %v2734
    %v2736 = vpop.f32.mrf.mxu0
    %v2737 = vadd.f32 %v2544, %v2736
    %v2738 = vpop.f32.mrf.mxu0
    %v2739 = vadd.f32 %v2546, %v2738
    %v2740 = vpop.f32.mrf.mxu0
    %v2741 = vadd.f32 %v2548, %v2740
    %2742 = vmatprep.mubr.bf16.mxu0 %v958
    %2743 = vmatmul.mubr.bf16.gmra.mxu0 %v957
    %v2744 = vpop.f32.mrf.mxu0
    %v2745 = vadd.f32 %v2552, %v2744
    %v2746 = vpop.f32.mrf.mxu0
    %v2747 = vadd.f32 %v2554, %v2746
    %v2748 = vpop.f32.mrf.mxu0
    %v2749 = vadd.f32 %v2556, %v2748
    %v2750 = vpop.f32.mrf.mxu0
    %v2751 = vadd.f32 %v2558, %v2750
    %2752 = vmatprep.mubr.bf16.mxu0 %v965
    %2753 = vmatmul.mubr.bf16.gmra.mxu0 %v964
    %v2754 = vpop.f32.mrf.mxu0
    %v2755 = vadd.f32 %v2562, %v2754
    %v2756 = vpop.f32.mrf.mxu0
    %v2757 = vadd.f32 %v2564, %v2756
    %v2758 = vpop.f32.mrf.mxu0
    %v2759 = vadd.f32 %v2566, %v2758
    %v2760 = vpop.f32.mrf.mxu0
    %v2761 = vadd.f32 %v2568, %v2760
    %2762 = vmatprep.mubr.bf16.mxu0 %v972
    %2763 = vmatmul.mubr.bf16.gmra.mxu0 %v971
    %v2764 = vpop.f32.mrf.mxu0
    %v2765 = vadd.f32 %v2572, %v2764
    %v2766 = vpop.f32.mrf.mxu0
    %v2767 = vadd.f32 %v2574, %v2766
    %v2768 = vpop.f32.mrf.mxu0
    %v2769 = vadd.f32 %v2576, %v2768
    %v2770 = vpop.f32.mrf.mxu0
    %v2771 = vadd.f32 %v2578, %v2770
    %2772 = vmatprep.mubr.bf16.mxu0 %v979
    %2773 = vmatmul.mubr.bf16.gmra.mxu0 %v978
    %v2774 = vpop.f32.mrf.mxu0
    %v2775 = vadd.f32 %v2582, %v2774
    %v2776 = vpop.f32.mrf.mxu0
    %v2777 = vadd.f32 %v2584, %v2776
    %v2778 = vpop.f32.mrf.mxu0
    %v2779 = vadd.f32 %v2586, %v2778
    %v2780 = vpop.f32.mrf.mxu0
    %v2781 = vadd.f32 %v2588, %v2780
    %2782 = vmatprep.mubr.bf16.mxu0 %v986
    %2783 = vmatmul.mubr.bf16.gmra.mxu0 %v985
    %v2784 = vpop.f32.mrf.mxu0
    %v2785 = vadd.f32 %v2592, %v2784
    %v2786 = vpop.f32.mrf.mxu0
    %v2787 = vadd.f32 %v2594, %v2786
    %v2788 = vpop.f32.mrf.mxu0
    %v2789 = vadd.f32 %v2596, %v2788
    %v2790 = vpop.f32.mrf.mxu0
    %v2791 = vadd.f32 %v2598, %v2790
    %2792 = vmatprep.mubr.bf16.mxu0 %v993
    %2793 = vmatmul.mubr.bf16.gmra.mxu0 %v992
    %v2794 = vpop.f32.mrf.mxu0
    %v2795 = vadd.f32 %v2602, %v2794
    %v2796 = vpop.f32.mrf.mxu0
    %v2797 = vadd.f32 %v2604, %v2796
    %v2798 = vpop.f32.mrf.mxu0
    %v2799 = vadd.f32 %v2606, %v2798
    %v2800 = vpop.f32.mrf.mxu0
    %v2801 = vadd.f32 %v2608, %v2800
    %2802 = vmatprep.mubr.bf16.mxu0 %v1000
    %2803 = vmatmul.mubr.bf16.gmra.mxu0 %v999
    %v2804 = vpop.f32.mrf.mxu0
    %v2805 = vadd.f32 %v2612, %v2804
    %v2806 = vpop.f32.mrf.mxu0
    %v2807 = vadd.f32 %v2614, %v2806
    %v2808 = vpop.f32.mrf.mxu0
    %v2809 = vadd.f32 %v2616, %v2808
    %v2810 = vpop.f32.mrf.mxu0
    %v2811 = vadd.f32 %v2618, %v2810
    %2812 = vdwg.mxu0
    %2813 = vmatprep.subr.bf16.mxu0 %v2007
    %2814 = vmatpush1.bf16.msra.mxu0 %v2006
    %2815 = vmatprep.subr.bf16.mxu0 %v2003
    %2816 = vmatpush1.bf16.msra.mxu0 %v2002
    %2817 = vmatprep.subr.bf16.mxu0 %v1999
    %2818 = vmatpush1.bf16.msra.mxu0 %v1998
    %2819 = vmatprep.subr.bf16.mxu0 %v1995
    %2820 = vmatpush1.bf16.msra.mxu0 %v1994
    %2821 = vmatprep.subr.bf16.mxu0 %v1991
    %2822 = vmatpush1.bf16.msra.mxu0 %v1990
    %2823 = vmatprep.subr.bf16.mxu0 %v1987
    %2824 = vmatpush1.bf16.msra.mxu0 %v1986
    %2825 = vmatprep.subr.bf16.mxu0 %v1983
    %2826 = vmatpush1.bf16.msra.mxu0 %v1982
    %2827 = vmatprep.subr.bf16.mxu0 %v1979
    %2828 = vmatpush1.bf16.msra.mxu0 %v1978
    %2829 = vmatprep.subr.bf16.mxu0 0
    %2830 = vmatpush2.bf16.msra.mxu0 0
    %2831 = vmatprep.subr.bf16.mxu0 0
    %2832 = vmatpush2.bf16.msra.mxu0 0
    %2833 = vmatprep.subr.bf16.mxu0 0
    %2834 = vmatpush2.bf16.msra.mxu0 0
    %2835 = vmatprep.subr.bf16.mxu0 0
    %2836 = vmatpush2.bf16.msra.mxu0 0
    %2837 = vmatprep.subr.bf16.mxu0 0
    %2838 = vmatpush2.bf16.msra.mxu0 0
    %2839 = vmatprep.subr.bf16.mxu0 0
    %2840 = vmatpush2.bf16.msra.mxu0 0
    %2841 = vmatprep.subr.bf16.mxu0 0
    %2842 = vmatpush2.bf16.msra.mxu0 0
    %2843 = vmatprep.subr.bf16.mxu0 0
    %2844 = vmatpush2.bf16.msra.mxu0 0
    %2845 = vmatprep.mubr.bf16.mxu0 0
    %2846 = vmatmul.mubr.bf16.gmra.mxu0 %v896
    %v2847 = vpop.f32.mrf.mxu0
    %v2848 = vadd.f32 %v2655, %v2847
    %v2849 = vpop.f32.mrf.mxu0
    %v2850 = vadd.f32 %v2657, %v2849
    %v2851 = vpop.f32.mrf.mxu0
    %v2852 = vadd.f32 %v2659, %v2851
    %v2853 = vpop.f32.mrf.mxu0
    %v2854 = vadd.f32 %v2661, %v2853
    %2855 = vmatprep.mubr.bf16.mxu0 0
    %2856 = vmatmul.mubr.bf16.gmra.mxu0 %v903
    %v2857 = vpop.f32.mrf.mxu0
    %v2858 = vadd.f32 %v2665, %v2857
    %v2859 = vpop.f32.mrf.mxu0
    %v2860 = vadd.f32 %v2667, %v2859
    %v2861 = vpop.f32.mrf.mxu0
    %v2862 = vadd.f32 %v2669, %v2861
    %v2863 = vpop.f32.mrf.mxu0
    %v2864 = vadd.f32 %v2671, %v2863
    %2865 = vmatprep.mubr.bf16.mxu0 0
    %2866 = vmatmul.mubr.bf16.gmra.mxu0 %v910
    %v2867 = vpop.f32.mrf.mxu0
    %v2868 = vadd.f32 %v2675, %v2867
    %v2869 = vpop.f32.mrf.mxu0
    %v2870 = vadd.f32 %v2677, %v2869
    %v2871 = vpop.f32.mrf.mxu0
    %v2872 = vadd.f32 %v2679, %v2871
    %v2873 = vpop.f32.mrf.mxu0
    %v2874 = vadd.f32 %v2681, %v2873
    %2875 = vmatprep.mubr.bf16.mxu0 0
    %2876 = vmatmul.mubr.bf16.gmra.mxu0 %v917
    %v2877 = vpop.f32.mrf.mxu0
    %v2878 = vadd.f32 %v2685, %v2877
    %v2879 = vpop.f32.mrf.mxu0
    %v2880 = vadd.f32 %v2687, %v2879
    %v2881 = vpop.f32.mrf.mxu0
    %v2882 = vadd.f32 %v2689, %v2881
    %v2883 = vpop.f32.mrf.mxu0
    %v2884 = vadd.f32 %v2691, %v2883
    %2885 = vmatprep.mubr.bf16.mxu0 0
    %2886 = vmatmul.mubr.bf16.gmra.mxu0 %v924
    %v2887 = vpop.f32.mrf.mxu0
    %v2888 = vadd.f32 %v2695, %v2887
    %v2889 = vpop.f32.mrf.mxu0
    %v2890 = vadd.f32 %v2697, %v2889
    %v2891 = vpop.f32.mrf.mxu0
    %v2892 = vadd.f32 %v2699, %v2891
    %v2893 = vpop.f32.mrf.mxu0
    %v2894 = vadd.f32 %v2701, %v2893
    %2895 = vmatprep.mubr.bf16.mxu0 0
    %2896 = vmatmul.mubr.bf16.gmra.mxu0 %v931
    %v2897 = vpop.f32.mrf.mxu0
    %v2898 = vadd.f32 %v2705, %v2897
    %v2899 = vpop.f32.mrf.mxu0
    %v2900 = vadd.f32 %v2707, %v2899
    %v2901 = vpop.f32.mrf.mxu0
    %v2902 = vadd.f32 %v2709, %v2901
    %v2903 = vpop.f32.mrf.mxu0
    %v2904 = vadd.f32 %v2711, %v2903
    %2905 = vmatprep.mubr.bf16.mxu0 0
    %2906 = vmatmul.mubr.bf16.gmra.mxu0 %v938
    %v2907 = vpop.f32.mrf.mxu0
    %v2908 = vadd.f32 %v2715, %v2907
    %v2909 = vpop.f32.mrf.mxu0
    %v2910 = vadd.f32 %v2717, %v2909
    %v2911 = vpop.f32.mrf.mxu0
    %v2912 = vadd.f32 %v2719, %v2911
    %v2913 = vpop.f32.mrf.mxu0
    %v2914 = vadd.f32 %v2721, %v2913
    %2915 = vmatprep.mubr.bf16.mxu0 0
    %2916 = vmatmul.mubr.bf16.gmra.mxu0 %v945
    %v2917 = vpop.f32.mrf.mxu0
    %v2918 = vadd.f32 %v2725, %v2917
    %v2919 = vpop.f32.mrf.mxu0
    %v2920 = vadd.f32 %v2727, %v2919
    %v2921 = vpop.f32.mrf.mxu0
    %v2922 = vadd.f32 %v2729, %v2921
    %v2923 = vpop.f32.mrf.mxu0
    %v2924 = vadd.f32 %v2731, %v2923
    %2925 = vmatprep.mubr.bf16.mxu0 0
    %2926 = vmatmul.mubr.bf16.gmra.mxu0 %v952
    %v2927 = vpop.f32.mrf.mxu0
    %v2928 = vadd.f32 %v2735, %v2927
    %v2929 = vpop.f32.mrf.mxu0
    %v2930 = vadd.f32 %v2737, %v2929
    %v2931 = vpop.f32.mrf.mxu0
    %v2932 = vadd.f32 %v2739, %v2931
    %v2933 = vpop.f32.mrf.mxu0
    %v2934 = vadd.f32 %v2741, %v2933
    %2935 = vmatprep.mubr.bf16.mxu0 0
    %2936 = vmatmul.mubr.bf16.gmra.mxu0 %v959
    %v2937 = vpop.f32.mrf.mxu0
    %v2938 = vadd.f32 %v2745, %v2937
    %v2939 = vpop.f32.mrf.mxu0
    %v2940 = vadd.f32 %v2747, %v2939
    %v2941 = vpop.f32.mrf.mxu0
    %v2942 = vadd.f32 %v2749, %v2941
    %v2943 = vpop.f32.mrf.mxu0
    %v2944 = vadd.f32 %v2751, %v2943
    %2945 = vmatprep.mubr.bf16.mxu0 0
    %2946 = vmatmul.mubr.bf16.gmra.mxu0 %v966
    %v2947 = vpop.f32.mrf.mxu0
    %v2948 = vadd.f32 %v2755, %v2947
    %v2949 = vpop.f32.mrf.mxu0
    %v2950 = vadd.f32 %v2757, %v2949
    %v2951 = vpop.f32.mrf.mxu0
    %v2952 = vadd.f32 %v2759, %v2951
    %v2953 = vpop.f32.mrf.mxu0
    %v2954 = vadd.f32 %v2761, %v2953
    %2955 = vmatprep.mubr.bf16.mxu0 0
    %2956 = vmatmul.mubr.bf16.gmra.mxu0 %v973
    %v2957 = vpop.f32.mrf.mxu0
    %v2958 = vadd.f32 %v2765, %v2957
    %v2959 = vpop.f32.mrf.mxu0
    %v2960 = vadd.f32 %v2767, %v2959
    %v2961 = vpop.f32.mrf.mxu0
    %v2962 = vadd.f32 %v2769, %v2961
    %v2963 = vpop.f32.mrf.mxu0
    %v2964 = vadd.f32 %v2771, %v2963
    %2965 = vmatprep.mubr.bf16.mxu0 0
    %2966 = vmatmul.mubr.bf16.gmra.mxu0 %v980
    %v2967 = vpop.f32.mrf.mxu0
    %v2968 = vadd.f32 %v2775, %v2967
    %v2969 = vpop.f32.mrf.mxu0
    %v2970 = vadd.f32 %v2777, %v2969
    %v2971 = vpop.f32.mrf.mxu0
    %v2972 = vadd.f32 %v2779, %v2971
    %v2973 = vpop.f32.mrf.mxu0
    %v2974 = vadd.f32 %v2781, %v2973
    %2975 = vmatprep.mubr.bf16.mxu0 0
    %2976 = vmatmul.mubr.bf16.gmra.mxu0 %v987
    %v2977 = vpop.f32.mrf.mxu0
    %v2978 = vadd.f32 %v2785, %v2977
    %v2979 = vpop.f32.mrf.mxu0
    %v2980 = vadd.f32 %v2787, %v2979
    %v2981 = vpop.f32.mrf.mxu0
    %v2982 = vadd.f32 %v2789, %v2981
    %v2983 = vpop.f32.mrf.mxu0
    %v2984 = vadd.f32 %v2791, %v2983
    %2985 = vmatprep.mubr.bf16.mxu0 0
    %2986 = vmatmul.mubr.bf16.gmra.mxu0 %v994
    %v2987 = vpop.f32.mrf.mxu0
    %v2988 = vadd.f32 %v2795, %v2987
    %v2989 = vpop.f32.mrf.mxu0
    %v2990 = vadd.f32 %v2797, %v2989
    %v2991 = vpop.f32.mrf.mxu0
    %v2992 = vadd.f32 %v2799, %v2991
    %v2993 = vpop.f32.mrf.mxu0
    %v2994 = vadd.f32 %v2801, %v2993
    %2995 = vmatprep.mubr.bf16.mxu0 0
    %2996 = vmatmul.mubr.bf16.gmra.mxu0 %v1001
    %v2997 = vpop.f32.mrf.mxu0
    %v2998 = vadd.f32 %v2805, %v2997
    %v2999 = vpop.f32.mrf.mxu0
    %v3000 = vadd.f32 %v2807, %v2999
    %v3001 = vpop.f32.mrf.mxu0
    %v3002 = vadd.f32 %v2809, %v3001
    %v3003 = vpop.f32.mrf.mxu0
    %v3004 = vadd.f32 %v2811, %v3003
    %3005 = vdwg.mxu0
    %3006 = vmatprep.subr.bf16.mxu0 %v1817
    %3007 = vmatpush1.bf16.msra.mxu0 %v1816
    %3008 = vmatprep.subr.bf16.mxu0 %v1813
    %3009 = vmatpush1.bf16.msra.mxu0 %v1812
    %3010 = vmatprep.subr.bf16.mxu0 %v1809
    %3011 = vmatpush1.bf16.msra.mxu0 %v1808
    %3012 = vmatprep.subr.bf16.mxu0 %v1805
    %3013 = vmatpush1.bf16.msra.mxu0 %v1804
    %3014 = vmatprep.subr.bf16.mxu0 %v1801
    %3015 = vmatpush1.bf16.msra.mxu0 %v1800
    %3016 = vmatprep.subr.bf16.mxu0 %v1797
    %3017 = vmatpush1.bf16.msra.mxu0 %v1796
    %3018 = vmatprep.subr.bf16.mxu0 %v1793
    %3019 = vmatpush1.bf16.msra.mxu0 %v1792
    %3020 = vmatprep.subr.bf16.mxu0 %v1789
    %3021 = vmatpush1.bf16.msra.mxu0 %v1788
    %3022 = vmatprep.subr.bf16.mxu0 %v1849
    %3023 = vmatpush2.bf16.msra.mxu0 %v1848
    %3024 = vmatprep.subr.bf16.mxu0 %v1845
    %3025 = vmatpush2.bf16.msra.mxu0 %v1844
    %3026 = vmatprep.subr.bf16.mxu0 %v1841
    %3027 = vmatpush2.bf16.msra.mxu0 %v1840
    %3028 = vmatprep.subr.bf16.mxu0 %v1837
    %3029 = vmatpush2.bf16.msra.mxu0 %v1836
    %3030 = vmatprep.subr.bf16.mxu0 %v1833
    %3031 = vmatpush2.bf16.msra.mxu0 %v1832
    %3032 = vmatprep.subr.bf16.mxu0 %v1829
    %3033 = vmatpush2.bf16.msra.mxu0 %v1828
    %3034 = vmatprep.subr.bf16.mxu0 %v1825
    %3035 = vmatpush2.bf16.msra.mxu0 %v1824
    %3036 = vmatprep.subr.bf16.mxu0 %v1821
    %3037 = vmatpush2.bf16.msra.mxu0 %v1820
    %3038 = vmatprep.mubr.bf16.mxu0 %v891
    %3039 = vmatmul.mubr.bf16.gmra.mxu0 %v890
    %v3040 = vpop.f32.mrf.mxu0
    %v3041 = vadd.f32 %v529, %v3040
    %v3042 = vpop.f32.mrf.mxu0
    %v3043 = vadd.f32 %v533, %v3042
    %v3044 = vpop.f32.mrf.mxu0
    %v3045 = vadd.f32 %v529, %v3044
    %v3046 = vpop.f32.mrf.mxu0
    %v3047 = vadd.f32 %v533, %v3046
    %3048 = vmatprep.mubr.bf16.mxu0 %v898
    %3049 = vmatmul.mubr.bf16.gmra.mxu0 %v897
    %v3050 = vpop.f32.mrf.mxu0
    %v3051 = vadd.f32 %v529, %v3050
    %v3052 = vpop.f32.mrf.mxu0
    %v3053 = vadd.f32 %v533, %v3052
    %v3054 = vpop.f32.mrf.mxu0
    %v3055 = vadd.f32 %v529, %v3054
    %v3056 = vpop.f32.mrf.mxu0
    %v3057 = vadd.f32 %v533, %v3056
    %3058 = vmatprep.mubr.bf16.mxu0 %v905
    %3059 = vmatmul.mubr.bf16.gmra.mxu0 %v904
    %v3060 = vpop.f32.mrf.mxu0
    %v3061 = vadd.f32 %v529, %v3060
    %v3062 = vpop.f32.mrf.mxu0
    %v3063 = vadd.f32 %v533, %v3062
    %v3064 = vpop.f32.mrf.mxu0
    %v3065 = vadd.f32 %v529, %v3064
    %v3066 = vpop.f32.mrf.mxu0
    %v3067 = vadd.f32 %v533, %v3066
    %3068 = vmatprep.mubr.bf16.mxu0 %v912
    %3069 = vmatmul.mubr.bf16.gmra.mxu0 %v911
    %v3070 = vpop.f32.mrf.mxu0
    %v3071 = vadd.f32 %v529, %v3070
    %v3072 = vpop.f32.mrf.mxu0
    %v3073 = vadd.f32 %v533, %v3072
    %v3074 = vpop.f32.mrf.mxu0
    %v3075 = vadd.f32 %v529, %v3074
    %v3076 = vpop.f32.mrf.mxu0
    %v3077 = vadd.f32 %v533, %v3076
    %3078 = vmatprep.mubr.bf16.mxu0 %v919
    %3079 = vmatmul.mubr.bf16.gmra.mxu0 %v918
    %v3080 = vpop.f32.mrf.mxu0
    %v3081 = vadd.f32 %v529, %v3080
    %v3082 = vpop.f32.mrf.mxu0
    %v3083 = vadd.f32 %v533, %v3082
    %v3084 = vpop.f32.mrf.mxu0
    %v3085 = vadd.f32 %v529, %v3084
    %v3086 = vpop.f32.mrf.mxu0
    %v3087 = vadd.f32 %v533, %v3086
    %3088 = vmatprep.mubr.bf16.mxu0 %v926
    %3089 = vmatmul.mubr.bf16.gmra.mxu0 %v925
    %v3090 = vpop.f32.mrf.mxu0
    %v3091 = vadd.f32 %v529, %v3090
    %v3092 = vpop.f32.mrf.mxu0
    %v3093 = vadd.f32 %v533, %v3092
    %v3094 = vpop.f32.mrf.mxu0
    %v3095 = vadd.f32 %v529, %v3094
    %v3096 = vpop.f32.mrf.mxu0
    %v3097 = vadd.f32 %v533, %v3096
    %3098 = vmatprep.mubr.bf16.mxu0 %v933
    %3099 = vmatmul.mubr.bf16.gmra.mxu0 %v932
    %v3100 = vpop.f32.mrf.mxu0
    %v3101 = vadd.f32 %v529, %v3100
    %v3102 = vpop.f32.mrf.mxu0
    %v3103 = vadd.f32 %v533, %v3102
    %v3104 = vpop.f32.mrf.mxu0
    %v3105 = vadd.f32 %v529, %v3104
    %v3106 = vpop.f32.mrf.mxu0
    %v3107 = vadd.f32 %v533, %v3106
    %3108 = vmatprep.mubr.bf16.mxu0 %v940
    %3109 = vmatmul.mubr.bf16.gmra.mxu0 %v939
    %v3110 = vpop.f32.mrf.mxu0
    %v3111 = vadd.f32 %v529, %v3110
    %v3112 = vpop.f32.mrf.mxu0
    %v3113 = vadd.f32 %v533, %v3112
    %v3114 = vpop.f32.mrf.mxu0
    %v3115 = vadd.f32 %v529, %v3114
    %v3116 = vpop.f32.mrf.mxu0
    %v3117 = vadd.f32 %v533, %v3116
    %3118 = vmatprep.mubr.bf16.mxu0 %v947
    %3119 = vmatmul.mubr.bf16.gmra.mxu0 %v946
    %v3120 = vpop.f32.mrf.mxu0
    %v3121 = vadd.f32 %v529, %v3120
    %v3122 = vpop.f32.mrf.mxu0
    %v3123 = vadd.f32 %v533, %v3122
    %v3124 = vpop.f32.mrf.mxu0
    %v3125 = vadd.f32 %v529, %v3124
    %v3126 = vpop.f32.mrf.mxu0
    %v3127 = vadd.f32 %v533, %v3126
    %3128 = vmatprep.mubr.bf16.mxu0 %v954
    %3129 = vmatmul.mubr.bf16.gmra.mxu0 %v953
    %v3130 = vpop.f32.mrf.mxu0
    %v3131 = vadd.f32 %v529, %v3130
    %v3132 = vpop.f32.mrf.mxu0
    %v3133 = vadd.f32 %v533, %v3132
    %v3134 = vpop.f32.mrf.mxu0
    %v3135 = vadd.f32 %v529, %v3134
    %v3136 = vpop.f32.mrf.mxu0
    %v3137 = vadd.f32 %v533, %v3136
    %3138 = vmatprep.mubr.bf16.mxu0 %v961
    %3139 = vmatmul.mubr.bf16.gmra.mxu0 %v960
    %v3140 = vpop.f32.mrf.mxu0
    %v3141 = vadd.f32 %v529, %v3140
    %v3142 = vpop.f32.mrf.mxu0
    %v3143 = vadd.f32 %v533, %v3142
    %v3144 = vpop.f32.mrf.mxu0
    %v3145 = vadd.f32 %v529, %v3144
    %v3146 = vpop.f32.mrf.mxu0
    %v3147 = vadd.f32 %v533, %v3146
    %3148 = vmatprep.mubr.bf16.mxu0 %v968
    %3149 = vmatmul.mubr.bf16.gmra.mxu0 %v967
    %v3150 = vpop.f32.mrf.mxu0
    %v3151 = vadd.f32 %v529, %v3150
    %v3152 = vpop.f32.mrf.mxu0
    %v3153 = vadd.f32 %v533, %v3152
    %v3154 = vpop.f32.mrf.mxu0
    %v3155 = vadd.f32 %v529, %v3154
    %v3156 = vpop.f32.mrf.mxu0
    %v3157 = vadd.f32 %v533, %v3156
    %3158 = vmatprep.mubr.bf16.mxu0 %v975
    %3159 = vmatmul.mubr.bf16.gmra.mxu0 %v974
    %v3160 = vpop.f32.mrf.mxu0
    %v3161 = vadd.f32 %v529, %v3160
    %v3162 = vpop.f32.mrf.mxu0
    %v3163 = vadd.f32 %v533, %v3162
    %v3164 = vpop.f32.mrf.mxu0
    %v3165 = vadd.f32 %v529, %v3164
    %v3166 = vpop.f32.mrf.mxu0
    %v3167 = vadd.f32 %v533, %v3166
    %3168 = vmatprep.mubr.bf16.mxu0 %v982
    %3169 = vmatmul.mubr.bf16.gmra.mxu0 %v981
    %v3170 = vpop.f32.mrf.mxu0
    %v3171 = vadd.f32 %v529, %v3170
    %v3172 = vpop.f32.mrf.mxu0
    %v3173 = vadd.f32 %v533, %v3172
    %v3174 = vpop.f32.mrf.mxu0
    %v3175 = vadd.f32 %v529, %v3174
    %v3176 = vpop.f32.mrf.mxu0
    %v3177 = vadd.f32 %v533, %v3176
    %3178 = vmatprep.mubr.bf16.mxu0 %v989
    %3179 = vmatmul.mubr.bf16.gmra.mxu0 %v988
    %v3180 = vpop.f32.mrf.mxu0
    %v3181 = vadd.f32 %v529, %v3180
    %v3182 = vpop.f32.mrf.mxu0
    %v3183 = vadd.f32 %v533, %v3182
    %v3184 = vpop.f32.mrf.mxu0
    %v3185 = vadd.f32 %v529, %v3184
    %v3186 = vpop.f32.mrf.mxu0
    %v3187 = vadd.f32 %v533, %v3186
    %3188 = vmatprep.mubr.bf16.mxu0 %v996
    %3189 = vmatmul.mubr.bf16.gmra.mxu0 %v995
    %v3190 = vpop.f32.mrf.mxu0
    %v3191 = vadd.f32 %v529, %v3190
    %v3192 = vpop.f32.mrf.mxu0
    %v3193 = vadd.f32 %v533, %v3192
    %v3194 = vpop.f32.mrf.mxu0
    %v3195 = vadd.f32 %v529, %v3194
    %v3196 = vpop.f32.mrf.mxu0
    %v3197 = vadd.f32 %v533, %v3196
    %3198 = vdwg.mxu0
    %3199 = vmatprep.subr.bf16.mxu0 %v1881
    %3200 = vmatpush1.bf16.msra.mxu0 %v1880
    %3201 = vmatprep.subr.bf16.mxu0 %v1877
    %3202 = vmatpush1.bf16.msra.mxu0 %v1876
    %3203 = vmatprep.subr.bf16.mxu0 %v1873
    %3204 = vmatpush1.bf16.msra.mxu0 %v1872
    %3205 = vmatprep.subr.bf16.mxu0 %v1869
    %3206 = vmatpush1.bf16.msra.mxu0 %v1868
    %3207 = vmatprep.subr.bf16.mxu0 %v1865
    %3208 = vmatpush1.bf16.msra.mxu0 %v1864
    %3209 = vmatprep.subr.bf16.mxu0 %v1861
    %3210 = vmatpush1.bf16.msra.mxu0 %v1860
    %3211 = vmatprep.subr.bf16.mxu0 %v1857
    %3212 = vmatpush1.bf16.msra.mxu0 %v1856
    %3213 = vmatprep.subr.bf16.mxu0 %v1853
    %3214 = vmatpush1.bf16.msra.mxu0 %v1852
    %3215 = vmatprep.subr.bf16.mxu0 %v1913
    %3216 = vmatpush2.bf16.msra.mxu0 %v1912
    %3217 = vmatprep.subr.bf16.mxu0 %v1909
    %3218 = vmatpush2.bf16.msra.mxu0 %v1908
    %3219 = vmatprep.subr.bf16.mxu0 %v1905
    %3220 = vmatpush2.bf16.msra.mxu0 %v1904
    %3221 = vmatprep.subr.bf16.mxu0 %v1901
    %3222 = vmatpush2.bf16.msra.mxu0 %v1900
    %3223 = vmatprep.subr.bf16.mxu0 %v1897
    %3224 = vmatpush2.bf16.msra.mxu0 %v1896
    %3225 = vmatprep.subr.bf16.mxu0 %v1893
    %3226 = vmatpush2.bf16.msra.mxu0 %v1892
    %3227 = vmatprep.subr.bf16.mxu0 %v1889
    %3228 = vmatpush2.bf16.msra.mxu0 %v1888
    %3229 = vmatprep.subr.bf16.mxu0 %v1885
    %3230 = vmatpush2.bf16.msra.mxu0 %v1884
    %3231 = vmatprep.mubr.bf16.mxu0 %v893
    %3232 = vmatmul.mubr.bf16.gmra.mxu0 %v892
    %v3233 = vpop.f32.mrf.mxu0
    %v3234 = vadd.f32 %v3041, %v3233
    %v3235 = vpop.f32.mrf.mxu0
    %v3236 = vadd.f32 %v3043, %v3235
    %v3237 = vpop.f32.mrf.mxu0
    %v3238 = vadd.f32 %v3045, %v3237
    %v3239 = vpop.f32.mrf.mxu0
    %v3240 = vadd.f32 %v3047, %v3239
    %3241 = vmatprep.mubr.bf16.mxu0 %v900
    %3242 = vmatmul.mubr.bf16.gmra.mxu0 %v899
    %v3243 = vpop.f32.mrf.mxu0
    %v3244 = vadd.f32 %v3051, %v3243
    %v3245 = vpop.f32.mrf.mxu0
    %v3246 = vadd.f32 %v3053, %v3245
    %v3247 = vpop.f32.mrf.mxu0
    %v3248 = vadd.f32 %v3055, %v3247
    %v3249 = vpop.f32.mrf.mxu0
    %v3250 = vadd.f32 %v3057, %v3249
    %3251 = vmatprep.mubr.bf16.mxu0 %v907
    %3252 = vmatmul.mubr.bf16.gmra.mxu0 %v906
    %v3253 = vpop.f32.mrf.mxu0
    %v3254 = vadd.f32 %v3061, %v3253
    %v3255 = vpop.f32.mrf.mxu0
    %v3256 = vadd.f32 %v3063, %v3255
    %v3257 = vpop.f32.mrf.mxu0
    %v3258 = vadd.f32 %v3065, %v3257
    %v3259 = vpop.f32.mrf.mxu0
    %v3260 = vadd.f32 %v3067, %v3259
    %3261 = vmatprep.mubr.bf16.mxu0 %v914
    %3262 = vmatmul.mubr.bf16.gmra.mxu0 %v913
    %v3263 = vpop.f32.mrf.mxu0
    %v3264 = vadd.f32 %v3071, %v3263
    %v3265 = vpop.f32.mrf.mxu0
    %v3266 = vadd.f32 %v3073, %v3265
    %v3267 = vpop.f32.mrf.mxu0
    %v3268 = vadd.f32 %v3075, %v3267
    %v3269 = vpop.f32.mrf.mxu0
    %v3270 = vadd.f32 %v3077, %v3269
    %3271 = vmatprep.mubr.bf16.mxu0 %v921
    %3272 = vmatmul.mubr.bf16.gmra.mxu0 %v920
    %v3273 = vpop.f32.mrf.mxu0
    %v3274 = vadd.f32 %v3081, %v3273
    %v3275 = vpop.f32.mrf.mxu0
    %v3276 = vadd.f32 %v3083, %v3275
    %v3277 = vpop.f32.mrf.mxu0
    %v3278 = vadd.f32 %v3085, %v3277
    %v3279 = vpop.f32.mrf.mxu0
    %v3280 = vadd.f32 %v3087, %v3279
    %3281 = vmatprep.mubr.bf16.mxu0 %v928
    %3282 = vmatmul.mubr.bf16.gmra.mxu0 %v927
    %v3283 = vpop.f32.mrf.mxu0
    %v3284 = vadd.f32 %v3091, %v3283
    %v3285 = vpop.f32.mrf.mxu0
    %v3286 = vadd.f32 %v3093, %v3285
    %v3287 = vpop.f32.mrf.mxu0
    %v3288 = vadd.f32 %v3095, %v3287
    %v3289 = vpop.f32.mrf.mxu0
    %v3290 = vadd.f32 %v3097, %v3289
    %3291 = vmatprep.mubr.bf16.mxu0 %v935
    %3292 = vmatmul.mubr.bf16.gmra.mxu0 %v934
    %v3293 = vpop.f32.mrf.mxu0
    %v3294 = vadd.f32 %v3101, %v3293
    %v3295 = vpop.f32.mrf.mxu0
    %v3296 = vadd.f32 %v3103, %v3295
    %v3297 = vpop.f32.mrf.mxu0
    %v3298 = vadd.f32 %v3105, %v3297
    %v3299 = vpop.f32.mrf.mxu0
    %v3300 = vadd.f32 %v3107, %v3299
    %3301 = vmatprep.mubr.bf16.mxu0 %v942
    %3302 = vmatmul.mubr.bf16.gmra.mxu0 %v941
    %v3303 = vpop.f32.mrf.mxu0
    %v3304 = vadd.f32 %v3111, %v3303
    %v3305 = vpop.f32.mrf.mxu0
    %v3306 = vadd.f32 %v3113, %v3305
    %v3307 = vpop.f32.mrf.mxu0
    %v3308 = vadd.f32 %v3115, %v3307
    %v3309 = vpop.f32.mrf.mxu0
    %v3310 = vadd.f32 %v3117, %v3309
    %3311 = vmatprep.mubr.bf16.mxu0 %v949
    %3312 = vmatmul.mubr.bf16.gmra.mxu0 %v948
    %v3313 = vpop.f32.mrf.mxu0
    %v3314 = vadd.f32 %v3121, %v3313
    %v3315 = vpop.f32.mrf.mxu0
    %v3316 = vadd.f32 %v3123, %v3315
    %v3317 = vpop.f32.mrf.mxu0
    %v3318 = vadd.f32 %v3125, %v3317
    %v3319 = vpop.f32.mrf.mxu0
    %v3320 = vadd.f32 %v3127, %v3319
    %3321 = vmatprep.mubr.bf16.mxu0 %v956
    %3322 = vmatmul.mubr.bf16.gmra.mxu0 %v955
    %v3323 = vpop.f32.mrf.mxu0
    %v3324 = vadd.f32 %v3131, %v3323
    %v3325 = vpop.f32.mrf.mxu0
    %v3326 = vadd.f32 %v3133, %v3325
    %v3327 = vpop.f32.mrf.mxu0
    %v3328 = vadd.f32 %v3135, %v3327
    %v3329 = vpop.f32.mrf.mxu0
    %v3330 = vadd.f32 %v3137, %v3329
    %3331 = vmatprep.mubr.bf16.mxu0 %v963
    %3332 = vmatmul.mubr.bf16.gmra.mxu0 %v962
    %v3333 = vpop.f32.mrf.mxu0
    %v3334 = vadd.f32 %v3141, %v3333
    %v3335 = vpop.f32.mrf.mxu0
    %v3336 = vadd.f32 %v3143, %v3335
    %v3337 = vpop.f32.mrf.mxu0
    %v3338 = vadd.f32 %v3145, %v3337
    %v3339 = vpop.f32.mrf.mxu0
    %v3340 = vadd.f32 %v3147, %v3339
    %3341 = vmatprep.mubr.bf16.mxu0 %v970
    %3342 = vmatmul.mubr.bf16.gmra.mxu0 %v969
    %v3343 = vpop.f32.mrf.mxu0
    %v3344 = vadd.f32 %v3151, %v3343
    %v3345 = vpop.f32.mrf.mxu0
    %v3346 = vadd.f32 %v3153, %v3345
    %v3347 = vpop.f32.mrf.mxu0
    %v3348 = vadd.f32 %v3155, %v3347
    %v3349 = vpop.f32.mrf.mxu0
    %v3350 = vadd.f32 %v3157, %v3349
    %3351 = vmatprep.mubr.bf16.mxu0 %v977
    %3352 = vmatmul.mubr.bf16.gmra.mxu0 %v976
    %v3353 = vpop.f32.mrf.mxu0
    %v3354 = vadd.f32 %v3161, %v3353
    %v3355 = vpop.f32.mrf.mxu0
    %v3356 = vadd.f32 %v3163, %v3355
    %v3357 = vpop.f32.mrf.mxu0
    %v3358 = vadd.f32 %v3165, %v3357
    %v3359 = vpop.f32.mrf.mxu0
    %v3360 = vadd.f32 %v3167, %v3359
    %3361 = vmatprep.mubr.bf16.mxu0 %v984
    %3362 = vmatmul.mubr.bf16.gmra.mxu0 %v983
    %v3363 = vpop.f32.mrf.mxu0
    %v3364 = vadd.f32 %v3171, %v3363
    %v3365 = vpop.f32.mrf.mxu0
    %v3366 = vadd.f32 %v3173, %v3365
    %v3367 = vpop.f32.mrf.mxu0
    %v3368 = vadd.f32 %v3175, %v3367
    %v3369 = vpop.f32.mrf.mxu0
    %v3370 = vadd.f32 %v3177, %v3369
    %3371 = vmatprep.mubr.bf16.mxu0 %v991
    %3372 = vmatmul.mubr.bf16.gmra.mxu0 %v990
    %v3373 = vpop.f32.mrf.mxu0
    %v3374 = vadd.f32 %v3181, %v3373
    %v3375 = vpop.f32.mrf.mxu0
    %v3376 = vadd.f32 %v3183, %v3375
    %v3377 = vpop.f32.mrf.mxu0
    %v3378 = vadd.f32 %v3185, %v3377
    %v3379 = vpop.f32.mrf.mxu0
    %v3380 = vadd.f32 %v3187, %v3379
    %3381 = vmatprep.mubr.bf16.mxu0 %v998
    %3382 = vmatmul.mubr.bf16.gmra.mxu0 %v997
    %v3383 = vpop.f32.mrf.mxu0
    %v3384 = vadd.f32 %v3191, %v3383
    %v3385 = vpop.f32.mrf.mxu0
    %v3386 = vadd.f32 %v3193, %v3385
    %v3387 = vpop.f32.mrf.mxu0
    %v3388 = vadd.f32 %v3195, %v3387
    %v3389 = vpop.f32.mrf.mxu0
    %v3390 = vadd.f32 %v3197, %v3389
    %3391 = vdwg.mxu0
    %3392 = vmatprep.subr.bf16.mxu0 %v1945
    %3393 = vmatpush1.bf16.msra.mxu0 %v1944
    %3394 = vmatprep.subr.bf16.mxu0 %v1941
    %3395 = vmatpush1.bf16.msra.mxu0 %v1940
    %3396 = vmatprep.subr.bf16.mxu0 %v1937
    %3397 = vmatpush1.bf16.msra.mxu0 %v1936
    %3398 = vmatprep.subr.bf16.mxu0 %v1933
    %3399 = vmatpush1.bf16.msra.mxu0 %v1932
    %3400 = vmatprep.subr.bf16.mxu0 %v1929
    %3401 = vmatpush1.bf16.msra.mxu0 %v1928
    %3402 = vmatprep.subr.bf16.mxu0 %v1925
    %3403 = vmatpush1.bf16.msra.mxu0 %v1924
    %3404 = vmatprep.subr.bf16.mxu0 %v1921
    %3405 = vmatpush1.bf16.msra.mxu0 %v1920
    %3406 = vmatprep.subr.bf16.mxu0 %v1917
    %3407 = vmatpush1.bf16.msra.mxu0 %v1916
    %3408 = vmatprep.subr.bf16.mxu0 %v1977
    %3409 = vmatpush2.bf16.msra.mxu0 %v1976
    %3410 = vmatprep.subr.bf16.mxu0 %v1973
    %3411 = vmatpush2.bf16.msra.mxu0 %v1972
    %3412 = vmatprep.subr.bf16.mxu0 %v1969
    %3413 = vmatpush2.bf16.msra.mxu0 %v1968
    %3414 = vmatprep.subr.bf16.mxu0 %v1965
    %3415 = vmatpush2.bf16.msra.mxu0 %v1964
    %3416 = vmatprep.subr.bf16.mxu0 %v1961
    %3417 = vmatpush2.bf16.msra.mxu0 %v1960
    %3418 = vmatprep.subr.bf16.mxu0 %v1957
    %3419 = vmatpush2.bf16.msra.mxu0 %v1956
    %3420 = vmatprep.subr.bf16.mxu0 %v1953
    %3421 = vmatpush2.bf16.msra.mxu0 %v1952
    %3422 = vmatprep.subr.bf16.mxu0 %v1949
    %3423 = vmatpush2.bf16.msra.mxu0 %v1948
    %3424 = vmatprep.mubr.bf16.mxu0 %v895
    %3425 = vmatmul.mubr.bf16.gmra.mxu0 %v894
    %v3426 = vpop.f32.mrf.mxu0
    %v3427 = vadd.f32 %v3234, %v3426
    %v3428 = vpop.f32.mrf.mxu0
    %v3429 = vadd.f32 %v3236, %v3428
    %v3430 = vpop.f32.mrf.mxu0
    %v3431 = vadd.f32 %v3238, %v3430
    %v3432 = vpop.f32.mrf.mxu0
    %v3433 = vadd.f32 %v3240, %v3432
    %3434 = vmatprep.mubr.bf16.mxu0 %v902
    %3435 = vmatmul.mubr.bf16.gmra.mxu0 %v901
    %v3436 = vpop.f32.mrf.mxu0
    %v3437 = vadd.f32 %v3244, %v3436
    %v3438 = vpop.f32.mrf.mxu0
    %v3439 = vadd.f32 %v3246, %v3438
    %v3440 = vpop.f32.mrf.mxu0
    %v3441 = vadd.f32 %v3248, %v3440
    %v3442 = vpop.f32.mrf.mxu0
    %v3443 = vadd.f32 %v3250, %v3442
    %3444 = vmatprep.mubr.bf16.mxu0 %v909
    %3445 = vmatmul.mubr.bf16.gmra.mxu0 %v908
    %v3446 = vpop.f32.mrf.mxu0
    %v3447 = vadd.f32 %v3254, %v3446
    %v3448 = vpop.f32.mrf.mxu0
    %v3449 = vadd.f32 %v3256, %v3448
    %v3450 = vpop.f32.mrf.mxu0
    %v3451 = vadd.f32 %v3258, %v3450
    %v3452 = vpop.f32.mrf.mxu0
    %v3453 = vadd.f32 %v3260, %v3452
    %3454 = vmatprep.mubr.bf16.mxu0 %v916
    %3455 = vmatmul.mubr.bf16.gmra.mxu0 %v915
    %v3456 = vpop.f32.mrf.mxu0
    %v3457 = vadd.f32 %v3264, %v3456
    %v3458 = vpop.f32.mrf.mxu0
    %v3459 = vadd.f32 %v3266, %v3458
    %v3460 = vpop.f32.mrf.mxu0
    %v3461 = vadd.f32 %v3268, %v3460
    %v3462 = vpop.f32.mrf.mxu0
    %v3463 = vadd.f32 %v3270, %v3462
    %3464 = vmatprep.mubr.bf16.mxu0 %v923
    %3465 = vmatmul.mubr.bf16.gmra.mxu0 %v922
    %v3466 = vpop.f32.mrf.mxu0
    %v3467 = vadd.f32 %v3274, %v3466
    %v3468 = vpop.f32.mrf.mxu0
    %v3469 = vadd.f32 %v3276, %v3468
    %v3470 = vpop.f32.mrf.mxu0
    %v3471 = vadd.f32 %v3278, %v3470
    %v3472 = vpop.f32.mrf.mxu0
    %v3473 = vadd.f32 %v3280, %v3472
    %3474 = vmatprep.mubr.bf16.mxu0 %v930
    %3475 = vmatmul.mubr.bf16.gmra.mxu0 %v929
    %v3476 = vpop.f32.mrf.mxu0
    %v3477 = vadd.f32 %v3284, %v3476
    %v3478 = vpop.f32.mrf.mxu0
    %v3479 = vadd.f32 %v3286, %v3478
    %v3480 = vpop.f32.mrf.mxu0
    %v3481 = vadd.f32 %v3288, %v3480
    %v3482 = vpop.f32.mrf.mxu0
    %v3483 = vadd.f32 %v3290, %v3482
    %3484 = vmatprep.mubr.bf16.mxu0 %v937
    %3485 = vmatmul.mubr.bf16.gmra.mxu0 %v936
    %v3486 = vpop.f32.mrf.mxu0
    %v3487 = vadd.f32 %v3294, %v3486
    %v3488 = vpop.f32.mrf.mxu0
    %v3489 = vadd.f32 %v3296, %v3488
    %v3490 = vpop.f32.mrf.mxu0
    %v3491 = vadd.f32 %v3298, %v3490
    %v3492 = vpop.f32.mrf.mxu0
    %v3493 = vadd.f32 %v3300, %v3492
    %3494 = vmatprep.mubr.bf16.mxu0 %v944
    %3495 = vmatmul.mubr.bf16.gmra.mxu0 %v943
    %v3496 = vpop.f32.mrf.mxu0
    %v3497 = vadd.f32 %v3304, %v3496
    %v3498 = vpop.f32.mrf.mxu0
    %v3499 = vadd.f32 %v3306, %v3498
    %v3500 = vpop.f32.mrf.mxu0
    %v3501 = vadd.f32 %v3308, %v3500
    %v3502 = vpop.f32.mrf.mxu0
    %v3503 = vadd.f32 %v3310, %v3502
    %3504 = vmatprep.mubr.bf16.mxu0 %v951
    %3505 = vmatmul.mubr.bf16.gmra.mxu0 %v950
    %v3506 = vpop.f32.mrf.mxu0
    %v3507 = vadd.f32 %v3314, %v3506
    %v3508 = vpop.f32.mrf.mxu0
    %v3509 = vadd.f32 %v3316, %v3508
    %v3510 = vpop.f32.mrf.mxu0
    %v3511 = vadd.f32 %v3318, %v3510
    %v3512 = vpop.f32.mrf.mxu0
    %v3513 = vadd.f32 %v3320, %v3512
    %3514 = vmatprep.mubr.bf16.mxu0 %v958
    %3515 = vmatmul.mubr.bf16.gmra.mxu0 %v957
    %v3516 = vpop.f32.mrf.mxu0
    %v3517 = vadd.f32 %v3324, %v3516
    %v3518 = vpop.f32.mrf.mxu0
    %v3519 = vadd.f32 %v3326, %v3518
    %v3520 = vpop.f32.mrf.mxu0
    %v3521 = vadd.f32 %v3328, %v3520
    %v3522 = vpop.f32.mrf.mxu0
    %v3523 = vadd.f32 %v3330, %v3522
    %3524 = vmatprep.mubr.bf16.mxu0 %v965
    %3525 = vmatmul.mubr.bf16.gmra.mxu0 %v964
    %v3526 = vpop.f32.mrf.mxu0
    %v3527 = vadd.f32 %v3334, %v3526
    %v3528 = vpop.f32.mrf.mxu0
    %v3529 = vadd.f32 %v3336, %v3528
    %v3530 = vpop.f32.mrf.mxu0
    %v3531 = vadd.f32 %v3338, %v3530
    %v3532 = vpop.f32.mrf.mxu0
    %v3533 = vadd.f32 %v3340, %v3532
    %3534 = vmatprep.mubr.bf16.mxu0 %v972
    %3535 = vmatmul.mubr.bf16.gmra.mxu0 %v971
    %v3536 = vpop.f32.mrf.mxu0
    %v3537 = vadd.f32 %v3344, %v3536
    %v3538 = vpop.f32.mrf.mxu0
    %v3539 = vadd.f32 %v3346, %v3538
    %v3540 = vpop.f32.mrf.mxu0
    %v3541 = vadd.f32 %v3348, %v3540
    %v3542 = vpop.f32.mrf.mxu0
    %v3543 = vadd.f32 %v3350, %v3542
    %3544 = vmatprep.mubr.bf16.mxu0 %v979
    %3545 = vmatmul.mubr.bf16.gmra.mxu0 %v978
    %v3546 = vpop.f32.mrf.mxu0
    %v3547 = vadd.f32 %v3354, %v3546
    %v3548 = vpop.f32.mrf.mxu0
    %v3549 = vadd.f32 %v3356, %v3548
    %v3550 = vpop.f32.mrf.mxu0
    %v3551 = vadd.f32 %v3358, %v3550
    %v3552 = vpop.f32.mrf.mxu0
    %v3553 = vadd.f32 %v3360, %v3552
    %3554 = vmatprep.mubr.bf16.mxu0 %v986
    %3555 = vmatmul.mubr.bf16.gmra.mxu0 %v985
    %v3556 = vpop.f32.mrf.mxu0
    %v3557 = vadd.f32 %v3364, %v3556
    %v3558 = vpop.f32.mrf.mxu0
    %v3559 = vadd.f32 %v3366, %v3558
    %v3560 = vpop.f32.mrf.mxu0
    %v3561 = vadd.f32 %v3368, %v3560
    %v3562 = vpop.f32.mrf.mxu0
    %v3563 = vadd.f32 %v3370, %v3562
    %3564 = vmatprep.mubr.bf16.mxu0 %v993
    %3565 = vmatmul.mubr.bf16.gmra.mxu0 %v992
    %v3566 = vpop.f32.mrf.mxu0
    %v3567 = vadd.f32 %v3374, %v3566
    %v3568 = vpop.f32.mrf.mxu0
    %v3569 = vadd.f32 %v3376, %v3568
    %v3570 = vpop.f32.mrf.mxu0
    %v3571 = vadd.f32 %v3378, %v3570
    %v3572 = vpop.f32.mrf.mxu0
    %v3573 = vadd.f32 %v3380, %v3572
    %3574 = vmatprep.mubr.bf16.mxu0 %v1000
    %3575 = vmatmul.mubr.bf16.gmra.mxu0 %v999
    %v3576 = vpop.f32.mrf.mxu0
    %v3577 = vadd.f32 %v3384, %v3576
    %v3578 = vpop.f32.mrf.mxu0
    %v3579 = vadd.f32 %v3386, %v3578
    %v3580 = vpop.f32.mrf.mxu0
    %v3581 = vadd.f32 %v3388, %v3580
    %v3582 = vpop.f32.mrf.mxu0
    %v3583 = vadd.f32 %v3390, %v3582
    %3584 = vdwg.mxu0
    %3585 = vmatprep.subr.bf16.mxu0 %v2009
    %3586 = vmatpush1.bf16.msra.mxu0 %v2008
    %3587 = vmatprep.subr.bf16.mxu0 %v2005
    %3588 = vmatpush1.bf16.msra.mxu0 %v2004
    %3589 = vmatprep.subr.bf16.mxu0 %v2001
    %3590 = vmatpush1.bf16.msra.mxu0 %v2000
    %3591 = vmatprep.subr.bf16.mxu0 %v1997
    %3592 = vmatpush1.bf16.msra.mxu0 %v1996
    %3593 = vmatprep.subr.bf16.mxu0 %v1993
    %3594 = vmatpush1.bf16.msra.mxu0 %v1992
    %3595 = vmatprep.subr.bf16.mxu0 %v1989
    %3596 = vmatpush1.bf16.msra.mxu0 %v1988
    %3597 = vmatprep.subr.bf16.mxu0 %v1985
    %3598 = vmatpush1.bf16.msra.mxu0 %v1984
    %3599 = vmatprep.subr.bf16.mxu0 %v1981
    %3600 = vmatpush1.bf16.msra.mxu0 %v1980
    %3601 = vmatprep.subr.bf16.mxu0 0
    %3602 = vmatpush2.bf16.msra.mxu0 0
    %3603 = vmatprep.subr.bf16.mxu0 0
    %3604 = vmatpush2.bf16.msra.mxu0 0
    %3605 = vmatprep.subr.bf16.mxu0 0
    %3606 = vmatpush2.bf16.msra.mxu0 0
    %3607 = vmatprep.subr.bf16.mxu0 0
    %3608 = vmatpush2.bf16.msra.mxu0 0
    %3609 = vmatprep.subr.bf16.mxu0 0
    %3610 = vmatpush2.bf16.msra.mxu0 0
    %3611 = vmatprep.subr.bf16.mxu0 0
    %3612 = vmatpush2.bf16.msra.mxu0 0
    %3613 = vmatprep.subr.bf16.mxu0 0
    %3614 = vmatpush2.bf16.msra.mxu0 0
    %3615 = vmatprep.subr.bf16.mxu0 0
    %3616 = vmatpush2.bf16.msra.mxu0 0
    %3617 = vmatprep.mubr.bf16.mxu0 0
    %3618 = vmatmul.mubr.bf16.gmra.mxu0 %v896
    %v3619 = vpop.f32.mrf.mxu0
    %v3620 = vadd.f32 %v3427, %v3619
    %v3621 = vpop.f32.mrf.mxu0
    %v3622 = vadd.f32 %v3429, %v3621
    %v3623 = vpop.f32.mrf.mxu0
    %v3624 = vadd.f32 %v3431, %v3623
    %v3625 = vpop.f32.mrf.mxu0
    %v3626 = vadd.f32 %v3433, %v3625
    %3627 = vmatprep.mubr.bf16.mxu0 0
    %3628 = vmatmul.mubr.bf16.gmra.mxu0 %v903
    %v3629 = vpop.f32.mrf.mxu0
    %v3630 = vadd.f32 %v3437, %v3629
    %v3631 = vpop.f32.mrf.mxu0
    %v3632 = vadd.f32 %v3439, %v3631
    %v3633 = vpop.f32.mrf.mxu0
    %v3634 = vadd.f32 %v3441, %v3633
    %v3635 = vpop.f32.mrf.mxu0
    %v3636 = vadd.f32 %v3443, %v3635
    %3637 = vmatprep.mubr.bf16.mxu0 0
    %3638 = vmatmul.mubr.bf16.gmra.mxu0 %v910
    %v3639 = vpop.f32.mrf.mxu0
    %v3640 = vadd.f32 %v3447, %v3639
    %v3641 = vpop.f32.mrf.mxu0
    %v3642 = vadd.f32 %v3449, %v3641
    %v3643 = vpop.f32.mrf.mxu0
    %v3644 = vadd.f32 %v3451, %v3643
    %v3645 = vpop.f32.mrf.mxu0
    %v3646 = vadd.f32 %v3453, %v3645
    %3647 = vmatprep.mubr.bf16.mxu0 0
    %3648 = vmatmul.mubr.bf16.gmra.mxu0 %v917
    %v3649 = vpop.f32.mrf.mxu0
    %v3650 = vadd.f32 %v3457, %v3649
    %v3651 = vpop.f32.mrf.mxu0
    %v3652 = vadd.f32 %v3459, %v3651
    %v3653 = vpop.f32.mrf.mxu0
    %v3654 = vadd.f32 %v3461, %v3653
    %v3655 = vpop.f32.mrf.mxu0
    %v3656 = vadd.f32 %v3463, %v3655
    %3657 = vmatprep.mubr.bf16.mxu0 0
    %3658 = vmatmul.mubr.bf16.gmra.mxu0 %v924
    %v3659 = vpop.f32.mrf.mxu0
    %v3660 = vadd.f32 %v3467, %v3659
    %v3661 = vpop.f32.mrf.mxu0
    %v3662 = vadd.f32 %v3469, %v3661
    %v3663 = vpop.f32.mrf.mxu0
    %v3664 = vadd.f32 %v3471, %v3663
    %v3665 = vpop.f32.mrf.mxu0
    %v3666 = vadd.f32 %v3473, %v3665
    %3667 = vmatprep.mubr.bf16.mxu0 0
    %3668 = vmatmul.mubr.bf16.gmra.mxu0 %v931
    %v3669 = vpop.f32.mrf.mxu0
    %v3670 = vadd.f32 %v3477, %v3669
    %v3671 = vpop.f32.mrf.mxu0
    %v3672 = vadd.f32 %v3479, %v3671
    %v3673 = vpop.f32.mrf.mxu0
    %v3674 = vadd.f32 %v3481, %v3673
    %v3675 = vpop.f32.mrf.mxu0
    %v3676 = vadd.f32 %v3483, %v3675
    %3677 = vmatprep.mubr.bf16.mxu0 0
    %3678 = vmatmul.mubr.bf16.gmra.mxu0 %v938
    %v3679 = vpop.f32.mrf.mxu0
    %v3680 = vadd.f32 %v3487, %v3679
    %v3681 = vpop.f32.mrf.mxu0
    %v3682 = vadd.f32 %v3489, %v3681
    %v3683 = vpop.f32.mrf.mxu0
    %v3684 = vadd.f32 %v3491, %v3683
    %v3685 = vpop.f32.mrf.mxu0
    %v3686 = vadd.f32 %v3493, %v3685
    %3687 = vmatprep.mubr.bf16.mxu0 0
    %3688 = vmatmul.mubr.bf16.gmra.mxu0 %v945
    %v3689 = vpop.f32.mrf.mxu0
    %v3690 = vadd.f32 %v3497, %v3689
    %v3691 = vpop.f32.mrf.mxu0
    %v3692 = vadd.f32 %v3499, %v3691
    %v3693 = vpop.f32.mrf.mxu0
    %v3694 = vadd.f32 %v3501, %v3693
    %v3695 = vpop.f32.mrf.mxu0
    %v3696 = vadd.f32 %v3503, %v3695
    %3697 = vmatprep.mubr.bf16.mxu0 0
    %3698 = vmatmul.mubr.bf16.gmra.mxu0 %v952
    %v3699 = vpop.f32.mrf.mxu0
    %v3700 = vadd.f32 %v3507, %v3699
    %v3701 = vpop.f32.mrf.mxu0
    %v3702 = vadd.f32 %v3509, %v3701
    %v3703 = vpop.f32.mrf.mxu0
    %v3704 = vadd.f32 %v3511, %v3703
    %v3705 = vpop.f32.mrf.mxu0
    %v3706 = vadd.f32 %v3513, %v3705
    %3707 = vmatprep.mubr.bf16.mxu0 0
    %3708 = vmatmul.mubr.bf16.gmra.mxu0 %v959
    %v3709 = vpop.f32.mrf.mxu0
    %v3710 = vadd.f32 %v3517, %v3709
    %v3711 = vpop.f32.mrf.mxu0
    %v3712 = vadd.f32 %v3519, %v3711
    %v3713 = vpop.f32.mrf.mxu0
    %v3714 = vadd.f32 %v3521, %v3713
    %v3715 = vpop.f32.mrf.mxu0
    %v3716 = vadd.f32 %v3523, %v3715
    %3717 = vmatprep.mubr.bf16.mxu0 0
    %3718 = vmatmul.mubr.bf16.gmra.mxu0 %v966
    %v3719 = vpop.f32.mrf.mxu0
    %v3720 = vadd.f32 %v3527, %v3719
    %v3721 = vpop.f32.mrf.mxu0
    %v3722 = vadd.f32 %v3529, %v3721
    %v3723 = vpop.f32.mrf.mxu0
    %v3724 = vadd.f32 %v3531, %v3723
    %v3725 = vpop.f32.mrf.mxu0
    %v3726 = vadd.f32 %v3533, %v3725
    %3727 = vmatprep.mubr.bf16.mxu0 0
    %3728 = vmatmul.mubr.bf16.gmra.mxu0 %v973
    %v3729 = vpop.f32.mrf.mxu0
    %v3730 = vadd.f32 %v3537, %v3729
    %v3731 = vpop.f32.mrf.mxu0
    %v3732 = vadd.f32 %v3539, %v3731
    %v3733 = vpop.f32.mrf.mxu0
    %v3734 = vadd.f32 %v3541, %v3733
    %v3735 = vpop.f32.mrf.mxu0
    %v3736 = vadd.f32 %v3543, %v3735
    %3737 = vmatprep.mubr.bf16.mxu0 0
    %3738 = vmatmul.mubr.bf16.gmra.mxu0 %v980
    %v3739 = vpop.f32.mrf.mxu0
    %v3740 = vadd.f32 %v3547, %v3739
    %v3741 = vpop.f32.mrf.mxu0
    %v3742 = vadd.f32 %v3549, %v3741
    %v3743 = vpop.f32.mrf.mxu0
    %v3744 = vadd.f32 %v3551, %v3743
    %v3745 = vpop.f32.mrf.mxu0
    %v3746 = vadd.f32 %v3553, %v3745
    %3747 = vmatprep.mubr.bf16.mxu0 0
    %3748 = vmatmul.mubr.bf16.gmra.mxu0 %v987
    %v3749 = vpop.f32.mrf.mxu0
    %v3750 = vadd.f32 %v3557, %v3749
    %v3751 = vpop.f32.mrf.mxu0
    %v3752 = vadd.f32 %v3559, %v3751
    %v3753 = vpop.f32.mrf.mxu0
    %v3754 = vadd.f32 %v3561, %v3753
    %v3755 = vpop.f32.mrf.mxu0
    %v3756 = vadd.f32 %v3563, %v3755
    %3757 = vmatprep.mubr.bf16.mxu0 0
    %3758 = vmatmul.mubr.bf16.gmra.mxu0 %v994
    %v3759 = vpop.f32.mrf.mxu0
    %v3760 = vadd.f32 %v3567, %v3759
    %v3761 = vpop.f32.mrf.mxu0
    %v3762 = vadd.f32 %v3569, %v3761
    %v3763 = vpop.f32.mrf.mxu0
    %v3764 = vadd.f32 %v3571, %v3763
    %v3765 = vpop.f32.mrf.mxu0
    %v3766 = vadd.f32 %v3573, %v3765
    %3767 = vmatprep.mubr.bf16.mxu0 0
    %3768 = vmatmul.mubr.bf16.gmra.mxu0 %v1001
    %v3769 = vpop.f32.mrf.mxu0
    %v3770 = vadd.f32 %v3577, %v3769
    %v3771 = vpop.f32.mrf.mxu0
    %v3772 = vadd.f32 %v3579, %v3771
    %v3773 = vpop.f32.mrf.mxu0
    %v3774 = vadd.f32 %v3581, %v3773
    %v3775 = vpop.f32.mrf.mxu0
    %v3776 = vadd.f32 %v3583, %v3775
    %3777 = vdwg.mxu0
    %v3778 = vmax.f32 %v2848, 0.0
    %v3779 = vmax.f32 %v2850, 0.0
    %v3780 = vmax.f32 %v3620, 0.0
    %v3781 = vmax.f32 %v3622, 0.0
    %v3782 = vmax.f32 %v2852, 0.0
    %v3783 = vmax.f32 %v2854, 0.0
    %v3784 = vmax.f32 %v3624, 0.0
    %v3785 = vmax.f32 %v3626, 0.0
    %v3786 = vmax.f32 %v2858, 0.0
    %v3787 = vmax.f32 %v2860, 0.0
    %v3788 = vmax.f32 %v3630, 0.0
    %v3789 = vmax.f32 %v3632, 0.0
    %v3790 = vmax.f32 %v2862, 0.0
    %v3791 = vmax.f32 %v2864, 0.0
    %v3792 = vmax.f32 %v3634, 0.0
    %v3793 = vmax.f32 %v3636, 0.0
    %v3794 = vmax.f32 %v2868, 0.0
    %v3795 = vmax.f32 %v2870, 0.0
    %v3796 = vmax.f32 %v3640, 0.0
    %v3797 = vmax.f32 %v3642, 0.0
    %v3798 = vmax.f32 %v2872, 0.0
    %v3799 = vmax.f32 %v2874, 0.0
    %v3800 = vmax.f32 %v3644, 0.0
    %v3801 = vmax.f32 %v3646, 0.0
    %v3802 = vmax.f32 %v2878, 0.0
    %v3803 = vmax.f32 %v2880, 0.0
    %v3804 = vmax.f32 %v3650, 0.0
    %v3805 = vmax.f32 %v3652, 0.0
    %v3806 = vmax.f32 %v2882, 0.0
    %v3807 = vmax.f32 %v2884, 0.0
    %v3808 = vmax.f32 %v3654, 0.0
    %v3809 = vmax.f32 %v3656, 0.0
    %v3810 = vmax.f32 %v2888, 0.0
    %v3811 = vmax.f32 %v2890, 0.0
    %v3812 = vmax.f32 %v3660, 0.0
    %v3813 = vmax.f32 %v3662, 0.0
    %v3814 = vmax.f32 %v2892, 0.0
    %v3815 = vmax.f32 %v2894, 0.0
    %v3816 = vmax.f32 %v3664, 0.0
    %v3817 = vmax.f32 %v3666, 0.0
    %v3818 = vmax.f32 %v2898, 0.0
    %v3819 = vmax.f32 %v2900, 0.0
    %v3820 = vmax.f32 %v3670, 0.0
    %v3821 = vmax.f32 %v3672, 0.0
    %v3822 = vmax.f32 %v2902, 0.0
    %v3823 = vmax.f32 %v2904, 0.0
    %v3824 = vmax.f32 %v3674, 0.0
    %v3825 = vmax.f32 %v3676, 0.0
    %v3826 = vmax.f32 %v2908, 0.0
    %v3827 = vmax.f32 %v2910, 0.0
    %v3828 = vmax.f32 %v3680, 0.0
    %v3829 = vmax.f32 %v3682, 0.0
    %v3830 = vmax.f32 %v2912, 0.0
    %v3831 = vmax.f32 %v2914, 0.0
    %v3832 = vmax.f32 %v3684, 0.0
    %v3833 = vmax.f32 %v3686, 0.0
    %v3834 = vmax.f32 %v2918, 0.0
    %v3835 = vmax.f32 %v2920, 0.0
    %v3836 = vmax.f32 %v3690, 0.0
    %v3837 = vmax.f32 %v3692, 0.0
    %v3838 = vmax.f32 %v2922, 0.0
    %v3839 = vmax.f32 %v2924, 0.0
    %v3840 = vmax.f32 %v3694, 0.0
    %v3841 = vmax.f32 %v3696, 0.0
    %v3842 = vmax.f32 %v2928, 0.0
    %v3843 = vmax.f32 %v2930, 0.0
    %v3844 = vmax.f32 %v3700, 0.0
    %v3845 = vmax.f32 %v3702, 0.0
    %v3846 = vmax.f32 %v2932, 0.0
    %v3847 = vmax.f32 %v2934, 0.0
    %v3848 = vmax.f32 %v3704, 0.0
    %v3849 = vmax.f32 %v3706, 0.0
    %v3850 = vmax.f32 %v2938, 0.0
    %v3851 = vmax.f32 %v2940, 0.0
    %v3852 = vmax.f32 %v3710, 0.0
    %v3853 = vmax.f32 %v3712, 0.0
    %v3854 = vmax.f32 %v2942, 0.0
    %v3855 = vmax.f32 %v2944, 0.0
    %v3856 = vmax.f32 %v3714, 0.0
    %v3857 = vmax.f32 %v3716, 0.0
    %v3858 = vmax.f32 %v2948, 0.0
    %v3859 = vmax.f32 %v2950, 0.0
    %v3860 = vmax.f32 %v3720, 0.0
    %v3861 = vmax.f32 %v3722, 0.0
    %v3862 = vmax.f32 %v2952, 0.0
    %v3863 = vmax.f32 %v2954, 0.0
    %v3864 = vmax.f32 %v3724, 0.0
    %v3865 = vmax.f32 %v3726, 0.0
    %v3866 = vmax.f32 %v2958, 0.0
    %v3867 = vmax.f32 %v2960, 0.0
    %v3868 = vmax.f32 %v3730, 0.0
    %v3869 = vmax.f32 %v3732, 0.0
    %v3870 = vmax.f32 %v2962, 0.0
    %v3871 = vmax.f32 %v2964, 0.0
    %v3872 = vmax.f32 %v3734, 0.0
    %v3873 = vmax.f32 %v3736, 0.0
    %v3874 = vmax.f32 %v2968, 0.0
    %v3875 = vmax.f32 %v2970, 0.0
    %v3876 = vmax.f32 %v3740, 0.0
    %v3877 = vmax.f32 %v3742, 0.0
    %v3878 = vmax.f32 %v2972, 0.0
    %v3879 = vmax.f32 %v2974, 0.0
    %v3880 = vmax.f32 %v3744, 0.0
    %v3881 = vmax.f32 %v3746, 0.0
    %v3882 = vmax.f32 %v2978, 0.0
    %v3883 = vmax.f32 %v2980, 0.0
    %v3884 = vmax.f32 %v3750, 0.0
    %v3885 = vmax.f32 %v3752, 0.0
    %v3886 = vmax.f32 %v2982, 0.0
    %v3887 = vmax.f32 %v2984, 0.0
    %v3888 = vmax.f32 %v3754, 0.0
    %v3889 = vmax.f32 %v3756, 0.0
    %v3890 = vmax.f32 %v2988, 0.0
    %v3891 = vmax.f32 %v2990, 0.0
    %v3892 = vmax.f32 %v3760, 0.0
    %v3893 = vmax.f32 %v3762, 0.0
    %v3894 = vmax.f32 %v2992, 0.0
    %v3895 = vmax.f32 %v2994, 0.0
    %v3896 = vmax.f32 %v3764, 0.0
    %v3897 = vmax.f32 %v3766, 0.0
    %v3898 = vmax.f32 %v2998, 0.0
    %v3899 = vmax.f32 %v3000, 0.0
    %v3900 = vmax.f32 %v3770, 0.0
    %v3901 = vmax.f32 %v3772, 0.0
    %v3902 = vmax.f32 %v3002, 0.0
    %v3903 = vmax.f32 %v3004, 0.0
    %v3904 = vmax.f32 %v3774, 0.0
    %v3905 = vmax.f32 %v3776, 0.0
    %v3906 = vpack.c.bf16 %v3782, %v3778
    %v3907 = vpack.c.bf16 %v3783, %v3779
    %v3908 = vpack.c.bf16 %v3784, %v3780
    %v3909 = vpack.c.bf16 %v3785, %v3781
    %v3910 = vpack.c.bf16 %v3790, %v3786
    %v3911 = vpack.c.bf16 %v3791, %v3787
    %v3912 = vpack.c.bf16 %v3792, %v3788
    %v3913 = vpack.c.bf16 %v3793, %v3789
    %v3914 = vpack.c.bf16 %v3798, %v3794
    %v3915 = vpack.c.bf16 %v3799, %v3795
    %v3916 = vpack.c.bf16 %v3800, %v3796
    %v3917 = vpack.c.bf16 %v3801, %v3797
    %v3918 = vpack.c.bf16 %v3806, %v3802
    %v3919 = vpack.c.bf16 %v3807, %v3803
    %v3920 = vpack.c.bf16 %v3808, %v3804
    %v3921 = vpack.c.bf16 %v3809, %v3805
    %v3922 = vpack.c.bf16 %v3814, %v3810
    %v3923 = vpack.c.bf16 %v3815, %v3811
    %v3924 = vpack.c.bf16 %v3816, %v3812
    %v3925 = vpack.c.bf16 %v3817, %v3813
    %v3926 = vpack.c.bf16 %v3822, %v3818
    %v3927 = vpack.c.bf16 %v3823, %v3819
    %v3928 = vpack.c.bf16 %v3824, %v3820
    %v3929 = vpack.c.bf16 %v3825, %v3821
    %v3930 = vpack.c.bf16 %v3830, %v3826
    %v3931 = vpack.c.bf16 %v3831, %v3827
    %v3932 = vpack.c.bf16 %v3832, %v3828
    %v3933 = vpack.c.bf16 %v3833, %v3829
    %v3934 = vpack.c.bf16 %v3838, %v3834
    %v3935 = vpack.c.bf16 %v3839, %v3835
    %v3936 = vpack.c.bf16 %v3840, %v3836
    %v3937 = vpack.c.bf16 %v3841, %v3837
    %v3938 = vpack.c.bf16 %v3846, %v3842
    %v3939 = vpack.c.bf16 %v3847, %v3843
    %v3940 = vpack.c.bf16 %v3848, %v3844
    %v3941 = vpack.c.bf16 %v3849, %v3845
    %v3942 = vpack.c.bf16 %v3854, %v3850
    %v3943 = vpack.c.bf16 %v3855, %v3851
    %v3944 = vpack.c.bf16 %v3856, %v3852
    %v3945 = vpack.c.bf16 %v3857, %v3853
    %v3946 = vpack.c.bf16 %v3862, %v3858
    %v3947 = vpack.c.bf16 %v3863, %v3859
    %v3948 = vpack.c.bf16 %v3864, %v3860
    %v3949 = vpack.c.bf16 %v3865, %v3861
    %v3950 = vpack.c.bf16 %v3870, %v3866
    %v3951 = vpack.c.bf16 %v3871, %v3867
    %v3952 = vpack.c.bf16 %v3872, %v3868
    %v3953 = vpack.c.bf16 %v3873, %v3869
    %v3954 = vpack.c.bf16 %v3878, %v3874
    %v3955 = vpack.c.bf16 %v3879, %v3875
    %v3956 = vpack.c.bf16 %v3880, %v3876
    %v3957 = vpack.c.bf16 %v3881, %v3877
    %v3958 = vpack.c.bf16 %v3886, %v3882
    %v3959 = vpack.c.bf16 %v3887, %v3883
    %v3960 = vpack.c.bf16 %v3888, %v3884
    %v3961 = vpack.c.bf16 %v3889, %v3885
    %v3962 = vpack.c.bf16 %v3894, %v3890
    %v3963 = vpack.c.bf16 %v3895, %v3891
    %v3964 = vpack.c.bf16 %v3896, %v3892
    %v3965 = vpack.c.bf16 %v3897, %v3893
    %v3966 = vpack.c.bf16 %v3902, %v3898
    %v3967 = vpack.c.bf16 %v3903, %v3899
    %v3968 = vpack.c.bf16 %v3904, %v3900
    %v3969 = vpack.c.bf16 %v3905, %v3901
    %v3970 = vld [vmem:[#allocation8] sm:$0xff]
    %v3971 = vld [vmem:[#allocation8 + $0x8] sm:$0xff]
    %v3972 = vld [vmem:[#allocation8 + $0x10] sm:$0xff]
    %v3973 = vld [vmem:[#allocation8 + $0x18] sm:$0xff]
    %v3974 = vld [vmem:[#allocation8 + $0x20] sm:$0xff]
    %v3975 = vld [vmem:[#allocation8 + $0x28] sm:$0xff]
    %v3976 = vld [vmem:[#allocation8 + $0x30] sm:$0xff]
    %v3977 = vld [vmem:[#allocation8 + $0x38] sm:$0xff]
    %v3978 = vld [vmem:[#allocation8 + $0x40] sm:$0xff]
    %v3979 = vld [vmem:[#allocation8 + $0x48] sm:$0xff]
    %v3980 = vld [vmem:[#allocation8 + $0x50] sm:$0xff]
    %v3981 = vld [vmem:[#allocation8 + $0x58] sm:$0xff]
    %v3982 = vld [vmem:[#allocation8 + $0x60] sm:$0xff]
    %v3983 = vld [vmem:[#allocation8 + $0x68] sm:$0xff]
    %v3984 = vld [vmem:[#allocation8 + $0x70] sm:$0xff]
    %v3985 = vld [vmem:[#allocation8 + $0x78] sm:$0xff]
    %v3986 = vld [vmem:[#allocation8 + $0x80] sm:$0xff]
    %v3987 = vld [vmem:[#allocation8 + $0x88] sm:$0xff]
    %v3988 = vld [vmem:[#allocation8 + $0x90] sm:$0xff]
    %v3989 = vld [vmem:[#allocation8 + $0x98] sm:$0xff]
    %v3990 = vld [vmem:[#allocation8 + $0xa0] sm:$0xff]
    %v3991 = vld [vmem:[#allocation8 + $0xa8] sm:$0xff]
    %v3992 = vld [vmem:[#allocation8 + $0xb0] sm:$0xff]
    %v3993 = vld [vmem:[#allocation8 + $0xb8] sm:$0xff]
    %v3994 = vld [vmem:[#allocation8 + $0xc0] sm:$0xff]
    %v3995 = vld [vmem:[#allocation8 + $0xc8] sm:$0xff]
    %v3996 = vld [vmem:[#allocation8 + $0xd0] sm:$0xff]
    %v3997 = vld [vmem:[#allocation8 + $0xd8] sm:$0xff]
    %v3998 = vld [vmem:[#allocation8 + $0xe0] sm:$0xff]
    %v3999 = vld [vmem:[#allocation8 + $0xe8] sm:$0xff]
    %v4000 = vld [vmem:[#allocation8 + $0xf0] sm:$0xff]
    %v4001 = vld [vmem:[#allocation8 + $0xf8] sm:$0xff]
    %v4002 = vld [vmem:[#allocation8 + $0x100] sm:$0xff]
    %v4003 = vld [vmem:[#allocation8 + $0x108] sm:$0xff]
    %v4004 = vld [vmem:[#allocation8 + $0x110] sm:$0xff]
    %v4005 = vld [vmem:[#allocation8 + $0x118] sm:$0xff]
    %v4006 = vld [vmem:[#allocation8 + $0x120] sm:$0xff]
    %v4007 = vld [vmem:[#allocation8 + $0x128] sm:$0xff]
    %v4008 = vld [vmem:[#allocation8 + $0x130] sm:$0xff]
    %v4009 = vld [vmem:[#allocation8 + $0x138] sm:$0xff]
    %v4010 = vld [vmem:[#allocation8 + $0x140] sm:$0xff]
    %v4011 = vld [vmem:[#allocation8 + $0x148] sm:$0xff]
    %v4012 = vld [vmem:[#allocation8 + $0x150] sm:$0xff]
    %v4013 = vld [vmem:[#allocation8 + $0x158] sm:$0xff]
    %v4014 = vld [vmem:[#allocation8 + $0x160] sm:$0xff]
    %v4015 = vld [vmem:[#allocation8 + $0x168] sm:$0xff]
    %v4016 = vld [vmem:[#allocation8 + $0x170] sm:$0xff]
    %v4017 = vld [vmem:[#allocation8 + $0x178] sm:$0xff]
    %v4018 = vld [vmem:[#allocation8 + $0x180] sm:$0xff]
    %v4019 = vld [vmem:[#allocation8 + $0x188] sm:$0xff]
    %v4020 = vld [vmem:[#allocation8 + $0x190] sm:$0xff]
    %v4021 = vld [vmem:[#allocation8 + $0x198] sm:$0xff]
    %v4022 = vld [vmem:[#allocation8 + $0x1a0] sm:$0xff]
    %v4023 = vld [vmem:[#allocation8 + $0x1a8] sm:$0xff]
    %v4024 = vld [vmem:[#allocation8 + $0x1b0] sm:$0xff]
    %v4025 = vld [vmem:[#allocation8 + $0x1b8] sm:$0xff]
    %v4026 = vld [vmem:[#allocation8 + $0x1c0] sm:$0xff]
    %v4027 = vld [vmem:[#allocation8 + $0x1c8] sm:$0xff]
    %v4028 = vld [vmem:[#allocation8 + $0x1d0] sm:$0xff]
    %v4029 = vld [vmem:[#allocation8 + $0x1d8] sm:$0xff]
    %v4030 = vld [vmem:[#allocation8 + $0x1e0] sm:$0xff]
    %v4031 = vld [vmem:[#allocation8 + $0x1e8] sm:$0xff]
    %v4032 = vld [vmem:[#allocation8 + $0x1f0] sm:$0xff]
    %v4033 = vld [vmem:[#allocation8 + $0x1f8] sm:$0xff]
    %v4034 = vld [vmem:[%s4] sm:$0x3]
    %v4036 = vlaneseq
    %v4037 = vshrl.u32 %v4036, 7
    %v4038 = vsub.s32 0, %v4037
    %v4039 = vrot.slane %v4034, %v4038
    %v4040 = vlaneseq
    %v4041 = vshrl.u32 %v4040, 7
    %v4042 = vsub.s32 1, %v4041
    %v4043 = vrot.slane %v4034, %v4042
    %v4110 = vunpack.c.l.b16 %v3970
    %v4111 = vunpack.c.h.b16 %v3970
    %v4112 = vunpack.c.l.b16 %v3971
    %v4113 = vunpack.c.h.b16 %v3971
    %v4114 = vunpack.c.l.b16 %v3972
    %v4115 = vunpack.c.h.b16 %v3972
    %v4116 = vunpack.c.l.b16 %v3973
    %v4117 = vunpack.c.h.b16 %v3973
    %v4118 = vunpack.c.l.b16 %v3974
    %v4119 = vunpack.c.h.b16 %v3974
    %v4120 = vunpack.c.l.b16 %v3975
    %v4121 = vunpack.c.h.b16 %v3975
    %v4122 = vunpack.c.l.b16 %v3976
    %v4123 = vunpack.c.h.b16 %v3976
    %v4124 = vunpack.c.l.b16 %v3977
    %v4125 = vunpack.c.h.b16 %v3977
    %v4126 = vunpack.c.l.b16 %v3978
    %v4127 = vunpack.c.h.b16 %v3978
    %v4128 = vunpack.c.l.b16 %v3979
    %v4129 = vunpack.c.h.b16 %v3979
    %v4130 = vunpack.c.l.b16 %v3980
    %v4131 = vunpack.c.h.b16 %v3980
    %v4132 = vunpack.c.l.b16 %v3981
    %v4133 = vunpack.c.h.b16 %v3981
    %v4134 = vunpack.c.l.b16 %v3982
    %v4135 = vunpack.c.h.b16 %v3982
    %v4136 = vunpack.c.l.b16 %v3983
    %v4137 = vunpack.c.h.b16 %v3983
    %v4138 = vunpack.c.l.b16 %v3984
    %v4139 = vunpack.c.h.b16 %v3984
    %v4140 = vunpack.c.l.b16 %v3985
    %v4141 = vunpack.c.h.b16 %v3985
    %v4142 = vunpack.c.l.b16 %v3986
    %v4143 = vunpack.c.h.b16 %v3986
    %v4144 = vunpack.c.l.b16 %v3987
    %v4145 = vunpack.c.h.b16 %v3987
    %v4146 = vunpack.c.l.b16 %v3988
    %v4147 = vunpack.c.h.b16 %v3988
    %v4148 = vunpack.c.l.b16 %v3989
    %v4149 = vunpack.c.h.b16 %v3989
    %v4150 = vunpack.c.l.b16 %v3990
    %v4151 = vunpack.c.h.b16 %v3990
    %v4152 = vunpack.c.l.b16 %v3991
    %v4153 = vunpack.c.h.b16 %v3991
    %v4154 = vunpack.c.l.b16 %v3992
    %v4155 = vunpack.c.h.b16 %v3992
    %v4156 = vunpack.c.l.b16 %v3993
    %v4157 = vunpack.c.h.b16 %v3993
    %v4158 = vunpack.c.l.b16 %v3994
    %v4159 = vunpack.c.h.b16 %v3994
    %v4160 = vunpack.c.l.b16 %v3995
    %v4161 = vunpack.c.h.b16 %v3995
    %v4162 = vunpack.c.l.b16 %v3996
    %v4163 = vunpack.c.h.b16 %v3996
    %v4164 = vunpack.c.l.b16 %v3997
    %v4165 = vunpack.c.h.b16 %v3997
    %v4166 = vunpack.c.l.b16 %v3998
    %v4167 = vunpack.c.h.b16 %v3998
    %v4168 = vunpack.c.l.b16 %v3999
    %v4169 = vunpack.c.h.b16 %v3999
    %v4170 = vunpack.c.l.b16 %v4000
    %v4171 = vunpack.c.h.b16 %v4000
    %v4172 = vunpack.c.l.b16 %v4001
    %v4173 = vunpack.c.h.b16 %v4001
    %v4174 = vunpack.c.l.b16 %v4002
    %v4175 = vunpack.c.h.b16 %v4002
    %v4176 = vunpack.c.l.b16 %v4003
    %v4177 = vunpack.c.h.b16 %v4003
    %v4178 = vunpack.c.l.b16 %v4004
    %v4179 = vunpack.c.h.b16 %v4004
    %v4180 = vunpack.c.l.b16 %v4005
    %v4181 = vunpack.c.h.b16 %v4005
    %v4182 = vunpack.c.l.b16 %v4006
    %v4183 = vunpack.c.h.b16 %v4006
    %v4184 = vunpack.c.l.b16 %v4007
    %v4185 = vunpack.c.h.b16 %v4007
    %v4186 = vunpack.c.l.b16 %v4008
    %v4187 = vunpack.c.h.b16 %v4008
    %v4188 = vunpack.c.l.b16 %v4009
    %v4189 = vunpack.c.h.b16 %v4009
    %v4190 = vunpack.c.l.b16 %v4010
    %v4191 = vunpack.c.h.b16 %v4010
    %v4192 = vunpack.c.l.b16 %v4011
    %v4193 = vunpack.c.h.b16 %v4011
    %v4194 = vunpack.c.l.b16 %v4012
    %v4195 = vunpack.c.h.b16 %v4012
    %v4196 = vunpack.c.l.b16 %v4013
    %v4197 = vunpack.c.h.b16 %v4013
    %v4198 = vunpack.c.l.b16 %v4014
    %v4199 = vunpack.c.h.b16 %v4014
    %v4200 = vunpack.c.l.b16 %v4015
    %v4201 = vunpack.c.h.b16 %v4015
    %v4202 = vunpack.c.l.b16 %v4016
    %v4203 = vunpack.c.h.b16 %v4016
    %v4204 = vunpack.c.l.b16 %v4017
    %v4205 = vunpack.c.h.b16 %v4017
    %v4206 = vunpack.c.l.b16 %v4018
    %v4207 = vunpack.c.h.b16 %v4018
    %v4208 = vunpack.c.l.b16 %v4019
    %v4209 = vunpack.c.h.b16 %v4019
    %v4210 = vunpack.c.l.b16 %v4020
    %v4211 = vunpack.c.h.b16 %v4020
    %v4212 = vunpack.c.l.b16 %v4021
    %v4213 = vunpack.c.h.b16 %v4021
    %v4214 = vunpack.c.l.b16 %v4022
    %v4215 = vunpack.c.h.b16 %v4022
    %v4216 = vunpack.c.l.b16 %v4023
    %v4217 = vunpack.c.h.b16 %v4023
    %v4218 = vunpack.c.l.b16 %v4024
    %v4219 = vunpack.c.h.b16 %v4024
    %v4220 = vunpack.c.l.b16 %v4025
    %v4221 = vunpack.c.h.b16 %v4025
    %v4222 = vunpack.c.l.b16 %v4026
    %v4223 = vunpack.c.h.b16 %v4026
    %v4224 = vunpack.c.l.b16 %v4027
    %v4225 = vunpack.c.h.b16 %v4027
    %v4226 = vunpack.c.l.b16 %v4028
    %v4227 = vunpack.c.h.b16 %v4028
    %v4228 = vunpack.c.l.b16 %v4029
    %v4229 = vunpack.c.h.b16 %v4029
    %v4230 = vunpack.c.l.b16 %v4030
    %v4231 = vunpack.c.h.b16 %v4030
    %v4232 = vunpack.c.l.b16 %v4031
    %v4233 = vunpack.c.h.b16 %v4031
    %v4234 = vunpack.c.l.b16 %v4032
    %v4235 = vunpack.c.h.b16 %v4032
    %v4236 = vunpack.c.l.b16 %v4033
    %v4237 = vunpack.c.h.b16 %v4033
    %v4238 = vpack.c.b16 %v4112, %v4110
    %v4239 = vpack.c.b16 %v4113, %v4111
    %v4240 = vpack.c.b16 %v4116, %v4114
    %v4241 = vpack.c.b16 %v4117, %v4115
    %v4242 = vpack.c.b16 %v4120, %v4118
    %v4243 = vpack.c.b16 %v4121, %v4119
    %v4244 = vpack.c.b16 %v4124, %v4122
    %v4245 = vpack.c.b16 %v4125, %v4123
    %v4246 = vpack.c.b16 %v4128, %v4126
    %v4247 = vpack.c.b16 %v4129, %v4127
    %v4248 = vpack.c.b16 %v4132, %v4130
    %v4249 = vpack.c.b16 %v4133, %v4131
    %v4250 = vpack.c.b16 %v4136, %v4134
    %v4251 = vpack.c.b16 %v4137, %v4135
    %v4252 = vpack.c.b16 %v4140, %v4138
    %v4253 = vpack.c.b16 %v4141, %v4139
    %v4254 = vpack.c.b16 %v4144, %v4142
    %v4255 = vpack.c.b16 %v4145, %v4143
    %v4256 = vpack.c.b16 %v4148, %v4146
    %v4257 = vpack.c.b16 %v4149, %v4147
    %v4258 = vpack.c.b16 %v4152, %v4150
    %v4259 = vpack.c.b16 %v4153, %v4151
    %v4260 = vpack.c.b16 %v4156, %v4154
    %v4261 = vpack.c.b16 %v4157, %v4155
    %v4262 = vpack.c.b16 %v4160, %v4158
    %v4263 = vpack.c.b16 %v4161, %v4159
    %v4264 = vpack.c.b16 %v4164, %v4162
    %v4265 = vpack.c.b16 %v4165, %v4163
    %v4266 = vpack.c.b16 %v4168, %v4166
    %v4267 = vpack.c.b16 %v4169, %v4167
    %v4268 = vpack.c.b16 %v4172, %v4170
    %v4269 = vpack.c.b16 %v4173, %v4171
    %v4270 = vpack.c.b16 %v4176, %v4174
    %v4271 = vpack.c.b16 %v4177, %v4175
    %v4272 = vpack.c.b16 %v4180, %v4178
    %v4273 = vpack.c.b16 %v4181, %v4179
    %v4274 = vpack.c.b16 %v4184, %v4182
    %v4275 = vpack.c.b16 %v4185, %v4183
    %v4276 = vpack.c.b16 %v4188, %v4186
    %v4277 = vpack.c.b16 %v4189, %v4187
    %v4278 = vpack.c.b16 %v4192, %v4190
    %v4279 = vpack.c.b16 %v4193, %v4191
    %v4280 = vpack.c.b16 %v4196, %v4194
    %v4281 = vpack.c.b16 %v4197, %v4195
    %v4282 = vpack.c.b16 %v4200, %v4198
    %v4283 = vpack.c.b16 %v4201, %v4199
    %v4284 = vpack.c.b16 %v4204, %v4202
    %v4285 = vpack.c.b16 %v4205, %v4203
    %v4286 = vpack.c.b16 %v4208, %v4206
    %v4287 = vpack.c.b16 %v4209, %v4207
    %v4288 = vpack.c.b16 %v4212, %v4210
    %v4289 = vpack.c.b16 %v4213, %v4211
    %v4290 = vpack.c.b16 %v4216, %v4214
    %v4291 = vpack.c.b16 %v4217, %v4215
    %v4292 = vpack.c.b16 %v4220, %v4218
    %v4293 = vpack.c.b16 %v4221, %v4219
    %v4294 = vpack.c.b16 %v4224, %v4222
    %v4295 = vpack.c.b16 %v4225, %v4223
    %v4296 = vpack.c.b16 %v4228, %v4226
    %v4297 = vpack.c.b16 %v4229, %v4227
    %v4298 = vpack.c.b16 %v4232, %v4230
    %v4299 = vpack.c.b16 %v4233, %v4231
    %v4300 = vpack.c.b16 %v4236, %v4234
    %v4301 = vpack.c.b16 %v4237, %v4235
    %4366 = vmatprep.subr.bf16.mxu0 %v4253
    %4367 = vmatpush1.bf16.msra.mxu0 %v4252
    %4368 = vmatprep.subr.bf16.mxu0 %v4251
    %4369 = vmatpush1.bf16.msra.mxu0 %v4250
    %4370 = vmatprep.subr.bf16.mxu0 %v4249
    %4371 = vmatpush1.bf16.msra.mxu0 %v4248
    %4372 = vmatprep.subr.bf16.mxu0 %v4247
    %4373 = vmatpush1.bf16.msra.mxu0 %v4246
    %4374 = vmatprep.subr.bf16.mxu0 %v4245
    %4375 = vmatpush1.bf16.msra.mxu0 %v4244
    %4376 = vmatprep.subr.bf16.mxu0 %v4243
    %4377 = vmatpush1.bf16.msra.mxu0 %v4242
    %4378 = vmatprep.subr.bf16.mxu0 %v4241
    %4379 = vmatpush1.bf16.msra.mxu0 %v4240
    %4380 = vmatprep.subr.bf16.mxu0 %v4239
    %4381 = vmatpush1.bf16.msra.mxu0 %v4238
    %4382 = vmatprep.subr.bf16.mxu0 %v4269
    %4383 = vmatpush2.bf16.msra.mxu0 %v4268
    %4384 = vmatprep.subr.bf16.mxu0 %v4267
    %4385 = vmatpush2.bf16.msra.mxu0 %v4266
    %4386 = vmatprep.subr.bf16.mxu0 %v4265
    %4387 = vmatpush2.bf16.msra.mxu0 %v4264
    %4388 = vmatprep.subr.bf16.mxu0 %v4263
    %4389 = vmatpush2.bf16.msra.mxu0 %v4262
    %4390 = vmatprep.subr.bf16.mxu0 %v4261
    %4391 = vmatpush2.bf16.msra.mxu0 %v4260
    %4392 = vmatprep.subr.bf16.mxu0 %v4259
    %4393 = vmatpush2.bf16.msra.mxu0 %v4258
    %4394 = vmatprep.subr.bf16.mxu0 %v4257
    %4395 = vmatpush2.bf16.msra.mxu0 %v4256
    %4396 = vmatprep.subr.bf16.mxu0 %v4255
    %4397 = vmatpush2.bf16.msra.mxu0 %v4254
    %4398 = vmatprep.mubr.bf16.mxu0 %v3907
    %4399 = vmatmul.mubr.bf16.gmra.mxu0 %v3906
    %v4400 = vpop.f32.mrf.mxu0
    %v4401 = vadd.f32 %v4039, %v4400
    %v4402 = vpop.f32.mrf.mxu0
    %v4403 = vadd.f32 %v4043, %v4402
    %v4404 = vpop.f32.mrf.mxu0
    %v4405 = vadd.f32 %v4039, %v4404
    %v4406 = vpop.f32.mrf.mxu0
    %v4407 = vadd.f32 %v4043, %v4406
    %4408 = vmatprep.mubr.bf16.mxu0 %v3911
    %4409 = vmatmul.mubr.bf16.gmra.mxu0 %v3910
    %v4410 = vpop.f32.mrf.mxu0
    %v4411 = vadd.f32 %v4039, %v4410
    %v4412 = vpop.f32.mrf.mxu0
    %v4413 = vadd.f32 %v4043, %v4412
    %v4414 = vpop.f32.mrf.mxu0
    %v4415 = vadd.f32 %v4039, %v4414
    %v4416 = vpop.f32.mrf.mxu0
    %v4417 = vadd.f32 %v4043, %v4416
    %4418 = vmatprep.mubr.bf16.mxu0 %v3915
    %4419 = vmatmul.mubr.bf16.gmra.mxu0 %v3914
    %v4420 = vpop.f32.mrf.mxu0
    %v4421 = vadd.f32 %v4039, %v4420
    %v4422 = vpop.f32.mrf.mxu0
    %v4423 = vadd.f32 %v4043, %v4422
    %v4424 = vpop.f32.mrf.mxu0
    %v4425 = vadd.f32 %v4039, %v4424
    %v4426 = vpop.f32.mrf.mxu0
    %v4427 = vadd.f32 %v4043, %v4426
    %4428 = vmatprep.mubr.bf16.mxu0 %v3919
    %4429 = vmatmul.mubr.bf16.gmra.mxu0 %v3918
    %v4430 = vpop.f32.mrf.mxu0
    %v4431 = vadd.f32 %v4039, %v4430
    %v4432 = vpop.f32.mrf.mxu0
    %v4433 = vadd.f32 %v4043, %v4432
    %v4434 = vpop.f32.mrf.mxu0
    %v4435 = vadd.f32 %v4039, %v4434
    %v4436 = vpop.f32.mrf.mxu0
    %v4437 = vadd.f32 %v4043, %v4436
    %4438 = vmatprep.mubr.bf16.mxu0 %v3923
    %4439 = vmatmul.mubr.bf16.gmra.mxu0 %v3922
    %v4440 = vpop.f32.mrf.mxu0
    %v4441 = vadd.f32 %v4039, %v4440
    %v4442 = vpop.f32.mrf.mxu0
    %v4443 = vadd.f32 %v4043, %v4442
    %v4444 = vpop.f32.mrf.mxu0
    %v4445 = vadd.f32 %v4039, %v4444
    %v4446 = vpop.f32.mrf.mxu0
    %v4447 = vadd.f32 %v4043, %v4446
    %4448 = vmatprep.mubr.bf16.mxu0 %v3927
    %4449 = vmatmul.mubr.bf16.gmra.mxu0 %v3926
    %v4450 = vpop.f32.mrf.mxu0
    %v4451 = vadd.f32 %v4039, %v4450
    %v4452 = vpop.f32.mrf.mxu0
    %v4453 = vadd.f32 %v4043, %v4452
    %v4454 = vpop.f32.mrf.mxu0
    %v4455 = vadd.f32 %v4039, %v4454
    %v4456 = vpop.f32.mrf.mxu0
    %v4457 = vadd.f32 %v4043, %v4456
    %4458 = vmatprep.mubr.bf16.mxu0 %v3931
    %4459 = vmatmul.mubr.bf16.gmra.mxu0 %v3930
    %v4460 = vpop.f32.mrf.mxu0
    %v4461 = vadd.f32 %v4039, %v4460
    %v4462 = vpop.f32.mrf.mxu0
    %v4463 = vadd.f32 %v4043, %v4462
    %v4464 = vpop.f32.mrf.mxu0
    %v4465 = vadd.f32 %v4039, %v4464
    %v4466 = vpop.f32.mrf.mxu0
    %v4467 = vadd.f32 %v4043, %v4466
    %4468 = vmatprep.mubr.bf16.mxu0 %v3935
    %4469 = vmatmul.mubr.bf16.gmra.mxu0 %v3934
    %v4470 = vpop.f32.mrf.mxu0
    %v4471 = vadd.f32 %v4039, %v4470
    %v4472 = vpop.f32.mrf.mxu0
    %v4473 = vadd.f32 %v4043, %v4472
    %v4474 = vpop.f32.mrf.mxu0
    %v4475 = vadd.f32 %v4039, %v4474
    %v4476 = vpop.f32.mrf.mxu0
    %v4477 = vadd.f32 %v4043, %v4476
    %4478 = vmatprep.mubr.bf16.mxu0 %v3939
    %4479 = vmatmul.mubr.bf16.gmra.mxu0 %v3938
    %v4480 = vpop.f32.mrf.mxu0
    %v4481 = vadd.f32 %v4039, %v4480
    %v4482 = vpop.f32.mrf.mxu0
    %v4483 = vadd.f32 %v4043, %v4482
    %v4484 = vpop.f32.mrf.mxu0
    %v4485 = vadd.f32 %v4039, %v4484
    %v4486 = vpop.f32.mrf.mxu0
    %v4487 = vadd.f32 %v4043, %v4486
    %4488 = vmatprep.mubr.bf16.mxu0 %v3943
    %4489 = vmatmul.mubr.bf16.gmra.mxu0 %v3942
    %v4490 = vpop.f32.mrf.mxu0
    %v4491 = vadd.f32 %v4039, %v4490
    %v4492 = vpop.f32.mrf.mxu0
    %v4493 = vadd.f32 %v4043, %v4492
    %v4494 = vpop.f32.mrf.mxu0
    %v4495 = vadd.f32 %v4039, %v4494
    %v4496 = vpop.f32.mrf.mxu0
    %v4497 = vadd.f32 %v4043, %v4496
    %4498 = vmatprep.mubr.bf16.mxu0 %v3947
    %4499 = vmatmul.mubr.bf16.gmra.mxu0 %v3946
    %v4500 = vpop.f32.mrf.mxu0
    %v4501 = vadd.f32 %v4039, %v4500
    %v4502 = vpop.f32.mrf.mxu0
    %v4503 = vadd.f32 %v4043, %v4502
    %v4504 = vpop.f32.mrf.mxu0
    %v4505 = vadd.f32 %v4039, %v4504
    %v4506 = vpop.f32.mrf.mxu0
    %v4507 = vadd.f32 %v4043, %v4506
    %4508 = vmatprep.mubr.bf16.mxu0 %v3951
    %4509 = vmatmul.mubr.bf16.gmra.mxu0 %v3950
    %v4510 = vpop.f32.mrf.mxu0
    %v4511 = vadd.f32 %v4039, %v4510
    %v4512 = vpop.f32.mrf.mxu0
    %v4513 = vadd.f32 %v4043, %v4512
    %v4514 = vpop.f32.mrf.mxu0
    %v4515 = vadd.f32 %v4039, %v4514
    %v4516 = vpop.f32.mrf.mxu0
    %v4517 = vadd.f32 %v4043, %v4516
    %4518 = vmatprep.mubr.bf16.mxu0 %v3955
    %4519 = vmatmul.mubr.bf16.gmra.mxu0 %v3954
    %v4520 = vpop.f32.mrf.mxu0
    %v4521 = vadd.f32 %v4039, %v4520
    %v4522 = vpop.f32.mrf.mxu0
    %v4523 = vadd.f32 %v4043, %v4522
    %v4524 = vpop.f32.mrf.mxu0
    %v4525 = vadd.f32 %v4039, %v4524
    %v4526 = vpop.f32.mrf.mxu0
    %v4527 = vadd.f32 %v4043, %v4526
    %4528 = vmatprep.mubr.bf16.mxu0 %v3959
    %4529 = vmatmul.mubr.bf16.gmra.mxu0 %v3958
    %v4530 = vpop.f32.mrf.mxu0
    %v4531 = vadd.f32 %v4039, %v4530
    %v4532 = vpop.f32.mrf.mxu0
    %v4533 = vadd.f32 %v4043, %v4532
    %v4534 = vpop.f32.mrf.mxu0
    %v4535 = vadd.f32 %v4039, %v4534
    %v4536 = vpop.f32.mrf.mxu0
    %v4537 = vadd.f32 %v4043, %v4536
    %4538 = vmatprep.mubr.bf16.mxu0 %v3963
    %4539 = vmatmul.mubr.bf16.gmra.mxu0 %v3962
    %v4540 = vpop.f32.mrf.mxu0
    %v4541 = vadd.f32 %v4039, %v4540
    %v4542 = vpop.f32.mrf.mxu0
    %v4543 = vadd.f32 %v4043, %v4542
    %v4544 = vpop.f32.mrf.mxu0
    %v4545 = vadd.f32 %v4039, %v4544
    %v4546 = vpop.f32.mrf.mxu0
    %v4547 = vadd.f32 %v4043, %v4546
    %4548 = vmatprep.mubr.bf16.mxu0 %v3967
    %4549 = vmatmul.mubr.bf16.gmra.mxu0 %v3966
    %v4550 = vpop.f32.mrf.mxu0
    %v4551 = vadd.f32 %v4039, %v4550
    %v4552 = vpop.f32.mrf.mxu0
    %v4553 = vadd.f32 %v4043, %v4552
    %v4554 = vpop.f32.mrf.mxu0
    %v4555 = vadd.f32 %v4039, %v4554
    %v4556 = vpop.f32.mrf.mxu0
    %v4557 = vadd.f32 %v4043, %v4556
    %4558 = vdwg.mxu0
    %4559 = vmatprep.subr.bf16.mxu0 %v4285
    %4560 = vmatpush1.bf16.msra.mxu0 %v4284
    %4561 = vmatprep.subr.bf16.mxu0 %v4283
    %4562 = vmatpush1.bf16.msra.mxu0 %v4282
    %4563 = vmatprep.subr.bf16.mxu0 %v4281
    %4564 = vmatpush1.bf16.msra.mxu0 %v4280
    %4565 = vmatprep.subr.bf16.mxu0 %v4279
    %4566 = vmatpush1.bf16.msra.mxu0 %v4278
    %4567 = vmatprep.subr.bf16.mxu0 %v4277
    %4568 = vmatpush1.bf16.msra.mxu0 %v4276
    %4569 = vmatprep.subr.bf16.mxu0 %v4275
    %4570 = vmatpush1.bf16.msra.mxu0 %v4274
    %4571 = vmatprep.subr.bf16.mxu0 %v4273
    %4572 = vmatpush1.bf16.msra.mxu0 %v4272
    %4573 = vmatprep.subr.bf16.mxu0 %v4271
    %4574 = vmatpush1.bf16.msra.mxu0 %v4270
    %4575 = vmatprep.subr.bf16.mxu0 %v4301
    %4576 = vmatpush2.bf16.msra.mxu0 %v4300
    %4577 = vmatprep.subr.bf16.mxu0 %v4299
    %4578 = vmatpush2.bf16.msra.mxu0 %v4298
    %4579 = vmatprep.subr.bf16.mxu0 %v4297
    %4580 = vmatpush2.bf16.msra.mxu0 %v4296
    %4581 = vmatprep.subr.bf16.mxu0 %v4295
    %4582 = vmatpush2.bf16.msra.mxu0 %v4294
    %4583 = vmatprep.subr.bf16.mxu0 %v4293
    %4584 = vmatpush2.bf16.msra.mxu0 %v4292
    %4585 = vmatprep.subr.bf16.mxu0 %v4291
    %4586 = vmatpush2.bf16.msra.mxu0 %v4290
    %4587 = vmatprep.subr.bf16.mxu0 %v4289
    %4588 = vmatpush2.bf16.msra.mxu0 %v4288
    %4589 = vmatprep.subr.bf16.mxu0 %v4287
    %4590 = vmatpush2.bf16.msra.mxu0 %v4286
    %4591 = vmatprep.mubr.bf16.mxu0 %v3909
    %4592 = vmatmul.mubr.bf16.gmra.mxu0 %v3908
    %v4593 = vpop.f32.mrf.mxu0
    %v4594 = vadd.f32 %v4401, %v4593
    %v4595 = vpop.f32.mrf.mxu0
    %v4596 = vadd.f32 %v4403, %v4595
    %v4597 = vpop.f32.mrf.mxu0
    %v4598 = vadd.f32 %v4405, %v4597
    %v4599 = vpop.f32.mrf.mxu0
    %v4600 = vadd.f32 %v4407, %v4599
    %4601 = vmatprep.mubr.bf16.mxu0 %v3913
    %4602 = vmatmul.mubr.bf16.gmra.mxu0 %v3912
    %v4603 = vpop.f32.mrf.mxu0
    %v4604 = vadd.f32 %v4411, %v4603
    %v4605 = vpop.f32.mrf.mxu0
    %v4606 = vadd.f32 %v4413, %v4605
    %v4607 = vpop.f32.mrf.mxu0
    %v4608 = vadd.f32 %v4415, %v4607
    %v4609 = vpop.f32.mrf.mxu0
    %v4610 = vadd.f32 %v4417, %v4609
    %4611 = vmatprep.mubr.bf16.mxu0 %v3917
    %4612 = vmatmul.mubr.bf16.gmra.mxu0 %v3916
    %v4613 = vpop.f32.mrf.mxu0
    %v4614 = vadd.f32 %v4421, %v4613
    %v4615 = vpop.f32.mrf.mxu0
    %v4616 = vadd.f32 %v4423, %v4615
    %v4617 = vpop.f32.mrf.mxu0
    %v4618 = vadd.f32 %v4425, %v4617
    %v4619 = vpop.f32.mrf.mxu0
    %v4620 = vadd.f32 %v4427, %v4619
    %4621 = vmatprep.mubr.bf16.mxu0 %v3921
    %4622 = vmatmul.mubr.bf16.gmra.mxu0 %v3920
    %v4623 = vpop.f32.mrf.mxu0
    %v4624 = vadd.f32 %v4431, %v4623
    %v4625 = vpop.f32.mrf.mxu0
    %v4626 = vadd.f32 %v4433, %v4625
    %v4627 = vpop.f32.mrf.mxu0
    %v4628 = vadd.f32 %v4435, %v4627
    %v4629 = vpop.f32.mrf.mxu0
    %v4630 = vadd.f32 %v4437, %v4629
    %4631 = vmatprep.mubr.bf16.mxu0 %v3925
    %4632 = vmatmul.mubr.bf16.gmra.mxu0 %v3924
    %v4633 = vpop.f32.mrf.mxu0
    %v4634 = vadd.f32 %v4441, %v4633
    %v4635 = vpop.f32.mrf.mxu0
    %v4636 = vadd.f32 %v4443, %v4635
    %v4637 = vpop.f32.mrf.mxu0
    %v4638 = vadd.f32 %v4445, %v4637
    %v4639 = vpop.f32.mrf.mxu0
    %v4640 = vadd.f32 %v4447, %v4639
    %4641 = vmatprep.mubr.bf16.mxu0 %v3929
    %4642 = vmatmul.mubr.bf16.gmra.mxu0 %v3928
    %v4643 = vpop.f32.mrf.mxu0
    %v4644 = vadd.f32 %v4451, %v4643
    %v4645 = vpop.f32.mrf.mxu0
    %v4646 = vadd.f32 %v4453, %v4645
    %v4647 = vpop.f32.mrf.mxu0
    %v4648 = vadd.f32 %v4455, %v4647
    %v4649 = vpop.f32.mrf.mxu0
    %v4650 = vadd.f32 %v4457, %v4649
    %4651 = vmatprep.mubr.bf16.mxu0 %v3933
    %4652 = vmatmul.mubr.bf16.gmra.mxu0 %v3932
    %v4653 = vpop.f32.mrf.mxu0
    %v4654 = vadd.f32 %v4461, %v4653
    %v4655 = vpop.f32.mrf.mxu0
    %v4656 = vadd.f32 %v4463, %v4655
    %v4657 = vpop.f32.mrf.mxu0
    %v4658 = vadd.f32 %v4465, %v4657
    %v4659 = vpop.f32.mrf.mxu0
    %v4660 = vadd.f32 %v4467, %v4659
    %4661 = vmatprep.mubr.bf16.mxu0 %v3937
    %4662 = vmatmul.mubr.bf16.gmra.mxu0 %v3936
    %v4663 = vpop.f32.mrf.mxu0
    %v4664 = vadd.f32 %v4471, %v4663
    %v4665 = vpop.f32.mrf.mxu0
    %v4666 = vadd.f32 %v4473, %v4665
    %v4667 = vpop.f32.mrf.mxu0
    %v4668 = vadd.f32 %v4475, %v4667
    %v4669 = vpop.f32.mrf.mxu0
    %v4670 = vadd.f32 %v4477, %v4669
    %4671 = vmatprep.mubr.bf16.mxu0 %v3941
    %4672 = vmatmul.mubr.bf16.gmra.mxu0 %v3940
    %v4673 = vpop.f32.mrf.mxu0
    %v4674 = vadd.f32 %v4481, %v4673
    %v4675 = vpop.f32.mrf.mxu0
    %v4676 = vadd.f32 %v4483, %v4675
    %v4677 = vpop.f32.mrf.mxu0
    %v4678 = vadd.f32 %v4485, %v4677
    %v4679 = vpop.f32.mrf.mxu0
    %v4680 = vadd.f32 %v4487, %v4679
    %4681 = vmatprep.mubr.bf16.mxu0 %v3945
    %4682 = vmatmul.mubr.bf16.gmra.mxu0 %v3944
    %v4683 = vpop.f32.mrf.mxu0
    %v4684 = vadd.f32 %v4491, %v4683
    %v4685 = vpop.f32.mrf.mxu0
    %v4686 = vadd.f32 %v4493, %v4685
    %v4687 = vpop.f32.mrf.mxu0
    %v4688 = vadd.f32 %v4495, %v4687
    %v4689 = vpop.f32.mrf.mxu0
    %v4690 = vadd.f32 %v4497, %v4689
    %4691 = vmatprep.mubr.bf16.mxu0 %v3949
    %4692 = vmatmul.mubr.bf16.gmra.mxu0 %v3948
    %v4693 = vpop.f32.mrf.mxu0
    %v4694 = vadd.f32 %v4501, %v4693
    %v4695 = vpop.f32.mrf.mxu0
    %v4696 = vadd.f32 %v4503, %v4695
    %v4697 = vpop.f32.mrf.mxu0
    %v4698 = vadd.f32 %v4505, %v4697
    %v4699 = vpop.f32.mrf.mxu0
    %v4700 = vadd.f32 %v4507, %v4699
    %4701 = vmatprep.mubr.bf16.mxu0 %v3953
    %4702 = vmatmul.mubr.bf16.gmra.mxu0 %v3952
    %v4703 = vpop.f32.mrf.mxu0
    %v4704 = vadd.f32 %v4511, %v4703
    %v4705 = vpop.f32.mrf.mxu0
    %v4706 = vadd.f32 %v4513, %v4705
    %v4707 = vpop.f32.mrf.mxu0
    %v4708 = vadd.f32 %v4515, %v4707
    %v4709 = vpop.f32.mrf.mxu0
    %v4710 = vadd.f32 %v4517, %v4709
    %4711 = vmatprep.mubr.bf16.mxu0 %v3957
    %4712 = vmatmul.mubr.bf16.gmra.mxu0 %v3956
    %v4713 = vpop.f32.mrf.mxu0
    %v4714 = vadd.f32 %v4521, %v4713
    %v4715 = vpop.f32.mrf.mxu0
    %v4716 = vadd.f32 %v4523, %v4715
    %v4717 = vpop.f32.mrf.mxu0
    %v4718 = vadd.f32 %v4525, %v4717
    %v4719 = vpop.f32.mrf.mxu0
    %v4720 = vadd.f32 %v4527, %v4719
    %4721 = vmatprep.mubr.bf16.mxu0 %v3961
    %4722 = vmatmul.mubr.bf16.gmra.mxu0 %v3960
    %v4723 = vpop.f32.mrf.mxu0
    %v4724 = vadd.f32 %v4531, %v4723
    %v4725 = vpop.f32.mrf.mxu0
    %v4726 = vadd.f32 %v4533, %v4725
    %v4727 = vpop.f32.mrf.mxu0
    %v4728 = vadd.f32 %v4535, %v4727
    %v4729 = vpop.f32.mrf.mxu0
    %v4730 = vadd.f32 %v4537, %v4729
    %4731 = vmatprep.mubr.bf16.mxu0 %v3965
    %4732 = vmatmul.mubr.bf16.gmra.mxu0 %v3964
    %v4733 = vpop.f32.mrf.mxu0
    %v4734 = vadd.f32 %v4541, %v4733
    %v4735 = vpop.f32.mrf.mxu0
    %v4736 = vadd.f32 %v4543, %v4735
    %v4737 = vpop.f32.mrf.mxu0
    %v4738 = vadd.f32 %v4545, %v4737
    %v4739 = vpop.f32.mrf.mxu0
    %v4740 = vadd.f32 %v4547, %v4739
    %4741 = vmatprep.mubr.bf16.mxu0 %v3969
    %4742 = vmatmul.mubr.bf16.gmra.mxu0 %v3968
    %v4743 = vpop.f32.mrf.mxu0
    %v4744 = vadd.f32 %v4551, %v4743
    %v4745 = vpop.f32.mrf.mxu0
    %v4746 = vadd.f32 %v4553, %v4745
    %v4747 = vpop.f32.mrf.mxu0
    %v4748 = vadd.f32 %v4555, %v4747
    %v4749 = vpop.f32.mrf.mxu0
    %v4750 = vadd.f32 %v4557, %v4749
    %4751 = vdwg.mxu0
    %v4752 = vmax.f32 %v4594, 0.0
    %v4753 = vmax.f32 %v4596, 0.0
    %v4754 = vmax.f32 %v4598, 0.0
    %v4755 = vmax.f32 %v4600, 0.0
    %v4756 = vmax.f32 %v4604, 0.0
    %v4757 = vmax.f32 %v4606, 0.0
    %v4758 = vmax.f32 %v4608, 0.0
    %v4759 = vmax.f32 %v4610, 0.0
    %v4760 = vmax.f32 %v4614, 0.0
    %v4761 = vmax.f32 %v4616, 0.0
    %v4762 = vmax.f32 %v4618, 0.0
    %v4763 = vmax.f32 %v4620, 0.0
    %v4764 = vmax.f32 %v4624, 0.0
    %v4765 = vmax.f32 %v4626, 0.0
    %v4766 = vmax.f32 %v4628, 0.0
    %v4767 = vmax.f32 %v4630, 0.0
    %v4768 = vmax.f32 %v4634, 0.0
    %v4769 = vmax.f32 %v4636, 0.0
    %v4770 = vmax.f32 %v4638, 0.0
    %v4771 = vmax.f32 %v4640, 0.0
    %v4772 = vmax.f32 %v4644, 0.0
    %v4773 = vmax.f32 %v4646, 0.0
    %v4774 = vmax.f32 %v4648, 0.0
    %v4775 = vmax.f32 %v4650, 0.0
    %v4776 = vmax.f32 %v4654, 0.0
    %v4777 = vmax.f32 %v4656, 0.0
    %v4778 = vmax.f32 %v4658, 0.0
    %v4779 = vmax.f32 %v4660, 0.0
    %v4780 = vmax.f32 %v4664, 0.0
    %v4781 = vmax.f32 %v4666, 0.0
    %v4782 = vmax.f32 %v4668, 0.0
    %v4783 = vmax.f32 %v4670, 0.0
    %v4784 = vmax.f32 %v4674, 0.0
    %v4785 = vmax.f32 %v4676, 0.0
    %v4786 = vmax.f32 %v4678, 0.0
    %v4787 = vmax.f32 %v4680, 0.0
    %v4788 = vmax.f32 %v4684, 0.0
    %v4789 = vmax.f32 %v4686, 0.0
    %v4790 = vmax.f32 %v4688, 0.0
    %v4791 = vmax.f32 %v4690, 0.0
    %v4792 = vmax.f32 %v4694, 0.0
    %v4793 = vmax.f32 %v4696, 0.0
    %v4794 = vmax.f32 %v4698, 0.0
    %v4795 = vmax.f32 %v4700, 0.0
    %v4796 = vmax.f32 %v4704, 0.0
    %v4797 = vmax.f32 %v4706, 0.0
    %v4798 = vmax.f32 %v4708, 0.0
    %v4799 = vmax.f32 %v4710, 0.0
    %v4800 = vmax.f32 %v4714, 0.0
    %v4801 = vmax.f32 %v4716, 0.0
    %v4802 = vmax.f32 %v4718, 0.0
    %v4803 = vmax.f32 %v4720, 0.0
    %v4804 = vmax.f32 %v4724, 0.0
    %v4805 = vmax.f32 %v4726, 0.0
    %v4806 = vmax.f32 %v4728, 0.0
    %v4807 = vmax.f32 %v4730, 0.0
    %v4808 = vmax.f32 %v4734, 0.0
    %v4809 = vmax.f32 %v4736, 0.0
    %v4810 = vmax.f32 %v4738, 0.0
    %v4811 = vmax.f32 %v4740, 0.0
    %v4812 = vmax.f32 %v4744, 0.0
    %v4813 = vmax.f32 %v4746, 0.0
    %v4814 = vmax.f32 %v4748, 0.0
    %v4815 = vmax.f32 %v4750, 0.0
    %v4816 = vpack.c.bf16 %v4754, %v4752
    %v4817 = vpack.c.bf16 %v4755, %v4753
    %v4818 = vpack.c.bf16 %v4758, %v4756
    %v4819 = vpack.c.bf16 %v4759, %v4757
    %v4820 = vpack.c.bf16 %v4762, %v4760
    %v4821 = vpack.c.bf16 %v4763, %v4761
    %v4822 = vpack.c.bf16 %v4766, %v4764
    %v4823 = vpack.c.bf16 %v4767, %v4765
    %v4824 = vpack.c.bf16 %v4770, %v4768
    %v4825 = vpack.c.bf16 %v4771, %v4769
    %v4826 = vpack.c.bf16 %v4774, %v4772
    %v4827 = vpack.c.bf16 %v4775, %v4773
    %v4828 = vpack.c.bf16 %v4778, %v4776
    %v4829 = vpack.c.bf16 %v4779, %v4777
    %v4830 = vpack.c.bf16 %v4782, %v4780
    %v4831 = vpack.c.bf16 %v4783, %v4781
    %v4832 = vpack.c.bf16 %v4786, %v4784
    %v4833 = vpack.c.bf16 %v4787, %v4785
    %v4834 = vpack.c.bf16 %v4790, %v4788
    %v4835 = vpack.c.bf16 %v4791, %v4789
    %v4836 = vpack.c.bf16 %v4794, %v4792
    %v4837 = vpack.c.bf16 %v4795, %v4793
    %v4838 = vpack.c.bf16 %v4798, %v4796
    %v4839 = vpack.c.bf16 %v4799, %v4797
    %v4840 = vpack.c.bf16 %v4802, %v4800
    %v4841 = vpack.c.bf16 %v4803, %v4801
    %v4842 = vpack.c.bf16 %v4806, %v4804
    %v4843 = vpack.c.bf16 %v4807, %v4805
    %v4844 = vpack.c.bf16 %v4810, %v4808
    %v4845 = vpack.c.bf16 %v4811, %v4809
    %v4846 = vpack.c.bf16 %v4814, %v4812
    %v4847 = vpack.c.bf16 %v4815, %v4813
    %v4848 = vld [vmem:[#allocation10] sm:$0xf]
    %v4849 = vld [vmem:[#allocation10 + $0x4] sm:$0xf]
    %v4850 = vld [vmem:[#allocation10 + $0x8] sm:$0xf]
    %v4851 = vld [vmem:[#allocation10 + $0xc] sm:$0xf]
    %v4852 = vld [vmem:[#allocation10 + $0x10] sm:$0xf]
    %v4853 = vld [vmem:[#allocation10 + $0x14] sm:$0xf]
    %v4854 = vld [vmem:[#allocation10 + $0x18] sm:$0xf]
    %v4855 = vld [vmem:[#allocation10 + $0x1c] sm:$0xf]
    %v4856 = vld [vmem:[#allocation10 + $0x20] sm:$0xf]
    %v4857 = vld [vmem:[#allocation10 + $0x24] sm:$0xf]
    %v4858 = vld [vmem:[#allocation10 + $0x28] sm:$0xf]
    %v4859 = vld [vmem:[#allocation10 + $0x2c] sm:$0xf]
    %v4860 = vld [vmem:[#allocation10 + $0x30] sm:$0xf]
    %v4861 = vld [vmem:[#allocation10 + $0x34] sm:$0xf]
    %v4862 = vld [vmem:[#allocation10 + $0x38] sm:$0xf]
    %v4863 = vld [vmem:[#allocation10 + $0x3c] sm:$0xf]
    %v4864 = vld [vmem:[#allocation10 + $0x40] sm:$0xf]
    %v4865 = vld [vmem:[#allocation10 + $0x44] sm:$0xf]
    %v4866 = vld [vmem:[#allocation10 + $0x48] sm:$0xf]
    %v4867 = vld [vmem:[#allocation10 + $0x4c] sm:$0xf]
    %v4868 = vld [vmem:[#allocation10 + $0x50] sm:$0xf]
    %v4869 = vld [vmem:[#allocation10 + $0x54] sm:$0xf]
    %v4870 = vld [vmem:[#allocation10 + $0x58] sm:$0xf]
    %v4871 = vld [vmem:[#allocation10 + $0x5c] sm:$0xf]
    %v4872 = vld [vmem:[#allocation10 + $0x60] sm:$0xf]
    %v4873 = vld [vmem:[#allocation10 + $0x64] sm:$0xf]
    %v4874 = vld [vmem:[#allocation10 + $0x68] sm:$0xf]
    %v4875 = vld [vmem:[#allocation10 + $0x6c] sm:$0xf]
    %v4876 = vld [vmem:[#allocation10 + $0x70] sm:$0xf]
    %v4877 = vld [vmem:[#allocation10 + $0x74] sm:$0xf]
    %v4878 = vld [vmem:[#allocation10 + $0x78] sm:$0xf]
    %v4879 = vld [vmem:[#allocation10 + $0x7c] sm:$0xf]
    %v4880 = vld [vmem:[%s6] sm:$0x1]
    %v4882 = vlaneseq
    %v4883 = vshrl.u32 %v4882, 7
    %v4884 = vsub.s32 0, %v4883
    %v4885 = vrot.slane %v4880, %v4884
    %v4919 = vunpack.c.l.b16 %v4848
    %v4920 = vunpack.c.l.b16 %v4849
    %v4921 = vunpack.c.l.b16 %v4850
    %v4922 = vunpack.c.l.b16 %v4851
    %v4923 = vunpack.c.l.b16 %v4852
    %v4924 = vunpack.c.l.b16 %v4853
    %v4925 = vunpack.c.l.b16 %v4854
    %v4926 = vunpack.c.l.b16 %v4855
    %v4927 = vunpack.c.l.b16 %v4856
    %v4928 = vunpack.c.l.b16 %v4857
    %v4929 = vunpack.c.l.b16 %v4858
    %v4930 = vunpack.c.l.b16 %v4859
    %v4931 = vunpack.c.l.b16 %v4860
    %v4932 = vunpack.c.l.b16 %v4861
    %v4933 = vunpack.c.l.b16 %v4862
    %v4934 = vunpack.c.l.b16 %v4863
    %v4935 = vunpack.c.l.b16 %v4864
    %v4936 = vunpack.c.l.b16 %v4865
    %v4937 = vunpack.c.l.b16 %v4866
    %v4938 = vunpack.c.l.b16 %v4867
    %v4939 = vunpack.c.l.b16 %v4868
    %v4940 = vunpack.c.l.b16 %v4869
    %v4941 = vunpack.c.l.b16 %v4870
    %v4942 = vunpack.c.l.b16 %v4871
    %v4943 = vunpack.c.l.b16 %v4872
    %v4944 = vunpack.c.l.b16 %v4873
    %v4945 = vunpack.c.l.b16 %v4874
    %v4946 = vunpack.c.l.b16 %v4875
    %v4947 = vunpack.c.l.b16 %v4876
    %v4948 = vunpack.c.l.b16 %v4877
    %v4949 = vunpack.c.l.b16 %v4878
    %v4950 = vunpack.c.l.b16 %v4879
    %v4951 = vpack.c.b16 %v4920, %v4919
    %v4952 = vpack.c.b16 %v4922, %v4921
    %v4953 = vpack.c.b16 %v4924, %v4923
    %v4954 = vpack.c.b16 %v4926, %v4925
    %v4955 = vpack.c.b16 %v4928, %v4927
    %v4956 = vpack.c.b16 %v4930, %v4929
    %v4957 = vpack.c.b16 %v4932, %v4931
    %v4958 = vpack.c.b16 %v4934, %v4933
    %v4959 = vpack.c.b16 %v4936, %v4935
    %v4960 = vpack.c.b16 %v4938, %v4937
    %v4961 = vpack.c.b16 %v4940, %v4939
    %v4962 = vpack.c.b16 %v4942, %v4941
    %v4963 = vpack.c.b16 %v4944, %v4943
    %v4964 = vpack.c.b16 %v4946, %v4945
    %v4965 = vpack.c.b16 %v4948, %v4947
    %v4966 = vpack.c.b16 %v4950, %v4949
    %4983 = vmatprep.subr.bf16.mxu0 0
    %4984 = vmatpush1.bf16.msra.mxu0 %v4958
    %4985 = vmatprep.subr.bf16.mxu0 0
    %4986 = vmatpush1.bf16.msra.mxu0 %v4957
    %4987 = vmatprep.subr.bf16.mxu0 0
    %4988 = vmatpush1.bf16.msra.mxu0 %v4956
    %4989 = vmatprep.subr.bf16.mxu0 0
    %4990 = vmatpush1.bf16.msra.mxu0 %v4955
    %4991 = vmatprep.subr.bf16.mxu0 0
    %4992 = vmatpush1.bf16.msra.mxu0 %v4954
    %4993 = vmatprep.subr.bf16.mxu0 0
    %4994 = vmatpush1.bf16.msra.mxu0 %v4953
    %4995 = vmatprep.subr.bf16.mxu0 0
    %4996 = vmatpush1.bf16.msra.mxu0 %v4952
    %4997 = vmatprep.subr.bf16.mxu0 0
    %4998 = vmatpush1.bf16.msra.mxu0 %v4951
    %4999 = vmatprep.subr.bf16.mxu0 0
    %5000 = vmatpush2.bf16.msra.mxu0 %v4966
    %5001 = vmatprep.subr.bf16.mxu0 0
    %5002 = vmatpush2.bf16.msra.mxu0 %v4965
    %5003 = vmatprep.subr.bf16.mxu0 0
    %5004 = vmatpush2.bf16.msra.mxu0 %v4964
    %5005 = vmatprep.subr.bf16.mxu0 0
    %5006 = vmatpush2.bf16.msra.mxu0 %v4963
    %5007 = vmatprep.subr.bf16.mxu0 0
    %5008 = vmatpush2.bf16.msra.mxu0 %v4962
    %5009 = vmatprep.subr.bf16.mxu0 0
    %5010 = vmatpush2.bf16.msra.mxu0 %v4961
    %5011 = vmatprep.subr.bf16.mxu0 0
    %5012 = vmatpush2.bf16.msra.mxu0 %v4960
    %5013 = vmatprep.subr.bf16.mxu0 0
    %5014 = vmatpush2.bf16.msra.mxu0 %v4959
    %5015 = vmatprep.mubr.bf16.mxu0 %v4817
    %5016 = vmatmul.mubr.bf16.gmra.mxu0 %v4816
    %v5017 = vpop.f32.mrf.mxu0
    %v5018 = vadd.f32 %v4885, %v5017
    %v5019 = vpop.f32.mrf.mxu0
    %v5020 = vpop.f32.mrf.mxu0
    %v5021 = vadd.f32 %v4885, %v5020
    %v5022 = vpop.f32.mrf.mxu0
    %5023 = vmatprep.mubr.bf16.mxu0 %v4819
    %5024 = vmatmul.mubr.bf16.gmra.mxu0 %v4818
    %v5025 = vpop.f32.mrf.mxu0
    %v5026 = vadd.f32 %v4885, %v5025
    %v5027 = vpop.f32.mrf.mxu0
    %v5028 = vpop.f32.mrf.mxu0
    %v5029 = vadd.f32 %v4885, %v5028
    %v5030 = vpop.f32.mrf.mxu0
    %5031 = vmatprep.mubr.bf16.mxu0 %v4821
    %5032 = vmatmul.mubr.bf16.gmra.mxu0 %v4820
    %v5033 = vpop.f32.mrf.mxu0
    %v5034 = vadd.f32 %v4885, %v5033
    %v5035 = vpop.f32.mrf.mxu0
    %v5036 = vpop.f32.mrf.mxu0
    %v5037 = vadd.f32 %v4885, %v5036
    %v5038 = vpop.f32.mrf.mxu0
    %5039 = vmatprep.mubr.bf16.mxu0 %v4823
    %5040 = vmatmul.mubr.bf16.gmra.mxu0 %v4822
    %v5041 = vpop.f32.mrf.mxu0
    %v5042 = vadd.f32 %v4885, %v5041
    %v5043 = vpop.f32.mrf.mxu0
    %v5044 = vpop.f32.mrf.mxu0
    %v5045 = vadd.f32 %v4885, %v5044
    %v5046 = vpop.f32.mrf.mxu0
    %5047 = vmatprep.mubr.bf16.mxu0 %v4825
    %5048 = vmatmul.mubr.bf16.gmra.mxu0 %v4824
    %v5049 = vpop.f32.mrf.mxu0
    %v5050 = vadd.f32 %v4885, %v5049
    %v5051 = vpop.f32.mrf.mxu0
    %v5052 = vpop.f32.mrf.mxu0
    %v5053 = vadd.f32 %v4885, %v5052
    %v5054 = vpop.f32.mrf.mxu0
    %5055 = vmatprep.mubr.bf16.mxu0 %v4827
    %5056 = vmatmul.mubr.bf16.gmra.mxu0 %v4826
    %v5057 = vpop.f32.mrf.mxu0
    %v5058 = vadd.f32 %v4885, %v5057
    %v5059 = vpop.f32.mrf.mxu0
    %v5060 = vpop.f32.mrf.mxu0
    %v5061 = vadd.f32 %v4885, %v5060
    %v5062 = vpop.f32.mrf.mxu0
    %5063 = vmatprep.mubr.bf16.mxu0 %v4829
    %5064 = vmatmul.mubr.bf16.gmra.mxu0 %v4828
    %v5065 = vpop.f32.mrf.mxu0
    %v5066 = vadd.f32 %v4885, %v5065
    %v5067 = vpop.f32.mrf.mxu0
    %v5068 = vpop.f32.mrf.mxu0
    %v5069 = vadd.f32 %v4885, %v5068
    %v5070 = vpop.f32.mrf.mxu0
    %5071 = vmatprep.mubr.bf16.mxu0 %v4831
    %5072 = vmatmul.mubr.bf16.gmra.mxu0 %v4830
    %v5073 = vpop.f32.mrf.mxu0
    %v5074 = vadd.f32 %v4885, %v5073
    %v5075 = vpop.f32.mrf.mxu0
    %v5076 = vpop.f32.mrf.mxu0
    %v5077 = vadd.f32 %v4885, %v5076
    %v5078 = vpop.f32.mrf.mxu0
    %5079 = vmatprep.mubr.bf16.mxu0 %v4833
    %5080 = vmatmul.mubr.bf16.gmra.mxu0 %v4832
    %v5081 = vpop.f32.mrf.mxu0
    %v5082 = vadd.f32 %v4885, %v5081
    %v5083 = vpop.f32.mrf.mxu0
    %v5084 = vpop.f32.mrf.mxu0
    %v5085 = vadd.f32 %v4885, %v5084
    %v5086 = vpop.f32.mrf.mxu0
    %5087 = vmatprep.mubr.bf16.mxu0 %v4835
    %5088 = vmatmul.mubr.bf16.gmra.mxu0 %v4834
    %v5089 = vpop.f32.mrf.mxu0
    %v5090 = vadd.f32 %v4885, %v5089
    %v5091 = vpop.f32.mrf.mxu0
    %v5092 = vpop.f32.mrf.mxu0
    %v5093 = vadd.f32 %v4885, %v5092
    %v5094 = vpop.f32.mrf.mxu0
    %5095 = vmatprep.mubr.bf16.mxu0 %v4837
    %5096 = vmatmul.mubr.bf16.gmra.mxu0 %v4836
    %v5097 = vpop.f32.mrf.mxu0
    %v5098 = vadd.f32 %v4885, %v5097
    %v5099 = vpop.f32.mrf.mxu0
    %v5100 = vpop.f32.mrf.mxu0
    %v5101 = vadd.f32 %v4885, %v5100
    %v5102 = vpop.f32.mrf.mxu0
    %5103 = vmatprep.mubr.bf16.mxu0 %v4839
    %5104 = vmatmul.mubr.bf16.gmra.mxu0 %v4838
    %v5105 = vpop.f32.mrf.mxu0
    %v5106 = vadd.f32 %v4885, %v5105
    %v5107 = vpop.f32.mrf.mxu0
    %v5108 = vpop.f32.mrf.mxu0
    %v5109 = vadd.f32 %v4885, %v5108
    %v5110 = vpop.f32.mrf.mxu0
    %5111 = vmatprep.mubr.bf16.mxu0 %v4841
    %5112 = vmatmul.mubr.bf16.gmra.mxu0 %v4840
    %v5113 = vpop.f32.mrf.mxu0
    %v5114 = vadd.f32 %v4885, %v5113
    %v5115 = vpop.f32.mrf.mxu0
    %v5116 = vpop.f32.mrf.mxu0
    %v5117 = vadd.f32 %v4885, %v5116
    %v5118 = vpop.f32.mrf.mxu0
    %5119 = vmatprep.mubr.bf16.mxu0 %v4843
    %5120 = vmatmul.mubr.bf16.gmra.mxu0 %v4842
    %v5121 = vpop.f32.mrf.mxu0
    %v5122 = vadd.f32 %v4885, %v5121
    %v5123 = vpop.f32.mrf.mxu0
    %v5124 = vpop.f32.mrf.mxu0
    %v5125 = vadd.f32 %v4885, %v5124
    %v5126 = vpop.f32.mrf.mxu0
    %5127 = vmatprep.mubr.bf16.mxu0 %v4845
    %5128 = vmatmul.mubr.bf16.gmra.mxu0 %v4844
    %v5129 = vpop.f32.mrf.mxu0
    %v5130 = vadd.f32 %v4885, %v5129
    %v5131 = vpop.f32.mrf.mxu0
    %v5132 = vpop.f32.mrf.mxu0
    %v5133 = vadd.f32 %v4885, %v5132
    %v5134 = vpop.f32.mrf.mxu0
    %5135 = vmatprep.mubr.bf16.mxu0 %v4847
    %5136 = vmatmul.mubr.bf16.gmra.mxu0 %v4846
    %v5137 = vpop.f32.mrf.mxu0
    %v5138 = vadd.f32 %v4885, %v5137
    %v5139 = vpop.f32.mrf.mxu0
    %v5140 = vpop.f32.mrf.mxu0
    %v5141 = vadd.f32 %v4885, %v5140
    %v5142 = vpop.f32.mrf.mxu0
    %5143 = vdwg.mxu0
    %v5144 = vmax.f32 %v5018, 0.0
    %v5145 = vmax.f32 %v5021, 0.0
    %v5146 = vmax.f32 %v5026, 0.0
    %v5147 = vmax.f32 %v5029, 0.0
    %v5148 = vmax.f32 %v5034, 0.0
    %v5149 = vmax.f32 %v5037, 0.0
    %v5150 = vmax.f32 %v5042, 0.0
    %v5151 = vmax.f32 %v5045, 0.0
    %v5152 = vmax.f32 %v5050, 0.0
    %v5153 = vmax.f32 %v5053, 0.0
    %v5154 = vmax.f32 %v5058, 0.0
    %v5155 = vmax.f32 %v5061, 0.0
    %v5156 = vmax.f32 %v5066, 0.0
    %v5157 = vmax.f32 %v5069, 0.0
    %v5158 = vmax.f32 %v5074, 0.0
    %v5159 = vmax.f32 %v5077, 0.0
    %v5160 = vmax.f32 %v5082, 0.0
    %v5161 = vmax.f32 %v5085, 0.0
    %v5162 = vmax.f32 %v5090, 0.0
    %v5163 = vmax.f32 %v5093, 0.0
    %v5164 = vmax.f32 %v5098, 0.0
    %v5165 = vmax.f32 %v5101, 0.0
    %v5166 = vmax.f32 %v5106, 0.0
    %v5167 = vmax.f32 %v5109, 0.0
    %v5168 = vmax.f32 %v5114, 0.0
    %v5169 = vmax.f32 %v5117, 0.0
    %v5170 = vmax.f32 %v5122, 0.0
    %v5171 = vmax.f32 %v5125, 0.0
    %v5172 = vmax.f32 %v5130, 0.0
    %v5173 = vmax.f32 %v5133, 0.0
    %v5174 = vmax.f32 %v5138, 0.0
    %v5175 = vmax.f32 %v5141, 0.0
    %v5176 = vpack.c.bf16 %v5145, %v5144
    %v5177 = vpack.c.bf16 %v5147, %v5146
    %v5178 = vpack.c.bf16 %v5149, %v5148
    %v5179 = vpack.c.bf16 %v5151, %v5150
    %v5180 = vpack.c.bf16 %v5153, %v5152
    %v5181 = vpack.c.bf16 %v5155, %v5154
    %v5182 = vpack.c.bf16 %v5157, %v5156
    %v5183 = vpack.c.bf16 %v5159, %v5158
    %v5184 = vpack.c.bf16 %v5161, %v5160
    %v5185 = vpack.c.bf16 %v5163, %v5162
    %v5186 = vpack.c.bf16 %v5165, %v5164
    %v5187 = vpack.c.bf16 %v5167, %v5166
    %v5188 = vpack.c.bf16 %v5169, %v5168
    %v5189 = vpack.c.bf16 %v5171, %v5170
    %v5190 = vpack.c.bf16 %v5173, %v5172
    %v5191 = vpack.c.bf16 %v5175, %v5174
    %v5192 = vld [vmem:[#allocation11] sm:$0xff]
    %v5193 = vld [vmem:[#allocation11 + $0x8] sm:$0xff]
    %v5194 = vld [vmem:[#allocation11 + $0x10] sm:$0xff]
    %v5195 = vld [vmem:[#allocation11 + $0x18] sm:$0xff]
    %v5196 = vld [vmem:[#allocation11 + $0x20] sm:$0xff]
    %v5197 = vld [vmem:[#allocation11 + $0x28] sm:$0xff]
    %v5198 = vld [vmem:[#allocation11 + $0x30] sm:$0xff]
    %v5199 = vld [vmem:[#allocation11 + $0x38] sm:$0xff]
    %v5200 = vld [vmem:[#allocation11 + $0x40] sm:$0xff]
    %v5201 = vld [vmem:[#allocation11 + $0x48] sm:$0xff]
    %v5202 = vld [vmem:[#allocation11 + $0x50] sm:$0xff]
    %v5203 = vld [vmem:[#allocation11 + $0x58] sm:$0xff]
    %v5204 = vld [vmem:[#allocation11 + $0x60] sm:$0xff]
    %v5205 = vld [vmem:[#allocation11 + $0x68] sm:$0xff]
    %v5206 = vld [vmem:[#allocation11 + $0x70] sm:$0xff]
    %v5207 = vld [vmem:[#allocation11 + $0x78] sm:$0xff]
    %v5208 = vld [vmem:[#allocation13] sm:$0x3]
    %v5210 = vlaneseq
    %v5211 = vshrl.u32 %v5210, 7
    %v5212 = vsub.s32 0, %v5211
    %v5213 = vrot.slane %v5208, %v5212
    %v5214 = vlaneseq
    %v5215 = vshrl.u32 %v5214, 7
    %v5216 = vsub.s32 1, %v5215
    %v5217 = vrot.slane %v5208, %v5216
    %v5236 = vunpack.c.l.b16 %v5192
    %v5237 = vunpack.c.h.b16 %v5192
    %v5238 = vunpack.c.l.b16 %v5193
    %v5239 = vunpack.c.h.b16 %v5193
    %v5240 = vunpack.c.l.b16 %v5194
    %v5241 = vunpack.c.h.b16 %v5194
    %v5242 = vunpack.c.l.b16 %v5195
    %v5243 = vunpack.c.h.b16 %v5195
    %v5244 = vunpack.c.l.b16 %v5196
    %v5245 = vunpack.c.h.b16 %v5196
    %v5246 = vunpack.c.l.b16 %v5197
    %v5247 = vunpack.c.h.b16 %v5197
    %v5248 = vunpack.c.l.b16 %v5198
    %v5249 = vunpack.c.h.b16 %v5198
    %v5250 = vunpack.c.l.b16 %v5199
    %v5251 = vunpack.c.h.b16 %v5199
    %v5252 = vunpack.c.l.b16 %v5200
    %v5253 = vunpack.c.h.b16 %v5200
    %v5254 = vunpack.c.l.b16 %v5201
    %v5255 = vunpack.c.h.b16 %v5201
    %v5256 = vunpack.c.l.b16 %v5202
    %v5257 = vunpack.c.h.b16 %v5202
    %v5258 = vunpack.c.l.b16 %v5203
    %v5259 = vunpack.c.h.b16 %v5203
    %v5260 = vunpack.c.l.b16 %v5204
    %v5261 = vunpack.c.h.b16 %v5204
    %v5262 = vunpack.c.l.b16 %v5205
    %v5263 = vunpack.c.h.b16 %v5205
    %v5264 = vunpack.c.l.b16 %v5206
    %v5265 = vunpack.c.h.b16 %v5206
    %v5266 = vunpack.c.l.b16 %v5207
    %v5267 = vunpack.c.h.b16 %v5207
    %v5268 = vpack.c.b16 %v5238, %v5236
    %v5269 = vpack.c.b16 %v5239, %v5237
    %v5270 = vpack.c.b16 %v5242, %v5240
    %v5271 = vpack.c.b16 %v5243, %v5241
    %v5272 = vpack.c.b16 %v5246, %v5244
    %v5273 = vpack.c.b16 %v5247, %v5245
    %v5274 = vpack.c.b16 %v5250, %v5248
    %v5275 = vpack.c.b16 %v5251, %v5249
    %v5276 = vpack.c.b16 %v5254, %v5252
    %v5277 = vpack.c.b16 %v5255, %v5253
    %v5278 = vpack.c.b16 %v5258, %v5256
    %v5279 = vpack.c.b16 %v5259, %v5257
    %v5280 = vpack.c.b16 %v5262, %v5260
    %v5281 = vpack.c.b16 %v5263, %v5261
    %v5282 = vpack.c.b16 %v5266, %v5264
    %v5283 = vpack.c.b16 %v5267, %v5265
    %5300 = vmatprep.subr.bf16.mxu0 %v5283
    %5301 = vmatpush1.bf16.msra.mxu0 %v5282
    %5302 = vmatprep.subr.bf16.mxu0 %v5281
    %5303 = vmatpush1.bf16.msra.mxu0 %v5280
    %5304 = vmatprep.subr.bf16.mxu0 %v5279
    %5305 = vmatpush1.bf16.msra.mxu0 %v5278
    %5306 = vmatprep.subr.bf16.mxu0 %v5277
    %5307 = vmatpush1.bf16.msra.mxu0 %v5276
    %5308 = vmatprep.subr.bf16.mxu0 %v5275
    %5309 = vmatpush1.bf16.msra.mxu0 %v5274
    %5310 = vmatprep.subr.bf16.mxu0 %v5273
    %5311 = vmatpush1.bf16.msra.mxu0 %v5272
    %5312 = vmatprep.subr.bf16.mxu0 %v5271
    %5313 = vmatpush1.bf16.msra.mxu0 %v5270
    %5314 = vmatprep.subr.bf16.mxu0 %v5269
    %5315 = vmatpush1.bf16.msra.mxu0 %v5268
    %5316 = vmatprep.subr.bf16.mxu0 0
    %5317 = vmatpush2.bf16.msra.mxu0 0
    %5318 = vmatprep.subr.bf16.mxu0 0
    %5319 = vmatpush2.bf16.msra.mxu0 0
    %5320 = vmatprep.subr.bf16.mxu0 0
    %5321 = vmatpush2.bf16.msra.mxu0 0
    %5322 = vmatprep.subr.bf16.mxu0 0
    %5323 = vmatpush2.bf16.msra.mxu0 0
    %5324 = vmatprep.subr.bf16.mxu0 0
    %5325 = vmatpush2.bf16.msra.mxu0 0
    %5326 = vmatprep.subr.bf16.mxu0 0
    %5327 = vmatpush2.bf16.msra.mxu0 0
    %5328 = vmatprep.subr.bf16.mxu0 0
    %5329 = vmatpush2.bf16.msra.mxu0 0
    %5330 = vmatprep.subr.bf16.mxu0 0
    %5331 = vmatpush2.bf16.msra.mxu0 0
    %5332 = vmatprep.mubr.bf16.mxu0 0
    %5333 = vmatmul.mubr.bf16.gmra.mxu0 %v5176
    %v5334 = vpop.f32.mrf.mxu0
    %v5335 = vadd.f32 %v5213, %v5334
    %v5336 = vpop.f32.mrf.mxu0
    %v5337 = vadd.f32 %v5217, %v5336
    %v5338 = vpop.f32.mrf.mxu0
    %v5339 = vadd.f32 %v5213, %v5338
    %v5340 = vpop.f32.mrf.mxu0
    %v5341 = vadd.f32 %v5217, %v5340
    %5342 = vmatprep.mubr.bf16.mxu0 0
    %5343 = vmatmul.mubr.bf16.gmra.mxu0 %v5177
    %v5344 = vpop.f32.mrf.mxu0
    %v5345 = vadd.f32 %v5213, %v5344
    %v5346 = vpop.f32.mrf.mxu0
    %v5347 = vadd.f32 %v5217, %v5346
    %v5348 = vpop.f32.mrf.mxu0
    %v5349 = vadd.f32 %v5213, %v5348
    %v5350 = vpop.f32.mrf.mxu0
    %v5351 = vadd.f32 %v5217, %v5350
    %5352 = vmatprep.mubr.bf16.mxu0 0
    %5353 = vmatmul.mubr.bf16.gmra.mxu0 %v5178
    %v5354 = vpop.f32.mrf.mxu0
    %v5355 = vadd.f32 %v5213, %v5354
    %v5356 = vpop.f32.mrf.mxu0
    %v5357 = vadd.f32 %v5217, %v5356
    %v5358 = vpop.f32.mrf.mxu0
    %v5359 = vadd.f32 %v5213, %v5358
    %v5360 = vpop.f32.mrf.mxu0
    %v5361 = vadd.f32 %v5217, %v5360
    %5362 = vmatprep.mubr.bf16.mxu0 0
    %5363 = vmatmul.mubr.bf16.gmra.mxu0 %v5179
    %v5364 = vpop.f32.mrf.mxu0
    %v5365 = vadd.f32 %v5213, %v5364
    %v5366 = vpop.f32.mrf.mxu0
    %v5367 = vadd.f32 %v5217, %v5366
    %v5368 = vpop.f32.mrf.mxu0
    %v5369 = vadd.f32 %v5213, %v5368
    %v5370 = vpop.f32.mrf.mxu0
    %v5371 = vadd.f32 %v5217, %v5370
    %5372 = vmatprep.mubr.bf16.mxu0 0
    %5373 = vmatmul.mubr.bf16.gmra.mxu0 %v5180
    %v5374 = vpop.f32.mrf.mxu0
    %v5375 = vadd.f32 %v5213, %v5374
    %v5376 = vpop.f32.mrf.mxu0
    %v5377 = vadd.f32 %v5217, %v5376
    %v5378 = vpop.f32.mrf.mxu0
    %v5379 = vadd.f32 %v5213, %v5378
    %v5380 = vpop.f32.mrf.mxu0
    %v5381 = vadd.f32 %v5217, %v5380
    %5382 = vmatprep.mubr.bf16.mxu0 0
    %5383 = vmatmul.mubr.bf16.gmra.mxu0 %v5181
    %v5384 = vpop.f32.mrf.mxu0
    %v5385 = vadd.f32 %v5213, %v5384
    %v5386 = vpop.f32.mrf.mxu0
    %v5387 = vadd.f32 %v5217, %v5386
    %v5388 = vpop.f32.mrf.mxu0
    %v5389 = vadd.f32 %v5213, %v5388
    %v5390 = vpop.f32.mrf.mxu0
    %v5391 = vadd.f32 %v5217, %v5390
    %5392 = vmatprep.mubr.bf16.mxu0 0
    %5393 = vmatmul.mubr.bf16.gmra.mxu0 %v5182
    %v5394 = vpop.f32.mrf.mxu0
    %v5395 = vadd.f32 %v5213, %v5394
    %v5396 = vpop.f32.mrf.mxu0
    %v5397 = vadd.f32 %v5217, %v5396
    %v5398 = vpop.f32.mrf.mxu0
    %v5399 = vadd.f32 %v5213, %v5398
    %v5400 = vpop.f32.mrf.mxu0
    %v5401 = vadd.f32 %v5217, %v5400
    %5402 = vmatprep.mubr.bf16.mxu0 0
    %5403 = vmatmul.mubr.bf16.gmra.mxu0 %v5183
    %v5404 = vpop.f32.mrf.mxu0
    %v5405 = vadd.f32 %v5213, %v5404
    %v5406 = vpop.f32.mrf.mxu0
    %v5407 = vadd.f32 %v5217, %v5406
    %v5408 = vpop.f32.mrf.mxu0
    %v5409 = vadd.f32 %v5213, %v5408
    %v5410 = vpop.f32.mrf.mxu0
    %v5411 = vadd.f32 %v5217, %v5410
    %5412 = vmatprep.mubr.bf16.mxu0 0
    %5413 = vmatmul.mubr.bf16.gmra.mxu0 %v5184
    %v5414 = vpop.f32.mrf.mxu0
    %v5415 = vadd.f32 %v5213, %v5414
    %v5416 = vpop.f32.mrf.mxu0
    %v5417 = vadd.f32 %v5217, %v5416
    %v5418 = vpop.f32.mrf.mxu0
    %v5419 = vadd.f32 %v5213, %v5418
    %v5420 = vpop.f32.mrf.mxu0
    %v5421 = vadd.f32 %v5217, %v5420
    %5422 = vmatprep.mubr.bf16.mxu0 0
    %5423 = vmatmul.mubr.bf16.gmra.mxu0 %v5185
    %v5424 = vpop.f32.mrf.mxu0
    %v5425 = vadd.f32 %v5213, %v5424
    %v5426 = vpop.f32.mrf.mxu0
    %v5427 = vadd.f32 %v5217, %v5426
    %v5428 = vpop.f32.mrf.mxu0
    %v5429 = vadd.f32 %v5213, %v5428
    %v5430 = vpop.f32.mrf.mxu0
    %v5431 = vadd.f32 %v5217, %v5430
    %5432 = vmatprep.mubr.bf16.mxu0 0
    %5433 = vmatmul.mubr.bf16.gmra.mxu0 %v5186
    %v5434 = vpop.f32.mrf.mxu0
    %v5435 = vadd.f32 %v5213, %v5434
    %v5436 = vpop.f32.mrf.mxu0
    %v5437 = vadd.f32 %v5217, %v5436
    %v5438 = vpop.f32.mrf.mxu0
    %v5439 = vadd.f32 %v5213, %v5438
    %v5440 = vpop.f32.mrf.mxu0
    %v5441 = vadd.f32 %v5217, %v5440
    %5442 = vmatprep.mubr.bf16.mxu0 0
    %5443 = vmatmul.mubr.bf16.gmra.mxu0 %v5187
    %v5444 = vpop.f32.mrf.mxu0
    %v5445 = vadd.f32 %v5213, %v5444
    %v5446 = vpop.f32.mrf.mxu0
    %v5447 = vadd.f32 %v5217, %v5446
    %v5448 = vpop.f32.mrf.mxu0
    %v5449 = vadd.f32 %v5213, %v5448
    %v5450 = vpop.f32.mrf.mxu0
    %v5451 = vadd.f32 %v5217, %v5450
    %5452 = vmatprep.mubr.bf16.mxu0 0
    %5453 = vmatmul.mubr.bf16.gmra.mxu0 %v5188
    %v5454 = vpop.f32.mrf.mxu0
    %v5455 = vadd.f32 %v5213, %v5454
    %v5456 = vpop.f32.mrf.mxu0
    %v5457 = vadd.f32 %v5217, %v5456
    %v5458 = vpop.f32.mrf.mxu0
    %v5459 = vadd.f32 %v5213, %v5458
    %v5460 = vpop.f32.mrf.mxu0
    %v5461 = vadd.f32 %v5217, %v5460
    %5462 = vmatprep.mubr.bf16.mxu0 0
    %5463 = vmatmul.mubr.bf16.gmra.mxu0 %v5189
    %v5464 = vpop.f32.mrf.mxu0
    %v5465 = vadd.f32 %v5213, %v5464
    %v5466 = vpop.f32.mrf.mxu0
    %v5467 = vadd.f32 %v5217, %v5466
    %v5468 = vpop.f32.mrf.mxu0
    %v5469 = vadd.f32 %v5213, %v5468
    %v5470 = vpop.f32.mrf.mxu0
    %v5471 = vadd.f32 %v5217, %v5470
    %5472 = vmatprep.mubr.bf16.mxu0 0
    %5473 = vmatmul.mubr.bf16.gmra.mxu0 %v5190
    %v5474 = vpop.f32.mrf.mxu0
    %v5475 = vadd.f32 %v5213, %v5474
    %v5476 = vpop.f32.mrf.mxu0
    %v5477 = vadd.f32 %v5217, %v5476
    %v5478 = vpop.f32.mrf.mxu0
    %v5479 = vadd.f32 %v5213, %v5478
    %v5480 = vpop.f32.mrf.mxu0
    %v5481 = vadd.f32 %v5217, %v5480
    %5482 = vmatprep.mubr.bf16.mxu0 0
    %5483 = vmatmul.mubr.bf16.gmra.mxu0 %v5191
    %v5484 = vpop.f32.mrf.mxu0
    %v5485 = vadd.f32 %v5213, %v5484
    %v5486 = vpop.f32.mrf.mxu0
    %v5487 = vadd.f32 %v5217, %v5486
    %v5488 = vpop.f32.mrf.mxu0
    %v5489 = vadd.f32 %v5213, %v5488
    %v5490 = vpop.f32.mrf.mxu0
    %v5491 = vadd.f32 %v5217, %v5490
    %5492 = vdwg.mxu0
    %v5493 = vmax.f32 %v5335, 0.0
    %v5494 = vmax.f32 %v5337, 0.0
    %v5495 = vmax.f32 %v5339, 0.0
    %v5496 = vmax.f32 %v5341, 0.0
    %v5497 = vmax.f32 %v5345, 0.0
    %v5498 = vmax.f32 %v5347, 0.0
    %v5499 = vmax.f32 %v5349, 0.0
    %v5500 = vmax.f32 %v5351, 0.0
    %v5501 = vmax.f32 %v5355, 0.0
    %v5502 = vmax.f32 %v5357, 0.0
    %v5503 = vmax.f32 %v5359, 0.0
    %v5504 = vmax.f32 %v5361, 0.0
    %v5505 = vmax.f32 %v5365, 0.0
    %v5506 = vmax.f32 %v5367, 0.0
    %v5507 = vmax.f32 %v5369, 0.0
    %v5508 = vmax.f32 %v5371, 0.0
    %v5509 = vmax.f32 %v5375, 0.0
    %v5510 = vmax.f32 %v5377, 0.0
    %v5511 = vmax.f32 %v5379, 0.0
    %v5512 = vmax.f32 %v5381, 0.0
    %v5513 = vmax.f32 %v5385, 0.0
    %v5514 = vmax.f32 %v5387, 0.0
    %v5515 = vmax.f32 %v5389, 0.0
    %v5516 = vmax.f32 %v5391, 0.0
    %v5517 = vmax.f32 %v5395, 0.0
    %v5518 = vmax.f32 %v5397, 0.0
    %v5519 = vmax.f32 %v5399, 0.0
    %v5520 = vmax.f32 %v5401, 0.0
    %v5521 = vmax.f32 %v5405, 0.0
    %v5522 = vmax.f32 %v5407, 0.0
    %v5523 = vmax.f32 %v5409, 0.0
    %v5524 = vmax.f32 %v5411, 0.0
    %v5525 = vmax.f32 %v5415, 0.0
    %v5526 = vmax.f32 %v5417, 0.0
    %v5527 = vmax.f32 %v5419, 0.0
    %v5528 = vmax.f32 %v5421, 0.0
    %v5529 = vmax.f32 %v5425, 0.0
    %v5530 = vmax.f32 %v5427, 0.0
    %v5531 = vmax.f32 %v5429, 0.0
    %v5532 = vmax.f32 %v5431, 0.0
    %v5533 = vmax.f32 %v5435, 0.0
    %v5534 = vmax.f32 %v5437, 0.0
    %v5535 = vmax.f32 %v5439, 0.0
    %v5536 = vmax.f32 %v5441, 0.0
    %v5537 = vmax.f32 %v5445, 0.0
    %v5538 = vmax.f32 %v5447, 0.0
    %v5539 = vmax.f32 %v5449, 0.0
    %v5540 = vmax.f32 %v5451, 0.0
    %v5541 = vmax.f32 %v5455, 0.0
    %v5542 = vmax.f32 %v5457, 0.0
    %v5543 = vmax.f32 %v5459, 0.0
    %v5544 = vmax.f32 %v5461, 0.0
    %v5545 = vmax.f32 %v5465, 0.0
    %v5546 = vmax.f32 %v5467, 0.0
    %v5547 = vmax.f32 %v5469, 0.0
    %v5548 = vmax.f32 %v5471, 0.0
    %v5549 = vmax.f32 %v5475, 0.0
    %v5550 = vmax.f32 %v5477, 0.0
    %v5551 = vmax.f32 %v5479, 0.0
    %v5552 = vmax.f32 %v5481, 0.0
    %v5553 = vmax.f32 %v5485, 0.0
    %v5554 = vmax.f32 %v5487, 0.0
    %v5555 = vmax.f32 %v5489, 0.0
    %v5556 = vmax.f32 %v5491, 0.0
    %v5557 = vpack.c.bf16 %v5495, %v5493
    %v5558 = vpack.c.bf16 %v5496, %v5494
    %v5559 = vpack.c.bf16 %v5499, %v5497
    %v5560 = vpack.c.bf16 %v5500, %v5498
    %v5561 = vpack.c.bf16 %v5503, %v5501
    %v5562 = vpack.c.bf16 %v5504, %v5502
    %v5563 = vpack.c.bf16 %v5507, %v5505
    %v5564 = vpack.c.bf16 %v5508, %v5506
    %v5565 = vpack.c.bf16 %v5511, %v5509
    %v5566 = vpack.c.bf16 %v5512, %v5510
    %v5567 = vpack.c.bf16 %v5515, %v5513
    %v5568 = vpack.c.bf16 %v5516, %v5514
    %v5569 = vpack.c.bf16 %v5519, %v5517
    %v5570 = vpack.c.bf16 %v5520, %v5518
    %v5571 = vpack.c.bf16 %v5523, %v5521
    %v5572 = vpack.c.bf16 %v5524, %v5522
    %v5573 = vpack.c.bf16 %v5527, %v5525
    %v5574 = vpack.c.bf16 %v5528, %v5526
    %v5575 = vpack.c.bf16 %v5531, %v5529
    %v5576 = vpack.c.bf16 %v5532, %v5530
    %v5577 = vpack.c.bf16 %v5535, %v5533
    %v5578 = vpack.c.bf16 %v5536, %v5534
    %v5579 = vpack.c.bf16 %v5539, %v5537
    %v5580 = vpack.c.bf16 %v5540, %v5538
    %v5581 = vpack.c.bf16 %v5543, %v5541
    %v5582 = vpack.c.bf16 %v5544, %v5542
    %v5583 = vpack.c.bf16 %v5547, %v5545
    %v5584 = vpack.c.bf16 %v5548, %v5546
    %v5585 = vpack.c.bf16 %v5551, %v5549
    %v5586 = vpack.c.bf16 %v5552, %v5550
    %v5587 = vpack.c.bf16 %v5555, %v5553
    %v5588 = vpack.c.bf16 %v5556, %v5554
    %v5589 = vld [vmem:[#allocation14] sm:$0xff]
    %v5590 = vld [vmem:[#allocation14 + $0x8] sm:$0xff]
    %v5591 = vld [vmem:[#allocation14 + $0x10] sm:$0xff]
    %v5592 = vld [vmem:[#allocation14 + $0x18] sm:$0xff]
    %v5593 = vld [vmem:[#allocation14 + $0x20] sm:$0xff]
    %v5594 = vld [vmem:[#allocation14 + $0x28] sm:$0xff]
    %v5595 = vld [vmem:[#allocation14 + $0x30] sm:$0xff]
    %v5596 = vld [vmem:[#allocation14 + $0x38] sm:$0xff]
    %v5597 = vld [vmem:[#allocation14 + $0x40] sm:$0xff]
    %v5598 = vld [vmem:[#allocation14 + $0x48] sm:$0xff]
    %v5599 = vld [vmem:[#allocation14 + $0x50] sm:$0xff]
    %v5600 = vld [vmem:[#allocation14 + $0x58] sm:$0xff]
    %v5601 = vld [vmem:[#allocation14 + $0x60] sm:$0xff]
    %v5602 = vld [vmem:[#allocation14 + $0x68] sm:$0xff]
    %v5603 = vld [vmem:[#allocation14 + $0x70] sm:$0xff]
    %v5604 = vld [vmem:[#allocation14 + $0x78] sm:$0xff]
    %v5605 = vld [vmem:[#allocation14 + $0x80] sm:$0xff]
    %v5606 = vld [vmem:[#allocation14 + $0x88] sm:$0xff]
    %v5607 = vld [vmem:[#allocation14 + $0x90] sm:$0xff]
    %v5608 = vld [vmem:[#allocation14 + $0x98] sm:$0xff]
    %v5609 = vld [vmem:[#allocation14 + $0xa0] sm:$0xff]
    %v5610 = vld [vmem:[#allocation14 + $0xa8] sm:$0xff]
    %v5611 = vld [vmem:[#allocation14 + $0xb0] sm:$0xff]
    %v5612 = vld [vmem:[#allocation14 + $0xb8] sm:$0xff]
    %v5613 = vld [vmem:[#allocation14 + $0xc0] sm:$0xff]
    %v5614 = vld [vmem:[#allocation14 + $0xc8] sm:$0xff]
    %v5615 = vld [vmem:[#allocation14 + $0xd0] sm:$0xff]
    %v5616 = vld [vmem:[#allocation14 + $0xd8] sm:$0xff]
    %v5617 = vld [vmem:[#allocation14 + $0xe0] sm:$0xff]
    %v5618 = vld [vmem:[#allocation14 + $0xe8] sm:$0xff]
    %v5619 = vld [vmem:[#allocation14 + $0xf0] sm:$0xff]
    %v5620 = vld [vmem:[#allocation14 + $0xf8] sm:$0xff]
    %v5621 = vld [vmem:[#allocation14 + $0x100] sm:$0xff]
    %v5622 = vld [vmem:[#allocation14 + $0x108] sm:$0xff]
    %v5623 = vld [vmem:[#allocation14 + $0x110] sm:$0xff]
    %v5624 = vld [vmem:[#allocation14 + $0x118] sm:$0xff]
    %v5625 = vld [vmem:[#allocation14 + $0x120] sm:$0xff]
    %v5626 = vld [vmem:[#allocation14 + $0x128] sm:$0xff]
    %v5627 = vld [vmem:[#allocation14 + $0x130] sm:$0xff]
    %v5628 = vld [vmem:[#allocation14 + $0x138] sm:$0xff]
    %v5629 = vld [vmem:[#allocation14 + $0x140] sm:$0xff]
    %v5630 = vld [vmem:[#allocation14 + $0x148] sm:$0xff]
    %v5631 = vld [vmem:[#allocation14 + $0x150] sm:$0xff]
    %v5632 = vld [vmem:[#allocation14 + $0x158] sm:$0xff]
    %v5633 = vld [vmem:[#allocation14 + $0x160] sm:$0xff]
    %v5634 = vld [vmem:[#allocation14 + $0x168] sm:$0xff]
    %v5635 = vld [vmem:[#allocation14 + $0x170] sm:$0xff]
    %v5636 = vld [vmem:[#allocation14 + $0x178] sm:$0xff]
    %v5637 = vld [vmem:[#allocation14 + $0x180] sm:$0xff]
    %v5638 = vld [vmem:[#allocation14 + $0x188] sm:$0xff]
    %v5639 = vld [vmem:[#allocation14 + $0x190] sm:$0xff]
    %v5640 = vld [vmem:[#allocation14 + $0x198] sm:$0xff]
    %v5641 = vld [vmem:[#allocation14 + $0x1a0] sm:$0xff]
    %v5642 = vld [vmem:[#allocation14 + $0x1a8] sm:$0xff]
    %v5643 = vld [vmem:[#allocation14 + $0x1b0] sm:$0xff]
    %v5644 = vld [vmem:[#allocation14 + $0x1b8] sm:$0xff]
    %v5645 = vld [vmem:[#allocation14 + $0x1c0] sm:$0xff]
    %v5646 = vld [vmem:[#allocation14 + $0x1c8] sm:$0xff]
    %v5647 = vld [vmem:[#allocation14 + $0x1d0] sm:$0xff]
    %v5648 = vld [vmem:[#allocation14 + $0x1d8] sm:$0xff]
    %v5649 = vld [vmem:[#allocation14 + $0x1e0] sm:$0xff]
    %v5650 = vld [vmem:[#allocation14 + $0x1e8] sm:$0xff]
    %v5651 = vld [vmem:[#allocation14 + $0x1f0] sm:$0xff]
    %v5652 = vld [vmem:[#allocation14 + $0x1f8] sm:$0xff]
    %v5653 = vld [vmem:[%s10] sm:$0xf]
    %v5655 = vlaneseq
    %v5656 = vshrl.u32 %v5655, 7
    %v5657 = vsub.s32 0, %v5656
    %v5658 = vrot.slane %v5653, %v5657
    %v5659 = vlaneseq
    %v5660 = vshrl.u32 %v5659, 7
    %v5661 = vsub.s32 1, %v5660
    %v5662 = vrot.slane %v5653, %v5661
    %v5663 = vlaneseq
    %v5664 = vshrl.u32 %v5663, 7
    %v5665 = vsub.s32 2, %v5664
    %v5666 = vrot.slane %v5653, %v5665
    %v5667 = vlaneseq
    %v5668 = vshrl.u32 %v5667, 7
    %v5669 = vsub.s32 3, %v5668
    %v5670 = vrot.slane %v5653, %v5669
    %v5739 = vunpack.c.l.b16 %v5589
    %v5740 = vunpack.c.h.b16 %v5589
    %v5741 = vunpack.c.l.b16 %v5590
    %v5742 = vunpack.c.h.b16 %v5590
    %v5743 = vunpack.c.l.b16 %v5591
    %v5744 = vunpack.c.h.b16 %v5591
    %v5745 = vunpack.c.l.b16 %v5592
    %v5746 = vunpack.c.h.b16 %v5592
    %v5747 = vunpack.c.l.b16 %v5593
    %v5748 = vunpack.c.h.b16 %v5593
    %v5749 = vunpack.c.l.b16 %v5594
    %v5750 = vunpack.c.h.b16 %v5594
    %v5751 = vunpack.c.l.b16 %v5595
    %v5752 = vunpack.c.h.b16 %v5595
    %v5753 = vunpack.c.l.b16 %v5596
    %v5754 = vunpack.c.h.b16 %v5596
    %v5755 = vunpack.c.l.b16 %v5597
    %v5756 = vunpack.c.h.b16 %v5597
    %v5757 = vunpack.c.l.b16 %v5598
    %v5758 = vunpack.c.h.b16 %v5598
    %v5759 = vunpack.c.l.b16 %v5599
    %v5760 = vunpack.c.h.b16 %v5599
    %v5761 = vunpack.c.l.b16 %v5600
    %v5762 = vunpack.c.h.b16 %v5600
    %v5763 = vunpack.c.l.b16 %v5601
    %v5764 = vunpack.c.h.b16 %v5601
    %v5765 = vunpack.c.l.b16 %v5602
    %v5766 = vunpack.c.h.b16 %v5602
    %v5767 = vunpack.c.l.b16 %v5603
    %v5768 = vunpack.c.h.b16 %v5603
    %v5769 = vunpack.c.l.b16 %v5604
    %v5770 = vunpack.c.h.b16 %v5604
    %v5771 = vunpack.c.l.b16 %v5605
    %v5772 = vunpack.c.h.b16 %v5605
    %v5773 = vunpack.c.l.b16 %v5606
    %v5774 = vunpack.c.h.b16 %v5606
    %v5775 = vunpack.c.l.b16 %v5607
    %v5776 = vunpack.c.h.b16 %v5607
    %v5777 = vunpack.c.l.b16 %v5608
    %v5778 = vunpack.c.h.b16 %v5608
    %v5779 = vunpack.c.l.b16 %v5609
    %v5780 = vunpack.c.h.b16 %v5609
    %v5781 = vunpack.c.l.b16 %v5610
    %v5782 = vunpack.c.h.b16 %v5610
    %v5783 = vunpack.c.l.b16 %v5611
    %v5784 = vunpack.c.h.b16 %v5611
    %v5785 = vunpack.c.l.b16 %v5612
    %v5786 = vunpack.c.h.b16 %v5612
    %v5787 = vunpack.c.l.b16 %v5613
    %v5788 = vunpack.c.h.b16 %v5613
    %v5789 = vunpack.c.l.b16 %v5614
    %v5790 = vunpack.c.h.b16 %v5614
    %v5791 = vunpack.c.l.b16 %v5615
    %v5792 = vunpack.c.h.b16 %v5615
    %v5793 = vunpack.c.l.b16 %v5616
    %v5794 = vunpack.c.h.b16 %v5616
    %v5795 = vunpack.c.l.b16 %v5617
    %v5796 = vunpack.c.h.b16 %v5617
    %v5797 = vunpack.c.l.b16 %v5618
    %v5798 = vunpack.c.h.b16 %v5618
    %v5799 = vunpack.c.l.b16 %v5619
    %v5800 = vunpack.c.h.b16 %v5619
    %v5801 = vunpack.c.l.b16 %v5620
    %v5802 = vunpack.c.h.b16 %v5620
    %v5803 = vunpack.c.l.b16 %v5621
    %v5804 = vunpack.c.h.b16 %v5621
    %v5805 = vunpack.c.l.b16 %v5622
    %v5806 = vunpack.c.h.b16 %v5622
    %v5807 = vunpack.c.l.b16 %v5623
    %v5808 = vunpack.c.h.b16 %v5623
    %v5809 = vunpack.c.l.b16 %v5624
    %v5810 = vunpack.c.h.b16 %v5624
    %v5811 = vunpack.c.l.b16 %v5625
    %v5812 = vunpack.c.h.b16 %v5625
    %v5813 = vunpack.c.l.b16 %v5626
    %v5814 = vunpack.c.h.b16 %v5626
    %v5815 = vunpack.c.l.b16 %v5627
    %v5816 = vunpack.c.h.b16 %v5627
    %v5817 = vunpack.c.l.b16 %v5628
    %v5818 = vunpack.c.h.b16 %v5628
    %v5819 = vunpack.c.l.b16 %v5629
    %v5820 = vunpack.c.h.b16 %v5629
    %v5821 = vunpack.c.l.b16 %v5630
    %v5822 = vunpack.c.h.b16 %v5630
    %v5823 = vunpack.c.l.b16 %v5631
    %v5824 = vunpack.c.h.b16 %v5631
    %v5825 = vunpack.c.l.b16 %v5632
    %v5826 = vunpack.c.h.b16 %v5632
    %v5827 = vunpack.c.l.b16 %v5633
    %v5828 = vunpack.c.h.b16 %v5633
    %v5829 = vunpack.c.l.b16 %v5634
    %v5830 = vunpack.c.h.b16 %v5634
    %v5831 = vunpack.c.l.b16 %v5635
    %v5832 = vunpack.c.h.b16 %v5635
    %v5833 = vunpack.c.l.b16 %v5636
    %v5834 = vunpack.c.h.b16 %v5636
    %v5835 = vunpack.c.l.b16 %v5637
    %v5836 = vunpack.c.h.b16 %v5637
    %v5837 = vunpack.c.l.b16 %v5638
    %v5838 = vunpack.c.h.b16 %v5638
    %v5839 = vunpack.c.l.b16 %v5639
    %v5840 = vunpack.c.h.b16 %v5639
    %v5841 = vunpack.c.l.b16 %v5640
    %v5842 = vunpack.c.h.b16 %v5640
    %v5843 = vunpack.c.l.b16 %v5641
    %v5844 = vunpack.c.h.b16 %v5641
    %v5845 = vunpack.c.l.b16 %v5642
    %v5846 = vunpack.c.h.b16 %v5642
    %v5847 = vunpack.c.l.b16 %v5643
    %v5848 = vunpack.c.h.b16 %v5643
    %v5849 = vunpack.c.l.b16 %v5644
    %v5850 = vunpack.c.h.b16 %v5644
    %v5851 = vunpack.c.l.b16 %v5645
    %v5852 = vunpack.c.h.b16 %v5645
    %v5853 = vunpack.c.l.b16 %v5646
    %v5854 = vunpack.c.h.b16 %v5646
    %v5855 = vunpack.c.l.b16 %v5647
    %v5856 = vunpack.c.h.b16 %v5647
    %v5857 = vunpack.c.l.b16 %v5648
    %v5858 = vunpack.c.h.b16 %v5648
    %v5859 = vunpack.c.l.b16 %v5649
    %v5860 = vunpack.c.h.b16 %v5649
    %v5861 = vunpack.c.l.b16 %v5650
    %v5862 = vunpack.c.h.b16 %v5650
    %v5863 = vunpack.c.l.b16 %v5651
    %v5864 = vunpack.c.h.b16 %v5651
    %v5865 = vunpack.c.l.b16 %v5652
    %v5866 = vunpack.c.h.b16 %v5652
    %v5867 = vpack.c.b16 %v5743, %v5739
    %v5868 = vpack.c.b16 %v5744, %v5740
    %v5869 = vpack.c.b16 %v5745, %v5741
    %v5870 = vpack.c.b16 %v5746, %v5742
    %v5871 = vpack.c.b16 %v5751, %v5747
    %v5872 = vpack.c.b16 %v5752, %v5748
    %v5873 = vpack.c.b16 %v5753, %v5749
    %v5874 = vpack.c.b16 %v5754, %v5750
    %v5875 = vpack.c.b16 %v5759, %v5755
    %v5876 = vpack.c.b16 %v5760, %v5756
    %v5877 = vpack.c.b16 %v5761, %v5757
    %v5878 = vpack.c.b16 %v5762, %v5758
    %v5879 = vpack.c.b16 %v5767, %v5763
    %v5880 = vpack.c.b16 %v5768, %v5764
    %v5881 = vpack.c.b16 %v5769, %v5765
    %v5882 = vpack.c.b16 %v5770, %v5766
    %v5883 = vpack.c.b16 %v5775, %v5771
    %v5884 = vpack.c.b16 %v5776, %v5772
    %v5885 = vpack.c.b16 %v5777, %v5773
    %v5886 = vpack.c.b16 %v5778, %v5774
    %v5887 = vpack.c.b16 %v5783, %v5779
    %v5888 = vpack.c.b16 %v5784, %v5780
    %v5889 = vpack.c.b16 %v5785, %v5781
    %v5890 = vpack.c.b16 %v5786, %v5782
    %v5891 = vpack.c.b16 %v5791, %v5787
    %v5892 = vpack.c.b16 %v5792, %v5788
    %v5893 = vpack.c.b16 %v5793, %v5789
    %v5894 = vpack.c.b16 %v5794, %v5790
    %v5895 = vpack.c.b16 %v5799, %v5795
    %v5896 = vpack.c.b16 %v5800, %v5796
    %v5897 = vpack.c.b16 %v5801, %v5797
    %v5898 = vpack.c.b16 %v5802, %v5798
    %v5899 = vpack.c.b16 %v5807, %v5803
    %v5900 = vpack.c.b16 %v5808, %v5804
    %v5901 = vpack.c.b16 %v5809, %v5805
    %v5902 = vpack.c.b16 %v5810, %v5806
    %v5903 = vpack.c.b16 %v5815, %v5811
    %v5904 = vpack.c.b16 %v5816, %v5812
    %v5905 = vpack.c.b16 %v5817, %v5813
    %v5906 = vpack.c.b16 %v5818, %v5814
    %v5907 = vpack.c.b16 %v5823, %v5819
    %v5908 = vpack.c.b16 %v5824, %v5820
    %v5909 = vpack.c.b16 %v5825, %v5821
    %v5910 = vpack.c.b16 %v5826, %v5822
    %v5911 = vpack.c.b16 %v5831, %v5827
    %v5912 = vpack.c.b16 %v5832, %v5828
    %v5913 = vpack.c.b16 %v5833, %v5829
    %v5914 = vpack.c.b16 %v5834, %v5830
    %v5915 = vpack.c.b16 %v5839, %v5835
    %v5916 = vpack.c.b16 %v5840, %v5836
    %v5917 = vpack.c.b16 %v5841, %v5837
    %v5918 = vpack.c.b16 %v5842, %v5838
    %v5919 = vpack.c.b16 %v5847, %v5843
    %v5920 = vpack.c.b16 %v5848, %v5844
    %v5921 = vpack.c.b16 %v5849, %v5845
    %v5922 = vpack.c.b16 %v5850, %v5846
    %v5923 = vpack.c.b16 %v5855, %v5851
    %v5924 = vpack.c.b16 %v5856, %v5852
    %v5925 = vpack.c.b16 %v5857, %v5853
    %v5926 = vpack.c.b16 %v5858, %v5854
    %v5927 = vpack.c.b16 %v5863, %v5859
    %v5928 = vpack.c.b16 %v5864, %v5860
    %v5929 = vpack.c.b16 %v5865, %v5861
    %v5930 = vpack.c.b16 %v5866, %v5862
    %5995 = vmatprep.subr.bf16.mxu0 %v5896
    %5996 = vmatpush1.bf16.msra.mxu0 %v5895
    %5997 = vmatprep.subr.bf16.mxu0 %v5892
    %5998 = vmatpush1.bf16.msra.mxu0 %v5891
    %5999 = vmatprep.subr.bf16.mxu0 %v5888
    %6000 = vmatpush1.bf16.msra.mxu0 %v5887
    %6001 = vmatprep.subr.bf16.mxu0 %v5884
    %6002 = vmatpush1.bf16.msra.mxu0 %v5883
    %6003 = vmatprep.subr.bf16.mxu0 %v5880
    %6004 = vmatpush1.bf16.msra.mxu0 %v5879
    %6005 = vmatprep.subr.bf16.mxu0 %v5876
    %6006 = vmatpush1.bf16.msra.mxu0 %v5875
    %6007 = vmatprep.subr.bf16.mxu0 %v5872
    %6008 = vmatpush1.bf16.msra.mxu0 %v5871
    %6009 = vmatprep.subr.bf16.mxu0 %v5868
    %6010 = vmatpush1.bf16.msra.mxu0 %v5867
    %6011 = vmatprep.subr.bf16.mxu0 %v5928
    %6012 = vmatpush2.bf16.msra.mxu0 %v5927
    %6013 = vmatprep.subr.bf16.mxu0 %v5924
    %6014 = vmatpush2.bf16.msra.mxu0 %v5923
    %6015 = vmatprep.subr.bf16.mxu0 %v5920
    %6016 = vmatpush2.bf16.msra.mxu0 %v5919
    %6017 = vmatprep.subr.bf16.mxu0 %v5916
    %6018 = vmatpush2.bf16.msra.mxu0 %v5915
    %6019 = vmatprep.subr.bf16.mxu0 %v5912
    %6020 = vmatpush2.bf16.msra.mxu0 %v5911
    %6021 = vmatprep.subr.bf16.mxu0 %v5908
    %6022 = vmatpush2.bf16.msra.mxu0 %v5907
    %6023 = vmatprep.subr.bf16.mxu0 %v5904
    %6024 = vmatpush2.bf16.msra.mxu0 %v5903
    %6025 = vmatprep.subr.bf16.mxu0 %v5900
    %6026 = vmatpush2.bf16.msra.mxu0 %v5899
    %6027 = vmatprep.mubr.bf16.mxu0 %v5558
    %6028 = vmatmul.mubr.bf16.gmra.mxu0 %v5557
    %v6029 = vpop.f32.mrf.mxu0
    %v6030 = vadd.f32 %v5658, %v6029
    %v6031 = vpop.f32.mrf.mxu0
    %v6032 = vadd.f32 %v5662, %v6031
    %v6033 = vpop.f32.mrf.mxu0
    %v6034 = vadd.f32 %v5658, %v6033
    %v6035 = vpop.f32.mrf.mxu0
    %v6036 = vadd.f32 %v5662, %v6035
    %6037 = vmatprep.mubr.bf16.mxu0 %v5560
    %6038 = vmatmul.mubr.bf16.gmra.mxu0 %v5559
    %v6039 = vpop.f32.mrf.mxu0
    %v6040 = vadd.f32 %v5658, %v6039
    %v6041 = vpop.f32.mrf.mxu0
    %v6042 = vadd.f32 %v5662, %v6041
    %v6043 = vpop.f32.mrf.mxu0
    %v6044 = vadd.f32 %v5658, %v6043
    %v6045 = vpop.f32.mrf.mxu0
    %v6046 = vadd.f32 %v5662, %v6045
    %6047 = vmatprep.mubr.bf16.mxu0 %v5562
    %6048 = vmatmul.mubr.bf16.gmra.mxu0 %v5561
    %v6049 = vpop.f32.mrf.mxu0
    %v6050 = vadd.f32 %v5658, %v6049
    %v6051 = vpop.f32.mrf.mxu0
    %v6052 = vadd.f32 %v5662, %v6051
    %v6053 = vpop.f32.mrf.mxu0
    %v6054 = vadd.f32 %v5658, %v6053
    %v6055 = vpop.f32.mrf.mxu0
    %v6056 = vadd.f32 %v5662, %v6055
    %6057 = vmatprep.mubr.bf16.mxu0 %v5564
    %6058 = vmatmul.mubr.bf16.gmra.mxu0 %v5563
    %v6059 = vpop.f32.mrf.mxu0
    %v6060 = vadd.f32 %v5658, %v6059
    %v6061 = vpop.f32.mrf.mxu0
    %v6062 = vadd.f32 %v5662, %v6061
    %v6063 = vpop.f32.mrf.mxu0
    %v6064 = vadd.f32 %v5658, %v6063
    %v6065 = vpop.f32.mrf.mxu0
    %v6066 = vadd.f32 %v5662, %v6065
    %6067 = vmatprep.mubr.bf16.mxu0 %v5566
    %6068 = vmatmul.mubr.bf16.gmra.mxu0 %v5565
    %v6069 = vpop.f32.mrf.mxu0
    %v6070 = vadd.f32 %v5658, %v6069
    %v6071 = vpop.f32.mrf.mxu0
    %v6072 = vadd.f32 %v5662, %v6071
    %v6073 = vpop.f32.mrf.mxu0
    %v6074 = vadd.f32 %v5658, %v6073
    %v6075 = vpop.f32.mrf.mxu0
    %v6076 = vadd.f32 %v5662, %v6075
    %6077 = vmatprep.mubr.bf16.mxu0 %v5568
    %6078 = vmatmul.mubr.bf16.gmra.mxu0 %v5567
    %v6079 = vpop.f32.mrf.mxu0
    %v6080 = vadd.f32 %v5658, %v6079
    %v6081 = vpop.f32.mrf.mxu0
    %v6082 = vadd.f32 %v5662, %v6081
    %v6083 = vpop.f32.mrf.mxu0
    %v6084 = vadd.f32 %v5658, %v6083
    %v6085 = vpop.f32.mrf.mxu0
    %v6086 = vadd.f32 %v5662, %v6085
    %6087 = vmatprep.mubr.bf16.mxu0 %v5570
    %6088 = vmatmul.mubr.bf16.gmra.mxu0 %v5569
    %v6089 = vpop.f32.mrf.mxu0
    %v6090 = vadd.f32 %v5658, %v6089
    %v6091 = vpop.f32.mrf.mxu0
    %v6092 = vadd.f32 %v5662, %v6091
    %v6093 = vpop.f32.mrf.mxu0
    %v6094 = vadd.f32 %v5658, %v6093
    %v6095 = vpop.f32.mrf.mxu0
    %v6096 = vadd.f32 %v5662, %v6095
    %6097 = vmatprep.mubr.bf16.mxu0 %v5572
    %6098 = vmatmul.mubr.bf16.gmra.mxu0 %v5571
    %v6099 = vpop.f32.mrf.mxu0
    %v6100 = vadd.f32 %v5658, %v6099
    %v6101 = vpop.f32.mrf.mxu0
    %v6102 = vadd.f32 %v5662, %v6101
    %v6103 = vpop.f32.mrf.mxu0
    %v6104 = vadd.f32 %v5658, %v6103
    %v6105 = vpop.f32.mrf.mxu0
    %v6106 = vadd.f32 %v5662, %v6105
    %6107 = vmatprep.mubr.bf16.mxu0 %v5574
    %6108 = vmatmul.mubr.bf16.gmra.mxu0 %v5573
    %v6109 = vpop.f32.mrf.mxu0
    %v6110 = vadd.f32 %v5658, %v6109
    %v6111 = vpop.f32.mrf.mxu0
    %v6112 = vadd.f32 %v5662, %v6111
    %v6113 = vpop.f32.mrf.mxu0
    %v6114 = vadd.f32 %v5658, %v6113
    %v6115 = vpop.f32.mrf.mxu0
    %v6116 = vadd.f32 %v5662, %v6115
    %6117 = vmatprep.mubr.bf16.mxu0 %v5576
    %6118 = vmatmul.mubr.bf16.gmra.mxu0 %v5575
    %v6119 = vpop.f32.mrf.mxu0
    %v6120 = vadd.f32 %v5658, %v6119
    %v6121 = vpop.f32.mrf.mxu0
    %v6122 = vadd.f32 %v5662, %v6121
    %v6123 = vpop.f32.mrf.mxu0
    %v6124 = vadd.f32 %v5658, %v6123
    %v6125 = vpop.f32.mrf.mxu0
    %v6126 = vadd.f32 %v5662, %v6125
    %6127 = vmatprep.mubr.bf16.mxu0 %v5578
    %6128 = vmatmul.mubr.bf16.gmra.mxu0 %v5577
    %v6129 = vpop.f32.mrf.mxu0
    %v6130 = vadd.f32 %v5658, %v6129
    %v6131 = vpop.f32.mrf.mxu0
    %v6132 = vadd.f32 %v5662, %v6131
    %v6133 = vpop.f32.mrf.mxu0
    %v6134 = vadd.f32 %v5658, %v6133
    %v6135 = vpop.f32.mrf.mxu0
    %v6136 = vadd.f32 %v5662, %v6135
    %6137 = vmatprep.mubr.bf16.mxu0 %v5580
    %6138 = vmatmul.mubr.bf16.gmra.mxu0 %v5579
    %v6139 = vpop.f32.mrf.mxu0
    %v6140 = vadd.f32 %v5658, %v6139
    %v6141 = vpop.f32.mrf.mxu0
    %v6142 = vadd.f32 %v5662, %v6141
    %v6143 = vpop.f32.mrf.mxu0
    %v6144 = vadd.f32 %v5658, %v6143
    %v6145 = vpop.f32.mrf.mxu0
    %v6146 = vadd.f32 %v5662, %v6145
    %6147 = vmatprep.mubr.bf16.mxu0 %v5582
    %6148 = vmatmul.mubr.bf16.gmra.mxu0 %v5581
    %v6149 = vpop.f32.mrf.mxu0
    %v6150 = vadd.f32 %v5658, %v6149
    %v6151 = vpop.f32.mrf.mxu0
    %v6152 = vadd.f32 %v5662, %v6151
    %v6153 = vpop.f32.mrf.mxu0
    %v6154 = vadd.f32 %v5658, %v6153
    %v6155 = vpop.f32.mrf.mxu0
    %v6156 = vadd.f32 %v5662, %v6155
    %6157 = vmatprep.mubr.bf16.mxu0 %v5584
    %6158 = vmatmul.mubr.bf16.gmra.mxu0 %v5583
    %v6159 = vpop.f32.mrf.mxu0
    %v6160 = vadd.f32 %v5658, %v6159
    %v6161 = vpop.f32.mrf.mxu0
    %v6162 = vadd.f32 %v5662, %v6161
    %v6163 = vpop.f32.mrf.mxu0
    %v6164 = vadd.f32 %v5658, %v6163
    %v6165 = vpop.f32.mrf.mxu0
    %v6166 = vadd.f32 %v5662, %v6165
    %6167 = vmatprep.mubr.bf16.mxu0 %v5586
    %6168 = vmatmul.mubr.bf16.gmra.mxu0 %v5585
    %v6169 = vpop.f32.mrf.mxu0
    %v6170 = vadd.f32 %v5658, %v6169
    %v6171 = vpop.f32.mrf.mxu0
    %v6172 = vadd.f32 %v5662, %v6171
    %v6173 = vpop.f32.mrf.mxu0
    %v6174 = vadd.f32 %v5658, %v6173
    %v6175 = vpop.f32.mrf.mxu0
    %v6176 = vadd.f32 %v5662, %v6175
    %6177 = vmatprep.mubr.bf16.mxu0 %v5588
    %6178 = vmatmul.mubr.bf16.gmra.mxu0 %v5587
    %v6179 = vpop.f32.mrf.mxu0
    %v6180 = vadd.f32 %v5658, %v6179
    %v6181 = vpop.f32.mrf.mxu0
    %v6182 = vadd.f32 %v5662, %v6181
    %v6183 = vpop.f32.mrf.mxu0
    %v6184 = vadd.f32 %v5658, %v6183
    %v6185 = vpop.f32.mrf.mxu0
    %v6186 = vadd.f32 %v5662, %v6185
    %6187 = vdwg.mxu0
    %6188 = vmatprep.subr.bf16.mxu0 %v5898
    %6189 = vmatpush1.bf16.msra.mxu0 %v5897
    %6190 = vmatprep.subr.bf16.mxu0 %v5894
    %6191 = vmatpush1.bf16.msra.mxu0 %v5893
    %6192 = vmatprep.subr.bf16.mxu0 %v5890
    %6193 = vmatpush1.bf16.msra.mxu0 %v5889
    %6194 = vmatprep.subr.bf16.mxu0 %v5886
    %6195 = vmatpush1.bf16.msra.mxu0 %v5885
    %6196 = vmatprep.subr.bf16.mxu0 %v5882
    %6197 = vmatpush1.bf16.msra.mxu0 %v5881
    %6198 = vmatprep.subr.bf16.mxu0 %v5878
    %6199 = vmatpush1.bf16.msra.mxu0 %v5877
    %6200 = vmatprep.subr.bf16.mxu0 %v5874
    %6201 = vmatpush1.bf16.msra.mxu0 %v5873
    %6202 = vmatprep.subr.bf16.mxu0 %v5870
    %6203 = vmatpush1.bf16.msra.mxu0 %v5869
    %6204 = vmatprep.subr.bf16.mxu0 %v5930
    %6205 = vmatpush2.bf16.msra.mxu0 %v5929
    %6206 = vmatprep.subr.bf16.mxu0 %v5926
    %6207 = vmatpush2.bf16.msra.mxu0 %v5925
    %6208 = vmatprep.subr.bf16.mxu0 %v5922
    %6209 = vmatpush2.bf16.msra.mxu0 %v5921
    %6210 = vmatprep.subr.bf16.mxu0 %v5918
    %6211 = vmatpush2.bf16.msra.mxu0 %v5917
    %6212 = vmatprep.subr.bf16.mxu0 %v5914
    %6213 = vmatpush2.bf16.msra.mxu0 %v5913
    %6214 = vmatprep.subr.bf16.mxu0 %v5910
    %6215 = vmatpush2.bf16.msra.mxu0 %v5909
    %6216 = vmatprep.subr.bf16.mxu0 %v5906
    %6217 = vmatpush2.bf16.msra.mxu0 %v5905
    %6218 = vmatprep.subr.bf16.mxu0 %v5902
    %6219 = vmatpush2.bf16.msra.mxu0 %v5901
    %6220 = vmatprep.mubr.bf16.mxu0 %v5558
    %6221 = vmatmul.mubr.bf16.gmra.mxu0 %v5557
    %v6222 = vpop.f32.mrf.mxu0
    %v6223 = vadd.f32 %v5666, %v6222
    %v6224 = vpop.f32.mrf.mxu0
    %v6225 = vadd.f32 %v5670, %v6224
    %v6226 = vpop.f32.mrf.mxu0
    %v6227 = vadd.f32 %v5666, %v6226
    %v6228 = vpop.f32.mrf.mxu0
    %v6229 = vadd.f32 %v5670, %v6228
    %6230 = vmatprep.mubr.bf16.mxu0 %v5560
    %6231 = vmatmul.mubr.bf16.gmra.mxu0 %v5559
    %v6232 = vpop.f32.mrf.mxu0
    %v6233 = vadd.f32 %v5666, %v6232
    %v6234 = vpop.f32.mrf.mxu0
    %v6235 = vadd.f32 %v5670, %v6234
    %v6236 = vpop.f32.mrf.mxu0
    %v6237 = vadd.f32 %v5666, %v6236
    %v6238 = vpop.f32.mrf.mxu0
    %v6239 = vadd.f32 %v5670, %v6238
    %6240 = vmatprep.mubr.bf16.mxu0 %v5562
    %6241 = vmatmul.mubr.bf16.gmra.mxu0 %v5561
    %v6242 = vpop.f32.mrf.mxu0
    %v6243 = vadd.f32 %v5666, %v6242
    %v6244 = vpop.f32.mrf.mxu0
    %v6245 = vadd.f32 %v5670, %v6244
    %v6246 = vpop.f32.mrf.mxu0
    %v6247 = vadd.f32 %v5666, %v6246
    %v6248 = vpop.f32.mrf.mxu0
    %v6249 = vadd.f32 %v5670, %v6248
    %6250 = vmatprep.mubr.bf16.mxu0 %v5564
    %6251 = vmatmul.mubr.bf16.gmra.mxu0 %v5563
    %v6252 = vpop.f32.mrf.mxu0
    %v6253 = vadd.f32 %v5666, %v6252
    %v6254 = vpop.f32.mrf.mxu0
    %v6255 = vadd.f32 %v5670, %v6254
    %v6256 = vpop.f32.mrf.mxu0
    %v6257 = vadd.f32 %v5666, %v6256
    %v6258 = vpop.f32.mrf.mxu0
    %v6259 = vadd.f32 %v5670, %v6258
    %6260 = vmatprep.mubr.bf16.mxu0 %v5566
    %6261 = vmatmul.mubr.bf16.gmra.mxu0 %v5565
    %v6262 = vpop.f32.mrf.mxu0
    %v6263 = vadd.f32 %v5666, %v6262
    %v6264 = vpop.f32.mrf.mxu0
    %v6265 = vadd.f32 %v5670, %v6264
    %v6266 = vpop.f32.mrf.mxu0
    %v6267 = vadd.f32 %v5666, %v6266
    %v6268 = vpop.f32.mrf.mxu0
    %v6269 = vadd.f32 %v5670, %v6268
    %6270 = vmatprep.mubr.bf16.mxu0 %v5568
    %6271 = vmatmul.mubr.bf16.gmra.mxu0 %v5567
    %v6272 = vpop.f32.mrf.mxu0
    %v6273 = vadd.f32 %v5666, %v6272
    %v6274 = vpop.f32.mrf.mxu0
    %v6275 = vadd.f32 %v5670, %v6274
    %v6276 = vpop.f32.mrf.mxu0
    %v6277 = vadd.f32 %v5666, %v6276
    %v6278 = vpop.f32.mrf.mxu0
    %v6279 = vadd.f32 %v5670, %v6278
    %6280 = vmatprep.mubr.bf16.mxu0 %v5570
    %6281 = vmatmul.mubr.bf16.gmra.mxu0 %v5569
    %v6282 = vpop.f32.mrf.mxu0
    %v6283 = vadd.f32 %v5666, %v6282
    %v6284 = vpop.f32.mrf.mxu0
    %v6285 = vadd.f32 %v5670, %v6284
    %v6286 = vpop.f32.mrf.mxu0
    %v6287 = vadd.f32 %v5666, %v6286
    %v6288 = vpop.f32.mrf.mxu0
    %v6289 = vadd.f32 %v5670, %v6288
    %6290 = vmatprep.mubr.bf16.mxu0 %v5572
    %6291 = vmatmul.mubr.bf16.gmra.mxu0 %v5571
    %v6292 = vpop.f32.mrf.mxu0
    %v6293 = vadd.f32 %v5666, %v6292
    %v6294 = vpop.f32.mrf.mxu0
    %v6295 = vadd.f32 %v5670, %v6294
    %v6296 = vpop.f32.mrf.mxu0
    %v6297 = vadd.f32 %v5666, %v6296
    %v6298 = vpop.f32.mrf.mxu0
    %v6299 = vadd.f32 %v5670, %v6298
    %6300 = vmatprep.mubr.bf16.mxu0 %v5574
    %6301 = vmatmul.mubr.bf16.gmra.mxu0 %v5573
    %v6302 = vpop.f32.mrf.mxu0
    %v6303 = vadd.f32 %v5666, %v6302
    %v6304 = vpop.f32.mrf.mxu0
    %v6305 = vadd.f32 %v5670, %v6304
    %v6306 = vpop.f32.mrf.mxu0
    %v6307 = vadd.f32 %v5666, %v6306
    %v6308 = vpop.f32.mrf.mxu0
    %v6309 = vadd.f32 %v5670, %v6308
    %6310 = vmatprep.mubr.bf16.mxu0 %v5576
    %6311 = vmatmul.mubr.bf16.gmra.mxu0 %v5575
    %v6312 = vpop.f32.mrf.mxu0
    %v6313 = vadd.f32 %v5666, %v6312
    %v6314 = vpop.f32.mrf.mxu0
    %v6315 = vadd.f32 %v5670, %v6314
    %v6316 = vpop.f32.mrf.mxu0
    %v6317 = vadd.f32 %v5666, %v6316
    %v6318 = vpop.f32.mrf.mxu0
    %v6319 = vadd.f32 %v5670, %v6318
    %6320 = vmatprep.mubr.bf16.mxu0 %v5578
    %6321 = vmatmul.mubr.bf16.gmra.mxu0 %v5577
    %v6322 = vpop.f32.mrf.mxu0
    %v6323 = vadd.f32 %v5666, %v6322
    %v6324 = vpop.f32.mrf.mxu0
    %v6325 = vadd.f32 %v5670, %v6324
    %v6326 = vpop.f32.mrf.mxu0
    %v6327 = vadd.f32 %v5666, %v6326
    %v6328 = vpop.f32.mrf.mxu0
    %v6329 = vadd.f32 %v5670, %v6328
    %6330 = vmatprep.mubr.bf16.mxu0 %v5580
    %6331 = vmatmul.mubr.bf16.gmra.mxu0 %v5579
    %v6332 = vpop.f32.mrf.mxu0
    %v6333 = vadd.f32 %v5666, %v6332
    %v6334 = vpop.f32.mrf.mxu0
    %v6335 = vadd.f32 %v5670, %v6334
    %v6336 = vpop.f32.mrf.mxu0
    %v6337 = vadd.f32 %v5666, %v6336
    %v6338 = vpop.f32.mrf.mxu0
    %v6339 = vadd.f32 %v5670, %v6338
    %6340 = vmatprep.mubr.bf16.mxu0 %v5582
    %6341 = vmatmul.mubr.bf16.gmra.mxu0 %v5581
    %v6342 = vpop.f32.mrf.mxu0
    %v6343 = vadd.f32 %v5666, %v6342
    %v6344 = vpop.f32.mrf.mxu0
    %v6345 = vadd.f32 %v5670, %v6344
    %v6346 = vpop.f32.mrf.mxu0
    %v6347 = vadd.f32 %v5666, %v6346
    %v6348 = vpop.f32.mrf.mxu0
    %v6349 = vadd.f32 %v5670, %v6348
    %6350 = vmatprep.mubr.bf16.mxu0 %v5584
    %6351 = vmatmul.mubr.bf16.gmra.mxu0 %v5583
    %v6352 = vpop.f32.mrf.mxu0
    %v6353 = vadd.f32 %v5666, %v6352
    %v6354 = vpop.f32.mrf.mxu0
    %v6355 = vadd.f32 %v5670, %v6354
    %v6356 = vpop.f32.mrf.mxu0
    %v6357 = vadd.f32 %v5666, %v6356
    %v6358 = vpop.f32.mrf.mxu0
    %v6359 = vadd.f32 %v5670, %v6358
    %6360 = vmatprep.mubr.bf16.mxu0 %v5586
    %6361 = vmatmul.mubr.bf16.gmra.mxu0 %v5585
    %v6362 = vpop.f32.mrf.mxu0
    %v6363 = vadd.f32 %v5666, %v6362
    %v6364 = vpop.f32.mrf.mxu0
    %v6365 = vadd.f32 %v5670, %v6364
    %v6366 = vpop.f32.mrf.mxu0
    %v6367 = vadd.f32 %v5666, %v6366
    %v6368 = vpop.f32.mrf.mxu0
    %v6369 = vadd.f32 %v5670, %v6368
    %6370 = vmatprep.mubr.bf16.mxu0 %v5588
    %6371 = vmatmul.mubr.bf16.gmra.mxu0 %v5587
    %v6372 = vpop.f32.mrf.mxu0
    %v6373 = vadd.f32 %v5666, %v6372
    %v6374 = vpop.f32.mrf.mxu0
    %v6375 = vadd.f32 %v5670, %v6374
    %v6376 = vpop.f32.mrf.mxu0
    %v6377 = vadd.f32 %v5666, %v6376
    %v6378 = vpop.f32.mrf.mxu0
    %v6379 = vadd.f32 %v5670, %v6378
    %6380 = vdwg.mxu0
    %v6381 = vmax.f32 %v6030, 0.0
    %v6382 = vmax.f32 %v6032, 0.0
    %v6383 = vmax.f32 %v6223, 0.0
    %v6384 = vmax.f32 %v6225, 0.0
    %v6385 = vmax.f32 %v6034, 0.0
    %v6386 = vmax.f32 %v6036, 0.0
    %v6387 = vmax.f32 %v6227, 0.0
    %v6388 = vmax.f32 %v6229, 0.0
    %v6389 = vmax.f32 %v6040, 0.0
    %v6390 = vmax.f32 %v6042, 0.0
    %v6391 = vmax.f32 %v6233, 0.0
    %v6392 = vmax.f32 %v6235, 0.0
    %v6393 = vmax.f32 %v6044, 0.0
    %v6394 = vmax.f32 %v6046, 0.0
    %v6395 = vmax.f32 %v6237, 0.0
    %v6396 = vmax.f32 %v6239, 0.0
    %v6397 = vmax.f32 %v6050, 0.0
    %v6398 = vmax.f32 %v6052, 0.0
    %v6399 = vmax.f32 %v6243, 0.0
    %v6400 = vmax.f32 %v6245, 0.0
    %v6401 = vmax.f32 %v6054, 0.0
    %v6402 = vmax.f32 %v6056, 0.0
    %v6403 = vmax.f32 %v6247, 0.0
    %v6404 = vmax.f32 %v6249, 0.0
    %v6405 = vmax.f32 %v6060, 0.0
    %v6406 = vmax.f32 %v6062, 0.0
    %v6407 = vmax.f32 %v6253, 0.0
    %v6408 = vmax.f32 %v6255, 0.0
    %v6409 = vmax.f32 %v6064, 0.0
    %v6410 = vmax.f32 %v6066, 0.0
    %v6411 = vmax.f32 %v6257, 0.0
    %v6412 = vmax.f32 %v6259, 0.0
    %v6413 = vmax.f32 %v6070, 0.0
    %v6414 = vmax.f32 %v6072, 0.0
    %v6415 = vmax.f32 %v6263, 0.0
    %v6416 = vmax.f32 %v6265, 0.0
    %v6417 = vmax.f32 %v6074, 0.0
    %v6418 = vmax.f32 %v6076, 0.0
    %v6419 = vmax.f32 %v6267, 0.0
    %v6420 = vmax.f32 %v6269, 0.0
    %v6421 = vmax.f32 %v6080, 0.0
    %v6422 = vmax.f32 %v6082, 0.0
    %v6423 = vmax.f32 %v6273, 0.0
    %v6424 = vmax.f32 %v6275, 0.0
    %v6425 = vmax.f32 %v6084, 0.0
    %v6426 = vmax.f32 %v6086, 0.0
    %v6427 = vmax.f32 %v6277, 0.0
    %v6428 = vmax.f32 %v6279, 0.0
    %v6429 = vmax.f32 %v6090, 0.0
    %v6430 = vmax.f32 %v6092, 0.0
    %v6431 = vmax.f32 %v6283, 0.0
    %v6432 = vmax.f32 %v6285, 0.0
    %v6433 = vmax.f32 %v6094, 0.0
    %v6434 = vmax.f32 %v6096, 0.0
    %v6435 = vmax.f32 %v6287, 0.0
    %v6436 = vmax.f32 %v6289, 0.0
    %v6437 = vmax.f32 %v6100, 0.0
    %v6438 = vmax.f32 %v6102, 0.0
    %v6439 = vmax.f32 %v6293, 0.0
    %v6440 = vmax.f32 %v6295, 0.0
    %v6441 = vmax.f32 %v6104, 0.0
    %v6442 = vmax.f32 %v6106, 0.0
    %v6443 = vmax.f32 %v6297, 0.0
    %v6444 = vmax.f32 %v6299, 0.0
    %v6445 = vmax.f32 %v6110, 0.0
    %v6446 = vmax.f32 %v6112, 0.0
    %v6447 = vmax.f32 %v6303, 0.0
    %v6448 = vmax.f32 %v6305, 0.0
    %v6449 = vmax.f32 %v6114, 0.0
    %v6450 = vmax.f32 %v6116, 0.0
    %v6451 = vmax.f32 %v6307, 0.0
    %v6452 = vmax.f32 %v6309, 0.0
    %v6453 = vmax.f32 %v6120, 0.0
    %v6454 = vmax.f32 %v6122, 0.0
    %v6455 = vmax.f32 %v6313, 0.0
    %v6456 = vmax.f32 %v6315, 0.0
    %v6457 = vmax.f32 %v6124, 0.0
    %v6458 = vmax.f32 %v6126, 0.0
    %v6459 = vmax.f32 %v6317, 0.0
    %v6460 = vmax.f32 %v6319, 0.0
    %v6461 = vmax.f32 %v6130, 0.0
    %v6462 = vmax.f32 %v6132, 0.0
    %v6463 = vmax.f32 %v6323, 0.0
    %v6464 = vmax.f32 %v6325, 0.0
    %v6465 = vmax.f32 %v6134, 0.0
    %v6466 = vmax.f32 %v6136, 0.0
    %v6467 = vmax.f32 %v6327, 0.0
    %v6468 = vmax.f32 %v6329, 0.0
    %v6469 = vmax.f32 %v6140, 0.0
    %v6470 = vmax.f32 %v6142, 0.0
    %v6471 = vmax.f32 %v6333, 0.0
    %v6472 = vmax.f32 %v6335, 0.0
    %v6473 = vmax.f32 %v6144, 0.0
    %v6474 = vmax.f32 %v6146, 0.0
    %v6475 = vmax.f32 %v6337, 0.0
    %v6476 = vmax.f32 %v6339, 0.0
    %v6477 = vmax.f32 %v6150, 0.0
    %v6478 = vmax.f32 %v6152, 0.0
    %v6479 = vmax.f32 %v6343, 0.0
    %v6480 = vmax.f32 %v6345, 0.0
    %v6481 = vmax.f32 %v6154, 0.0
    %v6482 = vmax.f32 %v6156, 0.0
    %v6483 = vmax.f32 %v6347, 0.0
    %v6484 = vmax.f32 %v6349, 0.0
    %v6485 = vmax.f32 %v6160, 0.0
    %v6486 = vmax.f32 %v6162, 0.0
    %v6487 = vmax.f32 %v6353, 0.0
    %v6488 = vmax.f32 %v6355, 0.0
    %v6489 = vmax.f32 %v6164, 0.0
    %v6490 = vmax.f32 %v6166, 0.0
    %v6491 = vmax.f32 %v6357, 0.0
    %v6492 = vmax.f32 %v6359, 0.0
    %v6493 = vmax.f32 %v6170, 0.0
    %v6494 = vmax.f32 %v6172, 0.0
    %v6495 = vmax.f32 %v6363, 0.0
    %v6496 = vmax.f32 %v6365, 0.0
    %v6497 = vmax.f32 %v6174, 0.0
    %v6498 = vmax.f32 %v6176, 0.0
    %v6499 = vmax.f32 %v6367, 0.0
    %v6500 = vmax.f32 %v6369, 0.0
    %v6501 = vmax.f32 %v6180, 0.0
    %v6502 = vmax.f32 %v6182, 0.0
    %v6503 = vmax.f32 %v6373, 0.0
    %v6504 = vmax.f32 %v6375, 0.0
    %v6505 = vmax.f32 %v6184, 0.0
    %v6506 = vmax.f32 %v6186, 0.0
    %v6507 = vmax.f32 %v6377, 0.0
    %v6508 = vmax.f32 %v6379, 0.0
    %v6509 = vpack.c.bf16 %v6385, %v6381
    %v6510 = vpack.c.bf16 %v6386, %v6382
    %v6511 = vpack.c.bf16 %v6387, %v6383
    %v6512 = vpack.c.bf16 %v6388, %v6384
    %v6513 = vpack.c.bf16 %v6393, %v6389
    %v6514 = vpack.c.bf16 %v6394, %v6390
    %v6515 = vpack.c.bf16 %v6395, %v6391
    %v6516 = vpack.c.bf16 %v6396, %v6392
    %v6517 = vpack.c.bf16 %v6401, %v6397
    %v6518 = vpack.c.bf16 %v6402, %v6398
    %v6519 = vpack.c.bf16 %v6403, %v6399
    %v6520 = vpack.c.bf16 %v6404, %v6400
    %v6521 = vpack.c.bf16 %v6409, %v6405
    %v6522 = vpack.c.bf16 %v6410, %v6406
    %v6523 = vpack.c.bf16 %v6411, %v6407
    %v6524 = vpack.c.bf16 %v6412, %v6408
    %v6525 = vpack.c.bf16 %v6417, %v6413
    %v6526 = vpack.c.bf16 %v6418, %v6414
    %v6527 = vpack.c.bf16 %v6419, %v6415
    %v6528 = vpack.c.bf16 %v6420, %v6416
    %v6529 = vpack.c.bf16 %v6425, %v6421
    %v6530 = vpack.c.bf16 %v6426, %v6422
    %v6531 = vpack.c.bf16 %v6427, %v6423
    %v6532 = vpack.c.bf16 %v6428, %v6424
    %v6533 = vpack.c.bf16 %v6433, %v6429
    %v6534 = vpack.c.bf16 %v6434, %v6430
    %v6535 = vpack.c.bf16 %v6435, %v6431
    %v6536 = vpack.c.bf16 %v6436, %v6432
    %v6537 = vpack.c.bf16 %v6441, %v6437
    %v6538 = vpack.c.bf16 %v6442, %v6438
    %v6539 = vpack.c.bf16 %v6443, %v6439
    %v6540 = vpack.c.bf16 %v6444, %v6440
    %v6541 = vpack.c.bf16 %v6449, %v6445
    %v6542 = vpack.c.bf16 %v6450, %v6446
    %v6543 = vpack.c.bf16 %v6451, %v6447
    %v6544 = vpack.c.bf16 %v6452, %v6448
    %v6545 = vpack.c.bf16 %v6457, %v6453
    %v6546 = vpack.c.bf16 %v6458, %v6454
    %v6547 = vpack.c.bf16 %v6459, %v6455
    %v6548 = vpack.c.bf16 %v6460, %v6456
    %v6549 = vpack.c.bf16 %v6465, %v6461
    %v6550 = vpack.c.bf16 %v6466, %v6462
    %v6551 = vpack.c.bf16 %v6467, %v6463
    %v6552 = vpack.c.bf16 %v6468, %v6464
    %v6553 = vpack.c.bf16 %v6473, %v6469
    %v6554 = vpack.c.bf16 %v6474, %v6470
    %v6555 = vpack.c.bf16 %v6475, %v6471
    %v6556 = vpack.c.bf16 %v6476, %v6472
    %v6557 = vpack.c.bf16 %v6481, %v6477
    %v6558 = vpack.c.bf16 %v6482, %v6478
    %v6559 = vpack.c.bf16 %v6483, %v6479
    %v6560 = vpack.c.bf16 %v6484, %v6480
    %v6561 = vpack.c.bf16 %v6489, %v6485
    %v6562 = vpack.c.bf16 %v6490, %v6486
    %v6563 = vpack.c.bf16 %v6491, %v6487
    %v6564 = vpack.c.bf16 %v6492, %v6488
    %v6565 = vpack.c.bf16 %v6497, %v6493
    %v6566 = vpack.c.bf16 %v6498, %v6494
    %v6567 = vpack.c.bf16 %v6499, %v6495
    %v6568 = vpack.c.bf16 %v6500, %v6496
    %v6569 = vpack.c.bf16 %v6505, %v6501
    %v6570 = vpack.c.bf16 %v6506, %v6502
    %v6571 = vpack.c.bf16 %v6507, %v6503
    %v6572 = vpack.c.bf16 %v6508, %v6504
    %v6573 = vld [vmem:[#allocation16] sm:$0xff]
    %v6574 = vld [vmem:[#allocation16 + $0x8] sm:$0xff]
    %v6575 = vld [vmem:[#allocation16 + $0x10] sm:$0xff]
    %v6576 = vld [vmem:[#allocation16 + $0x18] sm:$0xf]
    %v6577 = vld [vmem:[#allocation16 + $0x1c] sm:$0xff]
    %v6578 = vld [vmem:[#allocation16 + $0x24] sm:$0xff]
    %v6579 = vld [vmem:[#allocation16 + $0x2c] sm:$0xff]
    %v6580 = vld [vmem:[#allocation16 + $0x34] sm:$0xf]
    %v6581 = vld [vmem:[#allocation16 + $0x38] sm:$0xff]
    %v6582 = vld [vmem:[#allocation16 + $0x40] sm:$0xff]
    %v6583 = vld [vmem:[#allocation16 + $0x48] sm:$0xff]
    %v6584 = vld [vmem:[#allocation16 + $0x50] sm:$0xf]
    %v6585 = vld [vmem:[#allocation16 + $0x54] sm:$0xff]
    %v6586 = vld [vmem:[#allocation16 + $0x5c] sm:$0xff]
    %v6587 = vld [vmem:[#allocation16 + $0x64] sm:$0xff]
    %v6588 = vld [vmem:[#allocation16 + $0x6c] sm:$0xf]
    %v6589 = vld [vmem:[#allocation16 + $0x70] sm:$0xff]
    %v6590 = vld [vmem:[#allocation16 + $0x78] sm:$0xff]
    %v6591 = vld [vmem:[#allocation16 + $0x80] sm:$0xff]
    %v6592 = vld [vmem:[#allocation16 + $0x88] sm:$0xf]
    %v6593 = vld [vmem:[#allocation16 + $0x8c] sm:$0xff]
    %v6594 = vld [vmem:[#allocation16 + $0x94] sm:$0xff]
    %v6595 = vld [vmem:[#allocation16 + $0x9c] sm:$0xff]
    %v6596 = vld [vmem:[#allocation16 + $0xa4] sm:$0xf]
    %v6597 = vld [vmem:[#allocation16 + $0xa8] sm:$0xff]
    %v6598 = vld [vmem:[#allocation16 + $0xb0] sm:$0xff]
    %v6599 = vld [vmem:[#allocation16 + $0xb8] sm:$0xff]
    %v6600 = vld [vmem:[#allocation16 + $0xc0] sm:$0xf]
    %v6601 = vld [vmem:[#allocation16 + $0xc4] sm:$0xff]
    %v6602 = vld [vmem:[#allocation16 + $0xcc] sm:$0xff]
    %v6603 = vld [vmem:[#allocation16 + $0xd4] sm:$0xff]
    %v6604 = vld [vmem:[#allocation16 + $0xdc] sm:$0xf]
    %v6605 = vld [vmem:[#allocation16 + $0xe0] sm:$0xff]
    %v6606 = vld [vmem:[#allocation16 + $0xe8] sm:$0xff]
    %v6607 = vld [vmem:[#allocation16 + $0xf0] sm:$0xff]
    %v6608 = vld [vmem:[#allocation16 + $0xf8] sm:$0xf]
    %v6609 = vld [vmem:[#allocation16 + $0xfc] sm:$0xff]
    %v6610 = vld [vmem:[#allocation16 + $0x104] sm:$0xff]
    %v6611 = vld [vmem:[#allocation16 + $0x10c] sm:$0xff]
    %v6612 = vld [vmem:[#allocation16 + $0x114] sm:$0xf]
    %v6613 = vld [vmem:[#allocation16 + $0x118] sm:$0xff]
    %v6614 = vld [vmem:[#allocation16 + $0x120] sm:$0xff]
    %v6615 = vld [vmem:[#allocation16 + $0x128] sm:$0xff]
    %v6616 = vld [vmem:[#allocation16 + $0x130] sm:$0xf]
    %v6617 = vld [vmem:[#allocation16 + $0x134] sm:$0xff]
    %v6618 = vld [vmem:[#allocation16 + $0x13c] sm:$0xff]
    %v6619 = vld [vmem:[#allocation16 + $0x144] sm:$0xff]
    %v6620 = vld [vmem:[#allocation16 + $0x14c] sm:$0xf]
    %v6621 = vld [vmem:[#allocation16 + $0x150] sm:$0xff]
    %v6622 = vld [vmem:[#allocation16 + $0x158] sm:$0xff]
    %v6623 = vld [vmem:[#allocation16 + $0x160] sm:$0xff]
    %v6624 = vld [vmem:[#allocation16 + $0x168] sm:$0xf]
    %v6625 = vld [vmem:[#allocation16 + $0x16c] sm:$0xff]
    %v6626 = vld [vmem:[#allocation16 + $0x174] sm:$0xff]
    %v6627 = vld [vmem:[#allocation16 + $0x17c] sm:$0xff]
    %v6628 = vld [vmem:[#allocation16 + $0x184] sm:$0xf]
    %v6629 = vld [vmem:[#allocation16 + $0x188] sm:$0xff]
    %v6630 = vld [vmem:[#allocation16 + $0x190] sm:$0xff]
    %v6631 = vld [vmem:[#allocation16 + $0x198] sm:$0xff]
    %v6632 = vld [vmem:[#allocation16 + $0x1a0] sm:$0xf]
    %v6633 = vld [vmem:[#allocation16 + $0x1a4] sm:$0xff]
    %v6634 = vld [vmem:[#allocation16 + $0x1ac] sm:$0xff]
    %v6635 = vld [vmem:[#allocation16 + $0x1b4] sm:$0xff]
    %v6636 = vld [vmem:[#allocation16 + $0x1bc] sm:$0xf]
    %v6637 = vld [vmem:[#allocation16 + $0x1c0] sm:$0xff]
    %v6638 = vld [vmem:[#allocation16 + $0x1c8] sm:$0xff]
    %v6639 = vld [vmem:[#allocation16 + $0x1d0] sm:$0xff]
    %v6640 = vld [vmem:[#allocation16 + $0x1d8] sm:$0xf]
    %v6641 = vld [vmem:[#allocation16 + $0x1dc] sm:$0xff]
    %v6642 = vld [vmem:[#allocation16 + $0x1e4] sm:$0xff]
    %v6643 = vld [vmem:[#allocation16 + $0x1ec] sm:$0xff]
    %v6644 = vld [vmem:[#allocation16 + $0x1f4] sm:$0xf]
    %v6645 = vld [vmem:[#allocation16 + $0x1f8] sm:$0xff]
    %v6646 = vld [vmem:[#allocation16 + $0x200] sm:$0xff]
    %v6647 = vld [vmem:[#allocation16 + $0x208] sm:$0xff]
    %v6648 = vld [vmem:[#allocation16 + $0x210] sm:$0xf]
    %v6649 = vld [vmem:[#allocation16 + $0x214] sm:$0xff]
    %v6650 = vld [vmem:[#allocation16 + $0x21c] sm:$0xff]
    %v6651 = vld [vmem:[#allocation16 + $0x224] sm:$0xff]
    %v6652 = vld [vmem:[#allocation16 + $0x22c] sm:$0xf]
    %v6653 = vld [vmem:[#allocation16 + $0x230] sm:$0xff]
    %v6654 = vld [vmem:[#allocation16 + $0x238] sm:$0xff]
    %v6655 = vld [vmem:[#allocation16 + $0x240] sm:$0xff]
    %v6656 = vld [vmem:[#allocation16 + $0x248] sm:$0xf]
    %v6657 = vld [vmem:[#allocation16 + $0x24c] sm:$0xff]
    %v6658 = vld [vmem:[#allocation16 + $0x254] sm:$0xff]
    %v6659 = vld [vmem:[#allocation16 + $0x25c] sm:$0xff]
    %v6660 = vld [vmem:[#allocation16 + $0x264] sm:$0xf]
    %v6661 = vld [vmem:[#allocation16 + $0x268] sm:$0xff]
    %v6662 = vld [vmem:[#allocation16 + $0x270] sm:$0xff]
    %v6663 = vld [vmem:[#allocation16 + $0x278] sm:$0xff]
    %v6664 = vld [vmem:[#allocation16 + $0x280] sm:$0xf]
    %v6665 = vld [vmem:[#allocation16 + $0x284] sm:$0xff]
    %v6666 = vld [vmem:[#allocation16 + $0x28c] sm:$0xff]
    %v6667 = vld [vmem:[#allocation16 + $0x294] sm:$0xff]
    %v6668 = vld [vmem:[#allocation16 + $0x29c] sm:$0xf]
    %v6669 = vld [vmem:[#allocation16 + $0x2a0] sm:$0xff]
    %v6670 = vld [vmem:[#allocation16 + $0x2a8] sm:$0xff]
    %v6671 = vld [vmem:[#allocation16 + $0x2b0] sm:$0xff]
    %v6672 = vld [vmem:[#allocation16 + $0x2b8] sm:$0xf]
    %v6673 = vld [vmem:[#allocation16 + $0x2bc] sm:$0xff]
    %v6674 = vld [vmem:[#allocation16 + $0x2c4] sm:$0xff]
    %v6675 = vld [vmem:[#allocation16 + $0x2cc] sm:$0xff]
    %v6676 = vld [vmem:[#allocation16 + $0x2d4] sm:$0xf]
    %v6677 = vld [vmem:[#allocation16 + $0x2d8] sm:$0xff]
    %v6678 = vld [vmem:[#allocation16 + $0x2e0] sm:$0xff]
    %v6679 = vld [vmem:[#allocation16 + $0x2e8] sm:$0xff]
    %v6680 = vld [vmem:[#allocation16 + $0x2f0] sm:$0xf]
    %v6681 = vld [vmem:[#allocation16 + $0x2f4] sm:$0xff]
    %v6682 = vld [vmem:[#allocation16 + $0x2fc] sm:$0xff]
    %v6683 = vld [vmem:[#allocation16 + $0x304] sm:$0xff]
    %v6684 = vld [vmem:[#allocation16 + $0x30c] sm:$0xf]
    %v6685 = vld [vmem:[#allocation16 + $0x310] sm:$0xff]
    %v6686 = vld [vmem:[#allocation16 + $0x318] sm:$0xff]
    %v6687 = vld [vmem:[#allocation16 + $0x320] sm:$0xff]
    %v6688 = vld [vmem:[#allocation16 + $0x328] sm:$0xf]
    %v6689 = vld [vmem:[#allocation16 + $0x32c] sm:$0xff]
    %v6690 = vld [vmem:[#allocation16 + $0x334] sm:$0xff]
    %v6691 = vld [vmem:[#allocation16 + $0x33c] sm:$0xff]
    %v6692 = vld [vmem:[#allocation16 + $0x344] sm:$0xf]
    %v6693 = vld [vmem:[#allocation16 + $0x348] sm:$0xff]
    %v6694 = vld [vmem:[#allocation16 + $0x350] sm:$0xff]
    %v6695 = vld [vmem:[#allocation16 + $0x358] sm:$0xff]
    %v6696 = vld [vmem:[#allocation16 + $0x360] sm:$0xf]
    %v6697 = vld [vmem:[#allocation16 + $0x364] sm:$0xff]
    %v6698 = vld [vmem:[#allocation16 + $0x36c] sm:$0xff]
    %v6699 = vld [vmem:[#allocation16 + $0x374] sm:$0xff]
    %v6700 = vld [vmem:[#allocation16 + $0x37c] sm:$0xf]
    %v6701 = vld [vmem:[#allocation16 + $0x380] sm:$0xff]
    %v6702 = vld [vmem:[#allocation16 + $0x388] sm:$0xff]
    %v6703 = vld [vmem:[#allocation16 + $0x390] sm:$0xff]
    %v6704 = vld [vmem:[#allocation16 + $0x398] sm:$0xf]
    %v6705 = vld [vmem:[#allocation16 + $0x39c] sm:$0xff]
    %v6706 = vld [vmem:[#allocation16 + $0x3a4] sm:$0xff]
    %v6707 = vld [vmem:[#allocation16 + $0x3ac] sm:$0xff]
    %v6708 = vld [vmem:[#allocation16 + $0x3b4] sm:$0xf]
    %v6709 = vld [vmem:[#allocation16 + $0x3b8] sm:$0xff]
    %v6710 = vld [vmem:[#allocation16 + $0x3c0] sm:$0xff]
    %v6711 = vld [vmem:[#allocation16 + $0x3c8] sm:$0xff]
    %v6712 = vld [vmem:[#allocation16 + $0x3d0] sm:$0xf]
    %v6713 = vld [vmem:[#allocation16 + $0x3d4] sm:$0xff]
    %v6714 = vld [vmem:[#allocation16 + $0x3dc] sm:$0xff]
    %v6715 = vld [vmem:[#allocation16 + $0x3e4] sm:$0xff]
    %v6716 = vld [vmem:[#allocation16 + $0x3ec] sm:$0xf]
    %v6717 = vld [vmem:[#allocation16 + $0x3f0] sm:$0xff]
    %v6718 = vld [vmem:[#allocation16 + $0x3f8] sm:$0xff]
    %v6719 = vld [vmem:[#allocation16 + $0x400] sm:$0xff]
    %v6720 = vld [vmem:[#allocation16 + $0x408] sm:$0xf]
    %v6721 = vld [vmem:[#allocation16 + $0x40c] sm:$0xff]
    %v6722 = vld [vmem:[#allocation16 + $0x414] sm:$0xff]
    %v6723 = vld [vmem:[#allocation16 + $0x41c] sm:$0xff]
    %v6724 = vld [vmem:[#allocation16 + $0x424] sm:$0xf]
    %v6725 = vld [vmem:[#allocation16 + $0x428] sm:$0xff]
    %v6726 = vld [vmem:[#allocation16 + $0x430] sm:$0xff]
    %v6727 = vld [vmem:[#allocation16 + $0x438] sm:$0xff]
    %v6728 = vld [vmem:[#allocation16 + $0x440] sm:$0xf]
    %v6729 = vld [vmem:[#allocation16 + $0x444] sm:$0xff]
    %v6730 = vld [vmem:[#allocation16 + $0x44c] sm:$0xff]
    %v6731 = vld [vmem:[#allocation16 + $0x454] sm:$0xff]
    %v6732 = vld [vmem:[#allocation16 + $0x45c] sm:$0xf]
    %v6733 = vld [vmem:[#allocation16 + $0x460] sm:$0xff]
    %v6734 = vld [vmem:[#allocation16 + $0x468] sm:$0xff]
    %v6735 = vld [vmem:[#allocation16 + $0x470] sm:$0xff]
    %v6736 = vld [vmem:[#allocation16 + $0x478] sm:$0xf]
    %v6737 = vld [vmem:[#allocation16 + $0x47c] sm:$0xff]
    %v6738 = vld [vmem:[#allocation16 + $0x484] sm:$0xff]
    %v6739 = vld [vmem:[#allocation16 + $0x48c] sm:$0xff]
    %v6740 = vld [vmem:[#allocation16 + $0x494] sm:$0xf]
    %v6741 = vld [vmem:[#allocation16 + $0x498] sm:$0xff]
    %v6742 = vld [vmem:[#allocation16 + $0x4a0] sm:$0xff]
    %v6743 = vld [vmem:[#allocation16 + $0x4a8] sm:$0xff]
    %v6744 = vld [vmem:[#allocation16 + $0x4b0] sm:$0xf]
    %v6745 = vld [vmem:[#allocation16 + $0x4b4] sm:$0xff]
    %v6746 = vld [vmem:[#allocation16 + $0x4bc] sm:$0xff]
    %v6747 = vld [vmem:[#allocation16 + $0x4c4] sm:$0xff]
    %v6748 = vld [vmem:[#allocation16 + $0x4cc] sm:$0xf]
    %v6749 = vld [vmem:[#allocation16 + $0x4d0] sm:$0xff]
    %v6750 = vld [vmem:[#allocation16 + $0x4d8] sm:$0xff]
    %v6751 = vld [vmem:[#allocation16 + $0x4e0] sm:$0xff]
    %v6752 = vld [vmem:[#allocation16 + $0x4e8] sm:$0xf]
    %v6753 = vld [vmem:[#allocation16 + $0x4ec] sm:$0xff]
    %v6754 = vld [vmem:[#allocation16 + $0x4f4] sm:$0xff]
    %v6755 = vld [vmem:[#allocation16 + $0x4fc] sm:$0xff]
    %v6756 = vld [vmem:[#allocation16 + $0x504] sm:$0xf]
    %v6757 = vld [vmem:[#allocation16 + $0x508] sm:$0xff]
    %v6758 = vld [vmem:[#allocation16 + $0x510] sm:$0xff]
    %v6759 = vld [vmem:[#allocation16 + $0x518] sm:$0xff]
    %v6760 = vld [vmem:[#allocation16 + $0x520] sm:$0xf]
    %v6761 = vld [vmem:[#allocation16 + $0x524] sm:$0xff]
    %v6762 = vld [vmem:[#allocation16 + $0x52c] sm:$0xff]
    %v6763 = vld [vmem:[#allocation16 + $0x534] sm:$0xff]
    %v6764 = vld [vmem:[#allocation16 + $0x53c] sm:$0xf]
    %v6765 = vld [vmem:[#allocation16 + $0x540] sm:$0xff]
    %v6766 = vld [vmem:[#allocation16 + $0x548] sm:$0xff]
    %v6767 = vld [vmem:[#allocation16 + $0x550] sm:$0xff]
    %v6768 = vld [vmem:[#allocation16 + $0x558] sm:$0xf]
    %v6769 = vld [vmem:[#allocation16 + $0x55c] sm:$0xff]
    %v6770 = vld [vmem:[#allocation16 + $0x564] sm:$0xff]
    %v6771 = vld [vmem:[#allocation16 + $0x56c] sm:$0xff]
    %v6772 = vld [vmem:[#allocation16 + $0x574] sm:$0xf]
    %v6773 = vld [vmem:[#allocation16 + $0x578] sm:$0xff]
    %v6774 = vld [vmem:[#allocation16 + $0x580] sm:$0xff]
    %v6775 = vld [vmem:[#allocation16 + $0x588] sm:$0xff]
    %v6776 = vld [vmem:[#allocation16 + $0x590] sm:$0xf]
    %v6777 = vld [vmem:[#allocation16 + $0x594] sm:$0xff]
    %v6778 = vld [vmem:[#allocation16 + $0x59c] sm:$0xff]
    %v6779 = vld [vmem:[#allocation16 + $0x5a4] sm:$0xff]
    %v6780 = vld [vmem:[#allocation16 + $0x5ac] sm:$0xf]
    %v6781 = vld [vmem:[#allocation16 + $0x5b0] sm:$0xff]
    %v6782 = vld [vmem:[#allocation16 + $0x5b8] sm:$0xff]
    %v6783 = vld [vmem:[#allocation16 + $0x5c0] sm:$0xff]
    %v6784 = vld [vmem:[#allocation16 + $0x5c8] sm:$0xf]
    %v6785 = vld [vmem:[#allocation16 + $0x5cc] sm:$0xff]
    %v6786 = vld [vmem:[#allocation16 + $0x5d4] sm:$0xff]
    %v6787 = vld [vmem:[#allocation16 + $0x5dc] sm:$0xff]
    %v6788 = vld [vmem:[#allocation16 + $0x5e4] sm:$0xf]
    %v6789 = vld [vmem:[#allocation16 + $0x5e8] sm:$0xff]
    %v6790 = vld [vmem:[#allocation16 + $0x5f0] sm:$0xff]
    %v6791 = vld [vmem:[#allocation16 + $0x5f8] sm:$0xff]
    %v6792 = vld [vmem:[#allocation16 + $0x600] sm:$0xf]
    %v6793 = vld [vmem:[#allocation16 + $0x604] sm:$0xff]
    %v6794 = vld [vmem:[#allocation16 + $0x60c] sm:$0xff]
    %v6795 = vld [vmem:[#allocation16 + $0x614] sm:$0xff]
    %v6796 = vld [vmem:[#allocation16 + $0x61c] sm:$0xf]
    %v6797 = vld [vmem:[#allocation16 + $0x620] sm:$0xff]
    %v6798 = vld [vmem:[#allocation16 + $0x628] sm:$0xff]
    %v6799 = vld [vmem:[#allocation16 + $0x630] sm:$0xff]
    %v6800 = vld [vmem:[#allocation16 + $0x638] sm:$0xf]
    %v6801 = vld [vmem:[#allocation16 + $0x63c] sm:$0xff]
    %v6802 = vld [vmem:[#allocation16 + $0x644] sm:$0xff]
    %v6803 = vld [vmem:[#allocation16 + $0x64c] sm:$0xff]
    %v6804 = vld [vmem:[#allocation16 + $0x654] sm:$0xf]
    %v6805 = vld [vmem:[#allocation16 + $0x658] sm:$0xff]
    %v6806 = vld [vmem:[#allocation16 + $0x660] sm:$0xff]
    %v6807 = vld [vmem:[#allocation16 + $0x668] sm:$0xff]
    %v6808 = vld [vmem:[#allocation16 + $0x670] sm:$0xf]
    %v6809 = vld [vmem:[#allocation16 + $0x674] sm:$0xff]
    %v6810 = vld [vmem:[#allocation16 + $0x67c] sm:$0xff]
    %v6811 = vld [vmem:[#allocation16 + $0x684] sm:$0xff]
    %v6812 = vld [vmem:[#allocation16 + $0x68c] sm:$0xf]
    %v6813 = vld [vmem:[#allocation16 + $0x690] sm:$0xff]
    %v6814 = vld [vmem:[#allocation16 + $0x698] sm:$0xff]
    %v6815 = vld [vmem:[#allocation16 + $0x6a0] sm:$0xff]
    %v6816 = vld [vmem:[#allocation16 + $0x6a8] sm:$0xf]
    %v6817 = vld [vmem:[#allocation16 + $0x6ac] sm:$0xff]
    %v6818 = vld [vmem:[#allocation16 + $0x6b4] sm:$0xff]
    %v6819 = vld [vmem:[#allocation16 + $0x6bc] sm:$0xff]
    %v6820 = vld [vmem:[#allocation16 + $0x6c4] sm:$0xf]
    %v6821 = vld [vmem:[#allocation16 + $0x6c8] sm:$0xff]
    %v6822 = vld [vmem:[#allocation16 + $0x6d0] sm:$0xff]
    %v6823 = vld [vmem:[#allocation16 + $0x6d8] sm:$0xff]
    %v6824 = vld [vmem:[#allocation16 + $0x6e0] sm:$0xf]
    %v6825 = vld [vmem:[#allocation16 + $0x6e4] sm:$0xff]
    %v6826 = vld [vmem:[#allocation16 + $0x6ec] sm:$0xff]
    %v6827 = vld [vmem:[#allocation16 + $0x6f4] sm:$0xff]
    %v6828 = vld [vmem:[#allocation16 + $0x6fc] sm:$0xf]
    %v6829 = vld [vmem:[%s12] sm:$0xff]
    %v6831 = vlaneseq
    %v6832 = vshrl.u32 %v6831, 7
    %v6833 = vsub.s32 0, %v6832
    %v6834 = vrot.slane %v6829, %v6833
    %v6835 = vlaneseq
    %v6836 = vshrl.u32 %v6835, 7
    %v6837 = vsub.s32 1, %v6836
    %v6838 = vrot.slane %v6829, %v6837
    %v6839 = vlaneseq
    %v6840 = vshrl.u32 %v6839, 7
    %v6841 = vsub.s32 2, %v6840
    %v6842 = vrot.slane %v6829, %v6841
    %v6843 = vlaneseq
    %v6844 = vshrl.u32 %v6843, 7
    %v6845 = vsub.s32 3, %v6844
    %v6846 = vrot.slane %v6829, %v6845
    %v6847 = vlaneseq
    %v6848 = vshrl.u32 %v6847, 7
    %v6849 = vsub.s32 4, %v6848
    %v6850 = vrot.slane %v6829, %v6849
    %v6851 = vlaneseq
    %v6852 = vshrl.u32 %v6851, 7
    %v6853 = vsub.s32 5, %v6852
    %v6854 = vrot.slane %v6829, %v6853
    %v6855 = vlaneseq
    %v6856 = vshrl.u32 %v6855, 7
    %v6857 = vsub.s32 6, %v6856
    %v6858 = vrot.slane %v6829, %v6857
    %v7122 = vunpack.c.l.b16 %v6573
    %v7123 = vunpack.c.h.b16 %v6573
    %v7124 = vunpack.c.l.b16 %v6574
    %v7125 = vunpack.c.h.b16 %v6574
    %v7126 = vunpack.c.l.b16 %v6575
    %v7127 = vunpack.c.h.b16 %v6575
    %v7128 = vunpack.c.l.b16 %v6576
    %v7129 = vunpack.c.l.b16 %v6577
    %v7130 = vunpack.c.h.b16 %v6577
    %v7131 = vunpack.c.l.b16 %v6578
    %v7132 = vunpack.c.h.b16 %v6578
    %v7133 = vunpack.c.l.b16 %v6579
    %v7134 = vunpack.c.h.b16 %v6579
    %v7135 = vunpack.c.l.b16 %v6580
    %v7136 = vunpack.c.l.b16 %v6581
    %v7137 = vunpack.c.h.b16 %v6581
    %v7138 = vunpack.c.l.b16 %v6582
    %v7139 = vunpack.c.h.b16 %v6582
    %v7140 = vunpack.c.l.b16 %v6583
    %v7141 = vunpack.c.h.b16 %v6583
    %v7142 = vunpack.c.l.b16 %v6584
    %v7143 = vunpack.c.l.b16 %v6585
    %v7144 = vunpack.c.h.b16 %v6585
    %v7145 = vunpack.c.l.b16 %v6586
    %v7146 = vunpack.c.h.b16 %v6586
    %v7147 = vunpack.c.l.b16 %v6587
    %v7148 = vunpack.c.h.b16 %v6587
    %v7149 = vunpack.c.l.b16 %v6588
    %v7150 = vunpack.c.l.b16 %v6589
    %v7151 = vunpack.c.h.b16 %v6589
    %v7152 = vunpack.c.l.b16 %v6590
    %v7153 = vunpack.c.h.b16 %v6590
    %v7154 = vunpack.c.l.b16 %v6591
    %v7155 = vunpack.c.h.b16 %v6591
    %v7156 = vunpack.c.l.b16 %v6592
    %v7157 = vunpack.c.l.b16 %v6593
    %v7158 = vunpack.c.h.b16 %v6593
    %v7159 = vunpack.c.l.b16 %v6594
    %v7160 = vunpack.c.h.b16 %v6594
    %v7161 = vunpack.c.l.b16 %v6595
    %v7162 = vunpack.c.h.b16 %v6595
    %v7163 = vunpack.c.l.b16 %v6596
    %v7164 = vunpack.c.l.b16 %v6597
    %v7165 = vunpack.c.h.b16 %v6597
    %v7166 = vunpack.c.l.b16 %v6598
    %v7167 = vunpack.c.h.b16 %v6598
    %v7168 = vunpack.c.l.b16 %v6599
    %v7169 = vunpack.c.h.b16 %v6599
    %v7170 = vunpack.c.l.b16 %v6600
    %v7171 = vunpack.c.l.b16 %v6601
    %v7172 = vunpack.c.h.b16 %v6601
    %v7173 = vunpack.c.l.b16 %v6602
    %v7174 = vunpack.c.h.b16 %v6602
    %v7175 = vunpack.c.l.b16 %v6603
    %v7176 = vunpack.c.h.b16 %v6603
    %v7177 = vunpack.c.l.b16 %v6604
    %v7178 = vunpack.c.l.b16 %v6605
    %v7179 = vunpack.c.h.b16 %v6605
    %v7180 = vunpack.c.l.b16 %v6606
    %v7181 = vunpack.c.h.b16 %v6606
    %v7182 = vunpack.c.l.b16 %v6607
    %v7183 = vunpack.c.h.b16 %v6607
    %v7184 = vunpack.c.l.b16 %v6608
    %v7185 = vunpack.c.l.b16 %v6609
    %v7186 = vunpack.c.h.b16 %v6609
    %v7187 = vunpack.c.l.b16 %v6610
    %v7188 = vunpack.c.h.b16 %v6610
    %v7189 = vunpack.c.l.b16 %v6611
    %v7190 = vunpack.c.h.b16 %v6611
    %v7191 = vunpack.c.l.b16 %v6612
    %v7192 = vunpack.c.l.b16 %v6613
    %v7193 = vunpack.c.h.b16 %v6613
    %v7194 = vunpack.c.l.b16 %v6614
    %v7195 = vunpack.c.h.b16 %v6614
    %v7196 = vunpack.c.l.b16 %v6615
    %v7197 = vunpack.c.h.b16 %v6615
    %v7198 = vunpack.c.l.b16 %v6616
    %v7199 = vunpack.c.l.b16 %v6617
    %v7200 = vunpack.c.h.b16 %v6617
    %v7201 = vunpack.c.l.b16 %v6618
    %v7202 = vunpack.c.h.b16 %v6618
    %v7203 = vunpack.c.l.b16 %v6619
    %v7204 = vunpack.c.h.b16 %v6619
    %v7205 = vunpack.c.l.b16 %v6620
    %v7206 = vunpack.c.l.b16 %v6621
    %v7207 = vunpack.c.h.b16 %v6621
    %v7208 = vunpack.c.l.b16 %v6622
    %v7209 = vunpack.c.h.b16 %v6622
    %v7210 = vunpack.c.l.b16 %v6623
    %v7211 = vunpack.c.h.b16 %v6623
    %v7212 = vunpack.c.l.b16 %v6624
    %v7213 = vunpack.c.l.b16 %v6625
    %v7214 = vunpack.c.h.b16 %v6625
    %v7215 = vunpack.c.l.b16 %v6626
    %v7216 = vunpack.c.h.b16 %v6626
    %v7217 = vunpack.c.l.b16 %v6627
    %v7218 = vunpack.c.h.b16 %v6627
    %v7219 = vunpack.c.l.b16 %v6628
    %v7220 = vunpack.c.l.b16 %v6629
    %v7221 = vunpack.c.h.b16 %v6629
    %v7222 = vunpack.c.l.b16 %v6630
    %v7223 = vunpack.c.h.b16 %v6630
    %v7224 = vunpack.c.l.b16 %v6631
    %v7225 = vunpack.c.h.b16 %v6631
    %v7226 = vunpack.c.l.b16 %v6632
    %v7227 = vunpack.c.l.b16 %v6633
    %v7228 = vunpack.c.h.b16 %v6633
    %v7229 = vunpack.c.l.b16 %v6634
    %v7230 = vunpack.c.h.b16 %v6634
    %v7231 = vunpack.c.l.b16 %v6635
    %v7232 = vunpack.c.h.b16 %v6635
    %v7233 = vunpack.c.l.b16 %v6636
    %v7234 = vunpack.c.l.b16 %v6637
    %v7235 = vunpack.c.h.b16 %v6637
    %v7236 = vunpack.c.l.b16 %v6638
    %v7237 = vunpack.c.h.b16 %v6638
    %v7238 = vunpack.c.l.b16 %v6639
    %v7239 = vunpack.c.h.b16 %v6639
    %v7240 = vunpack.c.l.b16 %v6640
    %v7241 = vunpack.c.l.b16 %v6641
    %v7242 = vunpack.c.h.b16 %v6641
    %v7243 = vunpack.c.l.b16 %v6642
    %v7244 = vunpack.c.h.b16 %v6642
    %v7245 = vunpack.c.l.b16 %v6643
    %v7246 = vunpack.c.h.b16 %v6643
    %v7247 = vunpack.c.l.b16 %v6644
    %v7248 = vunpack.c.l.b16 %v6645
    %v7249 = vunpack.c.h.b16 %v6645
    %v7250 = vunpack.c.l.b16 %v6646
    %v7251 = vunpack.c.h.b16 %v6646
    %v7252 = vunpack.c.l.b16 %v6647
    %v7253 = vunpack.c.h.b16 %v6647
    %v7254 = vunpack.c.l.b16 %v6648
    %v7255 = vunpack.c.l.b16 %v6649
    %v7256 = vunpack.c.h.b16 %v6649
    %v7257 = vunpack.c.l.b16 %v6650
    %v7258 = vunpack.c.h.b16 %v6650
    %v7259 = vunpack.c.l.b16 %v6651
    %v7260 = vunpack.c.h.b16 %v6651
    %v7261 = vunpack.c.l.b16 %v6652
    %v7262 = vunpack.c.l.b16 %v6653
    %v7263 = vunpack.c.h.b16 %v6653
    %v7264 = vunpack.c.l.b16 %v6654
    %v7265 = vunpack.c.h.b16 %v6654
    %v7266 = vunpack.c.l.b16 %v6655
    %v7267 = vunpack.c.h.b16 %v6655
    %v7268 = vunpack.c.l.b16 %v6656
    %v7269 = vunpack.c.l.b16 %v6657
    %v7270 = vunpack.c.h.b16 %v6657
    %v7271 = vunpack.c.l.b16 %v6658
    %v7272 = vunpack.c.h.b16 %v6658
    %v7273 = vunpack.c.l.b16 %v6659
    %v7274 = vunpack.c.h.b16 %v6659
    %v7275 = vunpack.c.l.b16 %v6660
    %v7276 = vunpack.c.l.b16 %v6661
    %v7277 = vunpack.c.h.b16 %v6661
    %v7278 = vunpack.c.l.b16 %v6662
    %v7279 = vunpack.c.h.b16 %v6662
    %v7280 = vunpack.c.l.b16 %v6663
    %v7281 = vunpack.c.h.b16 %v6663
    %v7282 = vunpack.c.l.b16 %v6664
    %v7283 = vunpack.c.l.b16 %v6665
    %v7284 = vunpack.c.h.b16 %v6665
    %v7285 = vunpack.c.l.b16 %v6666
    %v7286 = vunpack.c.h.b16 %v6666
    %v7287 = vunpack.c.l.b16 %v6667
    %v7288 = vunpack.c.h.b16 %v6667
    %v7289 = vunpack.c.l.b16 %v6668
    %v7290 = vunpack.c.l.b16 %v6669
    %v7291 = vunpack.c.h.b16 %v6669
    %v7292 = vunpack.c.l.b16 %v6670
    %v7293 = vunpack.c.h.b16 %v6670
    %v7294 = vunpack.c.l.b16 %v6671
    %v7295 = vunpack.c.h.b16 %v6671
    %v7296 = vunpack.c.l.b16 %v6672
    %v7297 = vunpack.c.l.b16 %v6673
    %v7298 = vunpack.c.h.b16 %v6673
    %v7299 = vunpack.c.l.b16 %v6674
    %v7300 = vunpack.c.h.b16 %v6674
    %v7301 = vunpack.c.l.b16 %v6675
    %v7302 = vunpack.c.h.b16 %v6675
    %v7303 = vunpack.c.l.b16 %v6676
    %v7304 = vunpack.c.l.b16 %v6677
    %v7305 = vunpack.c.h.b16 %v6677
    %v7306 = vunpack.c.l.b16 %v6678
    %v7307 = vunpack.c.h.b16 %v6678
    %v7308 = vunpack.c.l.b16 %v6679
    %v7309 = vunpack.c.h.b16 %v6679
    %v7310 = vunpack.c.l.b16 %v6680
    %v7311 = vunpack.c.l.b16 %v6681
    %v7312 = vunpack.c.h.b16 %v6681
    %v7313 = vunpack.c.l.b16 %v6682
    %v7314 = vunpack.c.h.b16 %v6682
    %v7315 = vunpack.c.l.b16 %v6683
    %v7316 = vunpack.c.h.b16 %v6683
    %v7317 = vunpack.c.l.b16 %v6684
    %v7318 = vunpack.c.l.b16 %v6685
    %v7319 = vunpack.c.h.b16 %v6685
    %v7320 = vunpack.c.l.b16 %v6686
    %v7321 = vunpack.c.h.b16 %v6686
    %v7322 = vunpack.c.l.b16 %v6687
    %v7323 = vunpack.c.h.b16 %v6687
    %v7324 = vunpack.c.l.b16 %v6688
    %v7325 = vunpack.c.l.b16 %v6689
    %v7326 = vunpack.c.h.b16 %v6689
    %v7327 = vunpack.c.l.b16 %v6690
    %v7328 = vunpack.c.h.b16 %v6690
    %v7329 = vunpack.c.l.b16 %v6691
    %v7330 = vunpack.c.h.b16 %v6691
    %v7331 = vunpack.c.l.b16 %v6692
    %v7332 = vunpack.c.l.b16 %v6693
    %v7333 = vunpack.c.h.b16 %v6693
    %v7334 = vunpack.c.l.b16 %v6694
    %v7335 = vunpack.c.h.b16 %v6694
    %v7336 = vunpack.c.l.b16 %v6695
    %v7337 = vunpack.c.h.b16 %v6695
    %v7338 = vunpack.c.l.b16 %v6696
    %v7339 = vunpack.c.l.b16 %v6697
    %v7340 = vunpack.c.h.b16 %v6697
    %v7341 = vunpack.c.l.b16 %v6698
    %v7342 = vunpack.c.h.b16 %v6698
    %v7343 = vunpack.c.l.b16 %v6699
    %v7344 = vunpack.c.h.b16 %v6699
    %v7345 = vunpack.c.l.b16 %v6700
    %v7346 = vunpack.c.l.b16 %v6701
    %v7347 = vunpack.c.h.b16 %v6701
    %v7348 = vunpack.c.l.b16 %v6702
    %v7349 = vunpack.c.h.b16 %v6702
    %v7350 = vunpack.c.l.b16 %v6703
    %v7351 = vunpack.c.h.b16 %v6703
    %v7352 = vunpack.c.l.b16 %v6704
    %v7353 = vunpack.c.l.b16 %v6705
    %v7354 = vunpack.c.h.b16 %v6705
    %v7355 = vunpack.c.l.b16 %v6706
    %v7356 = vunpack.c.h.b16 %v6706
    %v7357 = vunpack.c.l.b16 %v6707
    %v7358 = vunpack.c.h.b16 %v6707
    %v7359 = vunpack.c.l.b16 %v6708
    %v7360 = vunpack.c.l.b16 %v6709
    %v7361 = vunpack.c.h.b16 %v6709
    %v7362 = vunpack.c.l.b16 %v6710
    %v7363 = vunpack.c.h.b16 %v6710
    %v7364 = vunpack.c.l.b16 %v6711
    %v7365 = vunpack.c.h.b16 %v6711
    %v7366 = vunpack.c.l.b16 %v6712
    %v7367 = vunpack.c.l.b16 %v6713
    %v7368 = vunpack.c.h.b16 %v6713
    %v7369 = vunpack.c.l.b16 %v6714
    %v7370 = vunpack.c.h.b16 %v6714
    %v7371 = vunpack.c.l.b16 %v6715
    %v7372 = vunpack.c.h.b16 %v6715
    %v7373 = vunpack.c.l.b16 %v6716
    %v7374 = vunpack.c.l.b16 %v6717
    %v7375 = vunpack.c.h.b16 %v6717
    %v7376 = vunpack.c.l.b16 %v6718
    %v7377 = vunpack.c.h.b16 %v6718
    %v7378 = vunpack.c.l.b16 %v6719
    %v7379 = vunpack.c.h.b16 %v6719
    %v7380 = vunpack.c.l.b16 %v6720
    %v7381 = vunpack.c.l.b16 %v6721
    %v7382 = vunpack.c.h.b16 %v6721
    %v7383 = vunpack.c.l.b16 %v6722
    %v7384 = vunpack.c.h.b16 %v6722
    %v7385 = vunpack.c.l.b16 %v6723
    %v7386 = vunpack.c.h.b16 %v6723
    %v7387 = vunpack.c.l.b16 %v6724
    %v7388 = vunpack.c.l.b16 %v6725
    %v7389 = vunpack.c.h.b16 %v6725
    %v7390 = vunpack.c.l.b16 %v6726
    %v7391 = vunpack.c.h.b16 %v6726
    %v7392 = vunpack.c.l.b16 %v6727
    %v7393 = vunpack.c.h.b16 %v6727
    %v7394 = vunpack.c.l.b16 %v6728
    %v7395 = vunpack.c.l.b16 %v6729
    %v7396 = vunpack.c.h.b16 %v6729
    %v7397 = vunpack.c.l.b16 %v6730
    %v7398 = vunpack.c.h.b16 %v6730
    %v7399 = vunpack.c.l.b16 %v6731
    %v7400 = vunpack.c.h.b16 %v6731
    %v7401 = vunpack.c.l.b16 %v6732
    %v7402 = vunpack.c.l.b16 %v6733
    %v7403 = vunpack.c.h.b16 %v6733
    %v7404 = vunpack.c.l.b16 %v6734
    %v7405 = vunpack.c.h.b16 %v6734
    %v7406 = vunpack.c.l.b16 %v6735
    %v7407 = vunpack.c.h.b16 %v6735
    %v7408 = vunpack.c.l.b16 %v6736
    %v7409 = vunpack.c.l.b16 %v6737
    %v7410 = vunpack.c.h.b16 %v6737
    %v7411 = vunpack.c.l.b16 %v6738
    %v7412 = vunpack.c.h.b16 %v6738
    %v7413 = vunpack.c.l.b16 %v6739
    %v7414 = vunpack.c.h.b16 %v6739
    %v7415 = vunpack.c.l.b16 %v6740
    %v7416 = vunpack.c.l.b16 %v6741
    %v7417 = vunpack.c.h.b16 %v6741
    %v7418 = vunpack.c.l.b16 %v6742
    %v7419 = vunpack.c.h.b16 %v6742
    %v7420 = vunpack.c.l.b16 %v6743
    %v7421 = vunpack.c.h.b16 %v6743
    %v7422 = vunpack.c.l.b16 %v6744
    %v7423 = vunpack.c.l.b16 %v6745
    %v7424 = vunpack.c.h.b16 %v6745
    %v7425 = vunpack.c.l.b16 %v6746
    %v7426 = vunpack.c.h.b16 %v6746
    %v7427 = vunpack.c.l.b16 %v6747
    %v7428 = vunpack.c.h.b16 %v6747
    %v7429 = vunpack.c.l.b16 %v6748
    %v7430 = vunpack.c.l.b16 %v6749
    %v7431 = vunpack.c.h.b16 %v6749
    %v7432 = vunpack.c.l.b16 %v6750
    %v7433 = vunpack.c.h.b16 %v6750
    %v7434 = vunpack.c.l.b16 %v6751
    %v7435 = vunpack.c.h.b16 %v6751
    %v7436 = vunpack.c.l.b16 %v6752
    %v7437 = vunpack.c.l.b16 %v6753
    %v7438 = vunpack.c.h.b16 %v6753
    %v7439 = vunpack.c.l.b16 %v6754
    %v7440 = vunpack.c.h.b16 %v6754
    %v7441 = vunpack.c.l.b16 %v6755
    %v7442 = vunpack.c.h.b16 %v6755
    %v7443 = vunpack.c.l.b16 %v6756
    %v7444 = vunpack.c.l.b16 %v6757
    %v7445 = vunpack.c.h.b16 %v6757
    %v7446 = vunpack.c.l.b16 %v6758
    %v7447 = vunpack.c.h.b16 %v6758
    %v7448 = vunpack.c.l.b16 %v6759
    %v7449 = vunpack.c.h.b16 %v6759
    %v7450 = vunpack.c.l.b16 %v6760
    %v7451 = vunpack.c.l.b16 %v6761
    %v7452 = vunpack.c.h.b16 %v6761
    %v7453 = vunpack.c.l.b16 %v6762
    %v7454 = vunpack.c.h.b16 %v6762
    %v7455 = vunpack.c.l.b16 %v6763
    %v7456 = vunpack.c.h.b16 %v6763
    %v7457 = vunpack.c.l.b16 %v6764
    %v7458 = vunpack.c.l.b16 %v6765
    %v7459 = vunpack.c.h.b16 %v6765
    %v7460 = vunpack.c.l.b16 %v6766
    %v7461 = vunpack.c.h.b16 %v6766
    %v7462 = vunpack.c.l.b16 %v6767
    %v7463 = vunpack.c.h.b16 %v6767
    %v7464 = vunpack.c.l.b16 %v6768
    %v7465 = vunpack.c.l.b16 %v6769
    %v7466 = vunpack.c.h.b16 %v6769
    %v7467 = vunpack.c.l.b16 %v6770
    %v7468 = vunpack.c.h.b16 %v6770
    %v7469 = vunpack.c.l.b16 %v6771
    %v7470 = vunpack.c.h.b16 %v6771
    %v7471 = vunpack.c.l.b16 %v6772
    %v7472 = vunpack.c.l.b16 %v6773
    %v7473 = vunpack.c.h.b16 %v6773
    %v7474 = vunpack.c.l.b16 %v6774
    %v7475 = vunpack.c.h.b16 %v6774
    %v7476 = vunpack.c.l.b16 %v6775
    %v7477 = vunpack.c.h.b16 %v6775
    %v7478 = vunpack.c.l.b16 %v6776
    %v7479 = vunpack.c.l.b16 %v6777
    %v7480 = vunpack.c.h.b16 %v6777
    %v7481 = vunpack.c.l.b16 %v6778
    %v7482 = vunpack.c.h.b16 %v6778
    %v7483 = vunpack.c.l.b16 %v6779
    %v7484 = vunpack.c.h.b16 %v6779
    %v7485 = vunpack.c.l.b16 %v6780
    %v7486 = vunpack.c.l.b16 %v6781
    %v7487 = vunpack.c.h.b16 %v6781
    %v7488 = vunpack.c.l.b16 %v6782
    %v7489 = vunpack.c.h.b16 %v6782
    %v7490 = vunpack.c.l.b16 %v6783
    %v7491 = vunpack.c.h.b16 %v6783
    %v7492 = vunpack.c.l.b16 %v6784
    %v7493 = vunpack.c.l.b16 %v6785
    %v7494 = vunpack.c.h.b16 %v6785
    %v7495 = vunpack.c.l.b16 %v6786
    %v7496 = vunpack.c.h.b16 %v6786
    %v7497 = vunpack.c.l.b16 %v6787
    %v7498 = vunpack.c.h.b16 %v6787
    %v7499 = vunpack.c.l.b16 %v6788
    %v7500 = vunpack.c.l.b16 %v6789
    %v7501 = vunpack.c.h.b16 %v6789
    %v7502 = vunpack.c.l.b16 %v6790
    %v7503 = vunpack.c.h.b16 %v6790
    %v7504 = vunpack.c.l.b16 %v6791
    %v7505 = vunpack.c.h.b16 %v6791
    %v7506 = vunpack.c.l.b16 %v6792
    %v7507 = vunpack.c.l.b16 %v6793
    %v7508 = vunpack.c.h.b16 %v6793
    %v7509 = vunpack.c.l.b16 %v6794
    %v7510 = vunpack.c.h.b16 %v6794
    %v7511 = vunpack.c.l.b16 %v6795
    %v7512 = vunpack.c.h.b16 %v6795
    %v7513 = vunpack.c.l.b16 %v6796
    %v7514 = vunpack.c.l.b16 %v6797
    %v7515 = vunpack.c.h.b16 %v6797
    %v7516 = vunpack.c.l.b16 %v6798
    %v7517 = vunpack.c.h.b16 %v6798
    %v7518 = vunpack.c.l.b16 %v6799
    %v7519 = vunpack.c.h.b16 %v6799
    %v7520 = vunpack.c.l.b16 %v6800
    %v7521 = vunpack.c.l.b16 %v6801
    %v7522 = vunpack.c.h.b16 %v6801
    %v7523 = vunpack.c.l.b16 %v6802
    %v7524 = vunpack.c.h.b16 %v6802
    %v7525 = vunpack.c.l.b16 %v6803
    %v7526 = vunpack.c.h.b16 %v6803
    %v7527 = vunpack.c.l.b16 %v6804
    %v7528 = vunpack.c.l.b16 %v6805
    %v7529 = vunpack.c.h.b16 %v6805
    %v7530 = vunpack.c.l.b16 %v6806
    %v7531 = vunpack.c.h.b16 %v6806
    %v7532 = vunpack.c.l.b16 %v6807
    %v7533 = vunpack.c.h.b16 %v6807
    %v7534 = vunpack.c.l.b16 %v6808
    %v7535 = vunpack.c.l.b16 %v6809
    %v7536 = vunpack.c.h.b16 %v6809
    %v7537 = vunpack.c.l.b16 %v6810
    %v7538 = vunpack.c.h.b16 %v6810
    %v7539 = vunpack.c.l.b16 %v6811
    %v7540 = vunpack.c.h.b16 %v6811
    %v7541 = vunpack.c.l.b16 %v6812
    %v7542 = vunpack.c.l.b16 %v6813
    %v7543 = vunpack.c.h.b16 %v6813
    %v7544 = vunpack.c.l.b16 %v6814
    %v7545 = vunpack.c.h.b16 %v6814
    %v7546 = vunpack.c.l.b16 %v6815
    %v7547 = vunpack.c.h.b16 %v6815
    %v7548 = vunpack.c.l.b16 %v6816
    %v7549 = vunpack.c.l.b16 %v6817
    %v7550 = vunpack.c.h.b16 %v6817
    %v7551 = vunpack.c.l.b16 %v6818
    %v7552 = vunpack.c.h.b16 %v6818
    %v7553 = vunpack.c.l.b16 %v6819
    %v7554 = vunpack.c.h.b16 %v6819
    %v7555 = vunpack.c.l.b16 %v6820
    %v7556 = vunpack.c.l.b16 %v6821
    %v7557 = vunpack.c.h.b16 %v6821
    %v7558 = vunpack.c.l.b16 %v6822
    %v7559 = vunpack.c.h.b16 %v6822
    %v7560 = vunpack.c.l.b16 %v6823
    %v7561 = vunpack.c.h.b16 %v6823
    %v7562 = vunpack.c.l.b16 %v6824
    %v7563 = vunpack.c.l.b16 %v6825
    %v7564 = vunpack.c.h.b16 %v6825
    %v7565 = vunpack.c.l.b16 %v6826
    %v7566 = vunpack.c.h.b16 %v6826
    %v7567 = vunpack.c.l.b16 %v6827
    %v7568 = vunpack.c.h.b16 %v6827
    %v7569 = vunpack.c.l.b16 %v6828
    %v7570 = vpack.c.b16 %v7129, %v7122
    %v7571 = vpack.c.b16 %v7130, %v7123
    %v7572 = vpack.c.b16 %v7131, %v7124
    %v7573 = vpack.c.b16 %v7132, %v7125
    %v7574 = vpack.c.b16 %v7133, %v7126
    %v7575 = vpack.c.b16 %v7134, %v7127
    %v7576 = vpack.c.b16 %v7135, %v7128
    %v7577 = vpack.c.b16 %v7143, %v7136
    %v7578 = vpack.c.b16 %v7144, %v7137
    %v7579 = vpack.c.b16 %v7145, %v7138
    %v7580 = vpack.c.b16 %v7146, %v7139
    %v7581 = vpack.c.b16 %v7147, %v7140
    %v7582 = vpack.c.b16 %v7148, %v7141
    %v7583 = vpack.c.b16 %v7149, %v7142
    %v7584 = vpack.c.b16 %v7157, %v7150
    %v7585 = vpack.c.b16 %v7158, %v7151
    %v7586 = vpack.c.b16 %v7159, %v7152
    %v7587 = vpack.c.b16 %v7160, %v7153
    %v7588 = vpack.c.b16 %v7161, %v7154
    %v7589 = vpack.c.b16 %v7162, %v7155
    %v7590 = vpack.c.b16 %v7163, %v7156
    %v7591 = vpack.c.b16 %v7171, %v7164
    %v7592 = vpack.c.b16 %v7172, %v7165
    %v7593 = vpack.c.b16 %v7173, %v7166
    %v7594 = vpack.c.b16 %v7174, %v7167
    %v7595 = vpack.c.b16 %v7175, %v7168
    %v7596 = vpack.c.b16 %v7176, %v7169
    %v7597 = vpack.c.b16 %v7177, %v7170
    %v7598 = vpack.c.b16 %v7185, %v7178
    %v7599 = vpack.c.b16 %v7186, %v7179
    %v7600 = vpack.c.b16 %v7187, %v7180
    %v7601 = vpack.c.b16 %v7188, %v7181
    %v7602 = vpack.c.b16 %v7189, %v7182
    %v7603 = vpack.c.b16 %v7190, %v7183
    %v7604 = vpack.c.b16 %v7191, %v7184
    %v7605 = vpack.c.b16 %v7199, %v7192
    %v7606 = vpack.c.b16 %v7200, %v7193
    %v7607 = vpack.c.b16 %v7201, %v7194
    %v7608 = vpack.c.b16 %v7202, %v7195
    %v7609 = vpack.c.b16 %v7203, %v7196
    %v7610 = vpack.c.b16 %v7204, %v7197
    %v7611 = vpack.c.b16 %v7205, %v7198
    %v7612 = vpack.c.b16 %v7213, %v7206
    %v7613 = vpack.c.b16 %v7214, %v7207
    %v7614 = vpack.c.b16 %v7215, %v7208
    %v7615 = vpack.c.b16 %v7216, %v7209
    %v7616 = vpack.c.b16 %v7217, %v7210
    %v7617 = vpack.c.b16 %v7218, %v7211
    %v7618 = vpack.c.b16 %v7219, %v7212
    %v7619 = vpack.c.b16 %v7227, %v7220
    %v7620 = vpack.c.b16 %v7228, %v7221
    %v7621 = vpack.c.b16 %v7229, %v7222
    %v7622 = vpack.c.b16 %v7230, %v7223
    %v7623 = vpack.c.b16 %v7231, %v7224
    %v7624 = vpack.c.b16 %v7232, %v7225
    %v7625 = vpack.c.b16 %v7233, %v7226
    %v7626 = vpack.c.b16 %v7241, %v7234
    %v7627 = vpack.c.b16 %v7242, %v7235
    %v7628 = vpack.c.b16 %v7243, %v7236
    %v7629 = vpack.c.b16 %v7244, %v7237
    %v7630 = vpack.c.b16 %v7245, %v7238
    %v7631 = vpack.c.b16 %v7246, %v7239
    %v7632 = vpack.c.b16 %v7247, %v7240
    %v7633 = vpack.c.b16 %v7255, %v7248
    %v7634 = vpack.c.b16 %v7256, %v7249
    %v7635 = vpack.c.b16 %v7257, %v7250
    %v7636 = vpack.c.b16 %v7258, %v7251
    %v7637 = vpack.c.b16 %v7259, %v7252
    %v7638 = vpack.c.b16 %v7260, %v7253
    %v7639 = vpack.c.b16 %v7261, %v7254
    %v7640 = vpack.c.b16 %v7269, %v7262
    %v7641 = vpack.c.b16 %v7270, %v7263
    %v7642 = vpack.c.b16 %v7271, %v7264
    %v7643 = vpack.c.b16 %v7272, %v7265
    %v7644 = vpack.c.b16 %v7273, %v7266
    %v7645 = vpack.c.b16 %v7274, %v7267
    %v7646 = vpack.c.b16 %v7275, %v7268
    %v7647 = vpack.c.b16 %v7283, %v7276
    %v7648 = vpack.c.b16 %v7284, %v7277
    %v7649 = vpack.c.b16 %v7285, %v7278
    %v7650 = vpack.c.b16 %v7286, %v7279
    %v7651 = vpack.c.b16 %v7287, %v7280
    %v7652 = vpack.c.b16 %v7288, %v7281
    %v7653 = vpack.c.b16 %v7289, %v7282
    %v7654 = vpack.c.b16 %v7297, %v7290
    %v7655 = vpack.c.b16 %v7298, %v7291
    %v7656 = vpack.c.b16 %v7299, %v7292
    %v7657 = vpack.c.b16 %v7300, %v7293
    %v7658 = vpack.c.b16 %v7301, %v7294
    %v7659 = vpack.c.b16 %v7302, %v7295
    %v7660 = vpack.c.b16 %v7303, %v7296
    %v7661 = vpack.c.b16 %v7311, %v7304
    %v7662 = vpack.c.b16 %v7312, %v7305
    %v7663 = vpack.c.b16 %v7313, %v7306
    %v7664 = vpack.c.b16 %v7314, %v7307
    %v7665 = vpack.c.b16 %v7315, %v7308
    %v7666 = vpack.c.b16 %v7316, %v7309
    %v7667 = vpack.c.b16 %v7317, %v7310
    %v7668 = vpack.c.b16 %v7325, %v7318
    %v7669 = vpack.c.b16 %v7326, %v7319
    %v7670 = vpack.c.b16 %v7327, %v7320
    %v7671 = vpack.c.b16 %v7328, %v7321
    %v7672 = vpack.c.b16 %v7329, %v7322
    %v7673 = vpack.c.b16 %v7330, %v7323
    %v7674 = vpack.c.b16 %v7331, %v7324
    %v7675 = vpack.c.b16 %v7339, %v7332
    %v7676 = vpack.c.b16 %v7340, %v7333
    %v7677 = vpack.c.b16 %v7341, %v7334
    %v7678 = vpack.c.b16 %v7342, %v7335
    %v7679 = vpack.c.b16 %v7343, %v7336
    %v7680 = vpack.c.b16 %v7344, %v7337
    %v7681 = vpack.c.b16 %v7345, %v7338
    %v7682 = vpack.c.b16 %v7353, %v7346
    %v7683 = vpack.c.b16 %v7354, %v7347
    %v7684 = vpack.c.b16 %v7355, %v7348
    %v7685 = vpack.c.b16 %v7356, %v7349
    %v7686 = vpack.c.b16 %v7357, %v7350
    %v7687 = vpack.c.b16 %v7358, %v7351
    %v7688 = vpack.c.b16 %v7359, %v7352
    %v7689 = vpack.c.b16 %v7367, %v7360
    %v7690 = vpack.c.b16 %v7368, %v7361
    %v7691 = vpack.c.b16 %v7369, %v7362
    %v7692 = vpack.c.b16 %v7370, %v7363
    %v7693 = vpack.c.b16 %v7371, %v7364
    %v7694 = vpack.c.b16 %v7372, %v7365
    %v7695 = vpack.c.b16 %v7373, %v7366
    %v7696 = vpack.c.b16 %v7381, %v7374
    %v7697 = vpack.c.b16 %v7382, %v7375
    %v7698 = vpack.c.b16 %v7383, %v7376
    %v7699 = vpack.c.b16 %v7384, %v7377
    %v7700 = vpack.c.b16 %v7385, %v7378
    %v7701 = vpack.c.b16 %v7386, %v7379
    %v7702 = vpack.c.b16 %v7387, %v7380
    %v7703 = vpack.c.b16 %v7395, %v7388
    %v7704 = vpack.c.b16 %v7396, %v7389
    %v7705 = vpack.c.b16 %v7397, %v7390
    %v7706 = vpack.c.b16 %v7398, %v7391
    %v7707 = vpack.c.b16 %v7399, %v7392
    %v7708 = vpack.c.b16 %v7400, %v7393
    %v7709 = vpack.c.b16 %v7401, %v7394
    %v7710 = vpack.c.b16 %v7409, %v7402
    %v7711 = vpack.c.b16 %v7410, %v7403
    %v7712 = vpack.c.b16 %v7411, %v7404
    %v7713 = vpack.c.b16 %v7412, %v7405
    %v7714 = vpack.c.b16 %v7413, %v7406
    %v7715 = vpack.c.b16 %v7414, %v7407
    %v7716 = vpack.c.b16 %v7415, %v7408
    %v7717 = vpack.c.b16 %v7423, %v7416
    %v7718 = vpack.c.b16 %v7424, %v7417
    %v7719 = vpack.c.b16 %v7425, %v7418
    %v7720 = vpack.c.b16 %v7426, %v7419
    %v7721 = vpack.c.b16 %v7427, %v7420
    %v7722 = vpack.c.b16 %v7428, %v7421
    %v7723 = vpack.c.b16 %v7429, %v7422
    %v7724 = vpack.c.b16 %v7437, %v7430
    %v7725 = vpack.c.b16 %v7438, %v7431
    %v7726 = vpack.c.b16 %v7439, %v7432
    %v7727 = vpack.c.b16 %v7440, %v7433
    %v7728 = vpack.c.b16 %v7441, %v7434
    %v7729 = vpack.c.b16 %v7442, %v7435
    %v7730 = vpack.c.b16 %v7443, %v7436
    %v7731 = vpack.c.b16 %v7451, %v7444
    %v7732 = vpack.c.b16 %v7452, %v7445
    %v7733 = vpack.c.b16 %v7453, %v7446
    %v7734 = vpack.c.b16 %v7454, %v7447
    %v7735 = vpack.c.b16 %v7455, %v7448
    %v7736 = vpack.c.b16 %v7456, %v7449
    %v7737 = vpack.c.b16 %v7457, %v7450
    %v7738 = vpack.c.b16 %v7465, %v7458
    %v7739 = vpack.c.b16 %v7466, %v7459
    %v7740 = vpack.c.b16 %v7467, %v7460
    %v7741 = vpack.c.b16 %v7468, %v7461
    %v7742 = vpack.c.b16 %v7469, %v7462
    %v7743 = vpack.c.b16 %v7470, %v7463
    %v7744 = vpack.c.b16 %v7471, %v7464
    %v7745 = vpack.c.b16 %v7479, %v7472
    %v7746 = vpack.c.b16 %v7480, %v7473
    %v7747 = vpack.c.b16 %v7481, %v7474
    %v7748 = vpack.c.b16 %v7482, %v7475
    %v7749 = vpack.c.b16 %v7483, %v7476
    %v7750 = vpack.c.b16 %v7484, %v7477
    %v7751 = vpack.c.b16 %v7485, %v7478
    %v7752 = vpack.c.b16 %v7493, %v7486
    %v7753 = vpack.c.b16 %v7494, %v7487
    %v7754 = vpack.c.b16 %v7495, %v7488
    %v7755 = vpack.c.b16 %v7496, %v7489
    %v7756 = vpack.c.b16 %v7497, %v7490
    %v7757 = vpack.c.b16 %v7498, %v7491
    %v7758 = vpack.c.b16 %v7499, %v7492
    %v7759 = vpack.c.b16 %v7507, %v7500
    %v7760 = vpack.c.b16 %v7508, %v7501
    %v7761 = vpack.c.b16 %v7509, %v7502
    %v7762 = vpack.c.b16 %v7510, %v7503
    %v7763 = vpack.c.b16 %v7511, %v7504
    %v7764 = vpack.c.b16 %v7512, %v7505
    %v7765 = vpack.c.b16 %v7513, %v7506
    %v7766 = vpack.c.b16 %v7521, %v7514
    %v7767 = vpack.c.b16 %v7522, %v7515
    %v7768 = vpack.c.b16 %v7523, %v7516
    %v7769 = vpack.c.b16 %v7524, %v7517
    %v7770 = vpack.c.b16 %v7525, %v7518
    %v7771 = vpack.c.b16 %v7526, %v7519
    %v7772 = vpack.c.b16 %v7527, %v7520
    %v7773 = vpack.c.b16 %v7535, %v7528
    %v7774 = vpack.c.b16 %v7536, %v7529
    %v7775 = vpack.c.b16 %v7537, %v7530
    %v7776 = vpack.c.b16 %v7538, %v7531
    %v7777 = vpack.c.b16 %v7539, %v7532
    %v7778 = vpack.c.b16 %v7540, %v7533
    %v7779 = vpack.c.b16 %v7541, %v7534
    %v7780 = vpack.c.b16 %v7549, %v7542
    %v7781 = vpack.c.b16 %v7550, %v7543
    %v7782 = vpack.c.b16 %v7551, %v7544
    %v7783 = vpack.c.b16 %v7552, %v7545
    %v7784 = vpack.c.b16 %v7553, %v7546
    %v7785 = vpack.c.b16 %v7554, %v7547
    %v7786 = vpack.c.b16 %v7555, %v7548
    %v7787 = vpack.c.b16 %v7563, %v7556
    %v7788 = vpack.c.b16 %v7564, %v7557
    %v7789 = vpack.c.b16 %v7565, %v7558
    %v7790 = vpack.c.b16 %v7566, %v7559
    %v7791 = vpack.c.b16 %v7567, %v7560
    %v7792 = vpack.c.b16 %v7568, %v7561
    %v7793 = vpack.c.b16 %v7569, %v7562
    %8018 = vmatprep.subr.bf16.mxu0 %v7620
    %8019 = vmatpush1.bf16.msra.mxu0 %v7619
    %8020 = vmatprep.subr.bf16.mxu0 %v7613
    %8021 = vmatpush1.bf16.msra.mxu0 %v7612
    %8022 = vmatprep.subr.bf16.mxu0 %v7606
    %8023 = vmatpush1.bf16.msra.mxu0 %v7605
    %8024 = vmatprep.subr.bf16.mxu0 %v7599
    %8025 = vmatpush1.bf16.msra.mxu0 %v7598
    %8026 = vmatprep.subr.bf16.mxu0 %v7592
    %8027 = vmatpush1.bf16.msra.mxu0 %v7591
    %8028 = vmatprep.subr.bf16.mxu0 %v7585
    %8029 = vmatpush1.bf16.msra.mxu0 %v7584
    %8030 = vmatprep.subr.bf16.mxu0 %v7578
    %8031 = vmatpush1.bf16.msra.mxu0 %v7577
    %8032 = vmatprep.subr.bf16.mxu0 %v7571
    %8033 = vmatpush1.bf16.msra.mxu0 %v7570
    %8034 = vmatprep.subr.bf16.mxu0 %v7676
    %8035 = vmatpush2.bf16.msra.mxu0 %v7675
    %8036 = vmatprep.subr.bf16.mxu0 %v7669
    %8037 = vmatpush2.bf16.msra.mxu0 %v7668
    %8038 = vmatprep.subr.bf16.mxu0 %v7662
    %8039 = vmatpush2.bf16.msra.mxu0 %v7661
    %8040 = vmatprep.subr.bf16.mxu0 %v7655
    %8041 = vmatpush2.bf16.msra.mxu0 %v7654
    %8042 = vmatprep.subr.bf16.mxu0 %v7648
    %8043 = vmatpush2.bf16.msra.mxu0 %v7647
    %8044 = vmatprep.subr.bf16.mxu0 %v7641
    %8045 = vmatpush2.bf16.msra.mxu0 %v7640
    %8046 = vmatprep.subr.bf16.mxu0 %v7634
    %8047 = vmatpush2.bf16.msra.mxu0 %v7633
    %8048 = vmatprep.subr.bf16.mxu0 %v7627
    %8049 = vmatpush2.bf16.msra.mxu0 %v7626
    %8050 = vmatprep.mubr.bf16.mxu0 %v6510
    %8051 = vmatmul.mubr.bf16.gmra.mxu0 %v6509
    %v8052 = vpop.f32.mrf.mxu0
    %v8053 = vadd.f32 %v6834, %v8052
    %v8054 = vpop.f32.mrf.mxu0
    %v8055 = vadd.f32 %v6838, %v8054
    %v8056 = vpop.f32.mrf.mxu0
    %v8057 = vadd.f32 %v6834, %v8056
    %v8058 = vpop.f32.mrf.mxu0
    %v8059 = vadd.f32 %v6838, %v8058
    %8060 = vmatprep.mubr.bf16.mxu0 %v6514
    %8061 = vmatmul.mubr.bf16.gmra.mxu0 %v6513
    %v8062 = vpop.f32.mrf.mxu0
    %v8063 = vadd.f32 %v6834, %v8062
    %v8064 = vpop.f32.mrf.mxu0
    %v8065 = vadd.f32 %v6838, %v8064
    %v8066 = vpop.f32.mrf.mxu0
    %v8067 = vadd.f32 %v6834, %v8066
    %v8068 = vpop.f32.mrf.mxu0
    %v8069 = vadd.f32 %v6838, %v8068
    %8070 = vmatprep.mubr.bf16.mxu0 %v6518
    %8071 = vmatmul.mubr.bf16.gmra.mxu0 %v6517
    %v8072 = vpop.f32.mrf.mxu0
    %v8073 = vadd.f32 %v6834, %v8072
    %v8074 = vpop.f32.mrf.mxu0
    %v8075 = vadd.f32 %v6838, %v8074
    %v8076 = vpop.f32.mrf.mxu0
    %v8077 = vadd.f32 %v6834, %v8076
    %v8078 = vpop.f32.mrf.mxu0
    %v8079 = vadd.f32 %v6838, %v8078
    %8080 = vmatprep.mubr.bf16.mxu0 %v6522
    %8081 = vmatmul.mubr.bf16.gmra.mxu0 %v6521
    %v8082 = vpop.f32.mrf.mxu0
    %v8083 = vadd.f32 %v6834, %v8082
    %v8084 = vpop.f32.mrf.mxu0
    %v8085 = vadd.f32 %v6838, %v8084
    %v8086 = vpop.f32.mrf.mxu0
    %v8087 = vadd.f32 %v6834, %v8086
    %v8088 = vpop.f32.mrf.mxu0
    %v8089 = vadd.f32 %v6838, %v8088
    %8090 = vmatprep.mubr.bf16.mxu0 %v6526
    %8091 = vmatmul.mubr.bf16.gmra.mxu0 %v6525
    %v8092 = vpop.f32.mrf.mxu0
    %v8093 = vadd.f32 %v6834, %v8092
    %v8094 = vpop.f32.mrf.mxu0
    %v8095 = vadd.f32 %v6838, %v8094
    %v8096 = vpop.f32.mrf.mxu0
    %v8097 = vadd.f32 %v6834, %v8096
    %v8098 = vpop.f32.mrf.mxu0
    %v8099 = vadd.f32 %v6838, %v8098
    %8100 = vmatprep.mubr.bf16.mxu0 %v6530
    %8101 = vmatmul.mubr.bf16.gmra.mxu0 %v6529
    %v8102 = vpop.f32.mrf.mxu0
    %v8103 = vadd.f32 %v6834, %v8102
    %v8104 = vpop.f32.mrf.mxu0
    %v8105 = vadd.f32 %v6838, %v8104
    %v8106 = vpop.f32.mrf.mxu0
    %v8107 = vadd.f32 %v6834, %v8106
    %v8108 = vpop.f32.mrf.mxu0
    %v8109 = vadd.f32 %v6838, %v8108
    %8110 = vmatprep.mubr.bf16.mxu0 %v6534
    %8111 = vmatmul.mubr.bf16.gmra.mxu0 %v6533
    %v8112 = vpop.f32.mrf.mxu0
    %v8113 = vadd.f32 %v6834, %v8112
    %v8114 = vpop.f32.mrf.mxu0
    %v8115 = vadd.f32 %v6838, %v8114
    %v8116 = vpop.f32.mrf.mxu0
    %v8117 = vadd.f32 %v6834, %v8116
    %v8118 = vpop.f32.mrf.mxu0
    %v8119 = vadd.f32 %v6838, %v8118
    %8120 = vmatprep.mubr.bf16.mxu0 %v6538
    %8121 = vmatmul.mubr.bf16.gmra.mxu0 %v6537
    %v8122 = vpop.f32.mrf.mxu0
    %v8123 = vadd.f32 %v6834, %v8122
    %v8124 = vpop.f32.mrf.mxu0
    %v8125 = vadd.f32 %v6838, %v8124
    %v8126 = vpop.f32.mrf.mxu0
    %v8127 = vadd.f32 %v6834, %v8126
    %v8128 = vpop.f32.mrf.mxu0
    %v8129 = vadd.f32 %v6838, %v8128
    %8130 = vmatprep.mubr.bf16.mxu0 %v6542
    %8131 = vmatmul.mubr.bf16.gmra.mxu0 %v6541
    %v8132 = vpop.f32.mrf.mxu0
    %v8133 = vadd.f32 %v6834, %v8132
    %v8134 = vpop.f32.mrf.mxu0
    %v8135 = vadd.f32 %v6838, %v8134
    %v8136 = vpop.f32.mrf.mxu0
    %v8137 = vadd.f32 %v6834, %v8136
    %v8138 = vpop.f32.mrf.mxu0
    %v8139 = vadd.f32 %v6838, %v8138
    %8140 = vmatprep.mubr.bf16.mxu0 %v6546
    %8141 = vmatmul.mubr.bf16.gmra.mxu0 %v6545
    %v8142 = vpop.f32.mrf.mxu0
    %v8143 = vadd.f32 %v6834, %v8142
    %v8144 = vpop.f32.mrf.mxu0
    %v8145 = vadd.f32 %v6838, %v8144
    %v8146 = vpop.f32.mrf.mxu0
    %v8147 = vadd.f32 %v6834, %v8146
    %v8148 = vpop.f32.mrf.mxu0
    %v8149 = vadd.f32 %v6838, %v8148
    %8150 = vmatprep.mubr.bf16.mxu0 %v6550
    %8151 = vmatmul.mubr.bf16.gmra.mxu0 %v6549
    %v8152 = vpop.f32.mrf.mxu0
    %v8153 = vadd.f32 %v6834, %v8152
    %v8154 = vpop.f32.mrf.mxu0
    %v8155 = vadd.f32 %v6838, %v8154
    %v8156 = vpop.f32.mrf.mxu0
    %v8157 = vadd.f32 %v6834, %v8156
    %v8158 = vpop.f32.mrf.mxu0
    %v8159 = vadd.f32 %v6838, %v8158
    %8160 = vmatprep.mubr.bf16.mxu0 %v6554
    %8161 = vmatmul.mubr.bf16.gmra.mxu0 %v6553
    %v8162 = vpop.f32.mrf.mxu0
    %v8163 = vadd.f32 %v6834, %v8162
    %v8164 = vpop.f32.mrf.mxu0
    %v8165 = vadd.f32 %v6838, %v8164
    %v8166 = vpop.f32.mrf.mxu0
    %v8167 = vadd.f32 %v6834, %v8166
    %v8168 = vpop.f32.mrf.mxu0
    %v8169 = vadd.f32 %v6838, %v8168
    %8170 = vmatprep.mubr.bf16.mxu0 %v6558
    %8171 = vmatmul.mubr.bf16.gmra.mxu0 %v6557
    %v8172 = vpop.f32.mrf.mxu0
    %v8173 = vadd.f32 %v6834, %v8172
    %v8174 = vpop.f32.mrf.mxu0
    %v8175 = vadd.f32 %v6838, %v8174
    %v8176 = vpop.f32.mrf.mxu0
    %v8177 = vadd.f32 %v6834, %v8176
    %v8178 = vpop.f32.mrf.mxu0
    %v8179 = vadd.f32 %v6838, %v8178
    %8180 = vmatprep.mubr.bf16.mxu0 %v6562
    %8181 = vmatmul.mubr.bf16.gmra.mxu0 %v6561
    %v8182 = vpop.f32.mrf.mxu0
    %v8183 = vadd.f32 %v6834, %v8182
    %v8184 = vpop.f32.mrf.mxu0
    %v8185 = vadd.f32 %v6838, %v8184
    %v8186 = vpop.f32.mrf.mxu0
    %v8187 = vadd.f32 %v6834, %v8186
    %v8188 = vpop.f32.mrf.mxu0
    %v8189 = vadd.f32 %v6838, %v8188
    %8190 = vmatprep.mubr.bf16.mxu0 %v6566
    %8191 = vmatmul.mubr.bf16.gmra.mxu0 %v6565
    %v8192 = vpop.f32.mrf.mxu0
    %v8193 = vadd.f32 %v6834, %v8192
    %v8194 = vpop.f32.mrf.mxu0
    %v8195 = vadd.f32 %v6838, %v8194
    %v8196 = vpop.f32.mrf.mxu0
    %v8197 = vadd.f32 %v6834, %v8196
    %v8198 = vpop.f32.mrf.mxu0
    %v8199 = vadd.f32 %v6838, %v8198
    %8200 = vmatprep.mubr.bf16.mxu0 %v6570
    %8201 = vmatmul.mubr.bf16.gmra.mxu0 %v6569
    %v8202 = vpop.f32.mrf.mxu0
    %v8203 = vadd.f32 %v6834, %v8202
    %v8204 = vpop.f32.mrf.mxu0
    %v8205 = vadd.f32 %v6838, %v8204
    %v8206 = vpop.f32.mrf.mxu0
    %v8207 = vadd.f32 %v6834, %v8206
    %v8208 = vpop.f32.mrf.mxu0
    %v8209 = vadd.f32 %v6838, %v8208
    %8210 = vdwg.mxu0
    %8211 = vmatprep.subr.bf16.mxu0 %v7732
    %8212 = vmatpush1.bf16.msra.mxu0 %v7731
    %8213 = vmatprep.subr.bf16.mxu0 %v7725
    %8214 = vmatpush1.bf16.msra.mxu0 %v7724
    %8215 = vmatprep.subr.bf16.mxu0 %v7718
    %8216 = vmatpush1.bf16.msra.mxu0 %v7717
    %8217 = vmatprep.subr.bf16.mxu0 %v7711
    %8218 = vmatpush1.bf16.msra.mxu0 %v7710
    %8219 = vmatprep.subr.bf16.mxu0 %v7704
    %8220 = vmatpush1.bf16.msra.mxu0 %v7703
    %8221 = vmatprep.subr.bf16.mxu0 %v7697
    %8222 = vmatpush1.bf16.msra.mxu0 %v7696
    %8223 = vmatprep.subr.bf16.mxu0 %v7690
    %8224 = vmatpush1.bf16.msra.mxu0 %v7689
    %8225 = vmatprep.subr.bf16.mxu0 %v7683
    %8226 = vmatpush1.bf16.msra.mxu0 %v7682
    %8227 = vmatprep.subr.bf16.mxu0 %v7788
    %8228 = vmatpush2.bf16.msra.mxu0 %v7787
    %8229 = vmatprep.subr.bf16.mxu0 %v7781
    %8230 = vmatpush2.bf16.msra.mxu0 %v7780
    %8231 = vmatprep.subr.bf16.mxu0 %v7774
    %8232 = vmatpush2.bf16.msra.mxu0 %v7773
    %8233 = vmatprep.subr.bf16.mxu0 %v7767
    %8234 = vmatpush2.bf16.msra.mxu0 %v7766
    %8235 = vmatprep.subr.bf16.mxu0 %v7760
    %8236 = vmatpush2.bf16.msra.mxu0 %v7759
    %8237 = vmatprep.subr.bf16.mxu0 %v7753
    %8238 = vmatpush2.bf16.msra.mxu0 %v7752
    %8239 = vmatprep.subr.bf16.mxu0 %v7746
    %8240 = vmatpush2.bf16.msra.mxu0 %v7745
    %8241 = vmatprep.subr.bf16.mxu0 %v7739
    %8242 = vmatpush2.bf16.msra.mxu0 %v7738
    %8243 = vmatprep.mubr.bf16.mxu0 %v6512
    %8244 = vmatmul.mubr.bf16.gmra.mxu0 %v6511
    %v8245 = vpop.f32.mrf.mxu0
    %v8246 = vadd.f32 %v8053, %v8245
    %v8247 = vpop.f32.mrf.mxu0
    %v8248 = vadd.f32 %v8055, %v8247
    %v8249 = vpop.f32.mrf.mxu0
    %v8250 = vadd.f32 %v8057, %v8249
    %v8251 = vpop.f32.mrf.mxu0
    %v8252 = vadd.f32 %v8059, %v8251
    %8253 = vmatprep.mubr.bf16.mxu0 %v6516
    %8254 = vmatmul.mubr.bf16.gmra.mxu0 %v6515
    %v8255 = vpop.f32.mrf.mxu0
    %v8256 = vadd.f32 %v8063, %v8255
    %v8257 = vpop.f32.mrf.mxu0
    %v8258 = vadd.f32 %v8065, %v8257
    %v8259 = vpop.f32.mrf.mxu0
    %v8260 = vadd.f32 %v8067, %v8259
    %v8261 = vpop.f32.mrf.mxu0
    %v8262 = vadd.f32 %v8069, %v8261
    %8263 = vmatprep.mubr.bf16.mxu0 %v6520
    %8264 = vmatmul.mubr.bf16.gmra.mxu0 %v6519
    %v8265 = vpop.f32.mrf.mxu0
    %v8266 = vadd.f32 %v8073, %v8265
    %v8267 = vpop.f32.mrf.mxu0
    %v8268 = vadd.f32 %v8075, %v8267
    %v8269 = vpop.f32.mrf.mxu0
    %v8270 = vadd.f32 %v8077, %v8269
    %v8271 = vpop.f32.mrf.mxu0
    %v8272 = vadd.f32 %v8079, %v8271
    %8273 = vmatprep.mubr.bf16.mxu0 %v6524
    %8274 = vmatmul.mubr.bf16.gmra.mxu0 %v6523
    %v8275 = vpop.f32.mrf.mxu0
    %v8276 = vadd.f32 %v8083, %v8275
    %v8277 = vpop.f32.mrf.mxu0
    %v8278 = vadd.f32 %v8085, %v8277
    %v8279 = vpop.f32.mrf.mxu0
    %v8280 = vadd.f32 %v8087, %v8279
    %v8281 = vpop.f32.mrf.mxu0
    %v8282 = vadd.f32 %v8089, %v8281
    %8283 = vmatprep.mubr.bf16.mxu0 %v6528
    %8284 = vmatmul.mubr.bf16.gmra.mxu0 %v6527
    %v8285 = vpop.f32.mrf.mxu0
    %v8286 = vadd.f32 %v8093, %v8285
    %v8287 = vpop.f32.mrf.mxu0
    %v8288 = vadd.f32 %v8095, %v8287
    %v8289 = vpop.f32.mrf.mxu0
    %v8290 = vadd.f32 %v8097, %v8289
    %v8291 = vpop.f32.mrf.mxu0
    %v8292 = vadd.f32 %v8099, %v8291
    %8293 = vmatprep.mubr.bf16.mxu0 %v6532
    %8294 = vmatmul.mubr.bf16.gmra.mxu0 %v6531
    %v8295 = vpop.f32.mrf.mxu0
    %v8296 = vadd.f32 %v8103, %v8295
    %v8297 = vpop.f32.mrf.mxu0
    %v8298 = vadd.f32 %v8105, %v8297
    %v8299 = vpop.f32.mrf.mxu0
    %v8300 = vadd.f32 %v8107, %v8299
    %v8301 = vpop.f32.mrf.mxu0
    %v8302 = vadd.f32 %v8109, %v8301
    %8303 = vmatprep.mubr.bf16.mxu0 %v6536
    %8304 = vmatmul.mubr.bf16.gmra.mxu0 %v6535
    %v8305 = vpop.f32.mrf.mxu0
    %v8306 = vadd.f32 %v8113, %v8305
    %v8307 = vpop.f32.mrf.mxu0
    %v8308 = vadd.f32 %v8115, %v8307
    %v8309 = vpop.f32.mrf.mxu0
    %v8310 = vadd.f32 %v8117, %v8309
    %v8311 = vpop.f32.mrf.mxu0
    %v8312 = vadd.f32 %v8119, %v8311
    %8313 = vmatprep.mubr.bf16.mxu0 %v6540
    %8314 = vmatmul.mubr.bf16.gmra.mxu0 %v6539
    %v8315 = vpop.f32.mrf.mxu0
    %v8316 = vadd.f32 %v8123, %v8315
    %v8317 = vpop.f32.mrf.mxu0
    %v8318 = vadd.f32 %v8125, %v8317
    %v8319 = vpop.f32.mrf.mxu0
    %v8320 = vadd.f32 %v8127, %v8319
    %v8321 = vpop.f32.mrf.mxu0
    %v8322 = vadd.f32 %v8129, %v8321
    %8323 = vmatprep.mubr.bf16.mxu0 %v6544
    %8324 = vmatmul.mubr.bf16.gmra.mxu0 %v6543
    %v8325 = vpop.f32.mrf.mxu0
    %v8326 = vadd.f32 %v8133, %v8325
    %v8327 = vpop.f32.mrf.mxu0
    %v8328 = vadd.f32 %v8135, %v8327
    %v8329 = vpop.f32.mrf.mxu0
    %v8330 = vadd.f32 %v8137, %v8329
    %v8331 = vpop.f32.mrf.mxu0
    %v8332 = vadd.f32 %v8139, %v8331
    %8333 = vmatprep.mubr.bf16.mxu0 %v6548
    %8334 = vmatmul.mubr.bf16.gmra.mxu0 %v6547
    %v8335 = vpop.f32.mrf.mxu0
    %v8336 = vadd.f32 %v8143, %v8335
    %v8337 = vpop.f32.mrf.mxu0
    %v8338 = vadd.f32 %v8145, %v8337
    %v8339 = vpop.f32.mrf.mxu0
    %v8340 = vadd.f32 %v8147, %v8339
    %v8341 = vpop.f32.mrf.mxu0
    %v8342 = vadd.f32 %v8149, %v8341
    %8343 = vmatprep.mubr.bf16.mxu0 %v6552
    %8344 = vmatmul.mubr.bf16.gmra.mxu0 %v6551
    %v8345 = vpop.f32.mrf.mxu0
    %v8346 = vadd.f32 %v8153, %v8345
    %v8347 = vpop.f32.mrf.mxu0
    %v8348 = vadd.f32 %v8155, %v8347
    %v8349 = vpop.f32.mrf.mxu0
    %v8350 = vadd.f32 %v8157, %v8349
    %v8351 = vpop.f32.mrf.mxu0
    %v8352 = vadd.f32 %v8159, %v8351
    %8353 = vmatprep.mubr.bf16.mxu0 %v6556
    %8354 = vmatmul.mubr.bf16.gmra.mxu0 %v6555
    %v8355 = vpop.f32.mrf.mxu0
    %v8356 = vadd.f32 %v8163, %v8355
    %v8357 = vpop.f32.mrf.mxu0
    %v8358 = vadd.f32 %v8165, %v8357
    %v8359 = vpop.f32.mrf.mxu0
    %v8360 = vadd.f32 %v8167, %v8359
    %v8361 = vpop.f32.mrf.mxu0
    %v8362 = vadd.f32 %v8169, %v8361
    %8363 = vmatprep.mubr.bf16.mxu0 %v6560
    %8364 = vmatmul.mubr.bf16.gmra.mxu0 %v6559
    %v8365 = vpop.f32.mrf.mxu0
    %v8366 = vadd.f32 %v8173, %v8365
    %v8367 = vpop.f32.mrf.mxu0
    %v8368 = vadd.f32 %v8175, %v8367
    %v8369 = vpop.f32.mrf.mxu0
    %v8370 = vadd.f32 %v8177, %v8369
    %v8371 = vpop.f32.mrf.mxu0
    %v8372 = vadd.f32 %v8179, %v8371
    %8373 = vmatprep.mubr.bf16.mxu0 %v6564
    %8374 = vmatmul.mubr.bf16.gmra.mxu0 %v6563
    %v8375 = vpop.f32.mrf.mxu0
    %v8376 = vadd.f32 %v8183, %v8375
    %v8377 = vpop.f32.mrf.mxu0
    %v8378 = vadd.f32 %v8185, %v8377
    %v8379 = vpop.f32.mrf.mxu0
    %v8380 = vadd.f32 %v8187, %v8379
    %v8381 = vpop.f32.mrf.mxu0
    %v8382 = vadd.f32 %v8189, %v8381
    %8383 = vmatprep.mubr.bf16.mxu0 %v6568
    %8384 = vmatmul.mubr.bf16.gmra.mxu0 %v6567
    %v8385 = vpop.f32.mrf.mxu0
    %v8386 = vadd.f32 %v8193, %v8385
    %v8387 = vpop.f32.mrf.mxu0
    %v8388 = vadd.f32 %v8195, %v8387
    %v8389 = vpop.f32.mrf.mxu0
    %v8390 = vadd.f32 %v8197, %v8389
    %v8391 = vpop.f32.mrf.mxu0
    %v8392 = vadd.f32 %v8199, %v8391
    %8393 = vmatprep.mubr.bf16.mxu0 %v6572
    %8394 = vmatmul.mubr.bf16.gmra.mxu0 %v6571
    %v8395 = vpop.f32.mrf.mxu0
    %v8396 = vadd.f32 %v8203, %v8395
    %v8397 = vpop.f32.mrf.mxu0
    %v8398 = vadd.f32 %v8205, %v8397
    %v8399 = vpop.f32.mrf.mxu0
    %v8400 = vadd.f32 %v8207, %v8399
    %v8401 = vpop.f32.mrf.mxu0
    %v8402 = vadd.f32 %v8209, %v8401
    %8403 = vdwg.mxu0
    %8404 = vmatprep.subr.bf16.mxu0 %v7622
    %8405 = vmatpush1.bf16.msra.mxu0 %v7621
    %8406 = vmatprep.subr.bf16.mxu0 %v7615
    %8407 = vmatpush1.bf16.msra.mxu0 %v7614
    %8408 = vmatprep.subr.bf16.mxu0 %v7608
    %8409 = vmatpush1.bf16.msra.mxu0 %v7607
    %8410 = vmatprep.subr.bf16.mxu0 %v7601
    %8411 = vmatpush1.bf16.msra.mxu0 %v7600
    %8412 = vmatprep.subr.bf16.mxu0 %v7594
    %8413 = vmatpush1.bf16.msra.mxu0 %v7593
    %8414 = vmatprep.subr.bf16.mxu0 %v7587
    %8415 = vmatpush1.bf16.msra.mxu0 %v7586
    %8416 = vmatprep.subr.bf16.mxu0 %v7580
    %8417 = vmatpush1.bf16.msra.mxu0 %v7579
    %8418 = vmatprep.subr.bf16.mxu0 %v7573
    %8419 = vmatpush1.bf16.msra.mxu0 %v7572
    %8420 = vmatprep.subr.bf16.mxu0 %v7678
    %8421 = vmatpush2.bf16.msra.mxu0 %v7677
    %8422 = vmatprep.subr.bf16.mxu0 %v7671
    %8423 = vmatpush2.bf16.msra.mxu0 %v7670
    %8424 = vmatprep.subr.bf16.mxu0 %v7664
    %8425 = vmatpush2.bf16.msra.mxu0 %v7663
    %8426 = vmatprep.subr.bf16.mxu0 %v7657
    %8427 = vmatpush2.bf16.msra.mxu0 %v7656
    %8428 = vmatprep.subr.bf16.mxu0 %v7650
    %8429 = vmatpush2.bf16.msra.mxu0 %v7649
    %8430 = vmatprep.subr.bf16.mxu0 %v7643
    %8431 = vmatpush2.bf16.msra.mxu0 %v7642
    %8432 = vmatprep.subr.bf16.mxu0 %v7636
    %8433 = vmatpush2.bf16.msra.mxu0 %v7635
    %8434 = vmatprep.subr.bf16.mxu0 %v7629
    %8435 = vmatpush2.bf16.msra.mxu0 %v7628
    %8436 = vmatprep.mubr.bf16.mxu0 %v6510
    %8437 = vmatmul.mubr.bf16.gmra.mxu0 %v6509
    %v8438 = vpop.f32.mrf.mxu0
    %v8439 = vadd.f32 %v6842, %v8438
    %v8440 = vpop.f32.mrf.mxu0
    %v8441 = vadd.f32 %v6846, %v8440
    %v8442 = vpop.f32.mrf.mxu0
    %v8443 = vadd.f32 %v6842, %v8442
    %v8444 = vpop.f32.mrf.mxu0
    %v8445 = vadd.f32 %v6846, %v8444
    %8446 = vmatprep.mubr.bf16.mxu0 %v6514
    %8447 = vmatmul.mubr.bf16.gmra.mxu0 %v6513
    %v8448 = vpop.f32.mrf.mxu0
    %v8449 = vadd.f32 %v6842, %v8448
    %v8450 = vpop.f32.mrf.mxu0
    %v8451 = vadd.f32 %v6846, %v8450
    %v8452 = vpop.f32.mrf.mxu0
    %v8453 = vadd.f32 %v6842, %v8452
    %v8454 = vpop.f32.mrf.mxu0
    %v8455 = vadd.f32 %v6846, %v8454
    %8456 = vmatprep.mubr.bf16.mxu0 %v6518
    %8457 = vmatmul.mubr.bf16.gmra.mxu0 %v6517
    %v8458 = vpop.f32.mrf.mxu0
    %v8459 = vadd.f32 %v6842, %v8458
    %v8460 = vpop.f32.mrf.mxu0
    %v8461 = vadd.f32 %v6846, %v8460
    %v8462 = vpop.f32.mrf.mxu0
    %v8463 = vadd.f32 %v6842, %v8462
    %v8464 = vpop.f32.mrf.mxu0
    %v8465 = vadd.f32 %v6846, %v8464
    %8466 = vmatprep.mubr.bf16.mxu0 %v6522
    %8467 = vmatmul.mubr.bf16.gmra.mxu0 %v6521
    %v8468 = vpop.f32.mrf.mxu0
    %v8469 = vadd.f32 %v6842, %v8468
    %v8470 = vpop.f32.mrf.mxu0
    %v8471 = vadd.f32 %v6846, %v8470
    %v8472 = vpop.f32.mrf.mxu0
    %v8473 = vadd.f32 %v6842, %v8472
    %v8474 = vpop.f32.mrf.mxu0
    %v8475 = vadd.f32 %v6846, %v8474
    %8476 = vmatprep.mubr.bf16.mxu0 %v6526
    %8477 = vmatmul.mubr.bf16.gmra.mxu0 %v6525
    %v8478 = vpop.f32.mrf.mxu0
    %v8479 = vadd.f32 %v6842, %v8478
    %v8480 = vpop.f32.mrf.mxu0
    %v8481 = vadd.f32 %v6846, %v8480
    %v8482 = vpop.f32.mrf.mxu0
    %v8483 = vadd.f32 %v6842, %v8482
    %v8484 = vpop.f32.mrf.mxu0
    %v8485 = vadd.f32 %v6846, %v8484
    %8486 = vmatprep.mubr.bf16.mxu0 %v6530
    %8487 = vmatmul.mubr.bf16.gmra.mxu0 %v6529
    %v8488 = vpop.f32.mrf.mxu0
    %v8489 = vadd.f32 %v6842, %v8488
    %v8490 = vpop.f32.mrf.mxu0
    %v8491 = vadd.f32 %v6846, %v8490
    %v8492 = vpop.f32.mrf.mxu0
    %v8493 = vadd.f32 %v6842, %v8492
    %v8494 = vpop.f32.mrf.mxu0
    %v8495 = vadd.f32 %v6846, %v8494
    %8496 = vmatprep.mubr.bf16.mxu0 %v6534
    %8497 = vmatmul.mubr.bf16.gmra.mxu0 %v6533
    %v8498 = vpop.f32.mrf.mxu0
    %v8499 = vadd.f32 %v6842, %v8498
    %v8500 = vpop.f32.mrf.mxu0
    %v8501 = vadd.f32 %v6846, %v8500
    %v8502 = vpop.f32.mrf.mxu0
    %v8503 = vadd.f32 %v6842, %v8502
    %v8504 = vpop.f32.mrf.mxu0
    %v8505 = vadd.f32 %v6846, %v8504
    %8506 = vmatprep.mubr.bf16.mxu0 %v6538
    %8507 = vmatmul.mubr.bf16.gmra.mxu0 %v6537
    %v8508 = vpop.f32.mrf.mxu0
    %v8509 = vadd.f32 %v6842, %v8508
    %v8510 = vpop.f32.mrf.mxu0
    %v8511 = vadd.f32 %v6846, %v8510
    %v8512 = vpop.f32.mrf.mxu0
    %v8513 = vadd.f32 %v6842, %v8512
    %v8514 = vpop.f32.mrf.mxu0
    %v8515 = vadd.f32 %v6846, %v8514
    %8516 = vmatprep.mubr.bf16.mxu0 %v6542
    %8517 = vmatmul.mubr.bf16.gmra.mxu0 %v6541
    %v8518 = vpop.f32.mrf.mxu0
    %v8519 = vadd.f32 %v6842, %v8518
    %v8520 = vpop.f32.mrf.mxu0
    %v8521 = vadd.f32 %v6846, %v8520
    %v8522 = vpop.f32.mrf.mxu0
    %v8523 = vadd.f32 %v6842, %v8522
    %v8524 = vpop.f32.mrf.mxu0
    %v8525 = vadd.f32 %v6846, %v8524
    %8526 = vmatprep.mubr.bf16.mxu0 %v6546
    %8527 = vmatmul.mubr.bf16.gmra.mxu0 %v6545
    %v8528 = vpop.f32.mrf.mxu0
    %v8529 = vadd.f32 %v6842, %v8528
    %v8530 = vpop.f32.mrf.mxu0
    %v8531 = vadd.f32 %v6846, %v8530
    %v8532 = vpop.f32.mrf.mxu0
    %v8533 = vadd.f32 %v6842, %v8532
    %v8534 = vpop.f32.mrf.mxu0
    %v8535 = vadd.f32 %v6846, %v8534
    %8536 = vmatprep.mubr.bf16.mxu0 %v6550
    %8537 = vmatmul.mubr.bf16.gmra.mxu0 %v6549
    %v8538 = vpop.f32.mrf.mxu0
    %v8539 = vadd.f32 %v6842, %v8538
    %v8540 = vpop.f32.mrf.mxu0
    %v8541 = vadd.f32 %v6846, %v8540
    %v8542 = vpop.f32.mrf.mxu0
    %v8543 = vadd.f32 %v6842, %v8542
    %v8544 = vpop.f32.mrf.mxu0
    %v8545 = vadd.f32 %v6846, %v8544
    %8546 = vmatprep.mubr.bf16.mxu0 %v6554
    %8547 = vmatmul.mubr.bf16.gmra.mxu0 %v6553
    %v8548 = vpop.f32.mrf.mxu0
    %v8549 = vadd.f32 %v6842, %v8548
    %v8550 = vpop.f32.mrf.mxu0
    %v8551 = vadd.f32 %v6846, %v8550
    %v8552 = vpop.f32.mrf.mxu0
    %v8553 = vadd.f32 %v6842, %v8552
    %v8554 = vpop.f32.mrf.mxu0
    %v8555 = vadd.f32 %v6846, %v8554
    %8556 = vmatprep.mubr.bf16.mxu0 %v6558
    %8557 = vmatmul.mubr.bf16.gmra.mxu0 %v6557
    %v8558 = vpop.f32.mrf.mxu0
    %v8559 = vadd.f32 %v6842, %v8558
    %v8560 = vpop.f32.mrf.mxu0
    %v8561 = vadd.f32 %v6846, %v8560
    %v8562 = vpop.f32.mrf.mxu0
    %v8563 = vadd.f32 %v6842, %v8562
    %v8564 = vpop.f32.mrf.mxu0
    %v8565 = vadd.f32 %v6846, %v8564
    %8566 = vmatprep.mubr.bf16.mxu0 %v6562
    %8567 = vmatmul.mubr.bf16.gmra.mxu0 %v6561
    %v8568 = vpop.f32.mrf.mxu0
    %v8569 = vadd.f32 %v6842, %v8568
    %v8570 = vpop.f32.mrf.mxu0
    %v8571 = vadd.f32 %v6846, %v8570
    %v8572 = vpop.f32.mrf.mxu0
    %v8573 = vadd.f32 %v6842, %v8572
    %v8574 = vpop.f32.mrf.mxu0
    %v8575 = vadd.f32 %v6846, %v8574
    %8576 = vmatprep.mubr.bf16.mxu0 %v6566
    %8577 = vmatmul.mubr.bf16.gmra.mxu0 %v6565
    %v8578 = vpop.f32.mrf.mxu0
    %v8579 = vadd.f32 %v6842, %v8578
    %v8580 = vpop.f32.mrf.mxu0
    %v8581 = vadd.f32 %v6846, %v8580
    %v8582 = vpop.f32.mrf.mxu0
    %v8583 = vadd.f32 %v6842, %v8582
    %v8584 = vpop.f32.mrf.mxu0
    %v8585 = vadd.f32 %v6846, %v8584
    %8586 = vmatprep.mubr.bf16.mxu0 %v6570
    %8587 = vmatmul.mubr.bf16.gmra.mxu0 %v6569
    %v8588 = vpop.f32.mrf.mxu0
    %v8589 = vadd.f32 %v6842, %v8588
    %v8590 = vpop.f32.mrf.mxu0
    %v8591 = vadd.f32 %v6846, %v8590
    %v8592 = vpop.f32.mrf.mxu0
    %v8593 = vadd.f32 %v6842, %v8592
    %v8594 = vpop.f32.mrf.mxu0
    %v8595 = vadd.f32 %v6846, %v8594
    %8596 = vdwg.mxu0
    %8597 = vmatprep.subr.bf16.mxu0 %v7734
    %8598 = vmatpush1.bf16.msra.mxu0 %v7733
    %8599 = vmatprep.subr.bf16.mxu0 %v7727
    %8600 = vmatpush1.bf16.msra.mxu0 %v7726
    %8601 = vmatprep.subr.bf16.mxu0 %v7720
    %8602 = vmatpush1.bf16.msra.mxu0 %v7719
    %8603 = vmatprep.subr.bf16.mxu0 %v7713
    %8604 = vmatpush1.bf16.msra.mxu0 %v7712
    %8605 = vmatprep.subr.bf16.mxu0 %v7706
    %8606 = vmatpush1.bf16.msra.mxu0 %v7705
    %8607 = vmatprep.subr.bf16.mxu0 %v7699
    %8608 = vmatpush1.bf16.msra.mxu0 %v7698
    %8609 = vmatprep.subr.bf16.mxu0 %v7692
    %8610 = vmatpush1.bf16.msra.mxu0 %v7691
    %8611 = vmatprep.subr.bf16.mxu0 %v7685
    %8612 = vmatpush1.bf16.msra.mxu0 %v7684
    %8613 = vmatprep.subr.bf16.mxu0 %v7790
    %8614 = vmatpush2.bf16.msra.mxu0 %v7789
    %8615 = vmatprep.subr.bf16.mxu0 %v7783
    %8616 = vmatpush2.bf16.msra.mxu0 %v7782
    %8617 = vmatprep.subr.bf16.mxu0 %v7776
    %8618 = vmatpush2.bf16.msra.mxu0 %v7775
    %8619 = vmatprep.subr.bf16.mxu0 %v7769
    %8620 = vmatpush2.bf16.msra.mxu0 %v7768
    %8621 = vmatprep.subr.bf16.mxu0 %v7762
    %8622 = vmatpush2.bf16.msra.mxu0 %v7761
    %8623 = vmatprep.subr.bf16.mxu0 %v7755
    %8624 = vmatpush2.bf16.msra.mxu0 %v7754
    %8625 = vmatprep.subr.bf16.mxu0 %v7748
    %8626 = vmatpush2.bf16.msra.mxu0 %v7747
    %8627 = vmatprep.subr.bf16.mxu0 %v7741
    %8628 = vmatpush2.bf16.msra.mxu0 %v7740
    %8629 = vmatprep.mubr.bf16.mxu0 %v6512
    %8630 = vmatmul.mubr.bf16.gmra.mxu0 %v6511
    %v8631 = vpop.f32.mrf.mxu0
    %v8632 = vadd.f32 %v8439, %v8631
    %v8633 = vpop.f32.mrf.mxu0
    %v8634 = vadd.f32 %v8441, %v8633
    %v8635 = vpop.f32.mrf.mxu0
    %v8636 = vadd.f32 %v8443, %v8635
    %v8637 = vpop.f32.mrf.mxu0
    %v8638 = vadd.f32 %v8445, %v8637
    %8639 = vmatprep.mubr.bf16.mxu0 %v6516
    %8640 = vmatmul.mubr.bf16.gmra.mxu0 %v6515
    %v8641 = vpop.f32.mrf.mxu0
    %v8642 = vadd.f32 %v8449, %v8641
    %v8643 = vpop.f32.mrf.mxu0
    %v8644 = vadd.f32 %v8451, %v8643
    %v8645 = vpop.f32.mrf.mxu0
    %v8646 = vadd.f32 %v8453, %v8645
    %v8647 = vpop.f32.mrf.mxu0
    %v8648 = vadd.f32 %v8455, %v8647
    %8649 = vmatprep.mubr.bf16.mxu0 %v6520
    %8650 = vmatmul.mubr.bf16.gmra.mxu0 %v6519
    %v8651 = vpop.f32.mrf.mxu0
    %v8652 = vadd.f32 %v8459, %v8651
    %v8653 = vpop.f32.mrf.mxu0
    %v8654 = vadd.f32 %v8461, %v8653
    %v8655 = vpop.f32.mrf.mxu0
    %v8656 = vadd.f32 %v8463, %v8655
    %v8657 = vpop.f32.mrf.mxu0
    %v8658 = vadd.f32 %v8465, %v8657
    %8659 = vmatprep.mubr.bf16.mxu0 %v6524
    %8660 = vmatmul.mubr.bf16.gmra.mxu0 %v6523
    %v8661 = vpop.f32.mrf.mxu0
    %v8662 = vadd.f32 %v8469, %v8661
    %v8663 = vpop.f32.mrf.mxu0
    %v8664 = vadd.f32 %v8471, %v8663
    %v8665 = vpop.f32.mrf.mxu0
    %v8666 = vadd.f32 %v8473, %v8665
    %v8667 = vpop.f32.mrf.mxu0
    %v8668 = vadd.f32 %v8475, %v8667
    %8669 = vmatprep.mubr.bf16.mxu0 %v6528
    %8670 = vmatmul.mubr.bf16.gmra.mxu0 %v6527
    %v8671 = vpop.f32.mrf.mxu0
    %v8672 = vadd.f32 %v8479, %v8671
    %v8673 = vpop.f32.mrf.mxu0
    %v8674 = vadd.f32 %v8481, %v8673
    %v8675 = vpop.f32.mrf.mxu0
    %v8676 = vadd.f32 %v8483, %v8675
    %v8677 = vpop.f32.mrf.mxu0
    %v8678 = vadd.f32 %v8485, %v8677
    %8679 = vmatprep.mubr.bf16.mxu0 %v6532
    %8680 = vmatmul.mubr.bf16.gmra.mxu0 %v6531
    %v8681 = vpop.f32.mrf.mxu0
    %v8682 = vadd.f32 %v8489, %v8681
    %v8683 = vpop.f32.mrf.mxu0
    %v8684 = vadd.f32 %v8491, %v8683
    %v8685 = vpop.f32.mrf.mxu0
    %v8686 = vadd.f32 %v8493, %v8685
    %v8687 = vpop.f32.mrf.mxu0
    %v8688 = vadd.f32 %v8495, %v8687
    %8689 = vmatprep.mubr.bf16.mxu0 %v6536
    %8690 = vmatmul.mubr.bf16.gmra.mxu0 %v6535
    %v8691 = vpop.f32.mrf.mxu0
    %v8692 = vadd.f32 %v8499, %v8691
    %v8693 = vpop.f32.mrf.mxu0
    %v8694 = vadd.f32 %v8501, %v8693
    %v8695 = vpop.f32.mrf.mxu0
    %v8696 = vadd.f32 %v8503, %v8695
    %v8697 = vpop.f32.mrf.mxu0
    %v8698 = vadd.f32 %v8505, %v8697
    %8699 = vmatprep.mubr.bf16.mxu0 %v6540
    %8700 = vmatmul.mubr.bf16.gmra.mxu0 %v6539
    %v8701 = vpop.f32.mrf.mxu0
    %v8702 = vadd.f32 %v8509, %v8701
    %v8703 = vpop.f32.mrf.mxu0
    %v8704 = vadd.f32 %v8511, %v8703
    %v8705 = vpop.f32.mrf.mxu0
    %v8706 = vadd.f32 %v8513, %v8705
    %v8707 = vpop.f32.mrf.mxu0
    %v8708 = vadd.f32 %v8515, %v8707
    %8709 = vmatprep.mubr.bf16.mxu0 %v6544
    %8710 = vmatmul.mubr.bf16.gmra.mxu0 %v6543
    %v8711 = vpop.f32.mrf.mxu0
    %v8712 = vadd.f32 %v8519, %v8711
    %v8713 = vpop.f32.mrf.mxu0
    %v8714 = vadd.f32 %v8521, %v8713
    %v8715 = vpop.f32.mrf.mxu0
    %v8716 = vadd.f32 %v8523, %v8715
    %v8717 = vpop.f32.mrf.mxu0
    %v8718 = vadd.f32 %v8525, %v8717
    %8719 = vmatprep.mubr.bf16.mxu0 %v6548
    %8720 = vmatmul.mubr.bf16.gmra.mxu0 %v6547
    %v8721 = vpop.f32.mrf.mxu0
    %v8722 = vadd.f32 %v8529, %v8721
    %v8723 = vpop.f32.mrf.mxu0
    %v8724 = vadd.f32 %v8531, %v8723
    %v8725 = vpop.f32.mrf.mxu0
    %v8726 = vadd.f32 %v8533, %v8725
    %v8727 = vpop.f32.mrf.mxu0
    %v8728 = vadd.f32 %v8535, %v8727
    %8729 = vmatprep.mubr.bf16.mxu0 %v6552
    %8730 = vmatmul.mubr.bf16.gmra.mxu0 %v6551
    %v8731 = vpop.f32.mrf.mxu0
    %v8732 = vadd.f32 %v8539, %v8731
    %v8733 = vpop.f32.mrf.mxu0
    %v8734 = vadd.f32 %v8541, %v8733
    %v8735 = vpop.f32.mrf.mxu0
    %v8736 = vadd.f32 %v8543, %v8735
    %v8737 = vpop.f32.mrf.mxu0
    %v8738 = vadd.f32 %v8545, %v8737
    %8739 = vmatprep.mubr.bf16.mxu0 %v6556
    %8740 = vmatmul.mubr.bf16.gmra.mxu0 %v6555
    %v8741 = vpop.f32.mrf.mxu0
    %v8742 = vadd.f32 %v8549, %v8741
    %v8743 = vpop.f32.mrf.mxu0
    %v8744 = vadd.f32 %v8551, %v8743
    %v8745 = vpop.f32.mrf.mxu0
    %v8746 = vadd.f32 %v8553, %v8745
    %v8747 = vpop.f32.mrf.mxu0
    %v8748 = vadd.f32 %v8555, %v8747
    %8749 = vmatprep.mubr.bf16.mxu0 %v6560
    %8750 = vmatmul.mubr.bf16.gmra.mxu0 %v6559
    %v8751 = vpop.f32.mrf.mxu0
    %v8752 = vadd.f32 %v8559, %v8751
    %v8753 = vpop.f32.mrf.mxu0
    %v8754 = vadd.f32 %v8561, %v8753
    %v8755 = vpop.f32.mrf.mxu0
    %v8756 = vadd.f32 %v8563, %v8755
    %v8757 = vpop.f32.mrf.mxu0
    %v8758 = vadd.f32 %v8565, %v8757
    %8759 = vmatprep.mubr.bf16.mxu0 %v6564
    %8760 = vmatmul.mubr.bf16.gmra.mxu0 %v6563
    %v8761 = vpop.f32.mrf.mxu0
    %v8762 = vadd.f32 %v8569, %v8761
    %v8763 = vpop.f32.mrf.mxu0
    %v8764 = vadd.f32 %v8571, %v8763
    %v8765 = vpop.f32.mrf.mxu0
    %v8766 = vadd.f32 %v8573, %v8765
    %v8767 = vpop.f32.mrf.mxu0
    %v8768 = vadd.f32 %v8575, %v8767
    %8769 = vmatprep.mubr.bf16.mxu0 %v6568
    %8770 = vmatmul.mubr.bf16.gmra.mxu0 %v6567
    %v8771 = vpop.f32.mrf.mxu0
    %v8772 = vadd.f32 %v8579, %v8771
    %v8773 = vpop.f32.mrf.mxu0
    %v8774 = vadd.f32 %v8581, %v8773
    %v8775 = vpop.f32.mrf.mxu0
    %v8776 = vadd.f32 %v8583, %v8775
    %v8777 = vpop.f32.mrf.mxu0
    %v8778 = vadd.f32 %v8585, %v8777
    %8779 = vmatprep.mubr.bf16.mxu0 %v6572
    %8780 = vmatmul.mubr.bf16.gmra.mxu0 %v6571
    %v8781 = vpop.f32.mrf.mxu0
    %v8782 = vadd.f32 %v8589, %v8781
    %v8783 = vpop.f32.mrf.mxu0
    %v8784 = vadd.f32 %v8591, %v8783
    %v8785 = vpop.f32.mrf.mxu0
    %v8786 = vadd.f32 %v8593, %v8785
    %v8787 = vpop.f32.mrf.mxu0
    %v8788 = vadd.f32 %v8595, %v8787
    %8789 = vdwg.mxu0
    %8790 = vmatprep.subr.bf16.mxu0 %v7624
    %8791 = vmatpush1.bf16.msra.mxu0 %v7623
    %8792 = vmatprep.subr.bf16.mxu0 %v7617
    %8793 = vmatpush1.bf16.msra.mxu0 %v7616
    %8794 = vmatprep.subr.bf16.mxu0 %v7610
    %8795 = vmatpush1.bf16.msra.mxu0 %v7609
    %8796 = vmatprep.subr.bf16.mxu0 %v7603
    %8797 = vmatpush1.bf16.msra.mxu0 %v7602
    %8798 = vmatprep.subr.bf16.mxu0 %v7596
    %8799 = vmatpush1.bf16.msra.mxu0 %v7595
    %8800 = vmatprep.subr.bf16.mxu0 %v7589
    %8801 = vmatpush1.bf16.msra.mxu0 %v7588
    %8802 = vmatprep.subr.bf16.mxu0 %v7582
    %8803 = vmatpush1.bf16.msra.mxu0 %v7581
    %8804 = vmatprep.subr.bf16.mxu0 %v7575
    %8805 = vmatpush1.bf16.msra.mxu0 %v7574
    %8806 = vmatprep.subr.bf16.mxu0 %v7680
    %8807 = vmatpush2.bf16.msra.mxu0 %v7679
    %8808 = vmatprep.subr.bf16.mxu0 %v7673
    %8809 = vmatpush2.bf16.msra.mxu0 %v7672
    %8810 = vmatprep.subr.bf16.mxu0 %v7666
    %8811 = vmatpush2.bf16.msra.mxu0 %v7665
    %8812 = vmatprep.subr.bf16.mxu0 %v7659
    %8813 = vmatpush2.bf16.msra.mxu0 %v7658
    %8814 = vmatprep.subr.bf16.mxu0 %v7652
    %8815 = vmatpush2.bf16.msra.mxu0 %v7651
    %8816 = vmatprep.subr.bf16.mxu0 %v7645
    %8817 = vmatpush2.bf16.msra.mxu0 %v7644
    %8818 = vmatprep.subr.bf16.mxu0 %v7638
    %8819 = vmatpush2.bf16.msra.mxu0 %v7637
    %8820 = vmatprep.subr.bf16.mxu0 %v7631
    %8821 = vmatpush2.bf16.msra.mxu0 %v7630
    %8822 = vmatprep.mubr.bf16.mxu0 %v6510
    %8823 = vmatmul.mubr.bf16.gmra.mxu0 %v6509
    %v8824 = vpop.f32.mrf.mxu0
    %v8825 = vadd.f32 %v6850, %v8824
    %v8826 = vpop.f32.mrf.mxu0
    %v8827 = vadd.f32 %v6854, %v8826
    %v8828 = vpop.f32.mrf.mxu0
    %v8829 = vadd.f32 %v6850, %v8828
    %v8830 = vpop.f32.mrf.mxu0
    %v8831 = vadd.f32 %v6854, %v8830
    %8832 = vmatprep.mubr.bf16.mxu0 %v6514
    %8833 = vmatmul.mubr.bf16.gmra.mxu0 %v6513
    %v8834 = vpop.f32.mrf.mxu0
    %v8835 = vadd.f32 %v6850, %v8834
    %v8836 = vpop.f32.mrf.mxu0
    %v8837 = vadd.f32 %v6854, %v8836
    %v8838 = vpop.f32.mrf.mxu0
    %v8839 = vadd.f32 %v6850, %v8838
    %v8840 = vpop.f32.mrf.mxu0
    %v8841 = vadd.f32 %v6854, %v8840
    %8842 = vmatprep.mubr.bf16.mxu0 %v6518
    %8843 = vmatmul.mubr.bf16.gmra.mxu0 %v6517
    %v8844 = vpop.f32.mrf.mxu0
    %v8845 = vadd.f32 %v6850, %v8844
    %v8846 = vpop.f32.mrf.mxu0
    %v8847 = vadd.f32 %v6854, %v8846
    %v8848 = vpop.f32.mrf.mxu0
    %v8849 = vadd.f32 %v6850, %v8848
    %v8850 = vpop.f32.mrf.mxu0
    %v8851 = vadd.f32 %v6854, %v8850
    %8852 = vmatprep.mubr.bf16.mxu0 %v6522
    %8853 = vmatmul.mubr.bf16.gmra.mxu0 %v6521
    %v8854 = vpop.f32.mrf.mxu0
    %v8855 = vadd.f32 %v6850, %v8854
    %v8856 = vpop.f32.mrf.mxu0
    %v8857 = vadd.f32 %v6854, %v8856
    %v8858 = vpop.f32.mrf.mxu0
    %v8859 = vadd.f32 %v6850, %v8858
    %v8860 = vpop.f32.mrf.mxu0
    %v8861 = vadd.f32 %v6854, %v8860
    %8862 = vmatprep.mubr.bf16.mxu0 %v6526
    %8863 = vmatmul.mubr.bf16.gmra.mxu0 %v6525
    %v8864 = vpop.f32.mrf.mxu0
    %v8865 = vadd.f32 %v6850, %v8864
    %v8866 = vpop.f32.mrf.mxu0
    %v8867 = vadd.f32 %v6854, %v8866
    %v8868 = vpop.f32.mrf.mxu0
    %v8869 = vadd.f32 %v6850, %v8868
    %v8870 = vpop.f32.mrf.mxu0
    %v8871 = vadd.f32 %v6854, %v8870
    %8872 = vmatprep.mubr.bf16.mxu0 %v6530
    %8873 = vmatmul.mubr.bf16.gmra.mxu0 %v6529
    %v8874 = vpop.f32.mrf.mxu0
    %v8875 = vadd.f32 %v6850, %v8874
    %v8876 = vpop.f32.mrf.mxu0
    %v8877 = vadd.f32 %v6854, %v8876
    %v8878 = vpop.f32.mrf.mxu0
    %v8879 = vadd.f32 %v6850, %v8878
    %v8880 = vpop.f32.mrf.mxu0
    %v8881 = vadd.f32 %v6854, %v8880
    %8882 = vmatprep.mubr.bf16.mxu0 %v6534
    %8883 = vmatmul.mubr.bf16.gmra.mxu0 %v6533
    %v8884 = vpop.f32.mrf.mxu0
    %v8885 = vadd.f32 %v6850, %v8884
    %v8886 = vpop.f32.mrf.mxu0
    %v8887 = vadd.f32 %v6854, %v8886
    %v8888 = vpop.f32.mrf.mxu0
    %v8889 = vadd.f32 %v6850, %v8888
    %v8890 = vpop.f32.mrf.mxu0
    %v8891 = vadd.f32 %v6854, %v8890
    %8892 = vmatprep.mubr.bf16.mxu0 %v6538
    %8893 = vmatmul.mubr.bf16.gmra.mxu0 %v6537
    %v8894 = vpop.f32.mrf.mxu0
    %v8895 = vadd.f32 %v6850, %v8894
    %v8896 = vpop.f32.mrf.mxu0
    %v8897 = vadd.f32 %v6854, %v8896
    %v8898 = vpop.f32.mrf.mxu0
    %v8899 = vadd.f32 %v6850, %v8898
    %v8900 = vpop.f32.mrf.mxu0
    %v8901 = vadd.f32 %v6854, %v8900
    %8902 = vmatprep.mubr.bf16.mxu0 %v6542
    %8903 = vmatmul.mubr.bf16.gmra.mxu0 %v6541
    %v8904 = vpop.f32.mrf.mxu0
    %v8905 = vadd.f32 %v6850, %v8904
    %v8906 = vpop.f32.mrf.mxu0
    %v8907 = vadd.f32 %v6854, %v8906
    %v8908 = vpop.f32.mrf.mxu0
    %v8909 = vadd.f32 %v6850, %v8908
    %v8910 = vpop.f32.mrf.mxu0
    %v8911 = vadd.f32 %v6854, %v8910
    %8912 = vmatprep.mubr.bf16.mxu0 %v6546
    %8913 = vmatmul.mubr.bf16.gmra.mxu0 %v6545
    %v8914 = vpop.f32.mrf.mxu0
    %v8915 = vadd.f32 %v6850, %v8914
    %v8916 = vpop.f32.mrf.mxu0
    %v8917 = vadd.f32 %v6854, %v8916
    %v8918 = vpop.f32.mrf.mxu0
    %v8919 = vadd.f32 %v6850, %v8918
    %v8920 = vpop.f32.mrf.mxu0
    %v8921 = vadd.f32 %v6854, %v8920
    %8922 = vmatprep.mubr.bf16.mxu0 %v6550
    %8923 = vmatmul.mubr.bf16.gmra.mxu0 %v6549
    %v8924 = vpop.f32.mrf.mxu0
    %v8925 = vadd.f32 %v6850, %v8924
    %v8926 = vpop.f32.mrf.mxu0
    %v8927 = vadd.f32 %v6854, %v8926
    %v8928 = vpop.f32.mrf.mxu0
    %v8929 = vadd.f32 %v6850, %v8928
    %v8930 = vpop.f32.mrf.mxu0
    %v8931 = vadd.f32 %v6854, %v8930
    %8932 = vmatprep.mubr.bf16.mxu0 %v6554
    %8933 = vmatmul.mubr.bf16.gmra.mxu0 %v6553
    %v8934 = vpop.f32.mrf.mxu0
    %v8935 = vadd.f32 %v6850, %v8934
    %v8936 = vpop.f32.mrf.mxu0
    %v8937 = vadd.f32 %v6854, %v8936
    %v8938 = vpop.f32.mrf.mxu0
    %v8939 = vadd.f32 %v6850, %v8938
    %v8940 = vpop.f32.mrf.mxu0
    %v8941 = vadd.f32 %v6854, %v8940
    %8942 = vmatprep.mubr.bf16.mxu0 %v6558
    %8943 = vmatmul.mubr.bf16.gmra.mxu0 %v6557
    %v8944 = vpop.f32.mrf.mxu0
    %v8945 = vadd.f32 %v6850, %v8944
    %v8946 = vpop.f32.mrf.mxu0
    %v8947 = vadd.f32 %v6854, %v8946
    %v8948 = vpop.f32.mrf.mxu0
    %v8949 = vadd.f32 %v6850, %v8948
    %v8950 = vpop.f32.mrf.mxu0
    %v8951 = vadd.f32 %v6854, %v8950
    %8952 = vmatprep.mubr.bf16.mxu0 %v6562
    %8953 = vmatmul.mubr.bf16.gmra.mxu0 %v6561
    %v8954 = vpop.f32.mrf.mxu0
    %v8955 = vadd.f32 %v6850, %v8954
    %v8956 = vpop.f32.mrf.mxu0
    %v8957 = vadd.f32 %v6854, %v8956
    %v8958 = vpop.f32.mrf.mxu0
    %v8959 = vadd.f32 %v6850, %v8958
    %v8960 = vpop.f32.mrf.mxu0
    %v8961 = vadd.f32 %v6854, %v8960
    %8962 = vmatprep.mubr.bf16.mxu0 %v6566
    %8963 = vmatmul.mubr.bf16.gmra.mxu0 %v6565
    %v8964 = vpop.f32.mrf.mxu0
    %v8965 = vadd.f32 %v6850, %v8964
    %v8966 = vpop.f32.mrf.mxu0
    %v8967 = vadd.f32 %v6854, %v8966
    %v8968 = vpop.f32.mrf.mxu0
    %v8969 = vadd.f32 %v6850, %v8968
    %v8970 = vpop.f32.mrf.mxu0
    %v8971 = vadd.f32 %v6854, %v8970
    %8972 = vmatprep.mubr.bf16.mxu0 %v6570
    %8973 = vmatmul.mubr.bf16.gmra.mxu0 %v6569
    %v8974 = vpop.f32.mrf.mxu0
    %v8975 = vadd.f32 %v6850, %v8974
    %v8976 = vpop.f32.mrf.mxu0
    %v8977 = vadd.f32 %v6854, %v8976
    %v8978 = vpop.f32.mrf.mxu0
    %v8979 = vadd.f32 %v6850, %v8978
    %v8980 = vpop.f32.mrf.mxu0
    %v8981 = vadd.f32 %v6854, %v8980
    %8982 = vdwg.mxu0
    %8983 = vmatprep.subr.bf16.mxu0 %v7736
    %8984 = vmatpush1.bf16.msra.mxu0 %v7735
    %8985 = vmatprep.subr.bf16.mxu0 %v7729
    %8986 = vmatpush1.bf16.msra.mxu0 %v7728
    %8987 = vmatprep.subr.bf16.mxu0 %v7722
    %8988 = vmatpush1.bf16.msra.mxu0 %v7721
    %8989 = vmatprep.subr.bf16.mxu0 %v7715
    %8990 = vmatpush1.bf16.msra.mxu0 %v7714
    %8991 = vmatprep.subr.bf16.mxu0 %v7708
    %8992 = vmatpush1.bf16.msra.mxu0 %v7707
    %8993 = vmatprep.subr.bf16.mxu0 %v7701
    %8994 = vmatpush1.bf16.msra.mxu0 %v7700
    %8995 = vmatprep.subr.bf16.mxu0 %v7694
    %8996 = vmatpush1.bf16.msra.mxu0 %v7693
    %8997 = vmatprep.subr.bf16.mxu0 %v7687
    %8998 = vmatpush1.bf16.msra.mxu0 %v7686
    %8999 = vmatprep.subr.bf16.mxu0 %v7792
    %9000 = vmatpush2.bf16.msra.mxu0 %v7791
    %9001 = vmatprep.subr.bf16.mxu0 %v7785
    %9002 = vmatpush2.bf16.msra.mxu0 %v7784
    %9003 = vmatprep.subr.bf16.mxu0 %v7778
    %9004 = vmatpush2.bf16.msra.mxu0 %v7777
    %9005 = vmatprep.subr.bf16.mxu0 %v7771
    %9006 = vmatpush2.bf16.msra.mxu0 %v7770
    %9007 = vmatprep.subr.bf16.mxu0 %v7764
    %9008 = vmatpush2.bf16.msra.mxu0 %v7763
    %9009 = vmatprep.subr.bf16.mxu0 %v7757
    %9010 = vmatpush2.bf16.msra.mxu0 %v7756
    %9011 = vmatprep.subr.bf16.mxu0 %v7750
    %9012 = vmatpush2.bf16.msra.mxu0 %v7749
    %9013 = vmatprep.subr.bf16.mxu0 %v7743
    %9014 = vmatpush2.bf16.msra.mxu0 %v7742
    %9015 = vmatprep.mubr.bf16.mxu0 %v6512
    %9016 = vmatmul.mubr.bf16.gmra.mxu0 %v6511
    %v9017 = vpop.f32.mrf.mxu0
    %v9018 = vadd.f32 %v8825, %v9017
    %v9019 = vpop.f32.mrf.mxu0
    %v9020 = vadd.f32 %v8827, %v9019
    %v9021 = vpop.f32.mrf.mxu0
    %v9022 = vadd.f32 %v8829, %v9021
    %v9023 = vpop.f32.mrf.mxu0
    %v9024 = vadd.f32 %v8831, %v9023
    %9025 = vmatprep.mubr.bf16.mxu0 %v6516
    %9026 = vmatmul.mubr.bf16.gmra.mxu0 %v6515
    %v9027 = vpop.f32.mrf.mxu0
    %v9028 = vadd.f32 %v8835, %v9027
    %v9029 = vpop.f32.mrf.mxu0
    %v9030 = vadd.f32 %v8837, %v9029
    %v9031 = vpop.f32.mrf.mxu0
    %v9032 = vadd.f32 %v8839, %v9031
    %v9033 = vpop.f32.mrf.mxu0
    %v9034 = vadd.f32 %v8841, %v9033
    %9035 = vmatprep.mubr.bf16.mxu0 %v6520
    %9036 = vmatmul.mubr.bf16.gmra.mxu0 %v6519
    %v9037 = vpop.f32.mrf.mxu0
    %v9038 = vadd.f32 %v8845, %v9037
    %v9039 = vpop.f32.mrf.mxu0
    %v9040 = vadd.f32 %v8847, %v9039
    %v9041 = vpop.f32.mrf.mxu0
    %v9042 = vadd.f32 %v8849, %v9041
    %v9043 = vpop.f32.mrf.mxu0
    %v9044 = vadd.f32 %v8851, %v9043
    %9045 = vmatprep.mubr.bf16.mxu0 %v6524
    %9046 = vmatmul.mubr.bf16.gmra.mxu0 %v6523
    %v9047 = vpop.f32.mrf.mxu0
    %v9048 = vadd.f32 %v8855, %v9047
    %v9049 = vpop.f32.mrf.mxu0
    %v9050 = vadd.f32 %v8857, %v9049
    %v9051 = vpop.f32.mrf.mxu0
    %v9052 = vadd.f32 %v8859, %v9051
    %v9053 = vpop.f32.mrf.mxu0
    %v9054 = vadd.f32 %v8861, %v9053
    %9055 = vmatprep.mubr.bf16.mxu0 %v6528
    %9056 = vmatmul.mubr.bf16.gmra.mxu0 %v6527
    %v9057 = vpop.f32.mrf.mxu0
    %v9058 = vadd.f32 %v8865, %v9057
    %v9059 = vpop.f32.mrf.mxu0
    %v9060 = vadd.f32 %v8867, %v9059
    %v9061 = vpop.f32.mrf.mxu0
    %v9062 = vadd.f32 %v8869, %v9061
    %v9063 = vpop.f32.mrf.mxu0
    %v9064 = vadd.f32 %v8871, %v9063
    %9065 = vmatprep.mubr.bf16.mxu0 %v6532
    %9066 = vmatmul.mubr.bf16.gmra.mxu0 %v6531
    %v9067 = vpop.f32.mrf.mxu0
    %v9068 = vadd.f32 %v8875, %v9067
    %v9069 = vpop.f32.mrf.mxu0
    %v9070 = vadd.f32 %v8877, %v9069
    %v9071 = vpop.f32.mrf.mxu0
    %v9072 = vadd.f32 %v8879, %v9071
    %v9073 = vpop.f32.mrf.mxu0
    %v9074 = vadd.f32 %v8881, %v9073
    %9075 = vmatprep.mubr.bf16.mxu0 %v6536
    %9076 = vmatmul.mubr.bf16.gmra.mxu0 %v6535
    %v9077 = vpop.f32.mrf.mxu0
    %v9078 = vadd.f32 %v8885, %v9077
    %v9079 = vpop.f32.mrf.mxu0
    %v9080 = vadd.f32 %v8887, %v9079
    %v9081 = vpop.f32.mrf.mxu0
    %v9082 = vadd.f32 %v8889, %v9081
    %v9083 = vpop.f32.mrf.mxu0
    %v9084 = vadd.f32 %v8891, %v9083
    %9085 = vmatprep.mubr.bf16.mxu0 %v6540
    %9086 = vmatmul.mubr.bf16.gmra.mxu0 %v6539
    %v9087 = vpop.f32.mrf.mxu0
    %v9088 = vadd.f32 %v8895, %v9087
    %v9089 = vpop.f32.mrf.mxu0
    %v9090 = vadd.f32 %v8897, %v9089
    %v9091 = vpop.f32.mrf.mxu0
    %v9092 = vadd.f32 %v8899, %v9091
    %v9093 = vpop.f32.mrf.mxu0
    %v9094 = vadd.f32 %v8901, %v9093
    %9095 = vmatprep.mubr.bf16.mxu0 %v6544
    %9096 = vmatmul.mubr.bf16.gmra.mxu0 %v6543
    %v9097 = vpop.f32.mrf.mxu0
    %v9098 = vadd.f32 %v8905, %v9097
    %v9099 = vpop.f32.mrf.mxu0
    %v9100 = vadd.f32 %v8907, %v9099
    %v9101 = vpop.f32.mrf.mxu0
    %v9102 = vadd.f32 %v8909, %v9101
    %v9103 = vpop.f32.mrf.mxu0
    %v9104 = vadd.f32 %v8911, %v9103
    %9105 = vmatprep.mubr.bf16.mxu0 %v6548
    %9106 = vmatmul.mubr.bf16.gmra.mxu0 %v6547
    %v9107 = vpop.f32.mrf.mxu0
    %v9108 = vadd.f32 %v8915, %v9107
    %v9109 = vpop.f32.mrf.mxu0
    %v9110 = vadd.f32 %v8917, %v9109
    %v9111 = vpop.f32.mrf.mxu0
    %v9112 = vadd.f32 %v8919, %v9111
    %v9113 = vpop.f32.mrf.mxu0
    %v9114 = vadd.f32 %v8921, %v9113
    %9115 = vmatprep.mubr.bf16.mxu0 %v6552
    %9116 = vmatmul.mubr.bf16.gmra.mxu0 %v6551
    %v9117 = vpop.f32.mrf.mxu0
    %v9118 = vadd.f32 %v8925, %v9117
    %v9119 = vpop.f32.mrf.mxu0
    %v9120 = vadd.f32 %v8927, %v9119
    %v9121 = vpop.f32.mrf.mxu0
    %v9122 = vadd.f32 %v8929, %v9121
    %v9123 = vpop.f32.mrf.mxu0
    %v9124 = vadd.f32 %v8931, %v9123
    %9125 = vmatprep.mubr.bf16.mxu0 %v6556
    %9126 = vmatmul.mubr.bf16.gmra.mxu0 %v6555
    %v9127 = vpop.f32.mrf.mxu0
    %v9128 = vadd.f32 %v8935, %v9127
    %v9129 = vpop.f32.mrf.mxu0
    %v9130 = vadd.f32 %v8937, %v9129
    %v9131 = vpop.f32.mrf.mxu0
    %v9132 = vadd.f32 %v8939, %v9131
    %v9133 = vpop.f32.mrf.mxu0
    %v9134 = vadd.f32 %v8941, %v9133
    %9135 = vmatprep.mubr.bf16.mxu0 %v6560
    %9136 = vmatmul.mubr.bf16.gmra.mxu0 %v6559
    %v9137 = vpop.f32.mrf.mxu0
    %v9138 = vadd.f32 %v8945, %v9137
    %v9139 = vpop.f32.mrf.mxu0
    %v9140 = vadd.f32 %v8947, %v9139
    %v9141 = vpop.f32.mrf.mxu0
    %v9142 = vadd.f32 %v8949, %v9141
    %v9143 = vpop.f32.mrf.mxu0
    %v9144 = vadd.f32 %v8951, %v9143
    %9145 = vmatprep.mubr.bf16.mxu0 %v6564
    %9146 = vmatmul.mubr.bf16.gmra.mxu0 %v6563
    %v9147 = vpop.f32.mrf.mxu0
    %v9148 = vadd.f32 %v8955, %v9147
    %v9149 = vpop.f32.mrf.mxu0
    %v9150 = vadd.f32 %v8957, %v9149
    %v9151 = vpop.f32.mrf.mxu0
    %v9152 = vadd.f32 %v8959, %v9151
    %v9153 = vpop.f32.mrf.mxu0
    %v9154 = vadd.f32 %v8961, %v9153
    %9155 = vmatprep.mubr.bf16.mxu0 %v6568
    %9156 = vmatmul.mubr.bf16.gmra.mxu0 %v6567
    %v9157 = vpop.f32.mrf.mxu0
    %v9158 = vadd.f32 %v8965, %v9157
    %v9159 = vpop.f32.mrf.mxu0
    %v9160 = vadd.f32 %v8967, %v9159
    %v9161 = vpop.f32.mrf.mxu0
    %v9162 = vadd.f32 %v8969, %v9161
    %v9163 = vpop.f32.mrf.mxu0
    %v9164 = vadd.f32 %v8971, %v9163
    %9165 = vmatprep.mubr.bf16.mxu0 %v6572
    %9166 = vmatmul.mubr.bf16.gmra.mxu0 %v6571
    %v9167 = vpop.f32.mrf.mxu0
    %v9168 = vadd.f32 %v8975, %v9167
    %v9169 = vpop.f32.mrf.mxu0
    %v9170 = vadd.f32 %v8977, %v9169
    %v9171 = vpop.f32.mrf.mxu0
    %v9172 = vadd.f32 %v8979, %v9171
    %v9173 = vpop.f32.mrf.mxu0
    %v9174 = vadd.f32 %v8981, %v9173
    %9175 = vdwg.mxu0
    %9176 = vmatprep.subr.bf16.mxu0 0
    %9177 = vmatpush1.bf16.msra.mxu0 %v7625
    %9178 = vmatprep.subr.bf16.mxu0 0
    %9179 = vmatpush1.bf16.msra.mxu0 %v7618
    %9180 = vmatprep.subr.bf16.mxu0 0
    %9181 = vmatpush1.bf16.msra.mxu0 %v7611
    %9182 = vmatprep.subr.bf16.mxu0 0
    %9183 = vmatpush1.bf16.msra.mxu0 %v7604
    %9184 = vmatprep.subr.bf16.mxu0 0
    %9185 = vmatpush1.bf16.msra.mxu0 %v7597
    %9186 = vmatprep.subr.bf16.mxu0 0
    %9187 = vmatpush1.bf16.msra.mxu0 %v7590
    %9188 = vmatprep.subr.bf16.mxu0 0
    %9189 = vmatpush1.bf16.msra.mxu0 %v7583
    %9190 = vmatprep.subr.bf16.mxu0 0
    %9191 = vmatpush1.bf16.msra.mxu0 %v7576
    %9192 = vmatprep.subr.bf16.mxu0 0
    %9193 = vmatpush2.bf16.msra.mxu0 %v7681
    %9194 = vmatprep.subr.bf16.mxu0 0
    %9195 = vmatpush2.bf16.msra.mxu0 %v7674
    %9196 = vmatprep.subr.bf16.mxu0 0
    %9197 = vmatpush2.bf16.msra.mxu0 %v7667
    %9198 = vmatprep.subr.bf16.mxu0 0
    %9199 = vmatpush2.bf16.msra.mxu0 %v7660
    %9200 = vmatprep.subr.bf16.mxu0 0
    %9201 = vmatpush2.bf16.msra.mxu0 %v7653
    %9202 = vmatprep.subr.bf16.mxu0 0
    %9203 = vmatpush2.bf16.msra.mxu0 %v7646
    %9204 = vmatprep.subr.bf16.mxu0 0
    %9205 = vmatpush2.bf16.msra.mxu0 %v7639
    %9206 = vmatprep.subr.bf16.mxu0 0
    %9207 = vmatpush2.bf16.msra.mxu0 %v7632
    %9208 = vmatprep.mubr.bf16.mxu0 %v6510
    %9209 = vmatmul.mubr.bf16.gmra.mxu0 %v6509
    %v9210 = vpop.f32.mrf.mxu0
    %v9211 = vadd.f32 %v6858, %v9210
    %v9212 = vpop.f32.mrf.mxu0
    %v9213 = vpop.f32.mrf.mxu0
    %v9214 = vadd.f32 %v6858, %v9213
    %v9215 = vpop.f32.mrf.mxu0
    %9216 = vmatprep.mubr.bf16.mxu0 %v6514
    %9217 = vmatmul.mubr.bf16.gmra.mxu0 %v6513
    %v9218 = vpop.f32.mrf.mxu0
    %v9219 = vadd.f32 %v6858, %v9218
    %v9220 = vpop.f32.mrf.mxu0
    %v9221 = vpop.f32.mrf.mxu0
    %v9222 = vadd.f32 %v6858, %v9221
    %v9223 = vpop.f32.mrf.mxu0
    %9224 = vmatprep.mubr.bf16.mxu0 %v6518
    %9225 = vmatmul.mubr.bf16.gmra.mxu0 %v6517
    %v9226 = vpop.f32.mrf.mxu0
    %v9227 = vadd.f32 %v6858, %v9226
    %v9228 = vpop.f32.mrf.mxu0
    %v9229 = vpop.f32.mrf.mxu0
    %v9230 = vadd.f32 %v6858, %v9229
    %v9231 = vpop.f32.mrf.mxu0
    %9232 = vmatprep.mubr.bf16.mxu0 %v6522
    %9233 = vmatmul.mubr.bf16.gmra.mxu0 %v6521
    %v9234 = vpop.f32.mrf.mxu0
    %v9235 = vadd.f32 %v6858, %v9234
    %v9236 = vpop.f32.mrf.mxu0
    %v9237 = vpop.f32.mrf.mxu0
    %v9238 = vadd.f32 %v6858, %v9237
    %v9239 = vpop.f32.mrf.mxu0
    %9240 = vmatprep.mubr.bf16.mxu0 %v6526
    %9241 = vmatmul.mubr.bf16.gmra.mxu0 %v6525
    %v9242 = vpop.f32.mrf.mxu0
    %v9243 = vadd.f32 %v6858, %v9242
    %v9244 = vpop.f32.mrf.mxu0
    %v9245 = vpop.f32.mrf.mxu0
    %v9246 = vadd.f32 %v6858, %v9245
    %v9247 = vpop.f32.mrf.mxu0
    %9248 = vmatprep.mubr.bf16.mxu0 %v6530
    %9249 = vmatmul.mubr.bf16.gmra.mxu0 %v6529
    %v9250 = vpop.f32.mrf.mxu0
    %v9251 = vadd.f32 %v6858, %v9250
    %v9252 = vpop.f32.mrf.mxu0
    %v9253 = vpop.f32.mrf.mxu0
    %v9254 = vadd.f32 %v6858, %v9253
    %v9255 = vpop.f32.mrf.mxu0
    %9256 = vmatprep.mubr.bf16.mxu0 %v6534
    %9257 = vmatmul.mubr.bf16.gmra.mxu0 %v6533
    %v9258 = vpop.f32.mrf.mxu0
    %v9259 = vadd.f32 %v6858, %v9258
    %v9260 = vpop.f32.mrf.mxu0
    %v9261 = vpop.f32.mrf.mxu0
    %v9262 = vadd.f32 %v6858, %v9261
    %v9263 = vpop.f32.mrf.mxu0
    %9264 = vmatprep.mubr.bf16.mxu0 %v6538
    %9265 = vmatmul.mubr.bf16.gmra.mxu0 %v6537
    %v9266 = vpop.f32.mrf.mxu0
    %v9267 = vadd.f32 %v6858, %v9266
    %v9268 = vpop.f32.mrf.mxu0
    %v9269 = vpop.f32.mrf.mxu0
    %v9270 = vadd.f32 %v6858, %v9269
    %v9271 = vpop.f32.mrf.mxu0
    %9272 = vmatprep.mubr.bf16.mxu0 %v6542
    %9273 = vmatmul.mubr.bf16.gmra.mxu0 %v6541
    %v9274 = vpop.f32.mrf.mxu0
    %v9275 = vadd.f32 %v6858, %v9274
    %v9276 = vpop.f32.mrf.mxu0
    %v9277 = vpop.f32.mrf.mxu0
    %v9278 = vadd.f32 %v6858, %v9277
    %v9279 = vpop.f32.mrf.mxu0
    %9280 = vmatprep.mubr.bf16.mxu0 %v6546
    %9281 = vmatmul.mubr.bf16.gmra.mxu0 %v6545
    %v9282 = vpop.f32.mrf.mxu0
    %v9283 = vadd.f32 %v6858, %v9282
    %v9284 = vpop.f32.mrf.mxu0
    %v9285 = vpop.f32.mrf.mxu0
    %v9286 = vadd.f32 %v6858, %v9285
    %v9287 = vpop.f32.mrf.mxu0
    %9288 = vmatprep.mubr.bf16.mxu0 %v6550
    %9289 = vmatmul.mubr.bf16.gmra.mxu0 %v6549
    %v9290 = vpop.f32.mrf.mxu0
    %v9291 = vadd.f32 %v6858, %v9290
    %v9292 = vpop.f32.mrf.mxu0
    %v9293 = vpop.f32.mrf.mxu0
    %v9294 = vadd.f32 %v6858, %v9293
    %v9295 = vpop.f32.mrf.mxu0
    %9296 = vmatprep.mubr.bf16.mxu0 %v6554
    %9297 = vmatmul.mubr.bf16.gmra.mxu0 %v6553
    %v9298 = vpop.f32.mrf.mxu0
    %v9299 = vadd.f32 %v6858, %v9298
    %v9300 = vpop.f32.mrf.mxu0
    %v9301 = vpop.f32.mrf.mxu0
    %v9302 = vadd.f32 %v6858, %v9301
    %v9303 = vpop.f32.mrf.mxu0
    %9304 = vmatprep.mubr.bf16.mxu0 %v6558
    %9305 = vmatmul.mubr.bf16.gmra.mxu0 %v6557
    %v9306 = vpop.f32.mrf.mxu0
    %v9307 = vadd.f32 %v6858, %v9306
    %v9308 = vpop.f32.mrf.mxu0
    %v9309 = vpop.f32.mrf.mxu0
    %v9310 = vadd.f32 %v6858, %v9309
    %v9311 = vpop.f32.mrf.mxu0
    %9312 = vmatprep.mubr.bf16.mxu0 %v6562
    %9313 = vmatmul.mubr.bf16.gmra.mxu0 %v6561
    %v9314 = vpop.f32.mrf.mxu0
    %v9315 = vadd.f32 %v6858, %v9314
    %v9316 = vpop.f32.mrf.mxu0
    %v9317 = vpop.f32.mrf.mxu0
    %v9318 = vadd.f32 %v6858, %v9317
    %v9319 = vpop.f32.mrf.mxu0
    %9320 = vmatprep.mubr.bf16.mxu0 %v6566
    %9321 = vmatmul.mubr.bf16.gmra.mxu0 %v6565
    %v9322 = vpop.f32.mrf.mxu0
    %v9323 = vadd.f32 %v6858, %v9322
    %v9324 = vpop.f32.mrf.mxu0
    %v9325 = vpop.f32.mrf.mxu0
    %v9326 = vadd.f32 %v6858, %v9325
    %v9327 = vpop.f32.mrf.mxu0
    %9328 = vmatprep.mubr.bf16.mxu0 %v6570
    %9329 = vmatmul.mubr.bf16.gmra.mxu0 %v6569
    %v9330 = vpop.f32.mrf.mxu0
    %v9331 = vadd.f32 %v6858, %v9330
    %v9332 = vpop.f32.mrf.mxu0
    %v9333 = vpop.f32.mrf.mxu0
    %v9334 = vadd.f32 %v6858, %v9333
    %v9335 = vpop.f32.mrf.mxu0
    %9336 = vdwg.mxu0
    %9337 = vmatprep.subr.bf16.mxu0 0
    %9338 = vmatpush1.bf16.msra.mxu0 %v7737
    %9339 = vmatprep.subr.bf16.mxu0 0
    %9340 = vmatpush1.bf16.msra.mxu0 %v7730
    %9341 = vmatprep.subr.bf16.mxu0 0
    %9342 = vmatpush1.bf16.msra.mxu0 %v7723
    %9343 = vmatprep.subr.bf16.mxu0 0
    %9344 = vmatpush1.bf16.msra.mxu0 %v7716
    %9345 = vmatprep.subr.bf16.mxu0 0
    %9346 = vmatpush1.bf16.msra.mxu0 %v7709
    %9347 = vmatprep.subr.bf16.mxu0 0
    %9348 = vmatpush1.bf16.msra.mxu0 %v7702
    %9349 = vmatprep.subr.bf16.mxu0 0
    %9350 = vmatpush1.bf16.msra.mxu0 %v7695
    %9351 = vmatprep.subr.bf16.mxu0 0
    %9352 = vmatpush1.bf16.msra.mxu0 %v7688
    %9353 = vmatprep.subr.bf16.mxu0 0
    %9354 = vmatpush2.bf16.msra.mxu0 %v7793
    %9355 = vmatprep.subr.bf16.mxu0 0
    %9356 = vmatpush2.bf16.msra.mxu0 %v7786
    %9357 = vmatprep.subr.bf16.mxu0 0
    %9358 = vmatpush2.bf16.msra.mxu0 %v7779
    %9359 = vmatprep.subr.bf16.mxu0 0
    %9360 = vmatpush2.bf16.msra.mxu0 %v7772
    %9361 = vmatprep.subr.bf16.mxu0 0
    %9362 = vmatpush2.bf16.msra.mxu0 %v7765
    %9363 = vmatprep.subr.bf16.mxu0 0
    %9364 = vmatpush2.bf16.msra.mxu0 %v7758
    %9365 = vmatprep.subr.bf16.mxu0 0
    %9366 = vmatpush2.bf16.msra.mxu0 %v7751
    %9367 = vmatprep.subr.bf16.mxu0 0
    %9368 = vmatpush2.bf16.msra.mxu0 %v7744
    %9369 = vmatprep.mubr.bf16.mxu0 %v6512
    %9370 = vmatmul.mubr.bf16.gmra.mxu0 %v6511
    %v9371 = vpop.f32.mrf.mxu0
    %v9372 = vadd.f32 %v9211, %v9371
    %v9373 = vpop.f32.mrf.mxu0
    %v9374 = vpop.f32.mrf.mxu0
    %v9375 = vadd.f32 %v9214, %v9374
    %v9376 = vpop.f32.mrf.mxu0
    %9377 = vmatprep.mubr.bf16.mxu0 %v6516
    %9378 = vmatmul.mubr.bf16.gmra.mxu0 %v6515
    %v9379 = vpop.f32.mrf.mxu0
    %v9380 = vadd.f32 %v9219, %v9379
    %v9381 = vpop.f32.mrf.mxu0
    %v9382 = vpop.f32.mrf.mxu0
    %v9383 = vadd.f32 %v9222, %v9382
    %v9384 = vpop.f32.mrf.mxu0
    %9385 = vmatprep.mubr.bf16.mxu0 %v6520
    %9386 = vmatmul.mubr.bf16.gmra.mxu0 %v6519
    %v9387 = vpop.f32.mrf.mxu0
    %v9388 = vadd.f32 %v9227, %v9387
    %v9389 = vpop.f32.mrf.mxu0
    %v9390 = vpop.f32.mrf.mxu0
    %v9391 = vadd.f32 %v9230, %v9390
    %v9392 = vpop.f32.mrf.mxu0
    %9393 = vmatprep.mubr.bf16.mxu0 %v6524
    %9394 = vmatmul.mubr.bf16.gmra.mxu0 %v6523
    %v9395 = vpop.f32.mrf.mxu0
    %v9396 = vadd.f32 %v9235, %v9395
    %v9397 = vpop.f32.mrf.mxu0
    %v9398 = vpop.f32.mrf.mxu0
    %v9399 = vadd.f32 %v9238, %v9398
    %v9400 = vpop.f32.mrf.mxu0
    %9401 = vmatprep.mubr.bf16.mxu0 %v6528
    %9402 = vmatmul.mubr.bf16.gmra.mxu0 %v6527
    %v9403 = vpop.f32.mrf.mxu0
    %v9404 = vadd.f32 %v9243, %v9403
    %v9405 = vpop.f32.mrf.mxu0
    %v9406 = vpop.f32.mrf.mxu0
    %v9407 = vadd.f32 %v9246, %v9406
    %v9408 = vpop.f32.mrf.mxu0
    %9409 = vmatprep.mubr.bf16.mxu0 %v6532
    %9410 = vmatmul.mubr.bf16.gmra.mxu0 %v6531
    %v9411 = vpop.f32.mrf.mxu0
    %v9412 = vadd.f32 %v9251, %v9411
    %v9413 = vpop.f32.mrf.mxu0
    %v9414 = vpop.f32.mrf.mxu0
    %v9415 = vadd.f32 %v9254, %v9414
    %v9416 = vpop.f32.mrf.mxu0
    %9417 = vmatprep.mubr.bf16.mxu0 %v6536
    %9418 = vmatmul.mubr.bf16.gmra.mxu0 %v6535
    %v9419 = vpop.f32.mrf.mxu0
    %v9420 = vadd.f32 %v9259, %v9419
    %v9421 = vpop.f32.mrf.mxu0
    %v9422 = vpop.f32.mrf.mxu0
    %v9423 = vadd.f32 %v9262, %v9422
    %v9424 = vpop.f32.mrf.mxu0
    %9425 = vmatprep.mubr.bf16.mxu0 %v6540
    %9426 = vmatmul.mubr.bf16.gmra.mxu0 %v6539
    %v9427 = vpop.f32.mrf.mxu0
    %v9428 = vadd.f32 %v9267, %v9427
    %v9429 = vpop.f32.mrf.mxu0
    %v9430 = vpop.f32.mrf.mxu0
    %v9431 = vadd.f32 %v9270, %v9430
    %v9432 = vpop.f32.mrf.mxu0
    %9433 = vmatprep.mubr.bf16.mxu0 %v6544
    %9434 = vmatmul.mubr.bf16.gmra.mxu0 %v6543
    %v9435 = vpop.f32.mrf.mxu0
    %v9436 = vadd.f32 %v9275, %v9435
    %v9437 = vpop.f32.mrf.mxu0
    %v9438 = vpop.f32.mrf.mxu0
    %v9439 = vadd.f32 %v9278, %v9438
    %v9440 = vpop.f32.mrf.mxu0
    %9441 = vmatprep.mubr.bf16.mxu0 %v6548
    %9442 = vmatmul.mubr.bf16.gmra.mxu0 %v6547
    %v9443 = vpop.f32.mrf.mxu0
    %v9444 = vadd.f32 %v9283, %v9443
    %v9445 = vpop.f32.mrf.mxu0
    %v9446 = vpop.f32.mrf.mxu0
    %v9447 = vadd.f32 %v9286, %v9446
    %v9448 = vpop.f32.mrf.mxu0
    %9449 = vmatprep.mubr.bf16.mxu0 %v6552
    %9450 = vmatmul.mubr.bf16.gmra.mxu0 %v6551
    %v9451 = vpop.f32.mrf.mxu0
    %v9452 = vadd.f32 %v9291, %v9451
    %v9453 = vpop.f32.mrf.mxu0
    %v9454 = vpop.f32.mrf.mxu0
    %v9455 = vadd.f32 %v9294, %v9454
    %v9456 = vpop.f32.mrf.mxu0
    %9457 = vmatprep.mubr.bf16.mxu0 %v6556
    %9458 = vmatmul.mubr.bf16.gmra.mxu0 %v6555
    %v9459 = vpop.f32.mrf.mxu0
    %v9460 = vadd.f32 %v9299, %v9459
    %v9461 = vpop.f32.mrf.mxu0
    %v9462 = vpop.f32.mrf.mxu0
    %v9463 = vadd.f32 %v9302, %v9462
    %v9464 = vpop.f32.mrf.mxu0
    %9465 = vmatprep.mubr.bf16.mxu0 %v6560
    %9466 = vmatmul.mubr.bf16.gmra.mxu0 %v6559
    %v9467 = vpop.f32.mrf.mxu0
    %v9468 = vadd.f32 %v9307, %v9467
    %v9469 = vpop.f32.mrf.mxu0
    %v9470 = vpop.f32.mrf.mxu0
    %v9471 = vadd.f32 %v9310, %v9470
    %v9472 = vpop.f32.mrf.mxu0
    %9473 = vmatprep.mubr.bf16.mxu0 %v6564
    %9474 = vmatmul.mubr.bf16.gmra.mxu0 %v6563
    %v9475 = vpop.f32.mrf.mxu0
    %v9476 = vadd.f32 %v9315, %v9475
    %v9477 = vpop.f32.mrf.mxu0
    %v9478 = vpop.f32.mrf.mxu0
    %v9479 = vadd.f32 %v9318, %v9478
    %v9480 = vpop.f32.mrf.mxu0
    %9481 = vmatprep.mubr.bf16.mxu0 %v6568
    %9482 = vmatmul.mubr.bf16.gmra.mxu0 %v6567
    %v9483 = vpop.f32.mrf.mxu0
    %v9484 = vadd.f32 %v9323, %v9483
    %v9485 = vpop.f32.mrf.mxu0
    %v9486 = vpop.f32.mrf.mxu0
    %v9487 = vadd.f32 %v9326, %v9486
    %v9488 = vpop.f32.mrf.mxu0
    %9489 = vmatprep.mubr.bf16.mxu0 %v6572
    %9490 = vmatmul.mubr.bf16.gmra.mxu0 %v6571
    %v9491 = vpop.f32.mrf.mxu0
    %v9492 = vadd.f32 %v9331, %v9491
    %v9493 = vpop.f32.mrf.mxu0
    %v9494 = vpop.f32.mrf.mxu0
    %v9495 = vadd.f32 %v9334, %v9494
    %v9496 = vpop.f32.mrf.mxu0
    %9497 = vdwg.mxu0
    %v9498 = vmax.f32 %v8246, 0.0
    %v9499 = vmax.f32 %v8248, 0.0
    %v9500 = vmax.f32 %v8632, 0.0
    %v9501 = vmax.f32 %v8634, 0.0
    %v9502 = vmax.f32 %v9018, 0.0
    %v9503 = vmax.f32 %v9020, 0.0
    %v9504 = vmax.f32 %v9372, 0.0
    %v9505 = vmax.f32 %v8250, 0.0
    %v9506 = vmax.f32 %v8252, 0.0
    %v9507 = vmax.f32 %v8636, 0.0
    %v9508 = vmax.f32 %v8638, 0.0
    %v9509 = vmax.f32 %v9022, 0.0
    %v9510 = vmax.f32 %v9024, 0.0
    %v9511 = vmax.f32 %v9375, 0.0
    %v9512 = vmax.f32 %v8256, 0.0
    %v9513 = vmax.f32 %v8258, 0.0
    %v9514 = vmax.f32 %v8642, 0.0
    %v9515 = vmax.f32 %v8644, 0.0
    %v9516 = vmax.f32 %v9028, 0.0
    %v9517 = vmax.f32 %v9030, 0.0
    %v9518 = vmax.f32 %v9380, 0.0
    %v9519 = vmax.f32 %v8260, 0.0
    %v9520 = vmax.f32 %v8262, 0.0
    %v9521 = vmax.f32 %v8646, 0.0
    %v9522 = vmax.f32 %v8648, 0.0
    %v9523 = vmax.f32 %v9032, 0.0
    %v9524 = vmax.f32 %v9034, 0.0
    %v9525 = vmax.f32 %v9383, 0.0
    %v9526 = vmax.f32 %v8266, 0.0
    %v9527 = vmax.f32 %v8268, 0.0
    %v9528 = vmax.f32 %v8652, 0.0
    %v9529 = vmax.f32 %v8654, 0.0
    %v9530 = vmax.f32 %v9038, 0.0
    %v9531 = vmax.f32 %v9040, 0.0
    %v9532 = vmax.f32 %v9388, 0.0
    %v9533 = vmax.f32 %v8270, 0.0
    %v9534 = vmax.f32 %v8272, 0.0
    %v9535 = vmax.f32 %v8656, 0.0
    %v9536 = vmax.f32 %v8658, 0.0
    %v9537 = vmax.f32 %v9042, 0.0
    %v9538 = vmax.f32 %v9044, 0.0
    %v9539 = vmax.f32 %v9391, 0.0
    %v9540 = vmax.f32 %v8276, 0.0
    %v9541 = vmax.f32 %v8278, 0.0
    %v9542 = vmax.f32 %v8662, 0.0
    %v9543 = vmax.f32 %v8664, 0.0
    %v9544 = vmax.f32 %v9048, 0.0
    %v9545 = vmax.f32 %v9050, 0.0
    %v9546 = vmax.f32 %v9396, 0.0
    %v9547 = vmax.f32 %v8280, 0.0
    %v9548 = vmax.f32 %v8282, 0.0
    %v9549 = vmax.f32 %v8666, 0.0
    %v9550 = vmax.f32 %v8668, 0.0
    %v9551 = vmax.f32 %v9052, 0.0
    %v9552 = vmax.f32 %v9054, 0.0
    %v9553 = vmax.f32 %v9399, 0.0
    %v9554 = vmax.f32 %v8286, 0.0
    %v9555 = vmax.f32 %v8288, 0.0
    %v9556 = vmax.f32 %v8672, 0.0
    %v9557 = vmax.f32 %v8674, 0.0
    %v9558 = vmax.f32 %v9058, 0.0
    %v9559 = vmax.f32 %v9060, 0.0
    %v9560 = vmax.f32 %v9404, 0.0
    %v9561 = vmax.f32 %v8290, 0.0
    %v9562 = vmax.f32 %v8292, 0.0
    %v9563 = vmax.f32 %v8676, 0.0
    %v9564 = vmax.f32 %v8678, 0.0
    %v9565 = vmax.f32 %v9062, 0.0
    %v9566 = vmax.f32 %v9064, 0.0
    %v9567 = vmax.f32 %v9407, 0.0
    %v9568 = vmax.f32 %v8296, 0.0
    %v9569 = vmax.f32 %v8298, 0.0
    %v9570 = vmax.f32 %v8682, 0.0
    %v9571 = vmax.f32 %v8684, 0.0
    %v9572 = vmax.f32 %v9068, 0.0
    %v9573 = vmax.f32 %v9070, 0.0
    %v9574 = vmax.f32 %v9412, 0.0
    %v9575 = vmax.f32 %v8300, 0.0
    %v9576 = vmax.f32 %v8302, 0.0
    %v9577 = vmax.f32 %v8686, 0.0
    %v9578 = vmax.f32 %v8688, 0.0
    %v9579 = vmax.f32 %v9072, 0.0
    %v9580 = vmax.f32 %v9074, 0.0
    %v9581 = vmax.f32 %v9415, 0.0
    %v9582 = vmax.f32 %v8306, 0.0
    %v9583 = vmax.f32 %v8308, 0.0
    %v9584 = vmax.f32 %v8692, 0.0
    %v9585 = vmax.f32 %v8694, 0.0
    %v9586 = vmax.f32 %v9078, 0.0
    %v9587 = vmax.f32 %v9080, 0.0
    %v9588 = vmax.f32 %v9420, 0.0
    %v9589 = vmax.f32 %v8310, 0.0
    %v9590 = vmax.f32 %v8312, 0.0
    %v9591 = vmax.f32 %v8696, 0.0
    %v9592 = vmax.f32 %v8698, 0.0
    %v9593 = vmax.f32 %v9082, 0.0
    %v9594 = vmax.f32 %v9084, 0.0
    %v9595 = vmax.f32 %v9423, 0.0
    %v9596 = vmax.f32 %v8316, 0.0
    %v9597 = vmax.f32 %v8318, 0.0
    %v9598 = vmax.f32 %v8702, 0.0
    %v9599 = vmax.f32 %v8704, 0.0
    %v9600 = vmax.f32 %v9088, 0.0
    %v9601 = vmax.f32 %v9090, 0.0
    %v9602 = vmax.f32 %v9428, 0.0
    %v9603 = vmax.f32 %v8320, 0.0
    %v9604 = vmax.f32 %v8322, 0.0
    %v9605 = vmax.f32 %v8706, 0.0
    %v9606 = vmax.f32 %v8708, 0.0
    %v9607 = vmax.f32 %v9092, 0.0
    %v9608 = vmax.f32 %v9094, 0.0
    %v9609 = vmax.f32 %v9431, 0.0
    %v9610 = vmax.f32 %v8326, 0.0
    %v9611 = vmax.f32 %v8328, 0.0
    %v9612 = vmax.f32 %v8712, 0.0
    %v9613 = vmax.f32 %v8714, 0.0
    %v9614 = vmax.f32 %v9098, 0.0
    %v9615 = vmax.f32 %v9100, 0.0
    %v9616 = vmax.f32 %v9436, 0.0
    %v9617 = vmax.f32 %v8330, 0.0
    %v9618 = vmax.f32 %v8332, 0.0
    %v9619 = vmax.f32 %v8716, 0.0
    %v9620 = vmax.f32 %v8718, 0.0
    %v9621 = vmax.f32 %v9102, 0.0
    %v9622 = vmax.f32 %v9104, 0.0
    %v9623 = vmax.f32 %v9439, 0.0
    %v9624 = vmax.f32 %v8336, 0.0
    %v9625 = vmax.f32 %v8338, 0.0
    %v9626 = vmax.f32 %v8722, 0.0
    %v9627 = vmax.f32 %v8724, 0.0
    %v9628 = vmax.f32 %v9108, 0.0
    %v9629 = vmax.f32 %v9110, 0.0
    %v9630 = vmax.f32 %v9444, 0.0
    %v9631 = vmax.f32 %v8340, 0.0
    %v9632 = vmax.f32 %v8342, 0.0
    %v9633 = vmax.f32 %v8726, 0.0
    %v9634 = vmax.f32 %v8728, 0.0
    %v9635 = vmax.f32 %v9112, 0.0
    %v9636 = vmax.f32 %v9114, 0.0
    %v9637 = vmax.f32 %v9447, 0.0
    %v9638 = vmax.f32 %v8346, 0.0
    %v9639 = vmax.f32 %v8348, 0.0
    %v9640 = vmax.f32 %v8732, 0.0
    %v9641 = vmax.f32 %v8734, 0.0
    %v9642 = vmax.f32 %v9118, 0.0
    %v9643 = vmax.f32 %v9120, 0.0
    %v9644 = vmax.f32 %v9452, 0.0
    %v9645 = vmax.f32 %v8350, 0.0
    %v9646 = vmax.f32 %v8352, 0.0
    %v9647 = vmax.f32 %v8736, 0.0
    %v9648 = vmax.f32 %v8738, 0.0
    %v9649 = vmax.f32 %v9122, 0.0
    %v9650 = vmax.f32 %v9124, 0.0
    %v9651 = vmax.f32 %v9455, 0.0
    %v9652 = vmax.f32 %v8356, 0.0
    %v9653 = vmax.f32 %v8358, 0.0
    %v9654 = vmax.f32 %v8742, 0.0
    %v9655 = vmax.f32 %v8744, 0.0
    %v9656 = vmax.f32 %v9128, 0.0
    %v9657 = vmax.f32 %v9130, 0.0
    %v9658 = vmax.f32 %v9460, 0.0
    %v9659 = vmax.f32 %v8360, 0.0
    %v9660 = vmax.f32 %v8362, 0.0
    %v9661 = vmax.f32 %v8746, 0.0
    %v9662 = vmax.f32 %v8748, 0.0
    %v9663 = vmax.f32 %v9132, 0.0
    %v9664 = vmax.f32 %v9134, 0.0
    %v9665 = vmax.f32 %v9463, 0.0
    %v9666 = vmax.f32 %v8366, 0.0
    %v9667 = vmax.f32 %v8368, 0.0
    %v9668 = vmax.f32 %v8752, 0.0
    %v9669 = vmax.f32 %v8754, 0.0
    %v9670 = vmax.f32 %v9138, 0.0
    %v9671 = vmax.f32 %v9140, 0.0
    %v9672 = vmax.f32 %v9468, 0.0
    %v9673 = vmax.f32 %v8370, 0.0
    %v9674 = vmax.f32 %v8372, 0.0
    %v9675 = vmax.f32 %v8756, 0.0
    %v9676 = vmax.f32 %v8758, 0.0
    %v9677 = vmax.f32 %v9142, 0.0
    %v9678 = vmax.f32 %v9144, 0.0
    %v9679 = vmax.f32 %v9471, 0.0
    %v9680 = vmax.f32 %v8376, 0.0
    %v9681 = vmax.f32 %v8378, 0.0
    %v9682 = vmax.f32 %v8762, 0.0
    %v9683 = vmax.f32 %v8764, 0.0
    %v9684 = vmax.f32 %v9148, 0.0
    %v9685 = vmax.f32 %v9150, 0.0
    %v9686 = vmax.f32 %v9476, 0.0
    %v9687 = vmax.f32 %v8380, 0.0
    %v9688 = vmax.f32 %v8382, 0.0
    %v9689 = vmax.f32 %v8766, 0.0
    %v9690 = vmax.f32 %v8768, 0.0
    %v9691 = vmax.f32 %v9152, 0.0
    %v9692 = vmax.f32 %v9154, 0.0
    %v9693 = vmax.f32 %v9479, 0.0
    %v9694 = vmax.f32 %v8386, 0.0
    %v9695 = vmax.f32 %v8388, 0.0
    %v9696 = vmax.f32 %v8772, 0.0
    %v9697 = vmax.f32 %v8774, 0.0
    %v9698 = vmax.f32 %v9158, 0.0
    %v9699 = vmax.f32 %v9160, 0.0
    %v9700 = vmax.f32 %v9484, 0.0
    %v9701 = vmax.f32 %v8390, 0.0
    %v9702 = vmax.f32 %v8392, 0.0
    %v9703 = vmax.f32 %v8776, 0.0
    %v9704 = vmax.f32 %v8778, 0.0
    %v9705 = vmax.f32 %v9162, 0.0
    %v9706 = vmax.f32 %v9164, 0.0
    %v9707 = vmax.f32 %v9487, 0.0
    %v9708 = vmax.f32 %v8396, 0.0
    %v9709 = vmax.f32 %v8398, 0.0
    %v9710 = vmax.f32 %v8782, 0.0
    %v9711 = vmax.f32 %v8784, 0.0
    %v9712 = vmax.f32 %v9168, 0.0
    %v9713 = vmax.f32 %v9170, 0.0
    %v9714 = vmax.f32 %v9492, 0.0
    %v9715 = vmax.f32 %v8400, 0.0
    %v9716 = vmax.f32 %v8402, 0.0
    %v9717 = vmax.f32 %v8786, 0.0
    %v9718 = vmax.f32 %v8788, 0.0
    %v9719 = vmax.f32 %v9172, 0.0
    %v9720 = vmax.f32 %v9174, 0.0
    %v9721 = vmax.f32 %v9495, 0.0
    %v9722 = vpack.c.bf16 %v9505, %v9498
    %v9723 = vpack.c.bf16 %v9506, %v9499
    %v9724 = vpack.c.bf16 %v9507, %v9500
    %v9725 = vpack.c.bf16 %v9508, %v9501
    %v9726 = vpack.c.bf16 %v9509, %v9502
    %v9727 = vpack.c.bf16 %v9510, %v9503
    %v9728 = vpack.c.bf16 %v9511, %v9504
    %v9729 = vpack.c.bf16 %v9519, %v9512
    %v9730 = vpack.c.bf16 %v9520, %v9513
    %v9731 = vpack.c.bf16 %v9521, %v9514
    %v9732 = vpack.c.bf16 %v9522, %v9515
    %v9733 = vpack.c.bf16 %v9523, %v9516
    %v9734 = vpack.c.bf16 %v9524, %v9517
    %v9735 = vpack.c.bf16 %v9525, %v9518
    %v9736 = vpack.c.bf16 %v9533, %v9526
    %v9737 = vpack.c.bf16 %v9534, %v9527
    %v9738 = vpack.c.bf16 %v9535, %v9528
    %v9739 = vpack.c.bf16 %v9536, %v9529
    %v9740 = vpack.c.bf16 %v9537, %v9530
    %v9741 = vpack.c.bf16 %v9538, %v9531
    %v9742 = vpack.c.bf16 %v9539, %v9532
    %v9743 = vpack.c.bf16 %v9547, %v9540
    %v9744 = vpack.c.bf16 %v9548, %v9541
    %v9745 = vpack.c.bf16 %v9549, %v9542
    %v9746 = vpack.c.bf16 %v9550, %v9543
    %v9747 = vpack.c.bf16 %v9551, %v9544
    %v9748 = vpack.c.bf16 %v9552, %v9545
    %v9749 = vpack.c.bf16 %v9553, %v9546
    %v9750 = vpack.c.bf16 %v9561, %v9554
    %v9751 = vpack.c.bf16 %v9562, %v9555
    %v9752 = vpack.c.bf16 %v9563, %v9556
    %v9753 = vpack.c.bf16 %v9564, %v9557
    %v9754 = vpack.c.bf16 %v9565, %v9558
    %v9755 = vpack.c.bf16 %v9566, %v9559
    %v9756 = vpack.c.bf16 %v9567, %v9560
    %v9757 = vpack.c.bf16 %v9575, %v9568
    %v9758 = vpack.c.bf16 %v9576, %v9569
    %v9759 = vpack.c.bf16 %v9577, %v9570
    %v9760 = vpack.c.bf16 %v9578, %v9571
    %v9761 = vpack.c.bf16 %v9579, %v9572
    %v9762 = vpack.c.bf16 %v9580, %v9573
    %v9763 = vpack.c.bf16 %v9581, %v9574
    %v9764 = vpack.c.bf16 %v9589, %v9582
    %v9765 = vpack.c.bf16 %v9590, %v9583
    %v9766 = vpack.c.bf16 %v9591, %v9584
    %v9767 = vpack.c.bf16 %v9592, %v9585
    %v9768 = vpack.c.bf16 %v9593, %v9586
    %v9769 = vpack.c.bf16 %v9594, %v9587
    %v9770 = vpack.c.bf16 %v9595, %v9588
    %v9771 = vpack.c.bf16 %v9603, %v9596
    %v9772 = vpack.c.bf16 %v9604, %v9597
    %v9773 = vpack.c.bf16 %v9605, %v9598
    %v9774 = vpack.c.bf16 %v9606, %v9599
    %v9775 = vpack.c.bf16 %v9607, %v9600
    %v9776 = vpack.c.bf16 %v9608, %v9601
    %v9777 = vpack.c.bf16 %v9609, %v9602
    %v9778 = vpack.c.bf16 %v9617, %v9610
    %v9779 = vpack.c.bf16 %v9618, %v9611
    %v9780 = vpack.c.bf16 %v9619, %v9612
    %v9781 = vpack.c.bf16 %v9620, %v9613
    %v9782 = vpack.c.bf16 %v9621, %v9614
    %v9783 = vpack.c.bf16 %v9622, %v9615
    %v9784 = vpack.c.bf16 %v9623, %v9616
    %v9785 = vpack.c.bf16 %v9631, %v9624
    %v9786 = vpack.c.bf16 %v9632, %v9625
    %v9787 = vpack.c.bf16 %v9633, %v9626
    %v9788 = vpack.c.bf16 %v9634, %v9627
    %v9789 = vpack.c.bf16 %v9635, %v9628
    %v9790 = vpack.c.bf16 %v9636, %v9629
    %v9791 = vpack.c.bf16 %v9637, %v9630
    %v9792 = vpack.c.bf16 %v9645, %v9638
    %v9793 = vpack.c.bf16 %v9646, %v9639
    %v9794 = vpack.c.bf16 %v9647, %v9640
    %v9795 = vpack.c.bf16 %v9648, %v9641
    %v9796 = vpack.c.bf16 %v9649, %v9642
    %v9797 = vpack.c.bf16 %v9650, %v9643
    %v9798 = vpack.c.bf16 %v9651, %v9644
    %v9799 = vpack.c.bf16 %v9659, %v9652
    %v9800 = vpack.c.bf16 %v9660, %v9653
    %v9801 = vpack.c.bf16 %v9661, %v9654
    %v9802 = vpack.c.bf16 %v9662, %v9655
    %v9803 = vpack.c.bf16 %v9663, %v9656
    %v9804 = vpack.c.bf16 %v9664, %v9657
    %v9805 = vpack.c.bf16 %v9665, %v9658
    %v9806 = vpack.c.bf16 %v9673, %v9666
    %v9807 = vpack.c.bf16 %v9674, %v9667
    %v9808 = vpack.c.bf16 %v9675, %v9668
    %v9809 = vpack.c.bf16 %v9676, %v9669
    %v9810 = vpack.c.bf16 %v9677, %v9670
    %v9811 = vpack.c.bf16 %v9678, %v9671
    %v9812 = vpack.c.bf16 %v9679, %v9672
    %v9813 = vpack.c.bf16 %v9687, %v9680
    %v9814 = vpack.c.bf16 %v9688, %v9681
    %v9815 = vpack.c.bf16 %v9689, %v9682
    %v9816 = vpack.c.bf16 %v9690, %v9683
    %v9817 = vpack.c.bf16 %v9691, %v9684
    %v9818 = vpack.c.bf16 %v9692, %v9685
    %v9819 = vpack.c.bf16 %v9693, %v9686
    %v9820 = vpack.c.bf16 %v9701, %v9694
    %v9821 = vpack.c.bf16 %v9702, %v9695
    %v9822 = vpack.c.bf16 %v9703, %v9696
    %v9823 = vpack.c.bf16 %v9704, %v9697
    %v9824 = vpack.c.bf16 %v9705, %v9698
    %v9825 = vpack.c.bf16 %v9706, %v9699
    %v9826 = vpack.c.bf16 %v9707, %v9700
    %v9827 = vpack.c.bf16 %v9715, %v9708
    %v9828 = vpack.c.bf16 %v9716, %v9709
    %v9829 = vpack.c.bf16 %v9717, %v9710
    %v9830 = vpack.c.bf16 %v9718, %v9711
    %v9831 = vpack.c.bf16 %v9719, %v9712
    %v9832 = vpack.c.bf16 %v9720, %v9713
    %v9833 = vpack.c.bf16 %v9721, %v9714
    %v9946 = vunpack.c.l.b16 %v9722
    %v9947 = vunpack.c.l.b16 %v9723
    %v9948 = vunpack.c.l.b16 %v9724
    %v9949 = vunpack.c.l.b16 %v9725
    %v9950 = vunpack.c.l.b16 %v9726
    %v9951 = vunpack.c.l.b16 %v9727
    %v9952 = vunpack.c.l.b16 %v9728
    %v9953 = vunpack.c.h.b16 %v9722
    %v9954 = vunpack.c.h.b16 %v9723
    %v9955 = vunpack.c.h.b16 %v9724
    %v9956 = vunpack.c.h.b16 %v9725
    %v9957 = vunpack.c.h.b16 %v9726
    %v9958 = vunpack.c.h.b16 %v9727
    %v9959 = vunpack.c.h.b16 %v9728
    %v9960 = vunpack.c.l.b16 %v9729
    %v9961 = vunpack.c.l.b16 %v9730
    %v9962 = vunpack.c.l.b16 %v9731
    %v9963 = vunpack.c.l.b16 %v9732
    %v9964 = vunpack.c.l.b16 %v9733
    %v9965 = vunpack.c.l.b16 %v9734
    %v9966 = vunpack.c.l.b16 %v9735
    %v9967 = vunpack.c.h.b16 %v9729
    %v9968 = vunpack.c.h.b16 %v9730
    %v9969 = vunpack.c.h.b16 %v9731
    %v9970 = vunpack.c.h.b16 %v9732
    %v9971 = vunpack.c.h.b16 %v9733
    %v9972 = vunpack.c.h.b16 %v9734
    %v9973 = vunpack.c.h.b16 %v9735
    %v9974 = vunpack.c.l.b16 %v9736
    %v9975 = vunpack.c.l.b16 %v9737
    %v9976 = vunpack.c.l.b16 %v9738
    %v9977 = vunpack.c.l.b16 %v9739
    %v9978 = vunpack.c.l.b16 %v9740
    %v9979 = vunpack.c.l.b16 %v9741
    %v9980 = vunpack.c.l.b16 %v9742
    %v9981 = vunpack.c.h.b16 %v9736
    %v9982 = vunpack.c.h.b16 %v9737
    %v9983 = vunpack.c.h.b16 %v9738
    %v9984 = vunpack.c.h.b16 %v9739
    %v9985 = vunpack.c.h.b16 %v9740
    %v9986 = vunpack.c.h.b16 %v9741
    %v9987 = vunpack.c.h.b16 %v9742
    %v9988 = vunpack.c.l.b16 %v9743
    %v9989 = vunpack.c.l.b16 %v9744
    %v9990 = vunpack.c.l.b16 %v9745
    %v9991 = vunpack.c.l.b16 %v9746
    %v9992 = vunpack.c.l.b16 %v9747
    %v9993 = vunpack.c.l.b16 %v9748
    %v9994 = vunpack.c.l.b16 %v9749
    %v9995 = vunpack.c.h.b16 %v9743
    %v9996 = vunpack.c.h.b16 %v9744
    %v9997 = vunpack.c.h.b16 %v9745
    %v9998 = vunpack.c.h.b16 %v9746
    %v9999 = vunpack.c.h.b16 %v9747
    %v10000 = vunpack.c.h.b16 %v9748
    %v10001 = vunpack.c.h.b16 %v9749
    %v10002 = vunpack.c.l.b16 %v9750
    %v10003 = vunpack.c.l.b16 %v9751
    %v10004 = vunpack.c.l.b16 %v9752
    %v10005 = vunpack.c.l.b16 %v9753
    %v10006 = vunpack.c.l.b16 %v9754
    %v10007 = vunpack.c.l.b16 %v9755
    %v10008 = vunpack.c.l.b16 %v9756
    %v10009 = vunpack.c.h.b16 %v9750
    %v10010 = vunpack.c.h.b16 %v9751
    %v10011 = vunpack.c.h.b16 %v9752
    %v10012 = vunpack.c.h.b16 %v9753
    %v10013 = vunpack.c.h.b16 %v9754
    %v10014 = vunpack.c.h.b16 %v9755
    %v10015 = vunpack.c.h.b16 %v9756
    %v10016 = vunpack.c.l.b16 %v9757
    %v10017 = vunpack.c.l.b16 %v9758
    %v10018 = vunpack.c.l.b16 %v9759
    %v10019 = vunpack.c.l.b16 %v9760
    %v10020 = vunpack.c.l.b16 %v9761
    %v10021 = vunpack.c.l.b16 %v9762
    %v10022 = vunpack.c.l.b16 %v9763
    %v10023 = vunpack.c.h.b16 %v9757
    %v10024 = vunpack.c.h.b16 %v9758
    %v10025 = vunpack.c.h.b16 %v9759
    %v10026 = vunpack.c.h.b16 %v9760
    %v10027 = vunpack.c.h.b16 %v9761
    %v10028 = vunpack.c.h.b16 %v9762
    %v10029 = vunpack.c.h.b16 %v9763
    %v10030 = vunpack.c.l.b16 %v9764
    %v10031 = vunpack.c.l.b16 %v9765
    %v10032 = vunpack.c.l.b16 %v9766
    %v10033 = vunpack.c.l.b16 %v9767
    %v10034 = vunpack.c.l.b16 %v9768
    %v10035 = vunpack.c.l.b16 %v9769
    %v10036 = vunpack.c.l.b16 %v9770
    %v10037 = vunpack.c.h.b16 %v9764
    %v10038 = vunpack.c.h.b16 %v9765
    %v10039 = vunpack.c.h.b16 %v9766
    %v10040 = vunpack.c.h.b16 %v9767
    %v10041 = vunpack.c.h.b16 %v9768
    %v10042 = vunpack.c.h.b16 %v9769
    %v10043 = vunpack.c.h.b16 %v9770
    %v10044 = vunpack.c.l.b16 %v9771
    %v10045 = vunpack.c.l.b16 %v9772
    %v10046 = vunpack.c.l.b16 %v9773
    %v10047 = vunpack.c.l.b16 %v9774
    %v10048 = vunpack.c.l.b16 %v9775
    %v10049 = vunpack.c.l.b16 %v9776
    %v10050 = vunpack.c.l.b16 %v9777
    %v10051 = vunpack.c.h.b16 %v9771
    %v10052 = vunpack.c.h.b16 %v9772
    %v10053 = vunpack.c.h.b16 %v9773
    %v10054 = vunpack.c.h.b16 %v9774
    %v10055 = vunpack.c.h.b16 %v9775
    %v10056 = vunpack.c.h.b16 %v9776
    %v10057 = vunpack.c.h.b16 %v9777
    %v10058 = vunpack.c.l.b16 %v9778
    %v10059 = vunpack.c.l.b16 %v9779
    %v10060 = vunpack.c.l.b16 %v9780
    %v10061 = vunpack.c.l.b16 %v9781
    %v10062 = vunpack.c.l.b16 %v9782
    %v10063 = vunpack.c.l.b16 %v9783
    %v10064 = vunpack.c.l.b16 %v9784
    %v10065 = vunpack.c.h.b16 %v9778
    %v10066 = vunpack.c.h.b16 %v9779
    %v10067 = vunpack.c.h.b16 %v9780
    %v10068 = vunpack.c.h.b16 %v9781
    %v10069 = vunpack.c.h.b16 %v9782
    %v10070 = vunpack.c.h.b16 %v9783
    %v10071 = vunpack.c.h.b16 %v9784
    %v10072 = vunpack.c.l.b16 %v9785
    %v10073 = vunpack.c.l.b16 %v9786
    %v10074 = vunpack.c.l.b16 %v9787
    %v10075 = vunpack.c.l.b16 %v9788
    %v10076 = vunpack.c.l.b16 %v9789
    %v10077 = vunpack.c.l.b16 %v9790
    %v10078 = vunpack.c.l.b16 %v9791
    %v10079 = vunpack.c.h.b16 %v9785
    %v10080 = vunpack.c.h.b16 %v9786
    %v10081 = vunpack.c.h.b16 %v9787
    %v10082 = vunpack.c.h.b16 %v9788
    %v10083 = vunpack.c.h.b16 %v9789
    %v10084 = vunpack.c.h.b16 %v9790
    %v10085 = vunpack.c.h.b16 %v9791
    %v10086 = vunpack.c.l.b16 %v9792
    %v10087 = vunpack.c.l.b16 %v9793
    %v10088 = vunpack.c.l.b16 %v9794
    %v10089 = vunpack.c.l.b16 %v9795
    %v10090 = vunpack.c.l.b16 %v9796
    %v10091 = vunpack.c.l.b16 %v9797
    %v10092 = vunpack.c.l.b16 %v9798
    %v10093 = vunpack.c.h.b16 %v9792
    %v10094 = vunpack.c.h.b16 %v9793
    %v10095 = vunpack.c.h.b16 %v9794
    %v10096 = vunpack.c.h.b16 %v9795
    %v10097 = vunpack.c.h.b16 %v9796
    %v10098 = vunpack.c.h.b16 %v9797
    %v10099 = vunpack.c.h.b16 %v9798
    %v10100 = vunpack.c.l.b16 %v9799
    %v10101 = vunpack.c.l.b16 %v9800
    %v10102 = vunpack.c.l.b16 %v9801
    %v10103 = vunpack.c.l.b16 %v9802
    %v10104 = vunpack.c.l.b16 %v9803
    %v10105 = vunpack.c.l.b16 %v9804
    %v10106 = vunpack.c.l.b16 %v9805
    %v10107 = vunpack.c.h.b16 %v9799
    %v10108 = vunpack.c.h.b16 %v9800
    %v10109 = vunpack.c.h.b16 %v9801
    %v10110 = vunpack.c.h.b16 %v9802
    %v10111 = vunpack.c.h.b16 %v9803
    %v10112 = vunpack.c.h.b16 %v9804
    %v10113 = vunpack.c.h.b16 %v9805
    %v10114 = vunpack.c.l.b16 %v9806
    %v10115 = vunpack.c.l.b16 %v9807
    %v10116 = vunpack.c.l.b16 %v9808
    %v10117 = vunpack.c.l.b16 %v9809
    %v10118 = vunpack.c.l.b16 %v9810
    %v10119 = vunpack.c.l.b16 %v9811
    %v10120 = vunpack.c.l.b16 %v9812
    %v10121 = vunpack.c.h.b16 %v9806
    %v10122 = vunpack.c.h.b16 %v9807
    %v10123 = vunpack.c.h.b16 %v9808
    %v10124 = vunpack.c.h.b16 %v9809
    %v10125 = vunpack.c.h.b16 %v9810
    %v10126 = vunpack.c.h.b16 %v9811
    %v10127 = vunpack.c.h.b16 %v9812
    %v10128 = vunpack.c.l.b16 %v9813
    %v10129 = vunpack.c.l.b16 %v9814
    %v10130 = vunpack.c.l.b16 %v9815
    %v10131 = vunpack.c.l.b16 %v9816
    %v10132 = vunpack.c.l.b16 %v9817
    %v10133 = vunpack.c.l.b16 %v9818
    %v10134 = vunpack.c.l.b16 %v9819
    %v10135 = vunpack.c.h.b16 %v9813
    %v10136 = vunpack.c.h.b16 %v9814
    %v10137 = vunpack.c.h.b16 %v9815
    %v10138 = vunpack.c.h.b16 %v9816
    %v10139 = vunpack.c.h.b16 %v9817
    %v10140 = vunpack.c.h.b16 %v9818
    %v10141 = vunpack.c.h.b16 %v9819
    %v10142 = vunpack.c.l.b16 %v9820
    %v10143 = vunpack.c.l.b16 %v9821
    %v10144 = vunpack.c.l.b16 %v9822
    %v10145 = vunpack.c.l.b16 %v9823
    %v10146 = vunpack.c.l.b16 %v9824
    %v10147 = vunpack.c.l.b16 %v9825
    %v10148 = vunpack.c.l.b16 %v9826
    %v10149 = vunpack.c.h.b16 %v9820
    %v10150 = vunpack.c.h.b16 %v9821
    %v10151 = vunpack.c.h.b16 %v9822
    %v10152 = vunpack.c.h.b16 %v9823
    %v10153 = vunpack.c.h.b16 %v9824
    %v10154 = vunpack.c.h.b16 %v9825
    %v10155 = vunpack.c.h.b16 %v9826
    %v10156 = vunpack.c.l.b16 %v9827
    %v10157 = vunpack.c.l.b16 %v9828
    %v10158 = vunpack.c.l.b16 %v9829
    %v10159 = vunpack.c.l.b16 %v9830
    %v10160 = vunpack.c.l.b16 %v9831
    %v10161 = vunpack.c.l.b16 %v9832
    %v10162 = vunpack.c.l.b16 %v9833
    %v10163 = vunpack.c.h.b16 %v9827
    %v10164 = vunpack.c.h.b16 %v9828
    %v10165 = vunpack.c.h.b16 %v9829
    %v10166 = vunpack.c.h.b16 %v9830
    %v10167 = vunpack.c.h.b16 %v9831
    %v10168 = vunpack.c.h.b16 %v9832
    %v10169 = vunpack.c.h.b16 %v9833
    %v10170 = vpack.c.b16 %v9947, %v9946
    %v10171 = vpack.c.b16 %v9949, %v9948
    %v10172 = vpack.c.b16 %v9951, %v9950
    %v10173 = vpack.c.b16 %v9952, %v9952
    %v10174 = vpack.c.b16 %v9954, %v9953
    %v10175 = vpack.c.b16 %v9956, %v9955
    %v10176 = vpack.c.b16 %v9958, %v9957
    %v10177 = vpack.c.b16 %v9959, %v9959
    %v10178 = vpack.c.b16 %v9961, %v9960
    %v10179 = vpack.c.b16 %v9963, %v9962
    %v10180 = vpack.c.b16 %v9965, %v9964
    %v10181 = vpack.c.b16 %v9966, %v9966
    %v10182 = vpack.c.b16 %v9968, %v9967
    %v10183 = vpack.c.b16 %v9970, %v9969
    %v10184 = vpack.c.b16 %v9972, %v9971
    %v10185 = vpack.c.b16 %v9973, %v9973
    %v10186 = vpack.c.b16 %v9975, %v9974
    %v10187 = vpack.c.b16 %v9977, %v9976
    %v10188 = vpack.c.b16 %v9979, %v9978
    %v10189 = vpack.c.b16 %v9980, %v9980
    %v10190 = vpack.c.b16 %v9982, %v9981
    %v10191 = vpack.c.b16 %v9984, %v9983
    %v10192 = vpack.c.b16 %v9986, %v9985
    %v10193 = vpack.c.b16 %v9987, %v9987
    %v10194 = vpack.c.b16 %v9989, %v9988
    %v10195 = vpack.c.b16 %v9991, %v9990
    %v10196 = vpack.c.b16 %v9993, %v9992
    %v10197 = vpack.c.b16 %v9994, %v9994
    %v10198 = vpack.c.b16 %v9996, %v9995
    %v10199 = vpack.c.b16 %v9998, %v9997
    %v10200 = vpack.c.b16 %v10000, %v9999
    %v10201 = vpack.c.b16 %v10001, %v10001
    %v10202 = vpack.c.b16 %v10003, %v10002
    %v10203 = vpack.c.b16 %v10005, %v10004
    %v10204 = vpack.c.b16 %v10007, %v10006
    %v10205 = vpack.c.b16 %v10008, %v10008
    %v10206 = vpack.c.b16 %v10010, %v10009
    %v10207 = vpack.c.b16 %v10012, %v10011
    %v10208 = vpack.c.b16 %v10014, %v10013
    %v10209 = vpack.c.b16 %v10015, %v10015
    %v10210 = vpack.c.b16 %v10017, %v10016
    %v10211 = vpack.c.b16 %v10019, %v10018
    %v10212 = vpack.c.b16 %v10021, %v10020
    %v10213 = vpack.c.b16 %v10022, %v10022
    %v10214 = vpack.c.b16 %v10024, %v10023
    %v10215 = vpack.c.b16 %v10026, %v10025
    %v10216 = vpack.c.b16 %v10028, %v10027
    %v10217 = vpack.c.b16 %v10029, %v10029
    %v10218 = vpack.c.b16 %v10031, %v10030
    %v10219 = vpack.c.b16 %v10033, %v10032
    %v10220 = vpack.c.b16 %v10035, %v10034
    %v10221 = vpack.c.b16 %v10036, %v10036
    %v10222 = vpack.c.b16 %v10038, %v10037
    %v10223 = vpack.c.b16 %v10040, %v10039
    %v10224 = vpack.c.b16 %v10042, %v10041
    %v10225 = vpack.c.b16 %v10043, %v10043
    %v10226 = vpack.c.b16 %v10045, %v10044
    %v10227 = vpack.c.b16 %v10047, %v10046
    %v10228 = vpack.c.b16 %v10049, %v10048
    %v10229 = vpack.c.b16 %v10050, %v10050
    %v10230 = vpack.c.b16 %v10052, %v10051
    %v10231 = vpack.c.b16 %v10054, %v10053
    %v10232 = vpack.c.b16 %v10056, %v10055
    %v10233 = vpack.c.b16 %v10057, %v10057
    %v10234 = vpack.c.b16 %v10059, %v10058
    %v10235 = vpack.c.b16 %v10061, %v10060
    %v10236 = vpack.c.b16 %v10063, %v10062
    %v10237 = vpack.c.b16 %v10064, %v10064
    %v10238 = vpack.c.b16 %v10066, %v10065
    %v10239 = vpack.c.b16 %v10068, %v10067
    %v10240 = vpack.c.b16 %v10070, %v10069
    %v10241 = vpack.c.b16 %v10071, %v10071
    %v10242 = vpack.c.b16 %v10073, %v10072
    %v10243 = vpack.c.b16 %v10075, %v10074
    %v10244 = vpack.c.b16 %v10077, %v10076
    %v10245 = vpack.c.b16 %v10078, %v10078
    %v10246 = vpack.c.b16 %v10080, %v10079
    %v10247 = vpack.c.b16 %v10082, %v10081
    %v10248 = vpack.c.b16 %v10084, %v10083
    %v10249 = vpack.c.b16 %v10085, %v10085
    %v10250 = vpack.c.b16 %v10087, %v10086
    %v10251 = vpack.c.b16 %v10089, %v10088
    %v10252 = vpack.c.b16 %v10091, %v10090
    %v10253 = vpack.c.b16 %v10092, %v10092
    %v10254 = vpack.c.b16 %v10094, %v10093
    %v10255 = vpack.c.b16 %v10096, %v10095
    %v10256 = vpack.c.b16 %v10098, %v10097
    %v10257 = vpack.c.b16 %v10099, %v10099
    %v10258 = vpack.c.b16 %v10101, %v10100
    %v10259 = vpack.c.b16 %v10103, %v10102
    %v10260 = vpack.c.b16 %v10105, %v10104
    %v10261 = vpack.c.b16 %v10106, %v10106
    %v10262 = vpack.c.b16 %v10108, %v10107
    %v10263 = vpack.c.b16 %v10110, %v10109
    %v10264 = vpack.c.b16 %v10112, %v10111
    %v10265 = vpack.c.b16 %v10113, %v10113
    %v10266 = vpack.c.b16 %v10115, %v10114
    %v10267 = vpack.c.b16 %v10117, %v10116
    %v10268 = vpack.c.b16 %v10119, %v10118
    %v10269 = vpack.c.b16 %v10120, %v10120
    %v10270 = vpack.c.b16 %v10122, %v10121
    %v10271 = vpack.c.b16 %v10124, %v10123
    %v10272 = vpack.c.b16 %v10126, %v10125
    %v10273 = vpack.c.b16 %v10127, %v10127
    %v10274 = vpack.c.b16 %v10129, %v10128
    %v10275 = vpack.c.b16 %v10131, %v10130
    %v10276 = vpack.c.b16 %v10133, %v10132
    %v10277 = vpack.c.b16 %v10134, %v10134
    %v10278 = vpack.c.b16 %v10136, %v10135
    %v10279 = vpack.c.b16 %v10138, %v10137
    %v10280 = vpack.c.b16 %v10140, %v10139
    %v10281 = vpack.c.b16 %v10141, %v10141
    %v10282 = vpack.c.b16 %v10143, %v10142
    %v10283 = vpack.c.b16 %v10145, %v10144
    %v10284 = vpack.c.b16 %v10147, %v10146
    %v10285 = vpack.c.b16 %v10148, %v10148
    %v10286 = vpack.c.b16 %v10150, %v10149
    %v10287 = vpack.c.b16 %v10152, %v10151
    %v10288 = vpack.c.b16 %v10154, %v10153
    %v10289 = vpack.c.b16 %v10155, %v10155
    %v10290 = vpack.c.b16 %v10157, %v10156
    %v10291 = vpack.c.b16 %v10159, %v10158
    %v10292 = vpack.c.b16 %v10161, %v10160
    %v10293 = vpack.c.b16 %v10162, %v10162
    %v10294 = vpack.c.b16 %v10164, %v10163
    %v10295 = vpack.c.b16 %v10166, %v10165
    %v10296 = vpack.c.b16 %v10168, %v10167
    %v10297 = vpack.c.b16 %v10169, %v10169
    %10426 = vst [vmem:[#allocation17] sm:$0xff] %v10170
    %10427 = vst [vmem:[#allocation17 + $0x8] sm:$0xff] %v10171
    %10428 = vst [vmem:[#allocation17 + $0x10] sm:$0xff] %v10172
    %10429 = vst [vmem:[#allocation17 + $0x18] sm:$0xf] %v10173
    %10430 = vst [vmem:[#allocation17 + $0x1c] sm:$0xff] %v10174
    %10431 = vst [vmem:[#allocation17 + $0x24] sm:$0xff] %v10175
    %10432 = vst [vmem:[#allocation17 + $0x2c] sm:$0xff] %v10176
    %10433 = vst [vmem:[#allocation17 + $0x34] sm:$0xf] %v10177
    %10434 = vst [vmem:[#allocation17 + $0x38] sm:$0xff] %v10178
    %10435 = vst [vmem:[#allocation17 + $0x40] sm:$0xff] %v10179
    %10436 = vst [vmem:[#allocation17 + $0x48] sm:$0xff] %v10180
    %10437 = vst [vmem:[#allocation17 + $0x50] sm:$0xf] %v10181
    %10438 = vst [vmem:[#allocation17 + $0x54] sm:$0xff] %v10182
    %10439 = vst [vmem:[#allocation17 + $0x5c] sm:$0xff] %v10183
    %10440 = vst [vmem:[#allocation17 + $0x64] sm:$0xff] %v10184
    %10441 = vst [vmem:[#allocation17 + $0x6c] sm:$0xf] %v10185
    %10442 = vst [vmem:[#allocation17 + $0x70] sm:$0xff] %v10186
    %10443 = vst [vmem:[#allocation17 + $0x78] sm:$0xff] %v10187
    %10444 = vst [vmem:[#allocation17 + $0x80] sm:$0xff] %v10188
    %10445 = vst [vmem:[#allocation17 + $0x88] sm:$0xf] %v10189
    %10446 = vst [vmem:[#allocation17 + $0x8c] sm:$0xff] %v10190
    %10447 = vst [vmem:[#allocation17 + $0x94] sm:$0xff] %v10191
    %10448 = vst [vmem:[#allocation17 + $0x9c] sm:$0xff] %v10192
    %10449 = vst [vmem:[#allocation17 + $0xa4] sm:$0xf] %v10193
    %10450 = vst [vmem:[#allocation17 + $0xa8] sm:$0xff] %v10194
    %10451 = vst [vmem:[#allocation17 + $0xb0] sm:$0xff] %v10195
    %10452 = vst [vmem:[#allocation17 + $0xb8] sm:$0xff] %v10196
    %10453 = vst [vmem:[#allocation17 + $0xc0] sm:$0xf] %v10197
    %10454 = vst [vmem:[#allocation17 + $0xc4] sm:$0xff] %v10198
    %10455 = vst [vmem:[#allocation17 + $0xcc] sm:$0xff] %v10199
    %10456 = vst [vmem:[#allocation17 + $0xd4] sm:$0xff] %v10200
    %10457 = vst [vmem:[#allocation17 + $0xdc] sm:$0xf] %v10201
    %10458 = vst [vmem:[#allocation17 + $0xe0] sm:$0xff] %v10202
    %10459 = vst [vmem:[#allocation17 + $0xe8] sm:$0xff] %v10203
    %10460 = vst [vmem:[#allocation17 + $0xf0] sm:$0xff] %v10204
    %10461 = vst [vmem:[#allocation17 + $0xf8] sm:$0xf] %v10205
    %10462 = vst [vmem:[#allocation17 + $0xfc] sm:$0xff] %v10206
    %10463 = vst [vmem:[#allocation17 + $0x104] sm:$0xff] %v10207
    %10464 = vst [vmem:[#allocation17 + $0x10c] sm:$0xff] %v10208
    %10465 = vst [vmem:[#allocation17 + $0x114] sm:$0xf] %v10209
    %10466 = vst [vmem:[#allocation17 + $0x118] sm:$0xff] %v10210
    %10467 = vst [vmem:[#allocation17 + $0x120] sm:$0xff] %v10211
    %10468 = vst [vmem:[#allocation17 + $0x128] sm:$0xff] %v10212
    %10469 = vst [vmem:[#allocation17 + $0x130] sm:$0xf] %v10213
    %10470 = vst [vmem:[#allocation17 + $0x134] sm:$0xff] %v10214
    %10471 = vst [vmem:[#allocation17 + $0x13c] sm:$0xff] %v10215
    %10472 = vst [vmem:[#allocation17 + $0x144] sm:$0xff] %v10216
    %10473 = vst [vmem:[#allocation17 + $0x14c] sm:$0xf] %v10217
    %10474 = vst [vmem:[#allocation17 + $0x150] sm:$0xff] %v10218
    %10475 = vst [vmem:[#allocation17 + $0x158] sm:$0xff] %v10219
    %10476 = vst [vmem:[#allocation17 + $0x160] sm:$0xff] %v10220
    %10477 = vst [vmem:[#allocation17 + $0x168] sm:$0xf] %v10221
    %10478 = vst [vmem:[#allocation17 + $0x16c] sm:$0xff] %v10222
    %10479 = vst [vmem:[#allocation17 + $0x174] sm:$0xff] %v10223
    %10480 = vst [vmem:[#allocation17 + $0x17c] sm:$0xff] %v10224
    %10481 = vst [vmem:[#allocation17 + $0x184] sm:$0xf] %v10225
    %10482 = vst [vmem:[#allocation17 + $0x188] sm:$0xff] %v10226
    %10483 = vst [vmem:[#allocation17 + $0x190] sm:$0xff] %v10227
    %10484 = vst [vmem:[#allocation17 + $0x198] sm:$0xff] %v10228
    %10485 = vst [vmem:[#allocation17 + $0x1a0] sm:$0xf] %v10229
    %10486 = vst [vmem:[#allocation17 + $0x1a4] sm:$0xff] %v10230
    %10487 = vst [vmem:[#allocation17 + $0x1ac] sm:$0xff] %v10231
    %10488 = vst [vmem:[#allocation17 + $0x1b4] sm:$0xff] %v10232
    %10489 = vst [vmem:[#allocation17 + $0x1bc] sm:$0xf] %v10233
    %10490 = vst [vmem:[#allocation17 + $0x1c0] sm:$0xff] %v10234
    %10491 = vst [vmem:[#allocation17 + $0x1c8] sm:$0xff] %v10235
    %10492 = vst [vmem:[#allocation17 + $0x1d0] sm:$0xff] %v10236
    %10493 = vst [vmem:[#allocation17 + $0x1d8] sm:$0xf] %v10237
    %10494 = vst [vmem:[#allocation17 + $0x1dc] sm:$0xff] %v10238
    %10495 = vst [vmem:[#allocation17 + $0x1e4] sm:$0xff] %v10239
    %10496 = vst [vmem:[#allocation17 + $0x1ec] sm:$0xff] %v10240
    %10497 = vst [vmem:[#allocation17 + $0x1f4] sm:$0xf] %v10241
    %10498 = vst [vmem:[#allocation17 + $0x1f8] sm:$0xff] %v10242
    %10499 = vst [vmem:[#allocation17 + $0x200] sm:$0xff] %v10243
    %10500 = vst [vmem:[#allocation17 + $0x208] sm:$0xff] %v10244
    %10501 = vst [vmem:[#allocation17 + $0x210] sm:$0xf] %v10245
    %10502 = vst [vmem:[#allocation17 + $0x214] sm:$0xff] %v10246
    %10503 = vst [vmem:[#allocation17 + $0x21c] sm:$0xff] %v10247
    %10504 = vst [vmem:[#allocation17 + $0x224] sm:$0xff] %v10248
    %10505 = vst [vmem:[#allocation17 + $0x22c] sm:$0xf] %v10249
    %10506 = vst [vmem:[#allocation17 + $0x230] sm:$0xff] %v10250
    %10507 = vst [vmem:[#allocation17 + $0x238] sm:$0xff] %v10251
    %10508 = vst [vmem:[#allocation17 + $0x240] sm:$0xff] %v10252
    %10509 = vst [vmem:[#allocation17 + $0x248] sm:$0xf] %v10253
    %10510 = vst [vmem:[#allocation17 + $0x24c] sm:$0xff] %v10254
    %10511 = vst [vmem:[#allocation17 + $0x254] sm:$0xff] %v10255
    %10512 = vst [vmem:[#allocation17 + $0x25c] sm:$0xff] %v10256
    %10513 = vst [vmem:[#allocation17 + $0x264] sm:$0xf] %v10257
    %10514 = vst [vmem:[#allocation17 + $0x268] sm:$0xff] %v10258
    %10515 = vst [vmem:[#allocation17 + $0x270] sm:$0xff] %v10259
    %10516 = vst [vmem:[#allocation17 + $0x278] sm:$0xff] %v10260
    %10517 = vst [vmem:[#allocation17 + $0x280] sm:$0xf] %v10261
    %10518 = vst [vmem:[#allocation17 + $0x284] sm:$0xff] %v10262
    %10519 = vst [vmem:[#allocation17 + $0x28c] sm:$0xff] %v10263
    %10520 = vst [vmem:[#allocation17 + $0x294] sm:$0xff] %v10264
    %10521 = vst [vmem:[#allocation17 + $0x29c] sm:$0xf] %v10265
    %10522 = vst [vmem:[#allocation17 + $0x2a0] sm:$0xff] %v10266
    %10523 = vst [vmem:[#allocation17 + $0x2a8] sm:$0xff] %v10267
    %10524 = vst [vmem:[#allocation17 + $0x2b0] sm:$0xff] %v10268
    %10525 = vst [vmem:[#allocation17 + $0x2b8] sm:$0xf] %v10269
    %10526 = vst [vmem:[#allocation17 + $0x2bc] sm:$0xff] %v10270
    %10527 = vst [vmem:[#allocation17 + $0x2c4] sm:$0xff] %v10271
    %10528 = vst [vmem:[#allocation17 + $0x2cc] sm:$0xff] %v10272
    %10529 = vst [vmem:[#allocation17 + $0x2d4] sm:$0xf] %v10273
    %10530 = vst [vmem:[#allocation17 + $0x2d8] sm:$0xff] %v10274
    %10531 = vst [vmem:[#allocation17 + $0x2e0] sm:$0xff] %v10275
    %10532 = vst [vmem:[#allocation17 + $0x2e8] sm:$0xff] %v10276
    %10533 = vst [vmem:[#allocation17 + $0x2f0] sm:$0xf] %v10277
    %10534 = vst [vmem:[#allocation17 + $0x2f4] sm:$0xff] %v10278
    %10535 = vst [vmem:[#allocation17 + $0x2fc] sm:$0xff] %v10279
    %10536 = vst [vmem:[#allocation17 + $0x304] sm:$0xff] %v10280
    %10537 = vst [vmem:[#allocation17 + $0x30c] sm:$0xf] %v10281
    %10538 = vst [vmem:[#allocation17 + $0x310] sm:$0xff] %v10282
    %10539 = vst [vmem:[#allocation17 + $0x318] sm:$0xff] %v10283
    %10540 = vst [vmem:[#allocation17 + $0x320] sm:$0xff] %v10284
    %10541 = vst [vmem:[#allocation17 + $0x328] sm:$0xf] %v10285
    %10542 = vst [vmem:[#allocation17 + $0x32c] sm:$0xff] %v10286
    %10543 = vst [vmem:[#allocation17 + $0x334] sm:$0xff] %v10287
    %10544 = vst [vmem:[#allocation17 + $0x33c] sm:$0xff] %v10288
    %10545 = vst [vmem:[#allocation17 + $0x344] sm:$0xf] %v10289
    %10546 = vst [vmem:[#allocation17 + $0x348] sm:$0xff] %v10290
    %10547 = vst [vmem:[#allocation17 + $0x350] sm:$0xff] %v10291
    %10548 = vst [vmem:[#allocation17 + $0x358] sm:$0xff] %v10292
    %10549 = vst [vmem:[#allocation17 + $0x360] sm:$0xf] %v10293
    %10550 = vst [vmem:[#allocation17 + $0x364] sm:$0xff] %v10294
    %10551 = vst [vmem:[#allocation17 + $0x36c] sm:$0xff] %v10295
    %10552 = vst [vmem:[#allocation17 + $0x374] sm:$0xff] %v10296
    %10553 = vst [vmem:[#allocation17 + $0x37c] sm:$0xf] %v10297
    // Predicated region
    $region90: #{tpu_custom_call.1} parent=1 // pred_check
      _
    $region91: #{tpu_custom_call.1} parent=1 // pred_check_branch
      %10555 = sbr.rel (0) target = $region93
    $region92: #{tpu_custom_call.1} parent=1 // pred_region
      %s10557 = ssub.s32 14336, 14336
      %10558 = vsyncadd [#allocation4], %s10557
      %s10559 = sshll.u32 [#allocation17], 4
      %s10560 = int_to_ptr.vmem [resolvable:$true] %s10559
      %10565 = dma.vmem_to_hbm [thread:$0]  %s10560, 14336, %s13, [#allocation4], 448, 448, 28
    $region93: #{tpu_custom_call.1} parent=1 // pred_fallthru
      _
    // Predicated region
    $region94: #{tpu_custom_call.1} parent=1 // pred_check
      _
    $region95: #{tpu_custom_call.1} parent=1 // pred_check_branch
      %10567 = sbr.rel (0) target = $region97
    $region96: #{tpu_custom_call.1} parent=1 // pred_region
      %10568 = dma.done [#allocation4], 14336
    $region97: #{tpu_custom_call.1} parent=1 // pred_fallthru
      _
    %10569 = vsyncpa [#allocation3], 1
    %10570 = vsyncpa [#allocation6], 1
    %10571 = vsyncpa [#allocation9], 1
    %10572 = vsyncpa [#allocation12], 1
    %10573 = vsyncpa [#allocation15], 1
    %10574 = vsyncpa [#allocation4], 1

</llo_original>
